<compile_context>
chip_gen: v7x
topology: tpu7x:2x2x1
jax: 0.10.0
libtpu: 0.0.40
codegen_flags: <defaults>
</compile_context>

<pallas_src>
import jax
import jax.numpy as jnp
from jax.experimental import pallas as pl
from jax.experimental.pallas import tpu as pltpu


# ----------------------------------------------------------------------------
# Pallas kernel: one grid step = Nb batch elements, everything lives in VMEM.
# ----------------------------------------------------------------------------
def _block17_kernel(x_ref,
                    w01_ref, b01_ref,          # fused Branch_0 + Branch_1_0a 1x1 (BN folded)
                    w1b_ref, b1b_ref,          # Branch_1 0b 1x7 taps (BN folded)
                    w1c_ref, b1c_ref,          # Branch_1 0c 7x1 taps (BN folded)
                    w2a_ref, w2b_ref, b2_ref,  # projection (scale folded in)
                    mw_ref, mh_ref,            # (7, M, 1) f32 edge masks
                    o_ref):
    Nb, H, W, C = x_ref.shape                  # C = padded (lane-dense) channels
    M = Nb * H * W
    x_bf = x_ref[...].reshape(M, C).astype(jnp.bfloat16)

    # ---- fused 1x1 convs for both branches: one (M,C)x(C,256) matmul -------
    y01 = jnp.maximum(
        jnp.dot(x_bf, w01_ref[...], preferred_element_type=jnp.float32)
        + b01_ref[...], 0.0)
    e1_bf = y01[:, :128].astype(jnp.bfloat16)   # Branch_0 (consumed by projection)
    a_bf = y01[:, 128:].astype(jnp.bfloat16)    # Branch_1 0a

    # ---- separable 7-tap convs: 256-col matmul chunks; tap slabs consumed in
    # ascending order; each shifted slab edge-handled by ONE mask multiply.
    def tap_conv(inp_bf, w_ref, b_ref, m_ref, unit):
        acc = None
        for c0 in range(0, 7 * 128, 256):
            c1 = min(c0 + 256, 7 * 128)
            z = jnp.dot(inp_bf, w_ref[:, c0:c1],
                        preferred_element_type=jnp.float32)     # (M, <=256) f32
            for k in range(c0 // 128, c1 // 128):
                d = k - 3                                       # tap offset
                j = k - c0 // 128
                zk = z[:, j * 128:(j + 1) * 128]                # lane-aligned slice
                if d == 0:
                    contrib = zk                                # center tap: no roll/mask
                else:
                    # contrib[i] = zk[i + d*unit] where in-bounds, else 0
                    contrib = pltpu.roll(zk, (-d * unit) % M, 0) * m_ref[k]
                acc = contrib if acc is None else acc + contrib
        return jnp.maximum(acc + b_ref[...], 0.0)

    t1b = tap_conv(a_bf, w1b_ref, b1b_ref, mw_ref, 1)                    # 1x7 along W
    e2 = tap_conv(t1b.astype(jnp.bfloat16), w1c_ref, b1c_ref, mh_ref, W)  # 7x1 along H

    # ---- projection (concat-free: two accumulating matmuls; scale folded in)
    up = jnp.dot(e2.astype(jnp.bfloat16), w2b_ref[...],
                 preferred_element_type=jnp.float32)
    up = up + jnp.dot(e1_bf, w2a_ref[...],
                      preferred_element_type=jnp.float32) + b2_ref[...]

    # ---- residual add + ReLU (re-read x from VMEM; keeps its live range short)
    out = jnp.maximum(x_ref[...].reshape(M, C) + up, 0.0)
    o_ref[...] = out.reshape(Nb, H, W, C).astype(o_ref.dtype)


def block17_pallas(x_nhwc, params, images_per_step=None):
    """x_nhwc: (N, H, W, C) float32.  Returns padded lane-dense (N, H, W, c_pad)."""
    N, H, W, C = x_nhwc.shape
    c_pad = params["w01"].shape[0]                 # padded channel count
    if c_pad != C:                                 # lane-dense channels
        x_nhwc = jnp.pad(x_nhwc, ((0, 0), (0, 0), (0, 0), (0, c_pad - C)))

    if images_per_step is None:
        # whole batch per step while it comfortably fits VMEM (amortizes the
        # ~0.35us fixed per-step pipeline overhead, raises M for MXU cadence).
        images_per_step = N if N * H * W <= 4096 else 1
    while N % images_per_step:                     # pick a divisor of N
        images_per_step -= 1
    Nb = images_per_step
    M = Nb * H * W

    # Per-tap 0/1 edge masks as lane-broadcast columns, built on the merged
    # (Nb*H*W) row index so pltpu.roll wrap never bleeds between images.
    flat = jnp.arange(M, dtype=jnp.int32)
    col = flat % W
    row = (flat % (H * W)) // W
    mw = jnp.stack([((col + (k - 3) >= 0) & (col + (k - 3) < W))
                    .astype(jnp.float32) for k in range(7)]).reshape(7, M, 1)
    mh = jnp.stack([((row + (k - 3) >= 0) & (row + (k - 3) < H))
                    .astype(jnp.float32) for k in range(7)]).reshape(7, M, 1)

    weight_keys = ("w01", "b01", "w1b", "b1b", "w1c", "b1c", "w2a", "w2b", "b2")
    const_args = [params[k] for k in weight_keys] + [mw, mh]

    def full_spec(a):
        nd = a.ndim
        return pl.BlockSpec(a.shape, lambda b, _nd=nd: (0,) * _nd)

    out = pl.pallas_call(
        _block17_kernel,
        out_shape=jax.ShapeDtypeStruct((N, H, W, c_pad), jnp.float32),
        grid_spec=pltpu.PrefetchScalarGridSpec(
            num_scalar_prefetch=0,
            grid=(N // Nb,),
            in_specs=[pl.BlockSpec((Nb, H, W, c_pad), lambda b: (b, 0, 0, 0))]
                     + [full_spec(a) for a in const_args],
            out_specs=pl.BlockSpec((Nb, H, W, c_pad), lambda b: (b, 0, 0, 0)),
        ),
        compiler_params=pltpu.CompilerParams(
            dimension_semantics=("parallel",)),
    )(x_nhwc, *const_args)
    # Keep the padded lane-dense layout for downstream consumers; depad only
    # where actually required (test harness below).
    return out


# ----------------------------------------------------------------------------
# Parameter construction (deterministic) + BN folding (inference semantics)
# ----------------------------------------------------------------------------
def _fold_bn(w_oihw, gamma, beta, mean, var, eps=1e-5):
    """Fold BatchNorm2d (inference) into a bias-free conv. Returns (w', b')."""
    s = gamma / jnp.sqrt(var + eps)                 # (Cout,)
    w_f = w_oihw * s[:, None, None, None]
    b_f = beta - mean * s
    return w_f, b_f


def make_params(key, cin, scale):
    ks = jax.random.split(key, 16)
    n = lambda k, shape, sc=0.1: sc * jax.random.normal(k, shape, jnp.float32)

    def bn(k):
        k1, k2, k3, k4 = jax.random.split(k, 4)
        gamma = 1.0 + 0.1 * jax.random.normal(k1, (128,), jnp.float32)
        beta = 0.1 * jax.random.normal(k2, (128,), jnp.float32)
        mean = 0.1 * jax.random.normal(k3, (128,), jnp.float32)
        var = 0.9 + 0.2 * jax.random.uniform(k4, (128,), jnp.float32)
        return gamma, beta, mean, var

    # Raw PyTorch-shaped (OIHW) weights
    w0_raw = n(ks[0], (128, cin, 1, 1))
    w1a_raw = n(ks[1], (128, cin, 1, 1))
    w1b_raw = n(ks[2], (128, 128, 1, 7))
    w1c_raw = n(ks[3], (128, 128, 7, 1))
    w2_raw = n(ks[4], (cin, 256, 1, 1))       # projection conv: NO BatchNorm
    b2_raw = n(ks[5], (cin,))

    w0_f, b0_f = _fold_bn(w0_raw, *bn(ks[6]))
    w1a_f, b1a_f = _fold_bn(w1a_raw, *bn(ks[7]))
    w1b_f, b1b_f = _fold_bn(w1b_raw, *bn(ks[8]))
    w1c_f, b1c_f = _fold_bn(w1c_raw, *bn(ks[9]))

    # Kernel-friendly layouts, lane-dense (channels padded to multiple of 128),
    # bf16 matmul weights, scale folded into the projection, f32 biases.
    cin_pad = ((cin + 127) // 128) * 128
    pad_in = lambda m: jnp.pad(m, ((0, cin_pad - cin), (0, 0)))    # Cin rows
    pad_out = lambda m: jnp.pad(m, ((0, 0), (0, cin_pad - cin)))   # Cout cols

    w2_mat = w2_raw[:, :, 0, 0].T                  # (256, cin), no BN folding
    params = dict(
        # Branch_0 and Branch_1_0a fused into one N=256 matmul
        w01=jnp.concatenate([pad_in(w0_f[:, :, 0, 0].T),
                             pad_in(w1a_f[:, :, 0, 0].T)],
                            axis=1).astype(jnp.bfloat16),          # (cin_pad, 256)
        b01=jnp.concatenate([b0_f, b1a_f]).reshape(1, 256),
        # taps stacked along the output axis (ascending d) -> chunked matmuls
        w1b=jnp.concatenate([w1b_f[:, :, 0, k].T for k in range(7)],
                            axis=1).astype(jnp.bfloat16),          # (128, 896)
        b1b=b1b_f.reshape(1, 128),
        w1c=jnp.concatenate([w1c_f[:, :, k, 0].T for k in range(7)],
                            axis=1).astype(jnp.bfloat16),          # (128, 896)
        b1c=b1c_f.reshape(1, 128),
        # projection split into e1/e2 halves, residual scale folded in
        w2a=(scale * pad_out(w2_mat[:128, :])).astype(jnp.bfloat16),   # (128,cin_pad)
        w2b=(scale * pad_out(w2_mat[128:, :])).astype(jnp.bfloat16),   # (128,cin_pad)
        b2=(scale * jnp.pad(b2_raw, (0, cin_pad - cin))).reshape(1, cin_pad),
    )
    folded_oihw = dict(w0=(w0_f, b0_f), w1a=(w1a_f, b1a_f),
                       w1b=(w1b_f, b1b_f), w1c=(w1c_f, b1c_f),
                       w2=(w2_raw, b2_raw))
    return params, folded_oihw


# ----------------------------------------------------------------------------
# Pure-JAX reference (NCHW, mirrors the PyTorch forward with folded BN)
# ----------------------------------------------------------------------------
def _conv_nchw(x, w, b=None, pad=((0, 0), (0, 0))):
    y = jax.lax.conv_general_dilated(
        x, w, window_strides=(1, 1), padding=pad,
        dimension_numbers=("NCHW", "OIHW", "NCHW"),
        precision=jax.lax.Precision.HIGHEST)
    if b is not None:
        y = y + b[None, :, None, None]
    return y


def block17_reference(x_nchw, folded, scale):
    relu = lambda t: jnp.maximum(t, 0.0)
    e1 = relu(_conv_nchw(x_nchw, *folded["w0"]))
    a = relu(_conv_nchw(x_nchw, *folded["w1a"]))
    b = relu(_conv_nchw(a, *folded["w1b"], pad=((0, 0), (3, 3))))
    e2 = relu(_conv_nchw(b, *folded["w1c"], pad=((3, 3), (0, 0))))
    up = jnp.concatenate([e1, e2], axis=1)
    up = _conv_nchw(up, *folded["w2"])
    return relu(x_nchw + scale * up)


# ----------------------------------------------------------------------------
if __name__ == "__main__":
    N, C, H, W = 2, 32, 16, 16          # small shapes; `input` channels = 32
    scale = 0.17

    key = jax.random.PRNGKey(0)
    kx, kp = jax.random.split(key)
    x_nchw = jax.random.normal(kx, (N, C, H, W), jnp.float32)

    params, folded = make_params(kp, C, scale)

    # NCHW -> NHWC for the kernel
    x_nhwc = jnp.transpose(x_nchw, (0, 2, 3, 1))
    out_padded = block17_pallas(x_nhwc, params)
    out_padded = jax.block_until_ready(out_padded)

    # Depad + transpose ONLY for verification (production keeps padded layout).
    out_nchw = jnp.transpose(out_padded[..., :C], (0, 3, 1, 2))

    # sanity check against a pure-JAX / XLA f32 reference
    ref = block17_reference(x_nchw, folded, scale)
    assert out_nchw.shape == ref.shape == (N, C, H, W)
    err = jnp.max(jnp.abs(out_nchw - ref))
    # bf16 matmul operands + f32 accumulation -> a few 1e-3 of absolute error
    assert float(err) < 3e-2, f"max abs err too large: {float(err)}"

    print("KERNEL_OK")
</pallas_src>

<mosaic_0001>
module attributes {stable_mosaic.version = 11 : i64} {
  func.func @_block17_kernel(%arg0: i32, %arg1: memref<2x16x16x128xf32, #tpu.memory_space<vmem>>, %arg2: memref<128x256xbf16, #tpu.memory_space<vmem>>, %arg3: memref<1x256xf32, #tpu.memory_space<vmem>>, %arg4: memref<128x896xbf16, #tpu.memory_space<vmem>>, %arg5: memref<1x128xf32, #tpu.memory_space<vmem>>, %arg6: memref<128x896xbf16, #tpu.memory_space<vmem>>, %arg7: memref<1x128xf32, #tpu.memory_space<vmem>>, %arg8: memref<128x128xbf16, #tpu.memory_space<vmem>>, %arg9: memref<128x128xbf16, #tpu.memory_space<vmem>>, %arg10: memref<1x128xf32, #tpu.memory_space<vmem>>, %arg11: memref<7x512x1xf32, #tpu.memory_space<vmem>>, %arg12: memref<7x512x1xf32, #tpu.memory_space<vmem>>, %arg13: memref<2x16x16x128xf32, #tpu.memory_space<vmem>>) attributes {dimension_semantics = [#tpu.dimension_semantics<parallel>], iteration_bounds = array<i64: 1>, scalar_prefetch = 0 : i64, scratch_operands = 0 : i64, tpu.core_type = #tpu.core_type<tc>, window_params = [{transform_indices = @transform_0, window_bounds = array<i64: 2, 16, 16, 128>}, {pipeline_mode = #tpu.pipeline_mode<synchronous>, transform_indices = @transform_1, window_bounds = array<i64: 128, 256>}, {pipeline_mode = #tpu.pipeline_mode<synchronous>, transform_indices = @transform_2, window_bounds = array<i64: 1, 256>}, {pipeline_mode = #tpu.pipeline_mode<synchronous>, transform_indices = @transform_3, window_bounds = array<i64: 128, 896>}, {pipeline_mode = #tpu.pipeline_mode<synchronous>, transform_indices = @transform_4, window_bounds = array<i64: 1, 128>}, {pipeline_mode = #tpu.pipeline_mode<synchronous>, transform_indices = @transform_5, window_bounds = array<i64: 128, 896>}, {pipeline_mode = #tpu.pipeline_mode<synchronous>, transform_indices = @transform_6, window_bounds = array<i64: 1, 128>}, {pipeline_mode = #tpu.pipeline_mode<synchronous>, transform_indices = @transform_7, window_bounds = array<i64: 128, 128>}, {pipeline_mode = #tpu.pipeline_mode<synchronous>, transform_indices = @transform_8, window_bounds = array<i64: 128, 128>}, {pipeline_mode = #tpu.pipeline_mode<synchronous>, transform_indices = @transform_9, window_bounds = array<i64: 1, 128>}, {pipeline_mode = #tpu.pipeline_mode<synchronous>, transform_indices = @transform_10, window_bounds = array<i64: 7, 512, 1>}, {pipeline_mode = #tpu.pipeline_mode<synchronous>, transform_indices = @transform_11, window_bounds = array<i64: 7, 512, 1>}, {transform_indices = @transform_12, window_bounds = array<i64: 2, 16, 16, 128>}]} {
    %c0 = arith.constant 0 : index
    %c0_0 = arith.constant 0 : index
    %c0_1 = arith.constant 0 : index
    %c0_2 = arith.constant 0 : index
    %0 = vector.load %arg1[%c0, %c0_0, %c0_1, %c0_2] : memref<2x16x16x128xf32, #tpu.memory_space<vmem>>, vector<2x16x16x128xf32>
    %1 = vector.shape_cast %0 : vector<2x16x16x128xf32> to vector<512x128xf32>
    %2 = arith.truncf %1 : vector<512x128xf32> to vector<512x128xbf16>
    %c0_3 = arith.constant 0 : index
    %c0_4 = arith.constant 0 : index
    %3 = vector.load %arg2[%c0_3, %c0_4] : memref<128x256xbf16, #tpu.memory_space<vmem>>, vector<128x256xbf16>
    %cst = arith.constant dense<0.000000e+00> : vector<512x256xf32>
    %4 = tpu.matmul %2, %3, %cst {dimension_numbers = #tpu.dot_dimension_numbers<[1], [0], [0], [1], [0, 0, 1, 1], [], []>} : vector<512x128xbf16>, vector<128x256xbf16>, vector<512x256xf32> -> vector<512x256xf32>
    %c0_5 = arith.constant 0 : index
    %c0_6 = arith.constant 0 : index
    %5 = vector.load %arg3[%c0_5, %c0_6] : memref<1x256xf32, #tpu.memory_space<vmem>>, vector<1x256xf32>
    %6 = vector.broadcast %5 : vector<1x256xf32> to vector<512x256xf32>
    %7 = arith.addf %4, %6 : vector<512x256xf32>
    %cst_7 = arith.constant 0.000000e+00 : f32
    %8 = vector.broadcast %cst_7 : f32 to vector<512x256xf32>
    %9 = arith.maximumf %7, %8 : vector<512x256xf32>
    %10 = vector.extract_strided_slice %9 {offsets = [0, 0], sizes = [512, 128], strides = [1, 1]} : vector<512x256xf32> to vector<512x128xf32>
    %11 = arith.truncf %10 : vector<512x128xf32> to vector<512x128xbf16>
    %12 = vector.extract_strided_slice %9 {offsets = [0, 128], sizes = [512, 128], strides = [1, 1]} : vector<512x256xf32> to vector<512x128xf32>
    %13 = arith.truncf %12 : vector<512x128xf32> to vector<512x128xbf16>
    %c0_8 = arith.constant 0 : index
    %c0_9 = arith.constant 0 : index
    %14 = vector.load %arg4[%c0_8, %c0_9] : memref<128x896xbf16, #tpu.memory_space<vmem>>, vector<128x256xbf16>
    %cst_10 = arith.constant dense<0.000000e+00> : vector<512x256xf32>
    %15 = tpu.matmul %13, %14, %cst_10 {dimension_numbers = #tpu.dot_dimension_numbers<[1], [0], [0], [1], [0, 0, 1, 1], [], []>} : vector<512x128xbf16>, vector<128x256xbf16>, vector<512x256xf32> -> vector<512x256xf32>
    %16 = vector.extract_strided_slice %15 {offsets = [0, 0], sizes = [512, 128], strides = [1, 1]} : vector<512x256xf32> to vector<512x128xf32>
    %c3_i32 = arith.constant 3 : i32
    %17 = tpu.dynamic_rotate %16 by %c3_i32 dim 0 : vector<512x128xf32>, i32 -> vector<512x128xf32>
    %c0_11 = arith.constant 0 : index
    %c0_12 = arith.constant 0 : index
    %c0_13 = arith.constant 0 : index
    %18 = vector.load %arg11[%c0_11, %c0_12, %c0_13] : memref<7x512x1xf32, #tpu.memory_space<vmem>>, vector<1x512x1xf32>
    %19 = vector.shape_cast %18 : vector<1x512x1xf32> to vector<512x1xf32>
    %20 = vector.broadcast %19 : vector<512x1xf32> to vector<512x128xf32>
    %21 = arith.mulf %17, %20 : vector<512x128xf32>
    %22 = vector.extract_strided_slice %15 {offsets = [0, 128], sizes = [512, 128], strides = [1, 1]} : vector<512x256xf32> to vector<512x128xf32>
    %c2_i32 = arith.constant 2 : i32
    %23 = tpu.dynamic_rotate %22 by %c2_i32 dim 0 : vector<512x128xf32>, i32 -> vector<512x128xf32>
    %c1 = arith.constant 1 : index
    %c0_14 = arith.constant 0 : index
    %c0_15 = arith.constant 0 : index
    %24 = vector.load %arg11[%c1, %c0_14, %c0_15] : memref<7x512x1xf32, #tpu.memory_space<vmem>>, vector<1x512x1xf32>
    %25 = vector.shape_cast %24 : vector<1x512x1xf32> to vector<512x1xf32>
    %26 = vector.broadcast %25 : vector<512x1xf32> to vector<512x128xf32>
    %27 = arith.mulf %23, %26 : vector<512x128xf32>
    %28 = arith.addf %21, %27 : vector<512x128xf32>
    %c0_16 = arith.constant 0 : index
    %c256 = arith.constant 256 : index
    %29 = vector.load %arg4[%c0_16, %c256] : memref<128x896xbf16, #tpu.memory_space<vmem>>, vector<128x256xbf16>
    %cst_17 = arith.constant dense<0.000000e+00> : vector<512x256xf32>
    %30 = tpu.matmul %13, %29, %cst_17 {dimension_numbers = #tpu.dot_dimension_numbers<[1], [0], [0], [1], [0, 0, 1, 1], [], []>} : vector<512x128xbf16>, vector<128x256xbf16>, vector<512x256xf32> -> vector<512x256xf32>
    %31 = vector.extract_strided_slice %30 {offsets = [0, 0], sizes = [512, 128], strides = [1, 1]} : vector<512x256xf32> to vector<512x128xf32>
    %c1_i32 = arith.constant 1 : i32
    %32 = tpu.dynamic_rotate %31 by %c1_i32 dim 0 : vector<512x128xf32>, i32 -> vector<512x128xf32>
    %c2 = arith.constant 2 : index
    %c0_18 = arith.constant 0 : index
    %c0_19 = arith.constant 0 : index
    %33 = vector.load %arg11[%c2, %c0_18, %c0_19] : memref<7x512x1xf32, #tpu.memory_space<vmem>>, vector<1x512x1xf32>
    %34 = vector.shape_cast %33 : vector<1x512x1xf32> to vector<512x1xf32>
    %35 = vector.broadcast %34 : vector<512x1xf32> to vector<512x128xf32>
    %36 = arith.mulf %32, %35 : vector<512x128xf32>
    %37 = arith.addf %28, %36 : vector<512x128xf32>
    %38 = vector.extract_strided_slice %30 {offsets = [0, 128], sizes = [512, 128], strides = [1, 1]} : vector<512x256xf32> to vector<512x128xf32>
    %39 = arith.addf %37, %38 : vector<512x128xf32>
    %c0_20 = arith.constant 0 : index
    %c512 = arith.constant 512 : index
    %40 = vector.load %arg4[%c0_20, %c512] : memref<128x896xbf16, #tpu.memory_space<vmem>>, vector<128x256xbf16>
    %cst_21 = arith.constant dense<0.000000e+00> : vector<512x256xf32>
    %41 = tpu.matmul %13, %40, %cst_21 {dimension_numbers = #tpu.dot_dimension_numbers<[1], [0], [0], [1], [0, 0, 1, 1], [], []>} : vector<512x128xbf16>, vector<128x256xbf16>, vector<512x256xf32> -> vector<512x256xf32>
    %42 = vector.extract_strided_slice %41 {offsets = [0, 0], sizes = [512, 128], strides = [1, 1]} : vector<512x256xf32> to vector<512x128xf32>
    %c511_i32 = arith.constant 511 : i32
    %43 = tpu.dynamic_rotate %42 by %c511_i32 dim 0 : vector<512x128xf32>, i32 -> vector<512x128xf32>
    %c4 = arith.constant 4 : index
    %c0_22 = arith.constant 0 : index
    %c0_23 = arith.constant 0 : index
    %44 = vector.load %arg11[%c4, %c0_22, %c0_23] : memref<7x512x1xf32, #tpu.memory_space<vmem>>, vector<1x512x1xf32>
    %45 = vector.shape_cast %44 : vector<1x512x1xf32> to vector<512x1xf32>
    %46 = vector.broadcast %45 : vector<512x1xf32> to vector<512x128xf32>
    %47 = arith.mulf %43, %46 : vector<512x128xf32>
    %48 = arith.addf %39, %47 : vector<512x128xf32>
    %49 = vector.extract_strided_slice %41 {offsets = [0, 128], sizes = [512, 128], strides = [1, 1]} : vector<512x256xf32> to vector<512x128xf32>
    %c510_i32 = arith.constant 510 : i32
    %50 = tpu.dynamic_rotate %49 by %c510_i32 dim 0 : vector<512x128xf32>, i32 -> vector<512x128xf32>
    %c5 = arith.constant 5 : index
    %c0_24 = arith.constant 0 : index
    %c0_25 = arith.constant 0 : index
    %51 = vector.load %arg11[%c5, %c0_24, %c0_25] : memref<7x512x1xf32, #tpu.memory_space<vmem>>, vector<1x512x1xf32>
    %52 = vector.shape_cast %51 : vector<1x512x1xf32> to vector<512x1xf32>
    %53 = vector.broadcast %52 : vector<512x1xf32> to vector<512x128xf32>
    %54 = arith.mulf %50, %53 : vector<512x128xf32>
    %55 = arith.addf %48, %54 : vector<512x128xf32>
    %c0_26 = arith.constant 0 : index
    %c768 = arith.constant 768 : index
    %56 = vector.load %arg4[%c0_26, %c768] : memref<128x896xbf16, #tpu.memory_space<vmem>>, vector<128x128xbf16>
    %cst_27 = arith.constant dense<0.000000e+00> : vector<512x128xf32>
    %57 = tpu.matmul %13, %56, %cst_27 {dimension_numbers = #tpu.dot_dimension_numbers<[1], [0], [0], [1], [0, 0, 1, 1], [], []>} : vector<512x128xbf16>, vector<128x128xbf16>, vector<512x128xf32> -> vector<512x128xf32>
    %c509_i32 = arith.constant 509 : i32
    %58 = tpu.dynamic_rotate %57 by %c509_i32 dim 0 : vector<512x128xf32>, i32 -> vector<512x128xf32>
    %c6 = arith.constant 6 : index
    %c0_28 = arith.constant 0 : index
    %c0_29 = arith.constant 0 : index
    %59 = vector.load %arg11[%c6, %c0_28, %c0_29] : memref<7x512x1xf32, #tpu.memory_space<vmem>>, vector<1x512x1xf32>
    %60 = vector.shape_cast %59 : vector<1x512x1xf32> to vector<512x1xf32>
    %61 = vector.broadcast %60 : vector<512x1xf32> to vector<512x128xf32>
    %62 = arith.mulf %58, %61 : vector<512x128xf32>
    %63 = arith.addf %55, %62 : vector<512x128xf32>
    %c0_30 = arith.constant 0 : index
    %c0_31 = arith.constant 0 : index
    %64 = vector.load %arg5[%c0_30, %c0_31] : memref<1x128xf32, #tpu.memory_space<vmem>>, vector<1x128xf32>
    %65 = vector.broadcast %64 : vector<1x128xf32> to vector<512x128xf32>
    %66 = arith.addf %63, %65 : vector<512x128xf32>
    %cst_32 = arith.constant 0.000000e+00 : f32
    %67 = vector.broadcast %cst_32 : f32 to vector<512x128xf32>
    %68 = arith.maximumf %66, %67 : vector<512x128xf32>
    %69 = arith.truncf %68 : vector<512x128xf32> to vector<512x128xbf16>
    %c0_33 = arith.constant 0 : index
    %c0_34 = arith.constant 0 : index
    %70 = vector.load %arg6[%c0_33, %c0_34] : memref<128x896xbf16, #tpu.memory_space<vmem>>, vector<128x256xbf16>
    %cst_35 = arith.constant dense<0.000000e+00> : vector<512x256xf32>
    %71 = tpu.matmul %69, %70, %cst_35 {dimension_numbers = #tpu.dot_dimension_numbers<[1], [0], [0], [1], [0, 0, 1, 1], [], []>} : vector<512x128xbf16>, vector<128x256xbf16>, vector<512x256xf32> -> vector<512x256xf32>
    %72 = vector.extract_strided_slice %71 {offsets = [0, 0], sizes = [512, 128], strides = [1, 1]} : vector<512x256xf32> to vector<512x128xf32>
    %c48_i32 = arith.constant 48 : i32
    %73 = tpu.dynamic_rotate %72 by %c48_i32 dim 0 : vector<512x128xf32>, i32 -> vector<512x128xf32>
    %c0_36 = arith.constant 0 : index
    %c0_37 = arith.constant 0 : index
    %c0_38 = arith.constant 0 : index
    %74 = vector.load %arg12[%c0_36, %c0_37, %c0_38] : memref<7x512x1xf32, #tpu.memory_space<vmem>>, vector<1x512x1xf32>
    %75 = vector.shape_cast %74 : vector<1x512x1xf32> to vector<512x1xf32>
    %76 = vector.broadcast %75 : vector<512x1xf32> to vector<512x128xf32>
    %77 = arith.mulf %73, %76 : vector<512x128xf32>
    %78 = vector.extract_strided_slice %71 {offsets = [0, 128], sizes = [512, 128], strides = [1, 1]} : vector<512x256xf32> to vector<512x128xf32>
    %c32_i32 = arith.constant 32 : i32
    %79 = tpu.dynamic_rotate %78 by %c32_i32 dim 0 : vector<512x128xf32>, i32 -> vector<512x128xf32>
    %c1_39 = arith.constant 1 : index
    %c0_40 = arith.constant 0 : index
    %c0_41 = arith.constant 0 : index
    %80 = vector.load %arg12[%c1_39, %c0_40, %c0_41] : memref<7x512x1xf32, #tpu.memory_space<vmem>>, vector<1x512x1xf32>
    %81 = vector.shape_cast %80 : vector<1x512x1xf32> to vector<512x1xf32>
    %82 = vector.broadcast %81 : vector<512x1xf32> to vector<512x128xf32>
    %83 = arith.mulf %79, %82 : vector<512x128xf32>
    %84 = arith.addf %77, %83 : vector<512x128xf32>
    %c0_42 = arith.constant 0 : index
    %c256_43 = arith.constant 256 : index
    %85 = vector.load %arg6[%c0_42, %c256_43] : memref<128x896xbf16, #tpu.memory_space<vmem>>, vector<128x256xbf16>
    %cst_44 = arith.constant dense<0.000000e+00> : vector<512x256xf32>
    %86 = tpu.matmul %69, %85, %cst_44 {dimension_numbers = #tpu.dot_dimension_numbers<[1], [0], [0], [1], [0, 0, 1, 1], [], []>} : vector<512x128xbf16>, vector<128x256xbf16>, vector<512x256xf32> -> vector<512x256xf32>
    %87 = vector.extract_strided_slice %86 {offsets = [0, 0], sizes = [512, 128], strides = [1, 1]} : vector<512x256xf32> to vector<512x128xf32>
    %c16_i32 = arith.constant 16 : i32
    %88 = tpu.dynamic_rotate %87 by %c16_i32 dim 0 : vector<512x128xf32>, i32 -> vector<512x128xf32>
    %c2_45 = arith.constant 2 : index
    %c0_46 = arith.constant 0 : index
    %c0_47 = arith.constant 0 : index
    %89 = vector.load %arg12[%c2_45, %c0_46, %c0_47] : memref<7x512x1xf32, #tpu.memory_space<vmem>>, vector<1x512x1xf32>
    %90 = vector.shape_cast %89 : vector<1x512x1xf32> to vector<512x1xf32>
    %91 = vector.broadcast %90 : vector<512x1xf32> to vector<512x128xf32>
    %92 = arith.mulf %88, %91 : vector<512x128xf32>
    %93 = arith.addf %84, %92 : vector<512x128xf32>
    %94 = vector.extract_strided_slice %86 {offsets = [0, 128], sizes = [512, 128], strides = [1, 1]} : vector<512x256xf32> to vector<512x128xf32>
    %95 = arith.addf %93, %94 : vector<512x128xf32>
    %c0_48 = arith.constant 0 : index
    %c512_49 = arith.constant 512 : index
    %96 = vector.load %arg6[%c0_48, %c512_49] : memref<128x896xbf16, #tpu.memory_space<vmem>>, vector<128x256xbf16>
    %cst_50 = arith.constant dense<0.000000e+00> : vector<512x256xf32>
    %97 = tpu.matmul %69, %96, %cst_50 {dimension_numbers = #tpu.dot_dimension_numbers<[1], [0], [0], [1], [0, 0, 1, 1], [], []>} : vector<512x128xbf16>, vector<128x256xbf16>, vector<512x256xf32> -> vector<512x256xf32>
    %98 = vector.extract_strided_slice %97 {offsets = [0, 0], sizes = [512, 128], strides = [1, 1]} : vector<512x256xf32> to vector<512x128xf32>
    %c496_i32 = arith.constant 496 : i32
    %99 = tpu.dynamic_rotate %98 by %c496_i32 dim 0 : vector<512x128xf32>, i32 -> vector<512x128xf32>
    %c4_51 = arith.constant 4 : index
    %c0_52 = arith.constant 0 : index
    %c0_53 = arith.constant 0 : index
    %100 = vector.load %arg12[%c4_51, %c0_52, %c0_53] : memref<7x512x1xf32, #tpu.memory_space<vmem>>, vector<1x512x1xf32>
    %101 = vector.shape_cast %100 : vector<1x512x1xf32> to vector<512x1xf32>
    %102 = vector.broadcast %101 : vector<512x1xf32> to vector<512x128xf32>
    %103 = arith.mulf %99, %102 : vector<512x128xf32>
    %104 = arith.addf %95, %103 : vector<512x128xf32>
    %105 = vector.extract_strided_slice %97 {offsets = [0, 128], sizes = [512, 128], strides = [1, 1]} : vector<512x256xf32> to vector<512x128xf32>
    %c480_i32 = arith.constant 480 : i32
    %106 = tpu.dynamic_rotate %105 by %c480_i32 dim 0 : vector<512x128xf32>, i32 -> vector<512x128xf32>
    %c5_54 = arith.constant 5 : index
    %c0_55 = arith.constant 0 : index
    %c0_56 = arith.constant 0 : index
    %107 = vector.load %arg12[%c5_54, %c0_55, %c0_56] : memref<7x512x1xf32, #tpu.memory_space<vmem>>, vector<1x512x1xf32>
    %108 = vector.shape_cast %107 : vector<1x512x1xf32> to vector<512x1xf32>
    %109 = vector.broadcast %108 : vector<512x1xf32> to vector<512x128xf32>
    %110 = arith.mulf %106, %109 : vector<512x128xf32>
    %111 = arith.addf %104, %110 : vector<512x128xf32>
    %c0_57 = arith.constant 0 : index
    %c768_58 = arith.constant 768 : index
    %112 = vector.load %arg6[%c0_57, %c768_58] : memref<128x896xbf16, #tpu.memory_space<vmem>>, vector<128x128xbf16>
    %cst_59 = arith.constant dense<0.000000e+00> : vector<512x128xf32>
    %113 = tpu.matmul %69, %112, %cst_59 {dimension_numbers = #tpu.dot_dimension_numbers<[1], [0], [0], [1], [0, 0, 1, 1], [], []>} : vector<512x128xbf16>, vector<128x128xbf16>, vector<512x128xf32> -> vector<512x128xf32>
    %c464_i32 = arith.constant 464 : i32
    %114 = tpu.dynamic_rotate %113 by %c464_i32 dim 0 : vector<512x128xf32>, i32 -> vector<512x128xf32>
    %c6_60 = arith.constant 6 : index
    %c0_61 = arith.constant 0 : index
    %c0_62 = arith.constant 0 : index
    %115 = vector.load %arg12[%c6_60, %c0_61, %c0_62] : memref<7x512x1xf32, #tpu.memory_space<vmem>>, vector<1x512x1xf32>
    %116 = vector.shape_cast %115 : vector<1x512x1xf32> to vector<512x1xf32>
    %117 = vector.broadcast %116 : vector<512x1xf32> to vector<512x128xf32>
    %118 = arith.mulf %114, %117 : vector<512x128xf32>
    %119 = arith.addf %111, %118 : vector<512x128xf32>
    %c0_63 = arith.constant 0 : index
    %c0_64 = arith.constant 0 : index
    %120 = vector.load %arg7[%c0_63, %c0_64] : memref<1x128xf32, #tpu.memory_space<vmem>>, vector<1x128xf32>
    %121 = vector.broadcast %120 : vector<1x128xf32> to vector<512x128xf32>
    %122 = arith.addf %119, %121 : vector<512x128xf32>
    %cst_65 = arith.constant 0.000000e+00 : f32
    %123 = vector.broadcast %cst_65 : f32 to vector<512x128xf32>
    %124 = arith.maximumf %122, %123 : vector<512x128xf32>
    %125 = arith.truncf %124 : vector<512x128xf32> to vector<512x128xbf16>
    %c0_66 = arith.constant 0 : index
    %c0_67 = arith.constant 0 : index
    %126 = vector.load %arg9[%c0_66, %c0_67] : memref<128x128xbf16, #tpu.memory_space<vmem>>, vector<128x128xbf16>
    %cst_68 = arith.constant dense<0.000000e+00> : vector<512x128xf32>
    %127 = tpu.matmul %125, %126, %cst_68 {dimension_numbers = #tpu.dot_dimension_numbers<[1], [0], [0], [1], [0, 0, 1, 1], [], []>} : vector<512x128xbf16>, vector<128x128xbf16>, vector<512x128xf32> -> vector<512x128xf32>
    %c0_69 = arith.constant 0 : index
    %c0_70 = arith.constant 0 : index
    %128 = vector.load %arg8[%c0_69, %c0_70] : memref<128x128xbf16, #tpu.memory_space<vmem>>, vector<128x128xbf16>
    %cst_71 = arith.constant dense<0.000000e+00> : vector<512x128xf32>
    %129 = tpu.matmul %11, %128, %cst_71 {dimension_numbers = #tpu.dot_dimension_numbers<[1], [0], [0], [1], [0, 0, 1, 1], [], []>} : vector<512x128xbf16>, vector<128x128xbf16>, vector<512x128xf32> -> vector<512x128xf32>
    %130 = arith.addf %127, %129 : vector<512x128xf32>
    %c0_72 = arith.constant 0 : index
    %c0_73 = arith.constant 0 : index
    %131 = vector.load %arg10[%c0_72, %c0_73] : memref<1x128xf32, #tpu.memory_space<vmem>>, vector<1x128xf32>
    %132 = vector.broadcast %131 : vector<1x128xf32> to vector<512x128xf32>
    %133 = arith.addf %130, %132 : vector<512x128xf32>
    %c0_74 = arith.constant 0 : index
    %c0_75 = arith.constant 0 : index
    %c0_76 = arith.constant 0 : index
    %c0_77 = arith.constant 0 : index
    %134 = vector.load %arg1[%c0_74, %c0_75, %c0_76, %c0_77] : memref<2x16x16x128xf32, #tpu.memory_space<vmem>>, vector<2x16x16x128xf32>
    %135 = vector.shape_cast %134 : vector<2x16x16x128xf32> to vector<512x128xf32>
    %136 = arith.addf %135, %133 : vector<512x128xf32>
    %cst_78 = arith.constant 0.000000e+00 : f32
    %137 = vector.broadcast %cst_78 : f32 to vector<512x128xf32>
    %138 = arith.maximumf %136, %137 : vector<512x128xf32>
    %139 = vector.shape_cast %138 : vector<512x128xf32> to vector<2x16x16x128xf32>
    %c0_79 = arith.constant 0 : index
    %c0_80 = arith.constant 0 : index
    %c0_81 = arith.constant 0 : index
    %c0_82 = arith.constant 0 : index
    %140 = vector.load %arg13[%c0_79, %c0_80, %c0_81, %c0_82] : memref<2x16x16x128xf32, #tpu.memory_space<vmem>>, vector<2x16x16x128xf32>
    tpu.vector_store %arg13[%c0_79, %c0_80, %c0_81, %c0_82], %139 {strides = array<i32>} : memref<2x16x16x128xf32, #tpu.memory_space<vmem>>, vector<2x16x16x128xf32>,
    return
  }
  func.func @transform_0(%arg0: i32) -> (i32, i32, i32, i32) {
    %c0_i32 = arith.constant 0 : i32
    %c0_i32_0 = arith.constant 0 : i32
    %c0_i32_1 = arith.constant 0 : i32
    %c0_i32_2 = arith.constant 0 : i32
    return %arg0, %c0_i32, %c0_i32_0, %c0_i32_1 : i32, i32, i32, i32
  }
  func.func @transform_1(%arg0: i32) -> (i32, i32) {
    %c0_i32 = arith.constant 0 : i32
    %c0_i32_0 = arith.constant 0 : i32
    %c0_i32_1 = arith.constant 0 : i32
    return %c0_i32, %c0_i32_0 : i32, i32
  }
  func.func @transform_2(%arg0: i32) -> (i32, i32) {
    %c0_i32 = arith.constant 0 : i32
    %c0_i32_0 = arith.constant 0 : i32
    %c0_i32_1 = arith.constant 0 : i32
    return %c0_i32, %c0_i32_0 : i32, i32
  }
  func.func @transform_3(%arg0: i32) -> (i32, i32) {
    %c0_i32 = arith.constant 0 : i32
    %c0_i32_0 = arith.constant 0 : i32
    %c0_i32_1 = arith.constant 0 : i32
    return %c0_i32, %c0_i32_0 : i32, i32
  }
  func.func @transform_4(%arg0: i32) -> (i32, i32) {
    %c0_i32 = arith.constant 0 : i32
    %c0_i32_0 = arith.constant 0 : i32
    %c0_i32_1 = arith.constant 0 : i32
    return %c0_i32, %c0_i32_0 : i32, i32
  }
  func.func @transform_5(%arg0: i32) -> (i32, i32) {
    %c0_i32 = arith.constant 0 : i32
    %c0_i32_0 = arith.constant 0 : i32
    %c0_i32_1 = arith.constant 0 : i32
    return %c0_i32, %c0_i32_0 : i32, i32
  }
  func.func @transform_6(%arg0: i32) -> (i32, i32) {
    %c0_i32 = arith.constant 0 : i32
    %c0_i32_0 = arith.constant 0 : i32
    %c0_i32_1 = arith.constant 0 : i32
    return %c0_i32, %c0_i32_0 : i32, i32
  }
  func.func @transform_7(%arg0: i32) -> (i32, i32) {
    %c0_i32 = arith.constant 0 : i32
    %c0_i32_0 = arith.constant 0 : i32
    %c0_i32_1 = arith.constant 0 : i32
    return %c0_i32, %c0_i32_0 : i32, i32
  }
  func.func @transform_8(%arg0: i32) -> (i32, i32) {
    %c0_i32 = arith.constant 0 : i32
    %c0_i32_0 = arith.constant 0 : i32
    %c0_i32_1 = arith.constant 0 : i32
    return %c0_i32, %c0_i32_0 : i32, i32
  }
  func.func @transform_9(%arg0: i32) -> (i32, i32) {
    %c0_i32 = arith.constant 0 : i32
    %c0_i32_0 = arith.constant 0 : i32
    %c0_i32_1 = arith.constant 0 : i32
    return %c0_i32, %c0_i32_0 : i32, i32
  }
  func.func @transform_10(%arg0: i32) -> (i32, i32, i32) {
    %c0_i32 = arith.constant 0 : i32
    %c0_i32_0 = arith.constant 0 : i32
    %c0_i32_1 = arith.constant 0 : i32
    %c0_i32_2 = arith.constant 0 : i32
    return %c0_i32, %c0_i32_0, %c0_i32_1 : i32, i32, i32
  }
  func.func @transform_11(%arg0: i32) -> (i32, i32, i32) {
    %c0_i32 = arith.constant 0 : i32
    %c0_i32_0 = arith.constant 0 : i32
    %c0_i32_1 = arith.constant 0 : i32
    %c0_i32_2 = arith.constant 0 : i32
    return %c0_i32, %c0_i32_0, %c0_i32_1 : i32, i32, i32
  }
  func.func @transform_12(%arg0: i32) -> (i32, i32, i32, i32) {
    %c0_i32 = arith.constant 0 : i32
    %c0_i32_0 = arith.constant 0 : i32
    %c0_i32_1 = arith.constant 0 : i32
    %c0_i32_2 = arith.constant 0 : i32
    return %arg0, %c0_i32, %c0_i32_0, %c0_i32_1 : i32, i32, i32, i32
  }
}

</mosaic_0001>

<llo_original>
// kernel: tpu_custom_call.1
$region0: #{tpu_custom_call.1}
  #allocation0 [shape = 'u32[]', space=smem, size = 0x4, offset = 0x4, fixed_abs, tag = 'smem constant byte address 0x4 - core index']
  #allocation1 [shape = 'u32[144,128]{1,0:T(1,128)}', space=vmem, size = 0x12000, scoped, tag = 'internal scratch']
  %s0 = inlined_call_operand.vmem [shape: f32[2,16,16,128], index: 0, kind: input, shape index: {}]
  %s1 = inlined_call_operand.vmem [shape: bf16[128,256], index: 1, kind: input, shape index: {}]
  %s2 = inlined_call_operand.vmem [shape: f32[1,256], index: 2, kind: input, shape index: {}]
  %s3 = inlined_call_operand.vmem [shape: bf16[128,896], index: 3, kind: input, shape index: {}]
  %s4 = inlined_call_operand.vmem [shape: f32[1,128], index: 4, kind: input, shape index: {}]
  %s5 = inlined_call_operand.vmem [shape: bf16[128,896], index: 5, kind: input, shape index: {}]
  %s6 = inlined_call_operand.vmem [shape: f32[1,128], index: 6, kind: input, shape index: {}]
  %s7 = inlined_call_operand.vmem [shape: bf16[128,128], index: 7, kind: input, shape index: {}]
  %s8 = inlined_call_operand.vmem [shape: bf16[128,128], index: 8, kind: input, shape index: {}]
  %s9 = inlined_call_operand.vmem [shape: f32[1,128], index: 9, kind: input, shape index: {}]
  %s10 = inlined_call_operand.vmem [shape: f32[7,512,1], index: 10, kind: input, shape index: {}]
  %s11 = inlined_call_operand.vmem [shape: f32[7,512,1], index: 11, kind: input, shape index: {}]
  %s12 = inlined_call_operand.hbm [shape: f32[2,16,16,128], index: 12, kind: output, shape index: {}]
  %s13 = sld [smem:[#allocation0]]
  $region58: #{tpu_custom_call.1} parent=0
    _
  %s15 = ssub.s32 1, %s13
  %s16 = scalar_select 0, %s15, %s13
  $region1: #{tpu_custom_call.1} parent=0
    #allocation2 [shape = 'u8[262144]{0}', space=vmem, size = 0x40000, scoped, tag = 'output window, operand 0, single buffered']
    #allocation3 [shape = 's32[1]{0}', space=sflag, size = 0x4, scoped, tag = 'scoped memory for tpu_custom_call.1']
    %17 = vsyncpa [#allocation3], 0
    // Predicated region
    $region2: #{tpu_custom_call.1} parent=1 // pred_check
      _
    $region3: #{tpu_custom_call.1} parent=1 // pred_check_branch
      %19 = sbr.rel (0) target = $region5
    $region4: #{tpu_custom_call.1} parent=1 // pred_region
      _
    $region5: #{tpu_custom_call.1} parent=1 // pred_fallthru
      _
    // Predicated region
    $region6: #{tpu_custom_call.1} parent=1 // pred_check
      _
    $region7: #{tpu_custom_call.1} parent=1 // pred_check_branch
      %21 = sbr.rel (0) target = $region9
    $region8: #{tpu_custom_call.1} parent=1 // pred_region
      _
    $region9: #{tpu_custom_call.1} parent=1 // pred_fallthru
      _
    // Predicated region
    $region10: #{tpu_custom_call.1} parent=1 // pred_check
      _
    $region11: #{tpu_custom_call.1} parent=1 // pred_check_branch
      %23 = sbr.rel (0) target = $region13
    $region12: #{tpu_custom_call.1} parent=1 // pred_region
      _
    $region13: #{tpu_custom_call.1} parent=1 // pred_fallthru
      _
    // Predicated region
    $region14: #{tpu_custom_call.1} parent=1 // pred_check
      _
    $region15: #{tpu_custom_call.1} parent=1 // pred_check_branch
      %25 = sbr.rel (0) target = $region17
    $region16: #{tpu_custom_call.1} parent=1 // pred_region
      _
    $region17: #{tpu_custom_call.1} parent=1 // pred_fallthru
      _
    // Predicated region
    $region18: #{tpu_custom_call.1} parent=1 // pred_check
      _
    $region19: #{tpu_custom_call.1} parent=1 // pred_check_branch
      %27 = sbr.rel (0) target = $region21
    $region20: #{tpu_custom_call.1} parent=1 // pred_region
      _
    $region21: #{tpu_custom_call.1} parent=1 // pred_fallthru
      _
    // Predicated region
    $region22: #{tpu_custom_call.1} parent=1 // pred_check
      _
    $region23: #{tpu_custom_call.1} parent=1 // pred_check_branch
      %29 = sbr.rel (0) target = $region25
    $region24: #{tpu_custom_call.1} parent=1 // pred_region
      _
    $region25: #{tpu_custom_call.1} parent=1 // pred_fallthru
      _
    // Predicated region
    $region26: #{tpu_custom_call.1} parent=1 // pred_check
      _
    $region27: #{tpu_custom_call.1} parent=1 // pred_check_branch
      %31 = sbr.rel (0) target = $region29
    $region28: #{tpu_custom_call.1} parent=1 // pred_region
      _
    $region29: #{tpu_custom_call.1} parent=1 // pred_fallthru
      _
    // Predicated region
    $region30: #{tpu_custom_call.1} parent=1 // pred_check
      _
    $region31: #{tpu_custom_call.1} parent=1 // pred_check_branch
      %33 = sbr.rel (0) target = $region33
    $region32: #{tpu_custom_call.1} parent=1 // pred_region
      _
    $region33: #{tpu_custom_call.1} parent=1 // pred_fallthru
      _
    // Predicated region
    $region34: #{tpu_custom_call.1} parent=1 // pred_check
      _
    $region35: #{tpu_custom_call.1} parent=1 // pred_check_branch
      %35 = sbr.rel (0) target = $region37
    $region36: #{tpu_custom_call.1} parent=1 // pred_region
      _
    $region37: #{tpu_custom_call.1} parent=1 // pred_fallthru
      _
    // Predicated region
    $region38: #{tpu_custom_call.1} parent=1 // pred_check
      _
    $region39: #{tpu_custom_call.1} parent=1 // pred_check_branch
      %37 = sbr.rel (0) target = $region41
    $region40: #{tpu_custom_call.1} parent=1 // pred_region
      _
    $region41: #{tpu_custom_call.1} parent=1 // pred_fallthru
      _
    // Predicated region
    $region42: #{tpu_custom_call.1} parent=1 // pred_check
      _
    $region43: #{tpu_custom_call.1} parent=1 // pred_check_branch
      %39 = sbr.rel (0) target = $region45
    $region44: #{tpu_custom_call.1} parent=1 // pred_region
      _
    $region45: #{tpu_custom_call.1} parent=1 // pred_fallthru
      _
    // Predicated region
    $region46: #{tpu_custom_call.1} parent=1 // pred_check
      _
    $region47: #{tpu_custom_call.1} parent=1 // pred_check_branch
      %41 = sbr.rel (0) target = $region49
    $region48: #{tpu_custom_call.1} parent=1 // pred_region
      _
    $region49: #{tpu_custom_call.1} parent=1 // pred_fallthru
      _
    %v43 = vld [vmem:[%s0] sm:$0xff]
    %v44 = vld [vmem:[%s0 + $0x8] sm:$0xff]
    %v45 = vld [vmem:[%s0 + $0x10] sm:$0xff]
    %v46 = vld [vmem:[%s0 + $0x18] sm:$0xff]
    %v47 = vld [vmem:[%s0 + $0x20] sm:$0xff]
    %v48 = vld [vmem:[%s0 + $0x28] sm:$0xff]
    %v49 = vld [vmem:[%s0 + $0x30] sm:$0xff]
    %v50 = vld [vmem:[%s0 + $0x38] sm:$0xff]
    %v51 = vld [vmem:[%s0 + $0x40] sm:$0xff]
    %v52 = vld [vmem:[%s0 + $0x48] sm:$0xff]
    %v53 = vld [vmem:[%s0 + $0x50] sm:$0xff]
    %v54 = vld [vmem:[%s0 + $0x58] sm:$0xff]
    %v55 = vld [vmem:[%s0 + $0x60] sm:$0xff]
    %v56 = vld [vmem:[%s0 + $0x68] sm:$0xff]
    %v57 = vld [vmem:[%s0 + $0x70] sm:$0xff]
    %v58 = vld [vmem:[%s0 + $0x78] sm:$0xff]
    %v59 = vld [vmem:[%s0 + $0x80] sm:$0xff]
    %v60 = vld [vmem:[%s0 + $0x88] sm:$0xff]
    %v61 = vld [vmem:[%s0 + $0x90] sm:$0xff]
    %v62 = vld [vmem:[%s0 + $0x98] sm:$0xff]
    %v63 = vld [vmem:[%s0 + $0xa0] sm:$0xff]
    %v64 = vld [vmem:[%s0 + $0xa8] sm:$0xff]
    %v65 = vld [vmem:[%s0 + $0xb0] sm:$0xff]
    %v66 = vld [vmem:[%s0 + $0xb8] sm:$0xff]
    %v67 = vld [vmem:[%s0 + $0xc0] sm:$0xff]
    %v68 = vld [vmem:[%s0 + $0xc8] sm:$0xff]
    %v69 = vld [vmem:[%s0 + $0xd0] sm:$0xff]
    %v70 = vld [vmem:[%s0 + $0xd8] sm:$0xff]
    %v71 = vld [vmem:[%s0 + $0xe0] sm:$0xff]
    %v72 = vld [vmem:[%s0 + $0xe8] sm:$0xff]
    %v73 = vld [vmem:[%s0 + $0xf0] sm:$0xff]
    %v74 = vld [vmem:[%s0 + $0xf8] sm:$0xff]
    %v75 = vld [vmem:[%s0 + $0x100] sm:$0xff]
    %v76 = vld [vmem:[%s0 + $0x108] sm:$0xff]
    %v77 = vld [vmem:[%s0 + $0x110] sm:$0xff]
    %v78 = vld [vmem:[%s0 + $0x118] sm:$0xff]
    %v79 = vld [vmem:[%s0 + $0x120] sm:$0xff]
    %v80 = vld [vmem:[%s0 + $0x128] sm:$0xff]
    %v81 = vld [vmem:[%s0 + $0x130] sm:$0xff]
    %v82 = vld [vmem:[%s0 + $0x138] sm:$0xff]
    %v83 = vld [vmem:[%s0 + $0x140] sm:$0xff]
    %v84 = vld [vmem:[%s0 + $0x148] sm:$0xff]
    %v85 = vld [vmem:[%s0 + $0x150] sm:$0xff]
    %v86 = vld [vmem:[%s0 + $0x158] sm:$0xff]
    %v87 = vld [vmem:[%s0 + $0x160] sm:$0xff]
    %v88 = vld [vmem:[%s0 + $0x168] sm:$0xff]
    %v89 = vld [vmem:[%s0 + $0x170] sm:$0xff]
    %v90 = vld [vmem:[%s0 + $0x178] sm:$0xff]
    %v91 = vld [vmem:[%s0 + $0x180] sm:$0xff]
    %v92 = vld [vmem:[%s0 + $0x188] sm:$0xff]
    %v93 = vld [vmem:[%s0 + $0x190] sm:$0xff]
    %v94 = vld [vmem:[%s0 + $0x198] sm:$0xff]
    %v95 = vld [vmem:[%s0 + $0x1a0] sm:$0xff]
    %v96 = vld [vmem:[%s0 + $0x1a8] sm:$0xff]
    %v97 = vld [vmem:[%s0 + $0x1b0] sm:$0xff]
    %v98 = vld [vmem:[%s0 + $0x1b8] sm:$0xff]
    %v99 = vld [vmem:[%s0 + $0x1c0] sm:$0xff]
    %v100 = vld [vmem:[%s0 + $0x1c8] sm:$0xff]
    %v101 = vld [vmem:[%s0 + $0x1d0] sm:$0xff]
    %v102 = vld [vmem:[%s0 + $0x1d8] sm:$0xff]
    %v103 = vld [vmem:[%s0 + $0x1e0] sm:$0xff]
    %v104 = vld [vmem:[%s0 + $0x1e8] sm:$0xff]
    %v105 = vld [vmem:[%s0 + $0x1f0] sm:$0xff]
    %v106 = vld [vmem:[%s0 + $0x1f8] sm:$0xff]
    %v107 = vpack.c.bf16 %v44, %v43
    %v108 = vpack.c.bf16 %v46, %v45
    %v109 = vpack.c.bf16 %v48, %v47
    %v110 = vpack.c.bf16 %v50, %v49
    %v111 = vpack.c.bf16 %v52, %v51
    %v112 = vpack.c.bf16 %v54, %v53
    %v113 = vpack.c.bf16 %v56, %v55
    %v114 = vpack.c.bf16 %v58, %v57
    %v115 = vpack.c.bf16 %v60, %v59
    %v116 = vpack.c.bf16 %v62, %v61
    %v117 = vpack.c.bf16 %v64, %v63
    %v118 = vpack.c.bf16 %v66, %v65
    %v119 = vpack.c.bf16 %v68, %v67
    %v120 = vpack.c.bf16 %v70, %v69
    %v121 = vpack.c.bf16 %v72, %v71
    %v122 = vpack.c.bf16 %v74, %v73
    %v123 = vpack.c.bf16 %v76, %v75
    %v124 = vpack.c.bf16 %v78, %v77
    %v125 = vpack.c.bf16 %v80, %v79
    %v126 = vpack.c.bf16 %v82, %v81
    %v127 = vpack.c.bf16 %v84, %v83
    %v128 = vpack.c.bf16 %v86, %v85
    %v129 = vpack.c.bf16 %v88, %v87
    %v130 = vpack.c.bf16 %v90, %v89
    %v131 = vpack.c.bf16 %v92, %v91
    %v132 = vpack.c.bf16 %v94, %v93
    %v133 = vpack.c.bf16 %v96, %v95
    %v134 = vpack.c.bf16 %v98, %v97
    %v135 = vpack.c.bf16 %v100, %v99
    %v136 = vpack.c.bf16 %v102, %v101
    %v137 = vpack.c.bf16 %v104, %v103
    %v138 = vpack.c.bf16 %v106, %v105
    %v139 = vld [vmem:[%s1] sm:$0xff]
    %v140 = vld [vmem:[%s1 + $0x8] sm:$0xff]
    %v141 = vld [vmem:[%s1 + $0x10] sm:$0xff]
    %v142 = vld [vmem:[%s1 + $0x18] sm:$0xff]
    %v143 = vld [vmem:[%s1 + $0x20] sm:$0xff]
    %v144 = vld [vmem:[%s1 + $0x28] sm:$0xff]
    %v145 = vld [vmem:[%s1 + $0x30] sm:$0xff]
    %v146 = vld [vmem:[%s1 + $0x38] sm:$0xff]
    %v147 = vld [vmem:[%s1 + $0x40] sm:$0xff]
    %v148 = vld [vmem:[%s1 + $0x48] sm:$0xff]
    %v149 = vld [vmem:[%s1 + $0x50] sm:$0xff]
    %v150 = vld [vmem:[%s1 + $0x58] sm:$0xff]
    %v151 = vld [vmem:[%s1 + $0x60] sm:$0xff]
    %v152 = vld [vmem:[%s1 + $0x68] sm:$0xff]
    %v153 = vld [vmem:[%s1 + $0x70] sm:$0xff]
    %v154 = vld [vmem:[%s1 + $0x78] sm:$0xff]
    %v155 = vld [vmem:[%s2] sm:$0x3]
    %v157 = vlaneseq
    %v158 = vshrl.u32 %v157, 7
    %v159 = vsub.s32 0, %v158
    %v160 = vrot.slane %v155, %v159
    %v161 = vlaneseq
    %v162 = vshrl.u32 %v161, 7
    %v163 = vsub.s32 1, %v162
    %v164 = vrot.slane %v155, %v163
    %v183 = vunpack.c.l.b16 %v139
    %v184 = vunpack.c.h.b16 %v139
    %v185 = vunpack.c.l.b16 %v140
    %v186 = vunpack.c.h.b16 %v140
    %v187 = vunpack.c.l.b16 %v141
    %v188 = vunpack.c.h.b16 %v141
    %v189 = vunpack.c.l.b16 %v142
    %v190 = vunpack.c.h.b16 %v142
    %v191 = vunpack.c.l.b16 %v143
    %v192 = vunpack.c.h.b16 %v143
    %v193 = vunpack.c.l.b16 %v144
    %v194 = vunpack.c.h.b16 %v144
    %v195 = vunpack.c.l.b16 %v145
    %v196 = vunpack.c.h.b16 %v145
    %v197 = vunpack.c.l.b16 %v146
    %v198 = vunpack.c.h.b16 %v146
    %v199 = vunpack.c.l.b16 %v147
    %v200 = vunpack.c.h.b16 %v147
    %v201 = vunpack.c.l.b16 %v148
    %v202 = vunpack.c.h.b16 %v148
    %v203 = vunpack.c.l.b16 %v149
    %v204 = vunpack.c.h.b16 %v149
    %v205 = vunpack.c.l.b16 %v150
    %v206 = vunpack.c.h.b16 %v150
    %v207 = vunpack.c.l.b16 %v151
    %v208 = vunpack.c.h.b16 %v151
    %v209 = vunpack.c.l.b16 %v152
    %v210 = vunpack.c.h.b16 %v152
    %v211 = vunpack.c.l.b16 %v153
    %v212 = vunpack.c.h.b16 %v153
    %v213 = vunpack.c.l.b16 %v154
    %v214 = vunpack.c.h.b16 %v154
    %v215 = vpack.c.b16 %v185, %v183
    %v216 = vpack.c.b16 %v186, %v184
    %v217 = vpack.c.b16 %v189, %v187
    %v218 = vpack.c.b16 %v190, %v188
    %v219 = vpack.c.b16 %v193, %v191
    %v220 = vpack.c.b16 %v194, %v192
    %v221 = vpack.c.b16 %v197, %v195
    %v222 = vpack.c.b16 %v198, %v196
    %v223 = vpack.c.b16 %v201, %v199
    %v224 = vpack.c.b16 %v202, %v200
    %v225 = vpack.c.b16 %v205, %v203
    %v226 = vpack.c.b16 %v206, %v204
    %v227 = vpack.c.b16 %v209, %v207
    %v228 = vpack.c.b16 %v210, %v208
    %v229 = vpack.c.b16 %v213, %v211
    %v230 = vpack.c.b16 %v214, %v212
    %247 = vmatprep.subr.bf16.mxu0 %v216
    %248 = vmatpush1.bf16.msra.mxu0 %v215
    %249 = vmatprep.subr.bf16.mxu0 %v218
    %250 = vmatpush1.bf16.msra.mxu0 %v217
    %251 = vmatprep.subr.bf16.mxu0 %v220
    %252 = vmatpush1.bf16.msra.mxu0 %v219
    %253 = vmatprep.subr.bf16.mxu0 %v222
    %254 = vmatpush1.bf16.msra.mxu0 %v221
    %255 = vmatprep.subr.bf16.mxu0 %v224
    %256 = vmatpush1.bf16.msra.mxu0 %v223
    %257 = vmatprep.subr.bf16.mxu0 %v226
    %258 = vmatpush1.bf16.msra.mxu0 %v225
    %259 = vmatprep.subr.bf16.mxu0 %v228
    %260 = vmatpush1.bf16.msra.mxu0 %v227
    %261 = vmatprep.subr.bf16.mxu0 %v230
    %262 = vmatpush1.bf16.msra.mxu0 %v229
    %263 = vmatprep.subr.bf16.mxu0 0
    %264 = vmatpush1.bf16.msra.mxu0 0
    %265 = vmatprep.subr.bf16.mxu0 0
    %266 = vmatpush1.bf16.msra.mxu0 0
    %267 = vmatprep.subr.bf16.mxu0 0
    %268 = vmatpush1.bf16.msra.mxu0 0
    %269 = vmatprep.subr.bf16.mxu0 0
    %270 = vmatpush1.bf16.msra.mxu0 0
    %271 = vmatprep.subr.bf16.mxu0 0
    %272 = vmatpush1.bf16.msra.mxu0 0
    %273 = vmatprep.subr.bf16.mxu0 0
    %274 = vmatpush1.bf16.msra.mxu0 0
    %275 = vmatprep.subr.bf16.mxu0 0
    %276 = vmatpush1.bf16.msra.mxu0 0
    %277 = vmatprep.subr.bf16.mxu0 0
    %278 = vmatpush1.bf16.msra.mxu0 0
    %279 = vmatprep.mubr.bf16.mxu0 0
    %280 = vmatmul.mubr.bf16.gmra.mrb[0].mxu0 %v107
    %v281 = vpop.f32.mrb[0].mxu0
    %v282 = vadd.f32 %v160, %v281
    %v283 = vpop.f32.mrb[0].mxu0
    %v284 = vadd.f32 %v164, %v283
    %v285 = vpop.f32.mrb[0].mxu0
    %v286 = vadd.f32 %v160, %v285
    %v287 = vpop.f32.mrb[0].mxu0
    %v288 = vadd.f32 %v164, %v287
    %289 = vmatprep.mubr.bf16.mxu0 0
    %290 = vmatmul.mubr.bf16.gmra.mrb[0].mxu0 %v108
    %v291 = vpop.f32.mrb[0].mxu0
    %v292 = vadd.f32 %v160, %v291
    %v293 = vpop.f32.mrb[0].mxu0
    %v294 = vadd.f32 %v164, %v293
    %v295 = vpop.f32.mrb[0].mxu0
    %v296 = vadd.f32 %v160, %v295
    %v297 = vpop.f32.mrb[0].mxu0
    %v298 = vadd.f32 %v164, %v297
    %299 = vmatprep.mubr.bf16.mxu0 0
    %300 = vmatmul.mubr.bf16.gmra.mrb[0].mxu0 %v109
    %v301 = vpop.f32.mrb[0].mxu0
    %v302 = vadd.f32 %v160, %v301
    %v303 = vpop.f32.mrb[0].mxu0
    %v304 = vadd.f32 %v164, %v303
    %v305 = vpop.f32.mrb[0].mxu0
    %v306 = vadd.f32 %v160, %v305
    %v307 = vpop.f32.mrb[0].mxu0
    %v308 = vadd.f32 %v164, %v307
    %309 = vmatprep.mubr.bf16.mxu0 0
    %310 = vmatmul.mubr.bf16.gmra.mrb[0].mxu0 %v110
    %v311 = vpop.f32.mrb[0].mxu0
    %v312 = vadd.f32 %v160, %v311
    %v313 = vpop.f32.mrb[0].mxu0
    %v314 = vadd.f32 %v164, %v313
    %v315 = vpop.f32.mrb[0].mxu0
    %v316 = vadd.f32 %v160, %v315
    %v317 = vpop.f32.mrb[0].mxu0
    %v318 = vadd.f32 %v164, %v317
    %319 = vmatprep.mubr.bf16.mxu0 0
    %320 = vmatmul.mubr.bf16.gmra.mrb[0].mxu0 %v111
    %v321 = vpop.f32.mrb[0].mxu0
    %v322 = vadd.f32 %v160, %v321
    %v323 = vpop.f32.mrb[0].mxu0
    %v324 = vadd.f32 %v164, %v323
    %v325 = vpop.f32.mrb[0].mxu0
    %v326 = vadd.f32 %v160, %v325
    %v327 = vpop.f32.mrb[0].mxu0
    %v328 = vadd.f32 %v164, %v327
    %329 = vmatprep.mubr.bf16.mxu0 0
    %330 = vmatmul.mubr.bf16.gmra.mrb[0].mxu0 %v112
    %v331 = vpop.f32.mrb[0].mxu0
    %v332 = vadd.f32 %v160, %v331
    %v333 = vpop.f32.mrb[0].mxu0
    %v334 = vadd.f32 %v164, %v333
    %v335 = vpop.f32.mrb[0].mxu0
    %v336 = vadd.f32 %v160, %v335
    %v337 = vpop.f32.mrb[0].mxu0
    %v338 = vadd.f32 %v164, %v337
    %339 = vmatprep.mubr.bf16.mxu0 0
    %340 = vmatmul.mubr.bf16.gmra.mrb[0].mxu0 %v113
    %v341 = vpop.f32.mrb[0].mxu0
    %v342 = vadd.f32 %v160, %v341
    %v343 = vpop.f32.mrb[0].mxu0
    %v344 = vadd.f32 %v164, %v343
    %v345 = vpop.f32.mrb[0].mxu0
    %v346 = vadd.f32 %v160, %v345
    %v347 = vpop.f32.mrb[0].mxu0
    %v348 = vadd.f32 %v164, %v347
    %349 = vmatprep.mubr.bf16.mxu0 0
    %350 = vmatmul.mubr.bf16.gmra.mrb[0].mxu0 %v114
    %v351 = vpop.f32.mrb[0].mxu0
    %v352 = vadd.f32 %v160, %v351
    %v353 = vpop.f32.mrb[0].mxu0
    %v354 = vadd.f32 %v164, %v353
    %v355 = vpop.f32.mrb[0].mxu0
    %v356 = vadd.f32 %v160, %v355
    %v357 = vpop.f32.mrb[0].mxu0
    %v358 = vadd.f32 %v164, %v357
    %359 = vmatprep.mubr.bf16.mxu0 0
    %360 = vmatmul.mubr.bf16.gmra.mrb[0].mxu0 %v115
    %v361 = vpop.f32.mrb[0].mxu0
    %v362 = vadd.f32 %v160, %v361
    %v363 = vpop.f32.mrb[0].mxu0
    %v364 = vadd.f32 %v164, %v363
    %v365 = vpop.f32.mrb[0].mxu0
    %v366 = vadd.f32 %v160, %v365
    %v367 = vpop.f32.mrb[0].mxu0
    %v368 = vadd.f32 %v164, %v367
    %369 = vmatprep.mubr.bf16.mxu0 0
    %370 = vmatmul.mubr.bf16.gmra.mrb[0].mxu0 %v116
    %v371 = vpop.f32.mrb[0].mxu0
    %v372 = vadd.f32 %v160, %v371
    %v373 = vpop.f32.mrb[0].mxu0
    %v374 = vadd.f32 %v164, %v373
    %v375 = vpop.f32.mrb[0].mxu0
    %v376 = vadd.f32 %v160, %v375
    %v377 = vpop.f32.mrb[0].mxu0
    %v378 = vadd.f32 %v164, %v377
    %379 = vmatprep.mubr.bf16.mxu0 0
    %380 = vmatmul.mubr.bf16.gmra.mrb[0].mxu0 %v117
    %v381 = vpop.f32.mrb[0].mxu0
    %v382 = vadd.f32 %v160, %v381
    %v383 = vpop.f32.mrb[0].mxu0
    %v384 = vadd.f32 %v164, %v383
    %v385 = vpop.f32.mrb[0].mxu0
    %v386 = vadd.f32 %v160, %v385
    %v387 = vpop.f32.mrb[0].mxu0
    %v388 = vadd.f32 %v164, %v387
    %389 = vmatprep.mubr.bf16.mxu0 0
    %390 = vmatmul.mubr.bf16.gmra.mrb[0].mxu0 %v118
    %v391 = vpop.f32.mrb[0].mxu0
    %v392 = vadd.f32 %v160, %v391
    %v393 = vpop.f32.mrb[0].mxu0
    %v394 = vadd.f32 %v164, %v393
    %v395 = vpop.f32.mrb[0].mxu0
    %v396 = vadd.f32 %v160, %v395
    %v397 = vpop.f32.mrb[0].mxu0
    %v398 = vadd.f32 %v164, %v397
    %399 = vmatprep.mubr.bf16.mxu0 0
    %400 = vmatmul.mubr.bf16.gmra.mrb[0].mxu0 %v119
    %v401 = vpop.f32.mrb[0].mxu0
    %v402 = vadd.f32 %v160, %v401
    %v403 = vpop.f32.mrb[0].mxu0
    %v404 = vadd.f32 %v164, %v403
    %v405 = vpop.f32.mrb[0].mxu0
    %v406 = vadd.f32 %v160, %v405
    %v407 = vpop.f32.mrb[0].mxu0
    %v408 = vadd.f32 %v164, %v407
    %409 = vmatprep.mubr.bf16.mxu0 0
    %410 = vmatmul.mubr.bf16.gmra.mrb[0].mxu0 %v120
    %v411 = vpop.f32.mrb[0].mxu0
    %v412 = vadd.f32 %v160, %v411
    %v413 = vpop.f32.mrb[0].mxu0
    %v414 = vadd.f32 %v164, %v413
    %v415 = vpop.f32.mrb[0].mxu0
    %v416 = vadd.f32 %v160, %v415
    %v417 = vpop.f32.mrb[0].mxu0
    %v418 = vadd.f32 %v164, %v417
    %419 = vmatprep.mubr.bf16.mxu0 0
    %420 = vmatmul.mubr.bf16.gmra.mrb[0].mxu0 %v121
    %v421 = vpop.f32.mrb[0].mxu0
    %v422 = vadd.f32 %v160, %v421
    %v423 = vpop.f32.mrb[0].mxu0
    %v424 = vadd.f32 %v164, %v423
    %v425 = vpop.f32.mrb[0].mxu0
    %v426 = vadd.f32 %v160, %v425
    %v427 = vpop.f32.mrb[0].mxu0
    %v428 = vadd.f32 %v164, %v427
    %429 = vmatprep.mubr.bf16.mxu0 0
    %430 = vmatmul.mubr.bf16.gmra.mrb[0].mxu0 %v122
    %v431 = vpop.f32.mrb[0].mxu0
    %v432 = vadd.f32 %v160, %v431
    %v433 = vpop.f32.mrb[0].mxu0
    %v434 = vadd.f32 %v164, %v433
    %v435 = vpop.f32.mrb[0].mxu0
    %v436 = vadd.f32 %v160, %v435
    %v437 = vpop.f32.mrb[0].mxu0
    %v438 = vadd.f32 %v164, %v437
    %439 = vmatprep.mubr.bf16.mxu0 0
    %440 = vmatmul.mubr.bf16.gmra.mrb[0].mxu0 %v123
    %v441 = vpop.f32.mrb[0].mxu0
    %v442 = vadd.f32 %v160, %v441
    %v443 = vpop.f32.mrb[0].mxu0
    %v444 = vadd.f32 %v164, %v443
    %v445 = vpop.f32.mrb[0].mxu0
    %v446 = vadd.f32 %v160, %v445
    %v447 = vpop.f32.mrb[0].mxu0
    %v448 = vadd.f32 %v164, %v447
    %449 = vmatprep.mubr.bf16.mxu0 0
    %450 = vmatmul.mubr.bf16.gmra.mrb[0].mxu0 %v124
    %v451 = vpop.f32.mrb[0].mxu0
    %v452 = vadd.f32 %v160, %v451
    %v453 = vpop.f32.mrb[0].mxu0
    %v454 = vadd.f32 %v164, %v453
    %v455 = vpop.f32.mrb[0].mxu0
    %v456 = vadd.f32 %v160, %v455
    %v457 = vpop.f32.mrb[0].mxu0
    %v458 = vadd.f32 %v164, %v457
    %459 = vmatprep.mubr.bf16.mxu0 0
    %460 = vmatmul.mubr.bf16.gmra.mrb[0].mxu0 %v125
    %v461 = vpop.f32.mrb[0].mxu0
    %v462 = vadd.f32 %v160, %v461
    %v463 = vpop.f32.mrb[0].mxu0
    %v464 = vadd.f32 %v164, %v463
    %v465 = vpop.f32.mrb[0].mxu0
    %v466 = vadd.f32 %v160, %v465
    %v467 = vpop.f32.mrb[0].mxu0
    %v468 = vadd.f32 %v164, %v467
    %469 = vmatprep.mubr.bf16.mxu0 0
    %470 = vmatmul.mubr.bf16.gmra.mrb[0].mxu0 %v126
    %v471 = vpop.f32.mrb[0].mxu0
    %v472 = vadd.f32 %v160, %v471
    %v473 = vpop.f32.mrb[0].mxu0
    %v474 = vadd.f32 %v164, %v473
    %v475 = vpop.f32.mrb[0].mxu0
    %v476 = vadd.f32 %v160, %v475
    %v477 = vpop.f32.mrb[0].mxu0
    %v478 = vadd.f32 %v164, %v477
    %479 = vmatprep.mubr.bf16.mxu0 0
    %480 = vmatmul.mubr.bf16.gmra.mrb[0].mxu0 %v127
    %v481 = vpop.f32.mrb[0].mxu0
    %v482 = vadd.f32 %v160, %v481
    %v483 = vpop.f32.mrb[0].mxu0
    %v484 = vadd.f32 %v164, %v483
    %v485 = vpop.f32.mrb[0].mxu0
    %v486 = vadd.f32 %v160, %v485
    %v487 = vpop.f32.mrb[0].mxu0
    %v488 = vadd.f32 %v164, %v487
    %489 = vmatprep.mubr.bf16.mxu0 0
    %490 = vmatmul.mubr.bf16.gmra.mrb[0].mxu0 %v128
    %v491 = vpop.f32.mrb[0].mxu0
    %v492 = vadd.f32 %v160, %v491
    %v493 = vpop.f32.mrb[0].mxu0
    %v494 = vadd.f32 %v164, %v493
    %v495 = vpop.f32.mrb[0].mxu0
    %v496 = vadd.f32 %v160, %v495
    %v497 = vpop.f32.mrb[0].mxu0
    %v498 = vadd.f32 %v164, %v497
    %499 = vmatprep.mubr.bf16.mxu0 0
    %500 = vmatmul.mubr.bf16.gmra.mrb[0].mxu0 %v129
    %v501 = vpop.f32.mrb[0].mxu0
    %v502 = vadd.f32 %v160, %v501
    %v503 = vpop.f32.mrb[0].mxu0
    %v504 = vadd.f32 %v164, %v503
    %v505 = vpop.f32.mrb[0].mxu0
    %v506 = vadd.f32 %v160, %v505
    %v507 = vpop.f32.mrb[0].mxu0
    %v508 = vadd.f32 %v164, %v507
    %509 = vmatprep.mubr.bf16.mxu0 0
    %510 = vmatmul.mubr.bf16.gmra.mrb[0].mxu0 %v130
    %v511 = vpop.f32.mrb[0].mxu0
    %v512 = vadd.f32 %v160, %v511
    %v513 = vpop.f32.mrb[0].mxu0
    %v514 = vadd.f32 %v164, %v513
    %v515 = vpop.f32.mrb[0].mxu0
    %v516 = vadd.f32 %v160, %v515
    %v517 = vpop.f32.mrb[0].mxu0
    %v518 = vadd.f32 %v164, %v517
    %519 = vmatprep.mubr.bf16.mxu0 0
    %520 = vmatmul.mubr.bf16.gmra.mrb[0].mxu0 %v131
    %v521 = vpop.f32.mrb[0].mxu0
    %v522 = vadd.f32 %v160, %v521
    %v523 = vpop.f32.mrb[0].mxu0
    %v524 = vadd.f32 %v164, %v523
    %v525 = vpop.f32.mrb[0].mxu0
    %v526 = vadd.f32 %v160, %v525
    %v527 = vpop.f32.mrb[0].mxu0
    %v528 = vadd.f32 %v164, %v527
    %529 = vmatprep.mubr.bf16.mxu0 0
    %530 = vmatmul.mubr.bf16.gmra.mrb[0].mxu0 %v132
    %v531 = vpop.f32.mrb[0].mxu0
    %v532 = vadd.f32 %v160, %v531
    %v533 = vpop.f32.mrb[0].mxu0
    %v534 = vadd.f32 %v164, %v533
    %v535 = vpop.f32.mrb[0].mxu0
    %v536 = vadd.f32 %v160, %v535
    %v537 = vpop.f32.mrb[0].mxu0
    %v538 = vadd.f32 %v164, %v537
    %539 = vmatprep.mubr.bf16.mxu0 0
    %540 = vmatmul.mubr.bf16.gmra.mrb[0].mxu0 %v133
    %v541 = vpop.f32.mrb[0].mxu0
    %v542 = vadd.f32 %v160, %v541
    %v543 = vpop.f32.mrb[0].mxu0
    %v544 = vadd.f32 %v164, %v543
    %v545 = vpop.f32.mrb[0].mxu0
    %v546 = vadd.f32 %v160, %v545
    %v547 = vpop.f32.mrb[0].mxu0
    %v548 = vadd.f32 %v164, %v547
    %549 = vmatprep.mubr.bf16.mxu0 0
    %550 = vmatmul.mubr.bf16.gmra.mrb[0].mxu0 %v134
    %v551 = vpop.f32.mrb[0].mxu0
    %v552 = vadd.f32 %v160, %v551
    %v553 = vpop.f32.mrb[0].mxu0
    %v554 = vadd.f32 %v164, %v553
    %v555 = vpop.f32.mrb[0].mxu0
    %v556 = vadd.f32 %v160, %v555
    %v557 = vpop.f32.mrb[0].mxu0
    %v558 = vadd.f32 %v164, %v557
    %559 = vmatprep.mubr.bf16.mxu0 0
    %560 = vmatmul.mubr.bf16.gmra.mrb[0].mxu0 %v135
    %v561 = vpop.f32.mrb[0].mxu0
    %v562 = vadd.f32 %v160, %v561
    %v563 = vpop.f32.mrb[0].mxu0
    %v564 = vadd.f32 %v164, %v563
    %v565 = vpop.f32.mrb[0].mxu0
    %v566 = vadd.f32 %v160, %v565
    %v567 = vpop.f32.mrb[0].mxu0
    %v568 = vadd.f32 %v164, %v567
    %569 = vmatprep.mubr.bf16.mxu0 0
    %570 = vmatmul.mubr.bf16.gmra.mrb[0].mxu0 %v136
    %v571 = vpop.f32.mrb[0].mxu0
    %v572 = vadd.f32 %v160, %v571
    %v573 = vpop.f32.mrb[0].mxu0
    %v574 = vadd.f32 %v164, %v573
    %v575 = vpop.f32.mrb[0].mxu0
    %v576 = vadd.f32 %v160, %v575
    %v577 = vpop.f32.mrb[0].mxu0
    %v578 = vadd.f32 %v164, %v577
    %579 = vmatprep.mubr.bf16.mxu0 0
    %580 = vmatmul.mubr.bf16.gmra.mrb[0].mxu0 %v137
    %v581 = vpop.f32.mrb[0].mxu0
    %v582 = vadd.f32 %v160, %v581
    %v583 = vpop.f32.mrb[0].mxu0
    %v584 = vadd.f32 %v164, %v583
    %v585 = vpop.f32.mrb[0].mxu0
    %v586 = vadd.f32 %v160, %v585
    %v587 = vpop.f32.mrb[0].mxu0
    %v588 = vadd.f32 %v164, %v587
    %589 = vmatprep.mubr.bf16.mxu0 0
    %590 = vmatmul.mubr.bf16.gmra.mrb[0].mxu0 %v138
    %v591 = vpop.f32.mrb[0].mxu0
    %v592 = vadd.f32 %v160, %v591
    %v593 = vpop.f32.mrb[0].mxu0
    %v594 = vadd.f32 %v164, %v593
    %v595 = vpop.f32.mrb[0].mxu0
    %v596 = vadd.f32 %v160, %v595
    %v597 = vpop.f32.mrb[0].mxu0
    %v598 = vadd.f32 %v164, %v597
    %599 = vdwg.mxu0
    %v600 = vmax.f32 %v282, 0.0
    %v601 = vmax.f32 %v284, 0.0
    %v602 = vmax.f32 %v286, 0.0
    %v603 = vmax.f32 %v288, 0.0
    %v604 = vmax.f32 %v292, 0.0
    %v605 = vmax.f32 %v294, 0.0
    %v606 = vmax.f32 %v296, 0.0
    %v607 = vmax.f32 %v298, 0.0
    %v608 = vmax.f32 %v302, 0.0
    %v609 = vmax.f32 %v304, 0.0
    %v610 = vmax.f32 %v306, 0.0
    %v611 = vmax.f32 %v308, 0.0
    %v612 = vmax.f32 %v312, 0.0
    %v613 = vmax.f32 %v314, 0.0
    %v614 = vmax.f32 %v316, 0.0
    %v615 = vmax.f32 %v318, 0.0
    %v616 = vmax.f32 %v322, 0.0
    %v617 = vmax.f32 %v324, 0.0
    %v618 = vmax.f32 %v326, 0.0
    %v619 = vmax.f32 %v328, 0.0
    %v620 = vmax.f32 %v332, 0.0
    %v621 = vmax.f32 %v334, 0.0
    %v622 = vmax.f32 %v336, 0.0
    %v623 = vmax.f32 %v338, 0.0
    %v624 = vmax.f32 %v342, 0.0
    %v625 = vmax.f32 %v344, 0.0
    %v626 = vmax.f32 %v346, 0.0
    %v627 = vmax.f32 %v348, 0.0
    %v628 = vmax.f32 %v352, 0.0
    %v629 = vmax.f32 %v354, 0.0
    %v630 = vmax.f32 %v356, 0.0
    %v631 = vmax.f32 %v358, 0.0
    %v632 = vmax.f32 %v362, 0.0
    %v633 = vmax.f32 %v364, 0.0
    %v634 = vmax.f32 %v366, 0.0
    %v635 = vmax.f32 %v368, 0.0
    %v636 = vmax.f32 %v372, 0.0
    %v637 = vmax.f32 %v374, 0.0
    %v638 = vmax.f32 %v376, 0.0
    %v639 = vmax.f32 %v378, 0.0
    %v640 = vmax.f32 %v382, 0.0
    %v641 = vmax.f32 %v384, 0.0
    %v642 = vmax.f32 %v386, 0.0
    %v643 = vmax.f32 %v388, 0.0
    %v644 = vmax.f32 %v392, 0.0
    %v645 = vmax.f32 %v394, 0.0
    %v646 = vmax.f32 %v396, 0.0
    %v647 = vmax.f32 %v398, 0.0
    %v648 = vmax.f32 %v402, 0.0
    %v649 = vmax.f32 %v404, 0.0
    %v650 = vmax.f32 %v406, 0.0
    %v651 = vmax.f32 %v408, 0.0
    %v652 = vmax.f32 %v412, 0.0
    %v653 = vmax.f32 %v414, 0.0
    %v654 = vmax.f32 %v416, 0.0
    %v655 = vmax.f32 %v418, 0.0
    %v656 = vmax.f32 %v422, 0.0
    %v657 = vmax.f32 %v424, 0.0
    %v658 = vmax.f32 %v426, 0.0
    %v659 = vmax.f32 %v428, 0.0
    %v660 = vmax.f32 %v432, 0.0
    %v661 = vmax.f32 %v434, 0.0
    %v662 = vmax.f32 %v436, 0.0
    %v663 = vmax.f32 %v438, 0.0
    %v664 = vmax.f32 %v442, 0.0
    %v665 = vmax.f32 %v444, 0.0
    %v666 = vmax.f32 %v446, 0.0
    %v667 = vmax.f32 %v448, 0.0
    %v668 = vmax.f32 %v452, 0.0
    %v669 = vmax.f32 %v454, 0.0
    %v670 = vmax.f32 %v456, 0.0
    %v671 = vmax.f32 %v458, 0.0
    %v672 = vmax.f32 %v462, 0.0
    %v673 = vmax.f32 %v464, 0.0
    %v674 = vmax.f32 %v466, 0.0
    %v675 = vmax.f32 %v468, 0.0
    %v676 = vmax.f32 %v472, 0.0
    %v677 = vmax.f32 %v474, 0.0
    %v678 = vmax.f32 %v476, 0.0
    %v679 = vmax.f32 %v478, 0.0
    %v680 = vmax.f32 %v482, 0.0
    %v681 = vmax.f32 %v484, 0.0
    %v682 = vmax.f32 %v486, 0.0
    %v683 = vmax.f32 %v488, 0.0
    %v684 = vmax.f32 %v492, 0.0
    %v685 = vmax.f32 %v494, 0.0
    %v686 = vmax.f32 %v496, 0.0
    %v687 = vmax.f32 %v498, 0.0
    %v688 = vmax.f32 %v502, 0.0
    %v689 = vmax.f32 %v504, 0.0
    %v690 = vmax.f32 %v506, 0.0
    %v691 = vmax.f32 %v508, 0.0
    %v692 = vmax.f32 %v512, 0.0
    %v693 = vmax.f32 %v514, 0.0
    %v694 = vmax.f32 %v516, 0.0
    %v695 = vmax.f32 %v518, 0.0
    %v696 = vmax.f32 %v522, 0.0
    %v697 = vmax.f32 %v524, 0.0
    %v698 = vmax.f32 %v526, 0.0
    %v699 = vmax.f32 %v528, 0.0
    %v700 = vmax.f32 %v532, 0.0
    %v701 = vmax.f32 %v534, 0.0
    %v702 = vmax.f32 %v536, 0.0
    %v703 = vmax.f32 %v538, 0.0
    %v704 = vmax.f32 %v542, 0.0
    %v705 = vmax.f32 %v544, 0.0
    %v706 = vmax.f32 %v546, 0.0
    %v707 = vmax.f32 %v548, 0.0
    %v708 = vmax.f32 %v552, 0.0
    %v709 = vmax.f32 %v554, 0.0
    %v710 = vmax.f32 %v556, 0.0
    %v711 = vmax.f32 %v558, 0.0
    %v712 = vmax.f32 %v562, 0.0
    %v713 = vmax.f32 %v564, 0.0
    %v714 = vmax.f32 %v566, 0.0
    %v715 = vmax.f32 %v568, 0.0
    %v716 = vmax.f32 %v572, 0.0
    %v717 = vmax.f32 %v574, 0.0
    %v718 = vmax.f32 %v576, 0.0
    %v719 = vmax.f32 %v578, 0.0
    %v720 = vmax.f32 %v582, 0.0
    %v721 = vmax.f32 %v584, 0.0
    %v722 = vmax.f32 %v586, 0.0
    %v723 = vmax.f32 %v588, 0.0
    %v724 = vmax.f32 %v592, 0.0
    %v725 = vmax.f32 %v594, 0.0
    %v726 = vmax.f32 %v596, 0.0
    %v727 = vmax.f32 %v598, 0.0
    %v728 = vpack.c.bf16 %v602, %v600
    %v729 = vpack.c.bf16 %v606, %v604
    %v730 = vpack.c.bf16 %v610, %v608
    %v731 = vpack.c.bf16 %v614, %v612
    %v732 = vpack.c.bf16 %v618, %v616
    %v733 = vpack.c.bf16 %v622, %v620
    %v734 = vpack.c.bf16 %v626, %v624
    %v735 = vpack.c.bf16 %v630, %v628
    %v736 = vpack.c.bf16 %v634, %v632
    %v737 = vpack.c.bf16 %v638, %v636
    %v738 = vpack.c.bf16 %v642, %v640
    %v739 = vpack.c.bf16 %v646, %v644
    %v740 = vpack.c.bf16 %v650, %v648
    %v741 = vpack.c.bf16 %v654, %v652
    %v742 = vpack.c.bf16 %v658, %v656
    %v743 = vpack.c.bf16 %v662, %v660
    %v744 = vpack.c.bf16 %v666, %v664
    %v745 = vpack.c.bf16 %v670, %v668
    %v746 = vpack.c.bf16 %v674, %v672
    %v747 = vpack.c.bf16 %v678, %v676
    %v748 = vpack.c.bf16 %v682, %v680
    %v749 = vpack.c.bf16 %v686, %v684
    %v750 = vpack.c.bf16 %v690, %v688
    %v751 = vpack.c.bf16 %v694, %v692
    %v752 = vpack.c.bf16 %v698, %v696
    %v753 = vpack.c.bf16 %v702, %v700
    %v754 = vpack.c.bf16 %v706, %v704
    %v755 = vpack.c.bf16 %v710, %v708
    %v756 = vpack.c.bf16 %v714, %v712
    %v757 = vpack.c.bf16 %v718, %v716
    %v758 = vpack.c.bf16 %v722, %v720
    %v759 = vpack.c.bf16 %v726, %v724
    %v760 = vpack.c.bf16 %v603, %v601
    %v761 = vpack.c.bf16 %v607, %v605
    %v762 = vpack.c.bf16 %v611, %v609
    %v763 = vpack.c.bf16 %v615, %v613
    %v764 = vpack.c.bf16 %v619, %v617
    %v765 = vpack.c.bf16 %v623, %v621
    %v766 = vpack.c.bf16 %v627, %v625
    %v767 = vpack.c.bf16 %v631, %v629
    %v768 = vpack.c.bf16 %v635, %v633
    %v769 = vpack.c.bf16 %v639, %v637
    %v770 = vpack.c.bf16 %v643, %v641
    %v771 = vpack.c.bf16 %v647, %v645
    %v772 = vpack.c.bf16 %v651, %v649
    %v773 = vpack.c.bf16 %v655, %v653
    %v774 = vpack.c.bf16 %v659, %v657
    %v775 = vpack.c.bf16 %v663, %v661
    %v776 = vpack.c.bf16 %v667, %v665
    %v777 = vpack.c.bf16 %v671, %v669
    %v778 = vpack.c.bf16 %v675, %v673
    %v779 = vpack.c.bf16 %v679, %v677
    %v780 = vpack.c.bf16 %v683, %v681
    %v781 = vpack.c.bf16 %v687, %v685
    %v782 = vpack.c.bf16 %v691, %v689
    %v783 = vpack.c.bf16 %v695, %v693
    %v784 = vpack.c.bf16 %v699, %v697
    %v785 = vpack.c.bf16 %v703, %v701
    %v786 = vpack.c.bf16 %v707, %v705
    %v787 = vpack.c.bf16 %v711, %v709
    %v788 = vpack.c.bf16 %v715, %v713
    %v789 = vpack.c.bf16 %v719, %v717
    %v790 = vpack.c.bf16 %v723, %v721
    %v791 = vpack.c.bf16 %v727, %v725
    %v792 = vld [vmem:[%s3] sm:$0xff]
    %v793 = vld [vmem:[%s3 + $0x1c] sm:$0xff]
    %v794 = vld [vmem:[%s3 + $0x38] sm:$0xff]
    %v795 = vld [vmem:[%s3 + $0x54] sm:$0xff]
    %v796 = vld [vmem:[%s3 + $0x70] sm:$0xff]
    %v797 = vld [vmem:[%s3 + $0x8c] sm:$0xff]
    %v798 = vld [vmem:[%s3 + $0xa8] sm:$0xff]
    %v799 = vld [vmem:[%s3 + $0xc4] sm:$0xff]
    %v800 = vld [vmem:[%s3 + $0xe0] sm:$0xff]
    %v801 = vld [vmem:[%s3 + $0xfc] sm:$0xff]
    %v802 = vld [vmem:[%s3 + $0x118] sm:$0xff]
    %v803 = vld [vmem:[%s3 + $0x134] sm:$0xff]
    %v804 = vld [vmem:[%s3 + $0x150] sm:$0xff]
    %v805 = vld [vmem:[%s3 + $0x16c] sm:$0xff]
    %v806 = vld [vmem:[%s3 + $0x188] sm:$0xff]
    %v807 = vld [vmem:[%s3 + $0x1a4] sm:$0xff]
    %v824 = vunpack.c.l.b16 %v792
    %v825 = vunpack.c.h.b16 %v792
    %v826 = vunpack.c.l.b16 %v793
    %v827 = vunpack.c.h.b16 %v793
    %v828 = vunpack.c.l.b16 %v794
    %v829 = vunpack.c.h.b16 %v794
    %v830 = vunpack.c.l.b16 %v795
    %v831 = vunpack.c.h.b16 %v795
    %v832 = vunpack.c.l.b16 %v796
    %v833 = vunpack.c.h.b16 %v796
    %v834 = vunpack.c.l.b16 %v797
    %v835 = vunpack.c.h.b16 %v797
    %v836 = vunpack.c.l.b16 %v798
    %v837 = vunpack.c.h.b16 %v798
    %v838 = vunpack.c.l.b16 %v799
    %v839 = vunpack.c.h.b16 %v799
    %v840 = vunpack.c.l.b16 %v800
    %v841 = vunpack.c.h.b16 %v800
    %v842 = vunpack.c.l.b16 %v801
    %v843 = vunpack.c.h.b16 %v801
    %v844 = vunpack.c.l.b16 %v802
    %v845 = vunpack.c.h.b16 %v802
    %v846 = vunpack.c.l.b16 %v803
    %v847 = vunpack.c.h.b16 %v803
    %v848 = vunpack.c.l.b16 %v804
    %v849 = vunpack.c.h.b16 %v804
    %v850 = vunpack.c.l.b16 %v805
    %v851 = vunpack.c.h.b16 %v805
    %v852 = vunpack.c.l.b16 %v806
    %v853 = vunpack.c.h.b16 %v806
    %v854 = vunpack.c.l.b16 %v807
    %v855 = vunpack.c.h.b16 %v807
    %v856 = vpack.c.b16 %v826, %v824
    %v857 = vpack.c.b16 %v827, %v825
    %v858 = vpack.c.b16 %v830, %v828
    %v859 = vpack.c.b16 %v831, %v829
    %v860 = vpack.c.b16 %v834, %v832
    %v861 = vpack.c.b16 %v835, %v833
    %v862 = vpack.c.b16 %v838, %v836
    %v863 = vpack.c.b16 %v839, %v837
    %v864 = vpack.c.b16 %v842, %v840
    %v865 = vpack.c.b16 %v843, %v841
    %v866 = vpack.c.b16 %v846, %v844
    %v867 = vpack.c.b16 %v847, %v845
    %v868 = vpack.c.b16 %v850, %v848
    %v869 = vpack.c.b16 %v851, %v849
    %v870 = vpack.c.b16 %v854, %v852
    %v871 = vpack.c.b16 %v855, %v853
    %888 = vmatprep.subr.bf16.mxu0 %v857
    %889 = vmatpush1.bf16.msra.mxu0 %v856
    %890 = vmatprep.subr.bf16.mxu0 %v859
    %891 = vmatpush1.bf16.msra.mxu0 %v858
    %892 = vmatprep.subr.bf16.mxu0 %v861
    %893 = vmatpush1.bf16.msra.mxu0 %v860
    %894 = vmatprep.subr.bf16.mxu0 %v863
    %895 = vmatpush1.bf16.msra.mxu0 %v862
    %896 = vmatprep.subr.bf16.mxu0 %v865
    %897 = vmatpush1.bf16.msra.mxu0 %v864
    %898 = vmatprep.subr.bf16.mxu0 %v867
    %899 = vmatpush1.bf16.msra.mxu0 %v866
    %900 = vmatprep.subr.bf16.mxu0 %v869
    %901 = vmatpush1.bf16.msra.mxu0 %v868
    %902 = vmatprep.subr.bf16.mxu0 %v871
    %903 = vmatpush1.bf16.msra.mxu0 %v870
    %904 = vmatprep.subr.bf16.mxu0 0
    %905 = vmatpush1.bf16.msra.mxu0 0
    %906 = vmatprep.subr.bf16.mxu0 0
    %907 = vmatpush1.bf16.msra.mxu0 0
    %908 = vmatprep.subr.bf16.mxu0 0
    %909 = vmatpush1.bf16.msra.mxu0 0
    %910 = vmatprep.subr.bf16.mxu0 0
    %911 = vmatpush1.bf16.msra.mxu0 0
    %912 = vmatprep.subr.bf16.mxu0 0
    %913 = vmatpush1.bf16.msra.mxu0 0
    %914 = vmatprep.subr.bf16.mxu0 0
    %915 = vmatpush1.bf16.msra.mxu0 0
    %916 = vmatprep.subr.bf16.mxu0 0
    %917 = vmatpush1.bf16.msra.mxu0 0
    %918 = vmatprep.subr.bf16.mxu0 0
    %919 = vmatpush1.bf16.msra.mxu0 0
    %920 = vmatprep.mubr.bf16.mxu0 0
    %921 = vmatmul.mubr.bf16.gmra.mrb[0].mxu0 %v760
    %v922 = vpop.f32.mrb[0].mxu0
    %v923 = vadd.f32 0.0, %v922
    %v924 = vpop.f32.mrb[0].mxu0
    %v925 = vadd.f32 0.0, %v924
    %v926 = vpop.f32.mrb[0].mxu0
    %v927 = vadd.f32 0.0, %v926
    %v928 = vpop.f32.mrb[0].mxu0
    %v929 = vadd.f32 0.0, %v928
    %930 = vmatprep.mubr.bf16.mxu0 0
    %931 = vmatmul.mubr.bf16.gmra.mrb[0].mxu0 %v761
    %v932 = vpop.f32.mrb[0].mxu0
    %v933 = vadd.f32 0.0, %v932
    %v934 = vpop.f32.mrb[0].mxu0
    %v935 = vadd.f32 0.0, %v934
    %v936 = vpop.f32.mrb[0].mxu0
    %v937 = vadd.f32 0.0, %v936
    %v938 = vpop.f32.mrb[0].mxu0
    %v939 = vadd.f32 0.0, %v938
    %940 = vmatprep.mubr.bf16.mxu0 0
    %941 = vmatmul.mubr.bf16.gmra.mrb[0].mxu0 %v762
    %v942 = vpop.f32.mrb[0].mxu0
    %v943 = vadd.f32 0.0, %v942
    %v944 = vpop.f32.mrb[0].mxu0
    %v945 = vadd.f32 0.0, %v944
    %v946 = vpop.f32.mrb[0].mxu0
    %v947 = vadd.f32 0.0, %v946
    %v948 = vpop.f32.mrb[0].mxu0
    %v949 = vadd.f32 0.0, %v948
    %950 = vmatprep.mubr.bf16.mxu0 0
    %951 = vmatmul.mubr.bf16.gmra.mrb[0].mxu0 %v763
    %v952 = vpop.f32.mrb[0].mxu0
    %v953 = vadd.f32 0.0, %v952
    %v954 = vpop.f32.mrb[0].mxu0
    %v955 = vadd.f32 0.0, %v954
    %v956 = vpop.f32.mrb[0].mxu0
    %v957 = vadd.f32 0.0, %v956
    %v958 = vpop.f32.mrb[0].mxu0
    %v959 = vadd.f32 0.0, %v958
    %960 = vmatprep.mubr.bf16.mxu0 0
    %961 = vmatmul.mubr.bf16.gmra.mrb[0].mxu0 %v764
    %v962 = vpop.f32.mrb[0].mxu0
    %v963 = vadd.f32 0.0, %v962
    %v964 = vpop.f32.mrb[0].mxu0
    %v965 = vadd.f32 0.0, %v964
    %v966 = vpop.f32.mrb[0].mxu0
    %v967 = vadd.f32 0.0, %v966
    %v968 = vpop.f32.mrb[0].mxu0
    %v969 = vadd.f32 0.0, %v968
    %970 = vmatprep.mubr.bf16.mxu0 0
    %971 = vmatmul.mubr.bf16.gmra.mrb[0].mxu0 %v765
    %v972 = vpop.f32.mrb[0].mxu0
    %v973 = vadd.f32 0.0, %v972
    %v974 = vpop.f32.mrb[0].mxu0
    %v975 = vadd.f32 0.0, %v974
    %v976 = vpop.f32.mrb[0].mxu0
    %v977 = vadd.f32 0.0, %v976
    %v978 = vpop.f32.mrb[0].mxu0
    %v979 = vadd.f32 0.0, %v978
    %980 = vmatprep.mubr.bf16.mxu0 0
    %981 = vmatmul.mubr.bf16.gmra.mrb[0].mxu0 %v766
    %v982 = vpop.f32.mrb[0].mxu0
    %v983 = vadd.f32 0.0, %v982
    %v984 = vpop.f32.mrb[0].mxu0
    %v985 = vadd.f32 0.0, %v984
    %v986 = vpop.f32.mrb[0].mxu0
    %v987 = vadd.f32 0.0, %v986
    %v988 = vpop.f32.mrb[0].mxu0
    %v989 = vadd.f32 0.0, %v988
    %990 = vmatprep.mubr.bf16.mxu0 0
    %991 = vmatmul.mubr.bf16.gmra.mrb[0].mxu0 %v767
    %v992 = vpop.f32.mrb[0].mxu0
    %v993 = vadd.f32 0.0, %v992
    %v994 = vpop.f32.mrb[0].mxu0
    %v995 = vadd.f32 0.0, %v994
    %v996 = vpop.f32.mrb[0].mxu0
    %v997 = vadd.f32 0.0, %v996
    %v998 = vpop.f32.mrb[0].mxu0
    %v999 = vadd.f32 0.0, %v998
    %1000 = vmatprep.mubr.bf16.mxu0 0
    %1001 = vmatmul.mubr.bf16.gmra.mrb[0].mxu0 %v768
    %v1002 = vpop.f32.mrb[0].mxu0
    %v1003 = vadd.f32 0.0, %v1002
    %v1004 = vpop.f32.mrb[0].mxu0
    %v1005 = vadd.f32 0.0, %v1004
    %v1006 = vpop.f32.mrb[0].mxu0
    %v1007 = vadd.f32 0.0, %v1006
    %v1008 = vpop.f32.mrb[0].mxu0
    %v1009 = vadd.f32 0.0, %v1008
    %1010 = vmatprep.mubr.bf16.mxu0 0
    %1011 = vmatmul.mubr.bf16.gmra.mrb[0].mxu0 %v769
    %v1012 = vpop.f32.mrb[0].mxu0
    %v1013 = vadd.f32 0.0, %v1012
    %v1014 = vpop.f32.mrb[0].mxu0
    %v1015 = vadd.f32 0.0, %v1014
    %v1016 = vpop.f32.mrb[0].mxu0
    %v1017 = vadd.f32 0.0, %v1016
    %v1018 = vpop.f32.mrb[0].mxu0
    %v1019 = vadd.f32 0.0, %v1018
    %1020 = vmatprep.mubr.bf16.mxu0 0
    %1021 = vmatmul.mubr.bf16.gmra.mrb[0].mxu0 %v770
    %v1022 = vpop.f32.mrb[0].mxu0
    %v1023 = vadd.f32 0.0, %v1022
    %v1024 = vpop.f32.mrb[0].mxu0
    %v1025 = vadd.f32 0.0, %v1024
    %v1026 = vpop.f32.mrb[0].mxu0
    %v1027 = vadd.f32 0.0, %v1026
    %v1028 = vpop.f32.mrb[0].mxu0
    %v1029 = vadd.f32 0.0, %v1028
    %1030 = vmatprep.mubr.bf16.mxu0 0
    %1031 = vmatmul.mubr.bf16.gmra.mrb[0].mxu0 %v771
    %v1032 = vpop.f32.mrb[0].mxu0
    %v1033 = vadd.f32 0.0, %v1032
    %v1034 = vpop.f32.mrb[0].mxu0
    %v1035 = vadd.f32 0.0, %v1034
    %v1036 = vpop.f32.mrb[0].mxu0
    %v1037 = vadd.f32 0.0, %v1036
    %v1038 = vpop.f32.mrb[0].mxu0
    %v1039 = vadd.f32 0.0, %v1038
    %1040 = vmatprep.mubr.bf16.mxu0 0
    %1041 = vmatmul.mubr.bf16.gmra.mrb[0].mxu0 %v772
    %v1042 = vpop.f32.mrb[0].mxu0
    %v1043 = vadd.f32 0.0, %v1042
    %v1044 = vpop.f32.mrb[0].mxu0
    %v1045 = vadd.f32 0.0, %v1044
    %v1046 = vpop.f32.mrb[0].mxu0
    %v1047 = vadd.f32 0.0, %v1046
    %v1048 = vpop.f32.mrb[0].mxu0
    %v1049 = vadd.f32 0.0, %v1048
    %1050 = vmatprep.mubr.bf16.mxu0 0
    %1051 = vmatmul.mubr.bf16.gmra.mrb[0].mxu0 %v773
    %v1052 = vpop.f32.mrb[0].mxu0
    %v1053 = vadd.f32 0.0, %v1052
    %v1054 = vpop.f32.mrb[0].mxu0
    %v1055 = vadd.f32 0.0, %v1054
    %v1056 = vpop.f32.mrb[0].mxu0
    %v1057 = vadd.f32 0.0, %v1056
    %v1058 = vpop.f32.mrb[0].mxu0
    %v1059 = vadd.f32 0.0, %v1058
    %1060 = vmatprep.mubr.bf16.mxu0 0
    %1061 = vmatmul.mubr.bf16.gmra.mrb[0].mxu0 %v774
    %v1062 = vpop.f32.mrb[0].mxu0
    %v1063 = vadd.f32 0.0, %v1062
    %v1064 = vpop.f32.mrb[0].mxu0
    %v1065 = vadd.f32 0.0, %v1064
    %v1066 = vpop.f32.mrb[0].mxu0
    %v1067 = vadd.f32 0.0, %v1066
    %v1068 = vpop.f32.mrb[0].mxu0
    %v1069 = vadd.f32 0.0, %v1068
    %1070 = vmatprep.mubr.bf16.mxu0 0
    %1071 = vmatmul.mubr.bf16.gmra.mrb[0].mxu0 %v775
    %v1072 = vpop.f32.mrb[0].mxu0
    %v1073 = vadd.f32 0.0, %v1072
    %v1074 = vpop.f32.mrb[0].mxu0
    %v1075 = vadd.f32 0.0, %v1074
    %v1076 = vpop.f32.mrb[0].mxu0
    %v1077 = vadd.f32 0.0, %v1076
    %v1078 = vpop.f32.mrb[0].mxu0
    %v1079 = vadd.f32 0.0, %v1078
    %1080 = vmatprep.mubr.bf16.mxu0 0
    %1081 = vmatmul.mubr.bf16.gmra.mrb[0].mxu0 %v776
    %v1082 = vpop.f32.mrb[0].mxu0
    %v1083 = vadd.f32 0.0, %v1082
    %v1084 = vpop.f32.mrb[0].mxu0
    %v1085 = vadd.f32 0.0, %v1084
    %v1086 = vpop.f32.mrb[0].mxu0
    %v1087 = vadd.f32 0.0, %v1086
    %v1088 = vpop.f32.mrb[0].mxu0
    %v1089 = vadd.f32 0.0, %v1088
    %1090 = vmatprep.mubr.bf16.mxu0 0
    %1091 = vmatmul.mubr.bf16.gmra.mrb[0].mxu0 %v777
    %v1092 = vpop.f32.mrb[0].mxu0
    %v1093 = vadd.f32 0.0, %v1092
    %v1094 = vpop.f32.mrb[0].mxu0
    %v1095 = vadd.f32 0.0, %v1094
    %v1096 = vpop.f32.mrb[0].mxu0
    %v1097 = vadd.f32 0.0, %v1096
    %v1098 = vpop.f32.mrb[0].mxu0
    %v1099 = vadd.f32 0.0, %v1098
    %1100 = vmatprep.mubr.bf16.mxu0 0
    %1101 = vmatmul.mubr.bf16.gmra.mrb[0].mxu0 %v778
    %v1102 = vpop.f32.mrb[0].mxu0
    %v1103 = vadd.f32 0.0, %v1102
    %v1104 = vpop.f32.mrb[0].mxu0
    %v1105 = vadd.f32 0.0, %v1104
    %v1106 = vpop.f32.mrb[0].mxu0
    %v1107 = vadd.f32 0.0, %v1106
    %v1108 = vpop.f32.mrb[0].mxu0
    %v1109 = vadd.f32 0.0, %v1108
    %1110 = vmatprep.mubr.bf16.mxu0 0
    %1111 = vmatmul.mubr.bf16.gmra.mrb[0].mxu0 %v779
    %v1112 = vpop.f32.mrb[0].mxu0
    %v1113 = vadd.f32 0.0, %v1112
    %v1114 = vpop.f32.mrb[0].mxu0
    %v1115 = vadd.f32 0.0, %v1114
    %v1116 = vpop.f32.mrb[0].mxu0
    %v1117 = vadd.f32 0.0, %v1116
    %v1118 = vpop.f32.mrb[0].mxu0
    %v1119 = vadd.f32 0.0, %v1118
    %1120 = vmatprep.mubr.bf16.mxu0 0
    %1121 = vmatmul.mubr.bf16.gmra.mrb[0].mxu0 %v780
    %v1122 = vpop.f32.mrb[0].mxu0
    %v1123 = vadd.f32 0.0, %v1122
    %v1124 = vpop.f32.mrb[0].mxu0
    %v1125 = vadd.f32 0.0, %v1124
    %v1126 = vpop.f32.mrb[0].mxu0
    %v1127 = vadd.f32 0.0, %v1126
    %v1128 = vpop.f32.mrb[0].mxu0
    %v1129 = vadd.f32 0.0, %v1128
    %1130 = vmatprep.mubr.bf16.mxu0 0
    %1131 = vmatmul.mubr.bf16.gmra.mrb[0].mxu0 %v781
    %v1132 = vpop.f32.mrb[0].mxu0
    %v1133 = vadd.f32 0.0, %v1132
    %v1134 = vpop.f32.mrb[0].mxu0
    %v1135 = vadd.f32 0.0, %v1134
    %v1136 = vpop.f32.mrb[0].mxu0
    %v1137 = vadd.f32 0.0, %v1136
    %v1138 = vpop.f32.mrb[0].mxu0
    %v1139 = vadd.f32 0.0, %v1138
    %1140 = vmatprep.mubr.bf16.mxu0 0
    %1141 = vmatmul.mubr.bf16.gmra.mrb[0].mxu0 %v782
    %v1142 = vpop.f32.mrb[0].mxu0
    %v1143 = vadd.f32 0.0, %v1142
    %v1144 = vpop.f32.mrb[0].mxu0
    %v1145 = vadd.f32 0.0, %v1144
    %v1146 = vpop.f32.mrb[0].mxu0
    %v1147 = vadd.f32 0.0, %v1146
    %v1148 = vpop.f32.mrb[0].mxu0
    %v1149 = vadd.f32 0.0, %v1148
    %1150 = vmatprep.mubr.bf16.mxu0 0
    %1151 = vmatmul.mubr.bf16.gmra.mrb[0].mxu0 %v783
    %v1152 = vpop.f32.mrb[0].mxu0
    %v1153 = vadd.f32 0.0, %v1152
    %v1154 = vpop.f32.mrb[0].mxu0
    %v1155 = vadd.f32 0.0, %v1154
    %v1156 = vpop.f32.mrb[0].mxu0
    %v1157 = vadd.f32 0.0, %v1156
    %v1158 = vpop.f32.mrb[0].mxu0
    %v1159 = vadd.f32 0.0, %v1158
    %1160 = vmatprep.mubr.bf16.mxu0 0
    %1161 = vmatmul.mubr.bf16.gmra.mrb[0].mxu0 %v784
    %v1162 = vpop.f32.mrb[0].mxu0
    %v1163 = vadd.f32 0.0, %v1162
    %v1164 = vpop.f32.mrb[0].mxu0
    %v1165 = vadd.f32 0.0, %v1164
    %v1166 = vpop.f32.mrb[0].mxu0
    %v1167 = vadd.f32 0.0, %v1166
    %v1168 = vpop.f32.mrb[0].mxu0
    %v1169 = vadd.f32 0.0, %v1168
    %1170 = vmatprep.mubr.bf16.mxu0 0
    %1171 = vmatmul.mubr.bf16.gmra.mrb[0].mxu0 %v785
    %v1172 = vpop.f32.mrb[0].mxu0
    %v1173 = vadd.f32 0.0, %v1172
    %v1174 = vpop.f32.mrb[0].mxu0
    %v1175 = vadd.f32 0.0, %v1174
    %v1176 = vpop.f32.mrb[0].mxu0
    %v1177 = vadd.f32 0.0, %v1176
    %v1178 = vpop.f32.mrb[0].mxu0
    %v1179 = vadd.f32 0.0, %v1178
    %1180 = vmatprep.mubr.bf16.mxu0 0
    %1181 = vmatmul.mubr.bf16.gmra.mrb[0].mxu0 %v786
    %v1182 = vpop.f32.mrb[0].mxu0
    %v1183 = vadd.f32 0.0, %v1182
    %v1184 = vpop.f32.mrb[0].mxu0
    %v1185 = vadd.f32 0.0, %v1184
    %v1186 = vpop.f32.mrb[0].mxu0
    %v1187 = vadd.f32 0.0, %v1186
    %v1188 = vpop.f32.mrb[0].mxu0
    %v1189 = vadd.f32 0.0, %v1188
    %1190 = vmatprep.mubr.bf16.mxu0 0
    %1191 = vmatmul.mubr.bf16.gmra.mrb[0].mxu0 %v787
    %v1192 = vpop.f32.mrb[0].mxu0
    %v1193 = vadd.f32 0.0, %v1192
    %v1194 = vpop.f32.mrb[0].mxu0
    %v1195 = vadd.f32 0.0, %v1194
    %v1196 = vpop.f32.mrb[0].mxu0
    %v1197 = vadd.f32 0.0, %v1196
    %v1198 = vpop.f32.mrb[0].mxu0
    %v1199 = vadd.f32 0.0, %v1198
    %1200 = vmatprep.mubr.bf16.mxu0 0
    %1201 = vmatmul.mubr.bf16.gmra.mrb[0].mxu0 %v788
    %v1202 = vpop.f32.mrb[0].mxu0
    %v1203 = vadd.f32 0.0, %v1202
    %v1204 = vpop.f32.mrb[0].mxu0
    %v1205 = vadd.f32 0.0, %v1204
    %v1206 = vpop.f32.mrb[0].mxu0
    %v1207 = vadd.f32 0.0, %v1206
    %v1208 = vpop.f32.mrb[0].mxu0
    %v1209 = vadd.f32 0.0, %v1208
    %1210 = vmatprep.mubr.bf16.mxu0 0
    %1211 = vmatmul.mubr.bf16.gmra.mrb[0].mxu0 %v789
    %v1212 = vpop.f32.mrb[0].mxu0
    %v1213 = vadd.f32 0.0, %v1212
    %v1214 = vpop.f32.mrb[0].mxu0
    %v1215 = vadd.f32 0.0, %v1214
    %v1216 = vpop.f32.mrb[0].mxu0
    %v1217 = vadd.f32 0.0, %v1216
    %v1218 = vpop.f32.mrb[0].mxu0
    %v1219 = vadd.f32 0.0, %v1218
    %1220 = vmatprep.mubr.bf16.mxu0 0
    %1221 = vmatmul.mubr.bf16.gmra.mrb[0].mxu0 %v790
    %v1222 = vpop.f32.mrb[0].mxu0
    %v1223 = vadd.f32 0.0, %v1222
    %v1224 = vpop.f32.mrb[0].mxu0
    %v1225 = vadd.f32 0.0, %v1224
    %v1226 = vpop.f32.mrb[0].mxu0
    %v1227 = vadd.f32 0.0, %v1226
    %v1228 = vpop.f32.mrb[0].mxu0
    %v1229 = vadd.f32 0.0, %v1228
    %1230 = vmatprep.mubr.bf16.mxu0 0
    %1231 = vmatmul.mubr.bf16.gmra.mrb[0].mxu0 %v791
    %v1232 = vpop.f32.mrb[0].mxu0
    %v1233 = vadd.f32 0.0, %v1232
    %v1234 = vpop.f32.mrb[0].mxu0
    %v1235 = vadd.f32 0.0, %v1234
    %v1236 = vpop.f32.mrb[0].mxu0
    %v1237 = vadd.f32 0.0, %v1236
    %v1238 = vpop.f32.mrb[0].mxu0
    %v1239 = vadd.f32 0.0, %v1238
    %1240 = vdwg.mxu0
    %v1241 = vrot.slane %v923, 5
    %v1242 = vrot.slane %v927, 5
    %v1243 = vrot.slane %v933, 5
    %v1244 = vrot.slane %v937, 5
    %v1245 = vrot.slane %v943, 5
    %v1246 = vrot.slane %v947, 5
    %v1247 = vrot.slane %v953, 5
    %v1248 = vrot.slane %v957, 5
    %v1249 = vrot.slane %v963, 5
    %v1250 = vrot.slane %v967, 5
    %v1251 = vrot.slane %v973, 5
    %v1252 = vrot.slane %v977, 5
    %v1253 = vrot.slane %v983, 5
    %v1254 = vrot.slane %v987, 5
    %v1255 = vrot.slane %v993, 5
    %v1256 = vrot.slane %v997, 5
    %v1257 = vrot.slane %v1003, 5
    %v1258 = vrot.slane %v1007, 5
    %v1259 = vrot.slane %v1013, 5
    %v1260 = vrot.slane %v1017, 5
    %v1261 = vrot.slane %v1023, 5
    %v1262 = vrot.slane %v1027, 5
    %v1263 = vrot.slane %v1033, 5
    %v1264 = vrot.slane %v1037, 5
    %v1265 = vrot.slane %v1043, 5
    %v1266 = vrot.slane %v1047, 5
    %v1267 = vrot.slane %v1053, 5
    %v1268 = vrot.slane %v1057, 5
    %v1269 = vrot.slane %v1063, 5
    %v1270 = vrot.slane %v1067, 5
    %v1271 = vrot.slane %v1073, 5
    %v1272 = vrot.slane %v1077, 5
    %v1273 = vrot.slane %v1083, 5
    %v1274 = vrot.slane %v1087, 5
    %v1275 = vrot.slane %v1093, 5
    %v1276 = vrot.slane %v1097, 5
    %v1277 = vrot.slane %v1103, 5
    %v1278 = vrot.slane %v1107, 5
    %v1279 = vrot.slane %v1113, 5
    %v1280 = vrot.slane %v1117, 5
    %v1281 = vrot.slane %v1123, 5
    %v1282 = vrot.slane %v1127, 5
    %v1283 = vrot.slane %v1133, 5
    %v1284 = vrot.slane %v1137, 5
    %v1285 = vrot.slane %v1143, 5
    %v1286 = vrot.slane %v1147, 5
    %v1287 = vrot.slane %v1153, 5
    %v1288 = vrot.slane %v1157, 5
    %v1289 = vrot.slane %v1163, 5
    %v1290 = vrot.slane %v1167, 5
    %v1291 = vrot.slane %v1173, 5
    %v1292 = vrot.slane %v1177, 5
    %v1293 = vrot.slane %v1183, 5
    %v1294 = vrot.slane %v1187, 5
    %v1295 = vrot.slane %v1193, 5
    %v1296 = vrot.slane %v1197, 5
    %v1297 = vrot.slane %v1203, 5
    %v1298 = vrot.slane %v1207, 5
    %v1299 = vrot.slane %v1213, 5
    %v1300 = vrot.slane %v1217, 5
    %v1301 = vrot.slane %v1223, 5
    %v1302 = vrot.slane %v1227, 5
    %v1303 = vrot.slane %v1233, 5
    %v1304 = vrot.slane %v1237, 5
    %v1305 = vlaneseq
    %v1306 = vshrl.u32 %v1305, 7
    %vm1307 = vcmp.lt.s32.totalorder %v1306, 3
    %v1308 = vsel %vm1307, %v1303, %v1304
    %v1309 = vsel %vm1307, %v1302, %v1303
    %v1310 = vsel %vm1307, %v1301, %v1302
    %v1311 = vsel %vm1307, %v1300, %v1301
    %v1312 = vsel %vm1307, %v1299, %v1300
    %v1313 = vsel %vm1307, %v1298, %v1299
    %v1314 = vsel %vm1307, %v1297, %v1298
    %v1315 = vsel %vm1307, %v1296, %v1297
    %v1316 = vsel %vm1307, %v1295, %v1296
    %v1317 = vsel %vm1307, %v1294, %v1295
    %v1318 = vsel %vm1307, %v1293, %v1294
    %v1319 = vsel %vm1307, %v1292, %v1293
    %v1320 = vsel %vm1307, %v1291, %v1292
    %v1321 = vsel %vm1307, %v1290, %v1291
    %v1322 = vsel %vm1307, %v1289, %v1290
    %v1323 = vsel %vm1307, %v1288, %v1289
    %v1324 = vsel %vm1307, %v1287, %v1288
    %v1325 = vsel %vm1307, %v1286, %v1287
    %v1326 = vsel %vm1307, %v1285, %v1286
    %v1327 = vsel %vm1307, %v1284, %v1285
    %v1328 = vsel %vm1307, %v1283, %v1284
    %v1329 = vsel %vm1307, %v1282, %v1283
    %v1330 = vsel %vm1307, %v1281, %v1282
    %v1331 = vsel %vm1307, %v1280, %v1281
    %v1332 = vsel %vm1307, %v1279, %v1280
    %v1333 = vsel %vm1307, %v1278, %v1279
    %v1334 = vsel %vm1307, %v1277, %v1278
    %v1335 = vsel %vm1307, %v1276, %v1277
    %v1336 = vsel %vm1307, %v1275, %v1276
    %v1337 = vsel %vm1307, %v1274, %v1275
    %v1338 = vsel %vm1307, %v1273, %v1274
    %v1339 = vsel %vm1307, %v1272, %v1273
    %v1340 = vsel %vm1307, %v1271, %v1272
    %v1341 = vsel %vm1307, %v1270, %v1271
    %v1342 = vsel %vm1307, %v1269, %v1270
    %v1343 = vsel %vm1307, %v1268, %v1269
    %v1344 = vsel %vm1307, %v1267, %v1268
    %v1345 = vsel %vm1307, %v1266, %v1267
    %v1346 = vsel %vm1307, %v1265, %v1266
    %v1347 = vsel %vm1307, %v1264, %v1265
    %v1348 = vsel %vm1307, %v1263, %v1264
    %v1349 = vsel %vm1307, %v1262, %v1263
    %v1350 = vsel %vm1307, %v1261, %v1262
    %v1351 = vsel %vm1307, %v1260, %v1261
    %v1352 = vsel %vm1307, %v1259, %v1260
    %v1353 = vsel %vm1307, %v1258, %v1259
    %v1354 = vsel %vm1307, %v1257, %v1258
    %v1355 = vsel %vm1307, %v1256, %v1257
    %v1356 = vsel %vm1307, %v1255, %v1256
    %v1357 = vsel %vm1307, %v1254, %v1255
    %v1358 = vsel %vm1307, %v1253, %v1254
    %v1359 = vsel %vm1307, %v1252, %v1253
    %v1360 = vsel %vm1307, %v1251, %v1252
    %v1361 = vsel %vm1307, %v1250, %v1251
    %v1362 = vsel %vm1307, %v1249, %v1250
    %v1363 = vsel %vm1307, %v1248, %v1249
    %v1364 = vsel %vm1307, %v1247, %v1248
    %v1365 = vsel %vm1307, %v1246, %v1247
    %v1366 = vsel %vm1307, %v1245, %v1246
    %v1367 = vsel %vm1307, %v1244, %v1245
    %v1368 = vsel %vm1307, %v1243, %v1244
    %v1369 = vsel %vm1307, %v1242, %v1243
    %v1370 = vsel %vm1307, %v1241, %v1242
    %v1371 = vsel %vm1307, %v1304, %v1241
    %v1372 = vld [vmem:[%s10] sm:$0xff]
    %v1373 = vld [vmem:[%s10 + $0x8] sm:$0xff]
    %v1374 = vld [vmem:[%s10 + $0x10] sm:$0xff]
    %v1375 = vld [vmem:[%s10 + $0x18] sm:$0xff]
    %v1376 = vld [vmem:[%s10 + $0x20] sm:$0xff]
    %v1377 = vld [vmem:[%s10 + $0x28] sm:$0xff]
    %v1378 = vld [vmem:[%s10 + $0x30] sm:$0xff]
    %v1379 = vld [vmem:[%s10 + $0x38] sm:$0xff]
    %v1380 = vld [vmem:[%s10 + $0x40] sm:$0xff]
    %v1381 = vld [vmem:[%s10 + $0x48] sm:$0xff]
    %v1382 = vld [vmem:[%s10 + $0x50] sm:$0xff]
    %v1383 = vld [vmem:[%s10 + $0x58] sm:$0xff]
    %v1384 = vld [vmem:[%s10 + $0x60] sm:$0xff]
    %v1385 = vld [vmem:[%s10 + $0x68] sm:$0xff]
    %v1386 = vld [vmem:[%s10 + $0x70] sm:$0xff]
    %v1387 = vld [vmem:[%s10 + $0x78] sm:$0xff]
    %v1388 = vld [vmem:[%s10 + $0x80] sm:$0xff]
    %v1389 = vld [vmem:[%s10 + $0x88] sm:$0xff]
    %v1390 = vld [vmem:[%s10 + $0x90] sm:$0xff]
    %v1391 = vld [vmem:[%s10 + $0x98] sm:$0xff]
    %v1392 = vld [vmem:[%s10 + $0xa0] sm:$0xff]
    %v1393 = vld [vmem:[%s10 + $0xa8] sm:$0xff]
    %v1394 = vld [vmem:[%s10 + $0xb0] sm:$0xff]
    %v1395 = vld [vmem:[%s10 + $0xb8] sm:$0xff]
    %v1396 = vld [vmem:[%s10 + $0xc0] sm:$0xff]
    %v1397 = vld [vmem:[%s10 + $0xc8] sm:$0xff]
    %v1398 = vld [vmem:[%s10 + $0xd0] sm:$0xff]
    %v1399 = vld [vmem:[%s10 + $0xd8] sm:$0xff]
    %v1400 = vld [vmem:[%s10 + $0xe0] sm:$0xff]
    %v1401 = vld [vmem:[%s10 + $0xe8] sm:$0xff]
    %v1402 = vld [vmem:[%s10 + $0xf0] sm:$0xff]
    %v1403 = vld [vmem:[%s10 + $0xf8] sm:$0xff]
    %v1404 = vld [vmem:[%s10 + $0x100] sm:$0xff]
    %v1405 = vld [vmem:[%s10 + $0x108] sm:$0xff]
    %v1406 = vld [vmem:[%s10 + $0x110] sm:$0xff]
    %v1407 = vld [vmem:[%s10 + $0x118] sm:$0xff]
    %v1408 = vld [vmem:[%s10 + $0x120] sm:$0xff]
    %v1409 = vld [vmem:[%s10 + $0x128] sm:$0xff]
    %v1410 = vld [vmem:[%s10 + $0x130] sm:$0xff]
    %v1411 = vld [vmem:[%s10 + $0x138] sm:$0xff]
    %v1412 = vld [vmem:[%s10 + $0x140] sm:$0xff]
    %v1413 = vld [vmem:[%s10 + $0x148] sm:$0xff]
    %v1414 = vld [vmem:[%s10 + $0x150] sm:$0xff]
    %v1415 = vld [vmem:[%s10 + $0x158] sm:$0xff]
    %v1416 = vld [vmem:[%s10 + $0x160] sm:$0xff]
    %v1417 = vld [vmem:[%s10 + $0x168] sm:$0xff]
    %v1418 = vld [vmem:[%s10 + $0x170] sm:$0xff]
    %v1419 = vld [vmem:[%s10 + $0x178] sm:$0xff]
    %v1420 = vld [vmem:[%s10 + $0x180] sm:$0xff]
    %v1421 = vld [vmem:[%s10 + $0x188] sm:$0xff]
    %v1422 = vld [vmem:[%s10 + $0x190] sm:$0xff]
    %v1423 = vld [vmem:[%s10 + $0x198] sm:$0xff]
    %v1424 = vld [vmem:[%s10 + $0x1a0] sm:$0xff]
    %v1425 = vld [vmem:[%s10 + $0x1a8] sm:$0xff]
    %v1426 = vld [vmem:[%s10 + $0x1b0] sm:$0xff]
    %v1427 = vld [vmem:[%s10 + $0x1b8] sm:$0xff]
    %v1428 = vld [vmem:[%s10 + $0x1c0] sm:$0xff]
    %v1429 = vld [vmem:[%s10 + $0x1c8] sm:$0xff]
    %v1430 = vld [vmem:[%s10 + $0x1d0] sm:$0xff]
    %v1431 = vld [vmem:[%s10 + $0x1d8] sm:$0xff]
    %v1432 = vld [vmem:[%s10 + $0x1e0] sm:$0xff]
    %v1433 = vld [vmem:[%s10 + $0x1e8] sm:$0xff]
    %v1434 = vld [vmem:[%s10 + $0x1f0] sm:$0xff]
    %v1435 = vld [vmem:[%s10 + $0x1f8] sm:$0xff]
    %1437 = vset.pattern.permute.xlu0 0
    %1438 = vperm.xlu0 %1437, %v1372
    %v1439 = vpop.permute.xlu0 %1438
    %1442 = vset.pattern.permute.xlu0 0
    %1443 = vperm.xlu0 %1442, %v1373
    %v1444 = vpop.permute.xlu0 %1443
    %1447 = vset.pattern.permute.xlu0 0
    %1448 = vperm.xlu0 %1447, %v1374
    %v1449 = vpop.permute.xlu0 %1448
    %1452 = vset.pattern.permute.xlu0 0
    %1453 = vperm.xlu0 %1452, %v1375
    %v1454 = vpop.permute.xlu0 %1453
    %1457 = vset.pattern.permute.xlu0 0
    %1458 = vperm.xlu0 %1457, %v1376
    %v1459 = vpop.permute.xlu0 %1458
    %1462 = vset.pattern.permute.xlu0 0
    %1463 = vperm.xlu0 %1462, %v1377
    %v1464 = vpop.permute.xlu0 %1463
    %1467 = vset.pattern.permute.xlu0 0
    %1468 = vperm.xlu0 %1467, %v1378
    %v1469 = vpop.permute.xlu0 %1468
    %1472 = vset.pattern.permute.xlu0 0
    %1473 = vperm.xlu0 %1472, %v1379
    %v1474 = vpop.permute.xlu0 %1473
    %1477 = vset.pattern.permute.xlu0 0
    %1478 = vperm.xlu0 %1477, %v1380
    %v1479 = vpop.permute.xlu0 %1478
    %1482 = vset.pattern.permute.xlu0 0
    %1483 = vperm.xlu0 %1482, %v1381
    %v1484 = vpop.permute.xlu0 %1483
    %1487 = vset.pattern.permute.xlu0 0
    %1488 = vperm.xlu0 %1487, %v1382
    %v1489 = vpop.permute.xlu0 %1488
    %1492 = vset.pattern.permute.xlu0 0
    %1493 = vperm.xlu0 %1492, %v1383
    %v1494 = vpop.permute.xlu0 %1493
    %1497 = vset.pattern.permute.xlu0 0
    %1498 = vperm.xlu0 %1497, %v1384
    %v1499 = vpop.permute.xlu0 %1498
    %1502 = vset.pattern.permute.xlu0 0
    %1503 = vperm.xlu0 %1502, %v1385
    %v1504 = vpop.permute.xlu0 %1503
    %1507 = vset.pattern.permute.xlu0 0
    %1508 = vperm.xlu0 %1507, %v1386
    %v1509 = vpop.permute.xlu0 %1508
    %1512 = vset.pattern.permute.xlu0 0
    %1513 = vperm.xlu0 %1512, %v1387
    %v1514 = vpop.permute.xlu0 %1513
    %1517 = vset.pattern.permute.xlu0 0
    %1518 = vperm.xlu0 %1517, %v1388
    %v1519 = vpop.permute.xlu0 %1518
    %1522 = vset.pattern.permute.xlu0 0
    %1523 = vperm.xlu0 %1522, %v1389
    %v1524 = vpop.permute.xlu0 %1523
    %1527 = vset.pattern.permute.xlu0 0
    %1528 = vperm.xlu0 %1527, %v1390
    %v1529 = vpop.permute.xlu0 %1528
    %1532 = vset.pattern.permute.xlu0 0
    %1533 = vperm.xlu0 %1532, %v1391
    %v1534 = vpop.permute.xlu0 %1533
    %1537 = vset.pattern.permute.xlu0 0
    %1538 = vperm.xlu0 %1537, %v1392
    %v1539 = vpop.permute.xlu0 %1538
    %1542 = vset.pattern.permute.xlu0 0
    %1543 = vperm.xlu0 %1542, %v1393
    %v1544 = vpop.permute.xlu0 %1543
    %1547 = vset.pattern.permute.xlu0 0
    %1548 = vperm.xlu0 %1547, %v1394
    %v1549 = vpop.permute.xlu0 %1548
    %1552 = vset.pattern.permute.xlu0 0
    %1553 = vperm.xlu0 %1552, %v1395
    %v1554 = vpop.permute.xlu0 %1553
    %1557 = vset.pattern.permute.xlu0 0
    %1558 = vperm.xlu0 %1557, %v1396
    %v1559 = vpop.permute.xlu0 %1558
    %1562 = vset.pattern.permute.xlu0 0
    %1563 = vperm.xlu0 %1562, %v1397
    %v1564 = vpop.permute.xlu0 %1563
    %1567 = vset.pattern.permute.xlu0 0
    %1568 = vperm.xlu0 %1567, %v1398
    %v1569 = vpop.permute.xlu0 %1568
    %1572 = vset.pattern.permute.xlu0 0
    %1573 = vperm.xlu0 %1572, %v1399
    %v1574 = vpop.permute.xlu0 %1573
    %1577 = vset.pattern.permute.xlu0 0
    %1578 = vperm.xlu0 %1577, %v1400
    %v1579 = vpop.permute.xlu0 %1578
    %1582 = vset.pattern.permute.xlu0 0
    %1583 = vperm.xlu0 %1582, %v1401
    %v1584 = vpop.permute.xlu0 %1583
    %1587 = vset.pattern.permute.xlu0 0
    %1588 = vperm.xlu0 %1587, %v1402
    %v1589 = vpop.permute.xlu0 %1588
    %1592 = vset.pattern.permute.xlu0 0
    %1593 = vperm.xlu0 %1592, %v1403
    %v1594 = vpop.permute.xlu0 %1593
    %1597 = vset.pattern.permute.xlu0 0
    %1598 = vperm.xlu0 %1597, %v1404
    %v1599 = vpop.permute.xlu0 %1598
    %1602 = vset.pattern.permute.xlu0 0
    %1603 = vperm.xlu0 %1602, %v1405
    %v1604 = vpop.permute.xlu0 %1603
    %1607 = vset.pattern.permute.xlu0 0
    %1608 = vperm.xlu0 %1607, %v1406
    %v1609 = vpop.permute.xlu0 %1608
    %1612 = vset.pattern.permute.xlu0 0
    %1613 = vperm.xlu0 %1612, %v1407
    %v1614 = vpop.permute.xlu0 %1613
    %1617 = vset.pattern.permute.xlu0 0
    %1618 = vperm.xlu0 %1617, %v1408
    %v1619 = vpop.permute.xlu0 %1618
    %1622 = vset.pattern.permute.xlu0 0
    %1623 = vperm.xlu0 %1622, %v1409
    %v1624 = vpop.permute.xlu0 %1623
    %1627 = vset.pattern.permute.xlu0 0
    %1628 = vperm.xlu0 %1627, %v1410
    %v1629 = vpop.permute.xlu0 %1628
    %1632 = vset.pattern.permute.xlu0 0
    %1633 = vperm.xlu0 %1632, %v1411
    %v1634 = vpop.permute.xlu0 %1633
    %1637 = vset.pattern.permute.xlu0 0
    %1638 = vperm.xlu0 %1637, %v1412
    %v1639 = vpop.permute.xlu0 %1638
    %1642 = vset.pattern.permute.xlu0 0
    %1643 = vperm.xlu0 %1642, %v1413
    %v1644 = vpop.permute.xlu0 %1643
    %1647 = vset.pattern.permute.xlu0 0
    %1648 = vperm.xlu0 %1647, %v1414
    %v1649 = vpop.permute.xlu0 %1648
    %1652 = vset.pattern.permute.xlu0 0
    %1653 = vperm.xlu0 %1652, %v1415
    %v1654 = vpop.permute.xlu0 %1653
    %1657 = vset.pattern.permute.xlu0 0
    %1658 = vperm.xlu0 %1657, %v1416
    %v1659 = vpop.permute.xlu0 %1658
    %1662 = vset.pattern.permute.xlu0 0
    %1663 = vperm.xlu0 %1662, %v1417
    %v1664 = vpop.permute.xlu0 %1663
    %1667 = vset.pattern.permute.xlu0 0
    %1668 = vperm.xlu0 %1667, %v1418
    %v1669 = vpop.permute.xlu0 %1668
    %1672 = vset.pattern.permute.xlu0 0
    %1673 = vperm.xlu0 %1672, %v1419
    %v1674 = vpop.permute.xlu0 %1673
    %1677 = vset.pattern.permute.xlu0 0
    %1678 = vperm.xlu0 %1677, %v1420
    %v1679 = vpop.permute.xlu0 %1678
    %1682 = vset.pattern.permute.xlu0 0
    %1683 = vperm.xlu0 %1682, %v1421
    %v1684 = vpop.permute.xlu0 %1683
    %1687 = vset.pattern.permute.xlu0 0
    %1688 = vperm.xlu0 %1687, %v1422
    %v1689 = vpop.permute.xlu0 %1688
    %1692 = vset.pattern.permute.xlu0 0
    %1693 = vperm.xlu0 %1692, %v1423
    %v1694 = vpop.permute.xlu0 %1693
    %1697 = vset.pattern.permute.xlu0 0
    %1698 = vperm.xlu0 %1697, %v1424
    %v1699 = vpop.permute.xlu0 %1698
    %1702 = vset.pattern.permute.xlu0 0
    %1703 = vperm.xlu0 %1702, %v1425
    %v1704 = vpop.permute.xlu0 %1703
    %1707 = vset.pattern.permute.xlu0 0
    %1708 = vperm.xlu0 %1707, %v1426
    %v1709 = vpop.permute.xlu0 %1708
    %1712 = vset.pattern.permute.xlu0 0
    %1713 = vperm.xlu0 %1712, %v1427
    %v1714 = vpop.permute.xlu0 %1713
    %1717 = vset.pattern.permute.xlu0 0
    %1718 = vperm.xlu0 %1717, %v1428
    %v1719 = vpop.permute.xlu0 %1718
    %1722 = vset.pattern.permute.xlu0 0
    %1723 = vperm.xlu0 %1722, %v1429
    %v1724 = vpop.permute.xlu0 %1723
    %1727 = vset.pattern.permute.xlu0 0
    %1728 = vperm.xlu0 %1727, %v1430
    %v1729 = vpop.permute.xlu0 %1728
    %1732 = vset.pattern.permute.xlu0 0
    %1733 = vperm.xlu0 %1732, %v1431
    %v1734 = vpop.permute.xlu0 %1733
    %1737 = vset.pattern.permute.xlu0 0
    %1738 = vperm.xlu0 %1737, %v1432
    %v1739 = vpop.permute.xlu0 %1738
    %1742 = vset.pattern.permute.xlu0 0
    %1743 = vperm.xlu0 %1742, %v1433
    %v1744 = vpop.permute.xlu0 %1743
    %1747 = vset.pattern.permute.xlu0 0
    %1748 = vperm.xlu0 %1747, %v1434
    %v1749 = vpop.permute.xlu0 %1748
    %1752 = vset.pattern.permute.xlu0 0
    %1753 = vperm.xlu0 %1752, %v1435
    %v1754 = vpop.permute.xlu0 %1753
    %v1756 = vmul.f32 %v1371, %v1439
    %v1757 = vmul.f32 %v1370, %v1444
    %v1758 = vmul.f32 %v1369, %v1449
    %v1759 = vmul.f32 %v1368, %v1454
    %v1760 = vmul.f32 %v1367, %v1459
    %v1761 = vmul.f32 %v1366, %v1464
    %v1762 = vmul.f32 %v1365, %v1469
    %v1763 = vmul.f32 %v1364, %v1474
    %v1764 = vmul.f32 %v1363, %v1479
    %v1765 = vmul.f32 %v1362, %v1484
    %v1766 = vmul.f32 %v1361, %v1489
    %v1767 = vmul.f32 %v1360, %v1494
    %v1768 = vmul.f32 %v1359, %v1499
    %v1769 = vmul.f32 %v1358, %v1504
    %v1770 = vmul.f32 %v1357, %v1509
    %v1771 = vmul.f32 %v1356, %v1514
    %v1772 = vmul.f32 %v1355, %v1519
    %v1773 = vmul.f32 %v1354, %v1524
    %v1774 = vmul.f32 %v1353, %v1529
    %v1775 = vmul.f32 %v1352, %v1534
    %v1776 = vmul.f32 %v1351, %v1539
    %v1777 = vmul.f32 %v1350, %v1544
    %v1778 = vmul.f32 %v1349, %v1549
    %v1779 = vmul.f32 %v1348, %v1554
    %v1780 = vmul.f32 %v1347, %v1559
    %v1781 = vmul.f32 %v1346, %v1564
    %v1782 = vmul.f32 %v1345, %v1569
    %v1783 = vmul.f32 %v1344, %v1574
    %v1784 = vmul.f32 %v1343, %v1579
    %v1785 = vmul.f32 %v1342, %v1584
    %v1786 = vmul.f32 %v1341, %v1589
    %v1787 = vmul.f32 %v1340, %v1594
    %v1788 = vmul.f32 %v1339, %v1599
    %v1789 = vmul.f32 %v1338, %v1604
    %v1790 = vmul.f32 %v1337, %v1609
    %v1791 = vmul.f32 %v1336, %v1614
    %v1792 = vmul.f32 %v1335, %v1619
    %v1793 = vmul.f32 %v1334, %v1624
    %v1794 = vmul.f32 %v1333, %v1629
    %v1795 = vmul.f32 %v1332, %v1634
    %v1796 = vmul.f32 %v1331, %v1639
    %v1797 = vmul.f32 %v1330, %v1644
    %v1798 = vmul.f32 %v1329, %v1649
    %v1799 = vmul.f32 %v1328, %v1654
    %v1800 = vmul.f32 %v1327, %v1659
    %v1801 = vmul.f32 %v1326, %v1664
    %v1802 = vmul.f32 %v1325, %v1669
    %v1803 = vmul.f32 %v1324, %v1674
    %v1804 = vmul.f32 %v1323, %v1679
    %v1805 = vmul.f32 %v1322, %v1684
    %v1806 = vmul.f32 %v1321, %v1689
    %v1807 = vmul.f32 %v1320, %v1694
    %v1808 = vmul.f32 %v1319, %v1699
    %v1809 = vmul.f32 %v1318, %v1704
    %v1810 = vmul.f32 %v1317, %v1709
    %v1811 = vmul.f32 %v1316, %v1714
    %v1812 = vmul.f32 %v1315, %v1719
    %v1813 = vmul.f32 %v1314, %v1724
    %v1814 = vmul.f32 %v1313, %v1729
    %v1815 = vmul.f32 %v1312, %v1734
    %v1816 = vmul.f32 %v1311, %v1739
    %v1817 = vmul.f32 %v1310, %v1744
    %v1818 = vmul.f32 %v1309, %v1749
    %v1819 = vmul.f32 %v1308, %v1754
    %v1820 = vrot.slane %v925, 6
    %v1821 = vrot.slane %v929, 6
    %v1822 = vrot.slane %v935, 6
    %v1823 = vrot.slane %v939, 6
    %v1824 = vrot.slane %v945, 6
    %v1825 = vrot.slane %v949, 6
    %v1826 = vrot.slane %v955, 6
    %v1827 = vrot.slane %v959, 6
    %v1828 = vrot.slane %v965, 6
    %v1829 = vrot.slane %v969, 6
    %v1830 = vrot.slane %v975, 6
    %v1831 = vrot.slane %v979, 6
    %v1832 = vrot.slane %v985, 6
    %v1833 = vrot.slane %v989, 6
    %v1834 = vrot.slane %v995, 6
    %v1835 = vrot.slane %v999, 6
    %v1836 = vrot.slane %v1005, 6
    %v1837 = vrot.slane %v1009, 6
    %v1838 = vrot.slane %v1015, 6
    %v1839 = vrot.slane %v1019, 6
    %v1840 = vrot.slane %v1025, 6
    %v1841 = vrot.slane %v1029, 6
    %v1842 = vrot.slane %v1035, 6
    %v1843 = vrot.slane %v1039, 6
    %v1844 = vrot.slane %v1045, 6
    %v1845 = vrot.slane %v1049, 6
    %v1846 = vrot.slane %v1055, 6
    %v1847 = vrot.slane %v1059, 6
    %v1848 = vrot.slane %v1065, 6
    %v1849 = vrot.slane %v1069, 6
    %v1850 = vrot.slane %v1075, 6
    %v1851 = vrot.slane %v1079, 6
    %v1852 = vrot.slane %v1085, 6
    %v1853 = vrot.slane %v1089, 6
    %v1854 = vrot.slane %v1095, 6
    %v1855 = vrot.slane %v1099, 6
    %v1856 = vrot.slane %v1105, 6
    %v1857 = vrot.slane %v1109, 6
    %v1858 = vrot.slane %v1115, 6
    %v1859 = vrot.slane %v1119, 6
    %v1860 = vrot.slane %v1125, 6
    %v1861 = vrot.slane %v1129, 6
    %v1862 = vrot.slane %v1135, 6
    %v1863 = vrot.slane %v1139, 6
    %v1864 = vrot.slane %v1145, 6
    %v1865 = vrot.slane %v1149, 6
    %v1866 = vrot.slane %v1155, 6
    %v1867 = vrot.slane %v1159, 6
    %v1868 = vrot.slane %v1165, 6
    %v1869 = vrot.slane %v1169, 6
    %v1870 = vrot.slane %v1175, 6
    %v1871 = vrot.slane %v1179, 6
    %v1872 = vrot.slane %v1185, 6
    %v1873 = vrot.slane %v1189, 6
    %v1874 = vrot.slane %v1195, 6
    %v1875 = vrot.slane %v1199, 6
    %v1876 = vrot.slane %v1205, 6
    %v1877 = vrot.slane %v1209, 6
    %v1878 = vrot.slane %v1215, 6
    %v1879 = vrot.slane %v1219, 6
    %v1880 = vrot.slane %v1225, 6
    %v1881 = vrot.slane %v1229, 6
    %v1882 = vrot.slane %v1235, 6
    %v1883 = vrot.slane %v1239, 6
    %vm1884 = vcmp.lt.s32.totalorder %v1306, 2
    %v1885 = vsel %vm1884, %v1882, %v1883
    %v1886 = vsel %vm1884, %v1881, %v1882
    %v1887 = vsel %vm1884, %v1880, %v1881
    %v1888 = vsel %vm1884, %v1879, %v1880
    %v1889 = vsel %vm1884, %v1878, %v1879
    %v1890 = vsel %vm1884, %v1877, %v1878
    %v1891 = vsel %vm1884, %v1876, %v1877
    %v1892 = vsel %vm1884, %v1875, %v1876
    %v1893 = vsel %vm1884, %v1874, %v1875
    %v1894 = vsel %vm1884, %v1873, %v1874
    %v1895 = vsel %vm1884, %v1872, %v1873
    %v1896 = vsel %vm1884, %v1871, %v1872
    %v1897 = vsel %vm1884, %v1870, %v1871
    %v1898 = vsel %vm1884, %v1869, %v1870
    %v1899 = vsel %vm1884, %v1868, %v1869
    %v1900 = vsel %vm1884, %v1867, %v1868
    %v1901 = vsel %vm1884, %v1866, %v1867
    %v1902 = vsel %vm1884, %v1865, %v1866
    %v1903 = vsel %vm1884, %v1864, %v1865
    %v1904 = vsel %vm1884, %v1863, %v1864
    %v1905 = vsel %vm1884, %v1862, %v1863
    %v1906 = vsel %vm1884, %v1861, %v1862
    %v1907 = vsel %vm1884, %v1860, %v1861
    %v1908 = vsel %vm1884, %v1859, %v1860
    %v1909 = vsel %vm1884, %v1858, %v1859
    %v1910 = vsel %vm1884, %v1857, %v1858
    %v1911 = vsel %vm1884, %v1856, %v1857
    %v1912 = vsel %vm1884, %v1855, %v1856
    %v1913 = vsel %vm1884, %v1854, %v1855
    %v1914 = vsel %vm1884, %v1853, %v1854
    %v1915 = vsel %vm1884, %v1852, %v1853
    %v1916 = vsel %vm1884, %v1851, %v1852
    %v1917 = vsel %vm1884, %v1850, %v1851
    %v1918 = vsel %vm1884, %v1849, %v1850
    %v1919 = vsel %vm1884, %v1848, %v1849
    %v1920 = vsel %vm1884, %v1847, %v1848
    %v1921 = vsel %vm1884, %v1846, %v1847
    %v1922 = vsel %vm1884, %v1845, %v1846
    %v1923 = vsel %vm1884, %v1844, %v1845
    %v1924 = vsel %vm1884, %v1843, %v1844
    %v1925 = vsel %vm1884, %v1842, %v1843
    %v1926 = vsel %vm1884, %v1841, %v1842
    %v1927 = vsel %vm1884, %v1840, %v1841
    %v1928 = vsel %vm1884, %v1839, %v1840
    %v1929 = vsel %vm1884, %v1838, %v1839
    %v1930 = vsel %vm1884, %v1837, %v1838
    %v1931 = vsel %vm1884, %v1836, %v1837
    %v1932 = vsel %vm1884, %v1835, %v1836
    %v1933 = vsel %vm1884, %v1834, %v1835
    %v1934 = vsel %vm1884, %v1833, %v1834
    %v1935 = vsel %vm1884, %v1832, %v1833
    %v1936 = vsel %vm1884, %v1831, %v1832
    %v1937 = vsel %vm1884, %v1830, %v1831
    %v1938 = vsel %vm1884, %v1829, %v1830
    %v1939 = vsel %vm1884, %v1828, %v1829
    %v1940 = vsel %vm1884, %v1827, %v1828
    %v1941 = vsel %vm1884, %v1826, %v1827
    %v1942 = vsel %vm1884, %v1825, %v1826
    %v1943 = vsel %vm1884, %v1824, %v1825
    %v1944 = vsel %vm1884, %v1823, %v1824
    %v1945 = vsel %vm1884, %v1822, %v1823
    %v1946 = vsel %vm1884, %v1821, %v1822
    %v1947 = vsel %vm1884, %v1820, %v1821
    %v1948 = vsel %vm1884, %v1883, %v1820
    %s1949 = scalar_lea.vmem %s10, 512
    %v1950 = vld [vmem:[%s1949] sm:$0xff]
    %v1951 = vld [vmem:[%s1949 + $0x8] sm:$0xff]
    %v1952 = vld [vmem:[%s1949 + $0x10] sm:$0xff]
    %v1953 = vld [vmem:[%s1949 + $0x18] sm:$0xff]
    %v1954 = vld [vmem:[%s1949 + $0x20] sm:$0xff]
    %v1955 = vld [vmem:[%s1949 + $0x28] sm:$0xff]
    %v1956 = vld [vmem:[%s1949 + $0x30] sm:$0xff]
    %v1957 = vld [vmem:[%s1949 + $0x38] sm:$0xff]
    %v1958 = vld [vmem:[%s1949 + $0x40] sm:$0xff]
    %v1959 = vld [vmem:[%s1949 + $0x48] sm:$0xff]
    %v1960 = vld [vmem:[%s1949 + $0x50] sm:$0xff]
    %v1961 = vld [vmem:[%s1949 + $0x58] sm:$0xff]
    %v1962 = vld [vmem:[%s1949 + $0x60] sm:$0xff]
    %v1963 = vld [vmem:[%s1949 + $0x68] sm:$0xff]
    %v1964 = vld [vmem:[%s1949 + $0x70] sm:$0xff]
    %v1965 = vld [vmem:[%s1949 + $0x78] sm:$0xff]
    %v1966 = vld [vmem:[%s1949 + $0x80] sm:$0xff]
    %v1967 = vld [vmem:[%s1949 + $0x88] sm:$0xff]
    %v1968 = vld [vmem:[%s1949 + $0x90] sm:$0xff]
    %v1969 = vld [vmem:[%s1949 + $0x98] sm:$0xff]
    %v1970 = vld [vmem:[%s1949 + $0xa0] sm:$0xff]
    %v1971 = vld [vmem:[%s1949 + $0xa8] sm:$0xff]
    %v1972 = vld [vmem:[%s1949 + $0xb0] sm:$0xff]
    %v1973 = vld [vmem:[%s1949 + $0xb8] sm:$0xff]
    %v1974 = vld [vmem:[%s1949 + $0xc0] sm:$0xff]
    %v1975 = vld [vmem:[%s1949 + $0xc8] sm:$0xff]
    %v1976 = vld [vmem:[%s1949 + $0xd0] sm:$0xff]
    %v1977 = vld [vmem:[%s1949 + $0xd8] sm:$0xff]
    %v1978 = vld [vmem:[%s1949 + $0xe0] sm:$0xff]
    %v1979 = vld [vmem:[%s1949 + $0xe8] sm:$0xff]
    %v1980 = vld [vmem:[%s1949 + $0xf0] sm:$0xff]
    %v1981 = vld [vmem:[%s1949 + $0xf8] sm:$0xff]
    %v1982 = vld [vmem:[%s1949 + $0x100] sm:$0xff]
    %v1983 = vld [vmem:[%s1949 + $0x108] sm:$0xff]
    %v1984 = vld [vmem:[%s1949 + $0x110] sm:$0xff]
    %v1985 = vld [vmem:[%s1949 + $0x118] sm:$0xff]
    %v1986 = vld [vmem:[%s1949 + $0x120] sm:$0xff]
    %v1987 = vld [vmem:[%s1949 + $0x128] sm:$0xff]
    %v1988 = vld [vmem:[%s1949 + $0x130] sm:$0xff]
    %v1989 = vld [vmem:[%s1949 + $0x138] sm:$0xff]
    %v1990 = vld [vmem:[%s1949 + $0x140] sm:$0xff]
    %v1991 = vld [vmem:[%s1949 + $0x148] sm:$0xff]
    %v1992 = vld [vmem:[%s1949 + $0x150] sm:$0xff]
    %v1993 = vld [vmem:[%s1949 + $0x158] sm:$0xff]
    %v1994 = vld [vmem:[%s1949 + $0x160] sm:$0xff]
    %v1995 = vld [vmem:[%s1949 + $0x168] sm:$0xff]
    %v1996 = vld [vmem:[%s1949 + $0x170] sm:$0xff]
    %v1997 = vld [vmem:[%s1949 + $0x178] sm:$0xff]
    %v1998 = vld [vmem:[%s1949 + $0x180] sm:$0xff]
    %v1999 = vld [vmem:[%s1949 + $0x188] sm:$0xff]
    %v2000 = vld [vmem:[%s1949 + $0x190] sm:$0xff]
    %v2001 = vld [vmem:[%s1949 + $0x198] sm:$0xff]
    %v2002 = vld [vmem:[%s1949 + $0x1a0] sm:$0xff]
    %v2003 = vld [vmem:[%s1949 + $0x1a8] sm:$0xff]
    %v2004 = vld [vmem:[%s1949 + $0x1b0] sm:$0xff]
    %v2005 = vld [vmem:[%s1949 + $0x1b8] sm:$0xff]
    %v2006 = vld [vmem:[%s1949 + $0x1c0] sm:$0xff]
    %v2007 = vld [vmem:[%s1949 + $0x1c8] sm:$0xff]
    %v2008 = vld [vmem:[%s1949 + $0x1d0] sm:$0xff]
    %v2009 = vld [vmem:[%s1949 + $0x1d8] sm:$0xff]
    %v2010 = vld [vmem:[%s1949 + $0x1e0] sm:$0xff]
    %v2011 = vld [vmem:[%s1949 + $0x1e8] sm:$0xff]
    %v2012 = vld [vmem:[%s1949 + $0x1f0] sm:$0xff]
    %v2013 = vld [vmem:[%s1949 + $0x1f8] sm:$0xff]
    %2015 = vset.pattern.permute.xlu0 0
    %2016 = vperm.xlu0 %2015, %v1950
    %v2017 = vpop.permute.xlu0 %2016
    %2020 = vset.pattern.permute.xlu0 0
    %2021 = vperm.xlu0 %2020, %v1951
    %v2022 = vpop.permute.xlu0 %2021
    %2025 = vset.pattern.permute.xlu0 0
    %2026 = vperm.xlu0 %2025, %v1952
    %v2027 = vpop.permute.xlu0 %2026
    %2030 = vset.pattern.permute.xlu0 0
    %2031 = vperm.xlu0 %2030, %v1953
    %v2032 = vpop.permute.xlu0 %2031
    %2035 = vset.pattern.permute.xlu0 0
    %2036 = vperm.xlu0 %2035, %v1954
    %v2037 = vpop.permute.xlu0 %2036
    %2040 = vset.pattern.permute.xlu0 0
    %2041 = vperm.xlu0 %2040, %v1955
    %v2042 = vpop.permute.xlu0 %2041
    %2045 = vset.pattern.permute.xlu0 0
    %2046 = vperm.xlu0 %2045, %v1956
    %v2047 = vpop.permute.xlu0 %2046
    %2050 = vset.pattern.permute.xlu0 0
    %2051 = vperm.xlu0 %2050, %v1957
    %v2052 = vpop.permute.xlu0 %2051
    %2055 = vset.pattern.permute.xlu0 0
    %2056 = vperm.xlu0 %2055, %v1958
    %v2057 = vpop.permute.xlu0 %2056
    %2060 = vset.pattern.permute.xlu0 0
    %2061 = vperm.xlu0 %2060, %v1959
    %v2062 = vpop.permute.xlu0 %2061
    %2065 = vset.pattern.permute.xlu0 0
    %2066 = vperm.xlu0 %2065, %v1960
    %v2067 = vpop.permute.xlu0 %2066
    %2070 = vset.pattern.permute.xlu0 0
    %2071 = vperm.xlu0 %2070, %v1961
    %v2072 = vpop.permute.xlu0 %2071
    %2075 = vset.pattern.permute.xlu0 0
    %2076 = vperm.xlu0 %2075, %v1962
    %v2077 = vpop.permute.xlu0 %2076
    %2080 = vset.pattern.permute.xlu0 0
    %2081 = vperm.xlu0 %2080, %v1963
    %v2082 = vpop.permute.xlu0 %2081
    %2085 = vset.pattern.permute.xlu0 0
    %2086 = vperm.xlu0 %2085, %v1964
    %v2087 = vpop.permute.xlu0 %2086
    %2090 = vset.pattern.permute.xlu0 0
    %2091 = vperm.xlu0 %2090, %v1965
    %v2092 = vpop.permute.xlu0 %2091
    %2095 = vset.pattern.permute.xlu0 0
    %2096 = vperm.xlu0 %2095, %v1966
    %v2097 = vpop.permute.xlu0 %2096
    %2100 = vset.pattern.permute.xlu0 0
    %2101 = vperm.xlu0 %2100, %v1967
    %v2102 = vpop.permute.xlu0 %2101
    %2105 = vset.pattern.permute.xlu0 0
    %2106 = vperm.xlu0 %2105, %v1968
    %v2107 = vpop.permute.xlu0 %2106
    %2110 = vset.pattern.permute.xlu0 0
    %2111 = vperm.xlu0 %2110, %v1969
    %v2112 = vpop.permute.xlu0 %2111
    %2115 = vset.pattern.permute.xlu0 0
    %2116 = vperm.xlu0 %2115, %v1970
    %v2117 = vpop.permute.xlu0 %2116
    %2120 = vset.pattern.permute.xlu0 0
    %2121 = vperm.xlu0 %2120, %v1971
    %v2122 = vpop.permute.xlu0 %2121
    %2125 = vset.pattern.permute.xlu0 0
    %2126 = vperm.xlu0 %2125, %v1972
    %v2127 = vpop.permute.xlu0 %2126
    %2130 = vset.pattern.permute.xlu0 0
    %2131 = vperm.xlu0 %2130, %v1973
    %v2132 = vpop.permute.xlu0 %2131
    %2135 = vset.pattern.permute.xlu0 0
    %2136 = vperm.xlu0 %2135, %v1974
    %v2137 = vpop.permute.xlu0 %2136
    %2140 = vset.pattern.permute.xlu0 0
    %2141 = vperm.xlu0 %2140, %v1975
    %v2142 = vpop.permute.xlu0 %2141
    %2145 = vset.pattern.permute.xlu0 0
    %2146 = vperm.xlu0 %2145, %v1976
    %v2147 = vpop.permute.xlu0 %2146
    %2150 = vset.pattern.permute.xlu0 0
    %2151 = vperm.xlu0 %2150, %v1977
    %v2152 = vpop.permute.xlu0 %2151
    %2155 = vset.pattern.permute.xlu0 0
    %2156 = vperm.xlu0 %2155, %v1978
    %v2157 = vpop.permute.xlu0 %2156
    %2160 = vset.pattern.permute.xlu0 0
    %2161 = vperm.xlu0 %2160, %v1979
    %v2162 = vpop.permute.xlu0 %2161
    %2165 = vset.pattern.permute.xlu0 0
    %2166 = vperm.xlu0 %2165, %v1980
    %v2167 = vpop.permute.xlu0 %2166
    %2170 = vset.pattern.permute.xlu0 0
    %2171 = vperm.xlu0 %2170, %v1981
    %v2172 = vpop.permute.xlu0 %2171
    %2175 = vset.pattern.permute.xlu0 0
    %2176 = vperm.xlu0 %2175, %v1982
    %v2177 = vpop.permute.xlu0 %2176
    %2180 = vset.pattern.permute.xlu0 0
    %2181 = vperm.xlu0 %2180, %v1983
    %v2182 = vpop.permute.xlu0 %2181
    %2185 = vset.pattern.permute.xlu0 0
    %2186 = vperm.xlu0 %2185, %v1984
    %v2187 = vpop.permute.xlu0 %2186
    %2190 = vset.pattern.permute.xlu0 0
    %2191 = vperm.xlu0 %2190, %v1985
    %v2192 = vpop.permute.xlu0 %2191
    %2195 = vset.pattern.permute.xlu0 0
    %2196 = vperm.xlu0 %2195, %v1986
    %v2197 = vpop.permute.xlu0 %2196
    %2200 = vset.pattern.permute.xlu0 0
    %2201 = vperm.xlu0 %2200, %v1987
    %v2202 = vpop.permute.xlu0 %2201
    %2205 = vset.pattern.permute.xlu0 0
    %2206 = vperm.xlu0 %2205, %v1988
    %v2207 = vpop.permute.xlu0 %2206
    %2210 = vset.pattern.permute.xlu0 0
    %2211 = vperm.xlu0 %2210, %v1989
    %v2212 = vpop.permute.xlu0 %2211
    %2215 = vset.pattern.permute.xlu0 0
    %2216 = vperm.xlu0 %2215, %v1990
    %v2217 = vpop.permute.xlu0 %2216
    %2220 = vset.pattern.permute.xlu0 0
    %2221 = vperm.xlu0 %2220, %v1991
    %v2222 = vpop.permute.xlu0 %2221
    %2225 = vset.pattern.permute.xlu0 0
    %2226 = vperm.xlu0 %2225, %v1992
    %v2227 = vpop.permute.xlu0 %2226
    %2230 = vset.pattern.permute.xlu0 0
    %2231 = vperm.xlu0 %2230, %v1993
    %v2232 = vpop.permute.xlu0 %2231
    %2235 = vset.pattern.permute.xlu0 0
    %2236 = vperm.xlu0 %2235, %v1994
    %v2237 = vpop.permute.xlu0 %2236
    %2240 = vset.pattern.permute.xlu0 0
    %2241 = vperm.xlu0 %2240, %v1995
    %v2242 = vpop.permute.xlu0 %2241
    %2245 = vset.pattern.permute.xlu0 0
    %2246 = vperm.xlu0 %2245, %v1996
    %v2247 = vpop.permute.xlu0 %2246
    %2250 = vset.pattern.permute.xlu0 0
    %2251 = vperm.xlu0 %2250, %v1997
    %v2252 = vpop.permute.xlu0 %2251
    %2255 = vset.pattern.permute.xlu0 0
    %2256 = vperm.xlu0 %2255, %v1998
    %v2257 = vpop.permute.xlu0 %2256
    %2260 = vset.pattern.permute.xlu0 0
    %2261 = vperm.xlu0 %2260, %v1999
    %v2262 = vpop.permute.xlu0 %2261
    %2265 = vset.pattern.permute.xlu0 0
    %2266 = vperm.xlu0 %2265, %v2000
    %v2267 = vpop.permute.xlu0 %2266
    %2270 = vset.pattern.permute.xlu0 0
    %2271 = vperm.xlu0 %2270, %v2001
    %v2272 = vpop.permute.xlu0 %2271
    %2275 = vset.pattern.permute.xlu0 0
    %2276 = vperm.xlu0 %2275, %v2002
    %v2277 = vpop.permute.xlu0 %2276
    %2280 = vset.pattern.permute.xlu0 0
    %2281 = vperm.xlu0 %2280, %v2003
    %v2282 = vpop.permute.xlu0 %2281
    %2285 = vset.pattern.permute.xlu0 0
    %2286 = vperm.xlu0 %2285, %v2004
    %v2287 = vpop.permute.xlu0 %2286
    %2290 = vset.pattern.permute.xlu0 0
    %2291 = vperm.xlu0 %2290, %v2005
    %v2292 = vpop.permute.xlu0 %2291
    %2295 = vset.pattern.permute.xlu0 0
    %2296 = vperm.xlu0 %2295, %v2006
    %v2297 = vpop.permute.xlu0 %2296
    %2300 = vset.pattern.permute.xlu0 0
    %2301 = vperm.xlu0 %2300, %v2007
    %v2302 = vpop.permute.xlu0 %2301
    %2305 = vset.pattern.permute.xlu0 0
    %2306 = vperm.xlu0 %2305, %v2008
    %v2307 = vpop.permute.xlu0 %2306
    %2310 = vset.pattern.permute.xlu0 0
    %2311 = vperm.xlu0 %2310, %v2009
    %v2312 = vpop.permute.xlu0 %2311
    %2315 = vset.pattern.permute.xlu0 0
    %2316 = vperm.xlu0 %2315, %v2010
    %v2317 = vpop.permute.xlu0 %2316
    %2320 = vset.pattern.permute.xlu0 0
    %2321 = vperm.xlu0 %2320, %v2011
    %v2322 = vpop.permute.xlu0 %2321
    %2325 = vset.pattern.permute.xlu0 0
    %2326 = vperm.xlu0 %2325, %v2012
    %v2327 = vpop.permute.xlu0 %2326
    %2330 = vset.pattern.permute.xlu0 0
    %2331 = vperm.xlu0 %2330, %v2013
    %v2332 = vpop.permute.xlu0 %2331
    %v2334 = vmul.f32 %v1948, %v2017
    %v2335 = vmul.f32 %v1947, %v2022
    %v2336 = vmul.f32 %v1946, %v2027
    %v2337 = vmul.f32 %v1945, %v2032
    %v2338 = vmul.f32 %v1944, %v2037
    %v2339 = vmul.f32 %v1943, %v2042
    %v2340 = vmul.f32 %v1942, %v2047
    %v2341 = vmul.f32 %v1941, %v2052
    %v2342 = vmul.f32 %v1940, %v2057
    %v2343 = vmul.f32 %v1939, %v2062
    %v2344 = vmul.f32 %v1938, %v2067
    %v2345 = vmul.f32 %v1937, %v2072
    %v2346 = vmul.f32 %v1936, %v2077
    %v2347 = vmul.f32 %v1935, %v2082
    %v2348 = vmul.f32 %v1934, %v2087
    %v2349 = vmul.f32 %v1933, %v2092
    %v2350 = vmul.f32 %v1932, %v2097
    %v2351 = vmul.f32 %v1931, %v2102
    %v2352 = vmul.f32 %v1930, %v2107
    %v2353 = vmul.f32 %v1929, %v2112
    %v2354 = vmul.f32 %v1928, %v2117
    %v2355 = vmul.f32 %v1927, %v2122
    %v2356 = vmul.f32 %v1926, %v2127
    %v2357 = vmul.f32 %v1925, %v2132
    %v2358 = vmul.f32 %v1924, %v2137
    %v2359 = vmul.f32 %v1923, %v2142
    %v2360 = vmul.f32 %v1922, %v2147
    %v2361 = vmul.f32 %v1921, %v2152
    %v2362 = vmul.f32 %v1920, %v2157
    %v2363 = vmul.f32 %v1919, %v2162
    %v2364 = vmul.f32 %v1918, %v2167
    %v2365 = vmul.f32 %v1917, %v2172
    %v2366 = vmul.f32 %v1916, %v2177
    %v2367 = vmul.f32 %v1915, %v2182
    %v2368 = vmul.f32 %v1914, %v2187
    %v2369 = vmul.f32 %v1913, %v2192
    %v2370 = vmul.f32 %v1912, %v2197
    %v2371 = vmul.f32 %v1911, %v2202
    %v2372 = vmul.f32 %v1910, %v2207
    %v2373 = vmul.f32 %v1909, %v2212
    %v2374 = vmul.f32 %v1908, %v2217
    %v2375 = vmul.f32 %v1907, %v2222
    %v2376 = vmul.f32 %v1906, %v2227
    %v2377 = vmul.f32 %v1905, %v2232
    %v2378 = vmul.f32 %v1904, %v2237
    %v2379 = vmul.f32 %v1903, %v2242
    %v2380 = vmul.f32 %v1902, %v2247
    %v2381 = vmul.f32 %v1901, %v2252
    %v2382 = vmul.f32 %v1900, %v2257
    %v2383 = vmul.f32 %v1899, %v2262
    %v2384 = vmul.f32 %v1898, %v2267
    %v2385 = vmul.f32 %v1897, %v2272
    %v2386 = vmul.f32 %v1896, %v2277
    %v2387 = vmul.f32 %v1895, %v2282
    %v2388 = vmul.f32 %v1894, %v2287
    %v2389 = vmul.f32 %v1893, %v2292
    %v2390 = vmul.f32 %v1892, %v2297
    %v2391 = vmul.f32 %v1891, %v2302
    %v2392 = vmul.f32 %v1890, %v2307
    %v2393 = vmul.f32 %v1889, %v2312
    %v2394 = vmul.f32 %v1888, %v2317
    %v2395 = vmul.f32 %v1887, %v2322
    %v2396 = vmul.f32 %v1886, %v2327
    %v2397 = vmul.f32 %v1885, %v2332
    %v2398 = vadd.f32 %v1756, %v2334
    %v2399 = vadd.f32 %v1757, %v2335
    %v2400 = vadd.f32 %v1758, %v2336
    %v2401 = vadd.f32 %v1759, %v2337
    %v2402 = vadd.f32 %v1760, %v2338
    %v2403 = vadd.f32 %v1761, %v2339
    %v2404 = vadd.f32 %v1762, %v2340
    %v2405 = vadd.f32 %v1763, %v2341
    %v2406 = vadd.f32 %v1764, %v2342
    %v2407 = vadd.f32 %v1765, %v2343
    %v2408 = vadd.f32 %v1766, %v2344
    %v2409 = vadd.f32 %v1767, %v2345
    %v2410 = vadd.f32 %v1768, %v2346
    %v2411 = vadd.f32 %v1769, %v2347
    %v2412 = vadd.f32 %v1770, %v2348
    %v2413 = vadd.f32 %v1771, %v2349
    %v2414 = vadd.f32 %v1772, %v2350
    %v2415 = vadd.f32 %v1773, %v2351
    %v2416 = vadd.f32 %v1774, %v2352
    %v2417 = vadd.f32 %v1775, %v2353
    %v2418 = vadd.f32 %v1776, %v2354
    %v2419 = vadd.f32 %v1777, %v2355
    %v2420 = vadd.f32 %v1778, %v2356
    %v2421 = vadd.f32 %v1779, %v2357
    %v2422 = vadd.f32 %v1780, %v2358
    %v2423 = vadd.f32 %v1781, %v2359
    %v2424 = vadd.f32 %v1782, %v2360
    %v2425 = vadd.f32 %v1783, %v2361
    %v2426 = vadd.f32 %v1784, %v2362
    %v2427 = vadd.f32 %v1785, %v2363
    %v2428 = vadd.f32 %v1786, %v2364
    %v2429 = vadd.f32 %v1787, %v2365
    %v2430 = vadd.f32 %v1788, %v2366
    %v2431 = vadd.f32 %v1789, %v2367
    %v2432 = vadd.f32 %v1790, %v2368
    %v2433 = vadd.f32 %v1791, %v2369
    %v2434 = vadd.f32 %v1792, %v2370
    %v2435 = vadd.f32 %v1793, %v2371
    %v2436 = vadd.f32 %v1794, %v2372
    %v2437 = vadd.f32 %v1795, %v2373
    %v2438 = vadd.f32 %v1796, %v2374
    %v2439 = vadd.f32 %v1797, %v2375
    %v2440 = vadd.f32 %v1798, %v2376
    %v2441 = vadd.f32 %v1799, %v2377
    %v2442 = vadd.f32 %v1800, %v2378
    %v2443 = vadd.f32 %v1801, %v2379
    %v2444 = vadd.f32 %v1802, %v2380
    %v2445 = vadd.f32 %v1803, %v2381
    %v2446 = vadd.f32 %v1804, %v2382
    %v2447 = vadd.f32 %v1805, %v2383
    %v2448 = vadd.f32 %v1806, %v2384
    %v2449 = vadd.f32 %v1807, %v2385
    %v2450 = vadd.f32 %v1808, %v2386
    %v2451 = vadd.f32 %v1809, %v2387
    %v2452 = vadd.f32 %v1810, %v2388
    %v2453 = vadd.f32 %v1811, %v2389
    %v2454 = vadd.f32 %v1812, %v2390
    %v2455 = vadd.f32 %v1813, %v2391
    %v2456 = vadd.f32 %v1814, %v2392
    %v2457 = vadd.f32 %v1815, %v2393
    %v2458 = vadd.f32 %v1816, %v2394
    %v2459 = vadd.f32 %v1817, %v2395
    %v2460 = vadd.f32 %v1818, %v2396
    %v2461 = vadd.f32 %v1819, %v2397
    %v2462 = vld [vmem:[%s3 + $0x8] sm:$0xff]
    %v2463 = vld [vmem:[%s3 + $0x24] sm:$0xff]
    %v2464 = vld [vmem:[%s3 + $0x40] sm:$0xff]
    %v2465 = vld [vmem:[%s3 + $0x5c] sm:$0xff]
    %v2466 = vld [vmem:[%s3 + $0x78] sm:$0xff]
    %v2467 = vld [vmem:[%s3 + $0x94] sm:$0xff]
    %v2468 = vld [vmem:[%s3 + $0xb0] sm:$0xff]
    %v2469 = vld [vmem:[%s3 + $0xcc] sm:$0xff]
    %v2470 = vld [vmem:[%s3 + $0xe8] sm:$0xff]
    %v2471 = vld [vmem:[%s3 + $0x104] sm:$0xff]
    %v2472 = vld [vmem:[%s3 + $0x120] sm:$0xff]
    %v2473 = vld [vmem:[%s3 + $0x13c] sm:$0xff]
    %v2474 = vld [vmem:[%s3 + $0x158] sm:$0xff]
    %v2475 = vld [vmem:[%s3 + $0x174] sm:$0xff]
    %v2476 = vld [vmem:[%s3 + $0x190] sm:$0xff]
    %v2477 = vld [vmem:[%s3 + $0x1ac] sm:$0xff]
    %v2494 = vunpack.c.l.b16 %v2462
    %v2495 = vunpack.c.h.b16 %v2462
    %v2496 = vunpack.c.l.b16 %v2463
    %v2497 = vunpack.c.h.b16 %v2463
    %v2498 = vunpack.c.l.b16 %v2464
    %v2499 = vunpack.c.h.b16 %v2464
    %v2500 = vunpack.c.l.b16 %v2465
    %v2501 = vunpack.c.h.b16 %v2465
    %v2502 = vunpack.c.l.b16 %v2466
    %v2503 = vunpack.c.h.b16 %v2466
    %v2504 = vunpack.c.l.b16 %v2467
    %v2505 = vunpack.c.h.b16 %v2467
    %v2506 = vunpack.c.l.b16 %v2468
    %v2507 = vunpack.c.h.b16 %v2468
    %v2508 = vunpack.c.l.b16 %v2469
    %v2509 = vunpack.c.h.b16 %v2469
    %v2510 = vunpack.c.l.b16 %v2470
    %v2511 = vunpack.c.h.b16 %v2470
    %v2512 = vunpack.c.l.b16 %v2471
    %v2513 = vunpack.c.h.b16 %v2471
    %v2514 = vunpack.c.l.b16 %v2472
    %v2515 = vunpack.c.h.b16 %v2472
    %v2516 = vunpack.c.l.b16 %v2473
    %v2517 = vunpack.c.h.b16 %v2473
    %v2518 = vunpack.c.l.b16 %v2474
    %v2519 = vunpack.c.h.b16 %v2474
    %v2520 = vunpack.c.l.b16 %v2475
    %v2521 = vunpack.c.h.b16 %v2475
    %v2522 = vunpack.c.l.b16 %v2476
    %v2523 = vunpack.c.h.b16 %v2476
    %v2524 = vunpack.c.l.b16 %v2477
    %v2525 = vunpack.c.h.b16 %v2477
    %v2526 = vpack.c.b16 %v2496, %v2494
    %v2527 = vpack.c.b16 %v2497, %v2495
    %v2528 = vpack.c.b16 %v2500, %v2498
    %v2529 = vpack.c.b16 %v2501, %v2499
    %v2530 = vpack.c.b16 %v2504, %v2502
    %v2531 = vpack.c.b16 %v2505, %v2503
    %v2532 = vpack.c.b16 %v2508, %v2506
    %v2533 = vpack.c.b16 %v2509, %v2507
    %v2534 = vpack.c.b16 %v2512, %v2510
    %v2535 = vpack.c.b16 %v2513, %v2511
    %v2536 = vpack.c.b16 %v2516, %v2514
    %v2537 = vpack.c.b16 %v2517, %v2515
    %v2538 = vpack.c.b16 %v2520, %v2518
    %v2539 = vpack.c.b16 %v2521, %v2519
    %v2540 = vpack.c.b16 %v2524, %v2522
    %v2541 = vpack.c.b16 %v2525, %v2523
    %2558 = vmatprep.subr.bf16.mxu0 %v2527
    %2559 = vmatpush1.bf16.msra.mxu0 %v2526
    %2560 = vmatprep.subr.bf16.mxu0 %v2529
    %2561 = vmatpush1.bf16.msra.mxu0 %v2528
    %2562 = vmatprep.subr.bf16.mxu0 %v2531
    %2563 = vmatpush1.bf16.msra.mxu0 %v2530
    %2564 = vmatprep.subr.bf16.mxu0 %v2533
    %2565 = vmatpush1.bf16.msra.mxu0 %v2532
    %2566 = vmatprep.subr.bf16.mxu0 %v2535
    %2567 = vmatpush1.bf16.msra.mxu0 %v2534
    %2568 = vmatprep.subr.bf16.mxu0 %v2537
    %2569 = vmatpush1.bf16.msra.mxu0 %v2536
    %2570 = vmatprep.subr.bf16.mxu0 %v2539
    %2571 = vmatpush1.bf16.msra.mxu0 %v2538
    %2572 = vmatprep.subr.bf16.mxu0 %v2541
    %2573 = vmatpush1.bf16.msra.mxu0 %v2540
    %2574 = vmatprep.subr.bf16.mxu0 0
    %2575 = vmatpush1.bf16.msra.mxu0 0
    %2576 = vmatprep.subr.bf16.mxu0 0
    %2577 = vmatpush1.bf16.msra.mxu0 0
    %2578 = vmatprep.subr.bf16.mxu0 0
    %2579 = vmatpush1.bf16.msra.mxu0 0
    %2580 = vmatprep.subr.bf16.mxu0 0
    %2581 = vmatpush1.bf16.msra.mxu0 0
    %2582 = vmatprep.subr.bf16.mxu0 0
    %2583 = vmatpush1.bf16.msra.mxu0 0
    %2584 = vmatprep.subr.bf16.mxu0 0
    %2585 = vmatpush1.bf16.msra.mxu0 0
    %2586 = vmatprep.subr.bf16.mxu0 0
    %2587 = vmatpush1.bf16.msra.mxu0 0
    %2588 = vmatprep.subr.bf16.mxu0 0
    %2589 = vmatpush1.bf16.msra.mxu0 0
    %2590 = vmatprep.mubr.bf16.mxu0 0
    %2591 = vmatmul.mubr.bf16.gmra.mrb[0].mxu0 %v760
    %v2592 = vpop.f32.mrb[0].mxu0
    %v2593 = vadd.f32 0.0, %v2592
    %v2594 = vpop.f32.mrb[0].mxu0
    %v2595 = vadd.f32 0.0, %v2594
    %v2596 = vpop.f32.mrb[0].mxu0
    %v2597 = vadd.f32 0.0, %v2596
    %v2598 = vpop.f32.mrb[0].mxu0
    %v2599 = vadd.f32 0.0, %v2598
    %2600 = vmatprep.mubr.bf16.mxu0 0
    %2601 = vmatmul.mubr.bf16.gmra.mrb[0].mxu0 %v761
    %v2602 = vpop.f32.mrb[0].mxu0
    %v2603 = vadd.f32 0.0, %v2602
    %v2604 = vpop.f32.mrb[0].mxu0
    %v2605 = vadd.f32 0.0, %v2604
    %v2606 = vpop.f32.mrb[0].mxu0
    %v2607 = vadd.f32 0.0, %v2606
    %v2608 = vpop.f32.mrb[0].mxu0
    %v2609 = vadd.f32 0.0, %v2608
    %2610 = vmatprep.mubr.bf16.mxu0 0
    %2611 = vmatmul.mubr.bf16.gmra.mrb[0].mxu0 %v762
    %v2612 = vpop.f32.mrb[0].mxu0
    %v2613 = vadd.f32 0.0, %v2612
    %v2614 = vpop.f32.mrb[0].mxu0
    %v2615 = vadd.f32 0.0, %v2614
    %v2616 = vpop.f32.mrb[0].mxu0
    %v2617 = vadd.f32 0.0, %v2616
    %v2618 = vpop.f32.mrb[0].mxu0
    %v2619 = vadd.f32 0.0, %v2618
    %2620 = vmatprep.mubr.bf16.mxu0 0
    %2621 = vmatmul.mubr.bf16.gmra.mrb[0].mxu0 %v763
    %v2622 = vpop.f32.mrb[0].mxu0
    %v2623 = vadd.f32 0.0, %v2622
    %v2624 = vpop.f32.mrb[0].mxu0
    %v2625 = vadd.f32 0.0, %v2624
    %v2626 = vpop.f32.mrb[0].mxu0
    %v2627 = vadd.f32 0.0, %v2626
    %v2628 = vpop.f32.mrb[0].mxu0
    %v2629 = vadd.f32 0.0, %v2628
    %2630 = vmatprep.mubr.bf16.mxu0 0
    %2631 = vmatmul.mubr.bf16.gmra.mrb[0].mxu0 %v764
    %v2632 = vpop.f32.mrb[0].mxu0
    %v2633 = vadd.f32 0.0, %v2632
    %v2634 = vpop.f32.mrb[0].mxu0
    %v2635 = vadd.f32 0.0, %v2634
    %v2636 = vpop.f32.mrb[0].mxu0
    %v2637 = vadd.f32 0.0, %v2636
    %v2638 = vpop.f32.mrb[0].mxu0
    %v2639 = vadd.f32 0.0, %v2638
    %2640 = vmatprep.mubr.bf16.mxu0 0
    %2641 = vmatmul.mubr.bf16.gmra.mrb[0].mxu0 %v765
    %v2642 = vpop.f32.mrb[0].mxu0
    %v2643 = vadd.f32 0.0, %v2642
    %v2644 = vpop.f32.mrb[0].mxu0
    %v2645 = vadd.f32 0.0, %v2644
    %v2646 = vpop.f32.mrb[0].mxu0
    %v2647 = vadd.f32 0.0, %v2646
    %v2648 = vpop.f32.mrb[0].mxu0
    %v2649 = vadd.f32 0.0, %v2648
    %2650 = vmatprep.mubr.bf16.mxu0 0
    %2651 = vmatmul.mubr.bf16.gmra.mrb[0].mxu0 %v766
    %v2652 = vpop.f32.mrb[0].mxu0
    %v2653 = vadd.f32 0.0, %v2652
    %v2654 = vpop.f32.mrb[0].mxu0
    %v2655 = vadd.f32 0.0, %v2654
    %v2656 = vpop.f32.mrb[0].mxu0
    %v2657 = vadd.f32 0.0, %v2656
    %v2658 = vpop.f32.mrb[0].mxu0
    %v2659 = vadd.f32 0.0, %v2658
    %2660 = vmatprep.mubr.bf16.mxu0 0
    %2661 = vmatmul.mubr.bf16.gmra.mrb[0].mxu0 %v767
    %v2662 = vpop.f32.mrb[0].mxu0
    %v2663 = vadd.f32 0.0, %v2662
    %v2664 = vpop.f32.mrb[0].mxu0
    %v2665 = vadd.f32 0.0, %v2664
    %v2666 = vpop.f32.mrb[0].mxu0
    %v2667 = vadd.f32 0.0, %v2666
    %v2668 = vpop.f32.mrb[0].mxu0
    %v2669 = vadd.f32 0.0, %v2668
    %2670 = vmatprep.mubr.bf16.mxu0 0
    %2671 = vmatmul.mubr.bf16.gmra.mrb[0].mxu0 %v768
    %v2672 = vpop.f32.mrb[0].mxu0
    %v2673 = vadd.f32 0.0, %v2672
    %v2674 = vpop.f32.mrb[0].mxu0
    %v2675 = vadd.f32 0.0, %v2674
    %v2676 = vpop.f32.mrb[0].mxu0
    %v2677 = vadd.f32 0.0, %v2676
    %v2678 = vpop.f32.mrb[0].mxu0
    %v2679 = vadd.f32 0.0, %v2678
    %2680 = vmatprep.mubr.bf16.mxu0 0
    %2681 = vmatmul.mubr.bf16.gmra.mrb[0].mxu0 %v769
    %v2682 = vpop.f32.mrb[0].mxu0
    %v2683 = vadd.f32 0.0, %v2682
    %v2684 = vpop.f32.mrb[0].mxu0
    %v2685 = vadd.f32 0.0, %v2684
    %v2686 = vpop.f32.mrb[0].mxu0
    %v2687 = vadd.f32 0.0, %v2686
    %v2688 = vpop.f32.mrb[0].mxu0
    %v2689 = vadd.f32 0.0, %v2688
    %2690 = vmatprep.mubr.bf16.mxu0 0
    %2691 = vmatmul.mubr.bf16.gmra.mrb[0].mxu0 %v770
    %v2692 = vpop.f32.mrb[0].mxu0
    %v2693 = vadd.f32 0.0, %v2692
    %v2694 = vpop.f32.mrb[0].mxu0
    %v2695 = vadd.f32 0.0, %v2694
    %v2696 = vpop.f32.mrb[0].mxu0
    %v2697 = vadd.f32 0.0, %v2696
    %v2698 = vpop.f32.mrb[0].mxu0
    %v2699 = vadd.f32 0.0, %v2698
    %2700 = vmatprep.mubr.bf16.mxu0 0
    %2701 = vmatmul.mubr.bf16.gmra.mrb[0].mxu0 %v771
    %v2702 = vpop.f32.mrb[0].mxu0
    %v2703 = vadd.f32 0.0, %v2702
    %v2704 = vpop.f32.mrb[0].mxu0
    %v2705 = vadd.f32 0.0, %v2704
    %v2706 = vpop.f32.mrb[0].mxu0
    %v2707 = vadd.f32 0.0, %v2706
    %v2708 = vpop.f32.mrb[0].mxu0
    %v2709 = vadd.f32 0.0, %v2708
    %2710 = vmatprep.mubr.bf16.mxu0 0
    %2711 = vmatmul.mubr.bf16.gmra.mrb[0].mxu0 %v772
    %v2712 = vpop.f32.mrb[0].mxu0
    %v2713 = vadd.f32 0.0, %v2712
    %v2714 = vpop.f32.mrb[0].mxu0
    %v2715 = vadd.f32 0.0, %v2714
    %v2716 = vpop.f32.mrb[0].mxu0
    %v2717 = vadd.f32 0.0, %v2716
    %v2718 = vpop.f32.mrb[0].mxu0
    %v2719 = vadd.f32 0.0, %v2718
    %2720 = vmatprep.mubr.bf16.mxu0 0
    %2721 = vmatmul.mubr.bf16.gmra.mrb[0].mxu0 %v773
    %v2722 = vpop.f32.mrb[0].mxu0
    %v2723 = vadd.f32 0.0, %v2722
    %v2724 = vpop.f32.mrb[0].mxu0
    %v2725 = vadd.f32 0.0, %v2724
    %v2726 = vpop.f32.mrb[0].mxu0
    %v2727 = vadd.f32 0.0, %v2726
    %v2728 = vpop.f32.mrb[0].mxu0
    %v2729 = vadd.f32 0.0, %v2728
    %2730 = vmatprep.mubr.bf16.mxu0 0
    %2731 = vmatmul.mubr.bf16.gmra.mrb[0].mxu0 %v774
    %v2732 = vpop.f32.mrb[0].mxu0
    %v2733 = vadd.f32 0.0, %v2732
    %v2734 = vpop.f32.mrb[0].mxu0
    %v2735 = vadd.f32 0.0, %v2734
    %v2736 = vpop.f32.mrb[0].mxu0
    %v2737 = vadd.f32 0.0, %v2736
    %v2738 = vpop.f32.mrb[0].mxu0
    %v2739 = vadd.f32 0.0, %v2738
    %2740 = vmatprep.mubr.bf16.mxu0 0
    %2741 = vmatmul.mubr.bf16.gmra.mrb[0].mxu0 %v775
    %v2742 = vpop.f32.mrb[0].mxu0
    %v2743 = vadd.f32 0.0, %v2742
    %v2744 = vpop.f32.mrb[0].mxu0
    %v2745 = vadd.f32 0.0, %v2744
    %v2746 = vpop.f32.mrb[0].mxu0
    %v2747 = vadd.f32 0.0, %v2746
    %v2748 = vpop.f32.mrb[0].mxu0
    %v2749 = vadd.f32 0.0, %v2748
    %2750 = vmatprep.mubr.bf16.mxu0 0
    %2751 = vmatmul.mubr.bf16.gmra.mrb[0].mxu0 %v776
    %v2752 = vpop.f32.mrb[0].mxu0
    %v2753 = vadd.f32 0.0, %v2752
    %v2754 = vpop.f32.mrb[0].mxu0
    %v2755 = vadd.f32 0.0, %v2754
    %v2756 = vpop.f32.mrb[0].mxu0
    %v2757 = vadd.f32 0.0, %v2756
    %v2758 = vpop.f32.mrb[0].mxu0
    %v2759 = vadd.f32 0.0, %v2758
    %2760 = vmatprep.mubr.bf16.mxu0 0
    %2761 = vmatmul.mubr.bf16.gmra.mrb[0].mxu0 %v777
    %v2762 = vpop.f32.mrb[0].mxu0
    %v2763 = vadd.f32 0.0, %v2762
    %v2764 = vpop.f32.mrb[0].mxu0
    %v2765 = vadd.f32 0.0, %v2764
    %v2766 = vpop.f32.mrb[0].mxu0
    %v2767 = vadd.f32 0.0, %v2766
    %v2768 = vpop.f32.mrb[0].mxu0
    %v2769 = vadd.f32 0.0, %v2768
    %2770 = vmatprep.mubr.bf16.mxu0 0
    %2771 = vmatmul.mubr.bf16.gmra.mrb[0].mxu0 %v778
    %v2772 = vpop.f32.mrb[0].mxu0
    %v2773 = vadd.f32 0.0, %v2772
    %v2774 = vpop.f32.mrb[0].mxu0
    %v2775 = vadd.f32 0.0, %v2774
    %v2776 = vpop.f32.mrb[0].mxu0
    %v2777 = vadd.f32 0.0, %v2776
    %v2778 = vpop.f32.mrb[0].mxu0
    %v2779 = vadd.f32 0.0, %v2778
    %2780 = vmatprep.mubr.bf16.mxu0 0
    %2781 = vmatmul.mubr.bf16.gmra.mrb[0].mxu0 %v779
    %v2782 = vpop.f32.mrb[0].mxu0
    %v2783 = vadd.f32 0.0, %v2782
    %v2784 = vpop.f32.mrb[0].mxu0
    %v2785 = vadd.f32 0.0, %v2784
    %v2786 = vpop.f32.mrb[0].mxu0
    %v2787 = vadd.f32 0.0, %v2786
    %v2788 = vpop.f32.mrb[0].mxu0
    %v2789 = vadd.f32 0.0, %v2788
    %2790 = vmatprep.mubr.bf16.mxu0 0
    %2791 = vmatmul.mubr.bf16.gmra.mrb[0].mxu0 %v780
    %v2792 = vpop.f32.mrb[0].mxu0
    %v2793 = vadd.f32 0.0, %v2792
    %v2794 = vpop.f32.mrb[0].mxu0
    %v2795 = vadd.f32 0.0, %v2794
    %v2796 = vpop.f32.mrb[0].mxu0
    %v2797 = vadd.f32 0.0, %v2796
    %v2798 = vpop.f32.mrb[0].mxu0
    %v2799 = vadd.f32 0.0, %v2798
    %2800 = vmatprep.mubr.bf16.mxu0 0
    %2801 = vmatmul.mubr.bf16.gmra.mrb[0].mxu0 %v781
    %v2802 = vpop.f32.mrb[0].mxu0
    %v2803 = vadd.f32 0.0, %v2802
    %v2804 = vpop.f32.mrb[0].mxu0
    %v2805 = vadd.f32 0.0, %v2804
    %v2806 = vpop.f32.mrb[0].mxu0
    %v2807 = vadd.f32 0.0, %v2806
    %v2808 = vpop.f32.mrb[0].mxu0
    %v2809 = vadd.f32 0.0, %v2808
    %2810 = vmatprep.mubr.bf16.mxu0 0
    %2811 = vmatmul.mubr.bf16.gmra.mrb[0].mxu0 %v782
    %v2812 = vpop.f32.mrb[0].mxu0
    %v2813 = vadd.f32 0.0, %v2812
    %v2814 = vpop.f32.mrb[0].mxu0
    %v2815 = vadd.f32 0.0, %v2814
    %v2816 = vpop.f32.mrb[0].mxu0
    %v2817 = vadd.f32 0.0, %v2816
    %v2818 = vpop.f32.mrb[0].mxu0
    %v2819 = vadd.f32 0.0, %v2818
    %2820 = vmatprep.mubr.bf16.mxu0 0
    %2821 = vmatmul.mubr.bf16.gmra.mrb[0].mxu0 %v783
    %v2822 = vpop.f32.mrb[0].mxu0
    %v2823 = vadd.f32 0.0, %v2822
    %v2824 = vpop.f32.mrb[0].mxu0
    %v2825 = vadd.f32 0.0, %v2824
    %v2826 = vpop.f32.mrb[0].mxu0
    %v2827 = vadd.f32 0.0, %v2826
    %v2828 = vpop.f32.mrb[0].mxu0
    %v2829 = vadd.f32 0.0, %v2828
    %2830 = vmatprep.mubr.bf16.mxu0 0
    %2831 = vmatmul.mubr.bf16.gmra.mrb[0].mxu0 %v784
    %v2832 = vpop.f32.mrb[0].mxu0
    %v2833 = vadd.f32 0.0, %v2832
    %v2834 = vpop.f32.mrb[0].mxu0
    %v2835 = vadd.f32 0.0, %v2834
    %v2836 = vpop.f32.mrb[0].mxu0
    %v2837 = vadd.f32 0.0, %v2836
    %v2838 = vpop.f32.mrb[0].mxu0
    %v2839 = vadd.f32 0.0, %v2838
    %2840 = vmatprep.mubr.bf16.mxu0 0
    %2841 = vmatmul.mubr.bf16.gmra.mrb[0].mxu0 %v785
    %v2842 = vpop.f32.mrb[0].mxu0
    %v2843 = vadd.f32 0.0, %v2842
    %v2844 = vpop.f32.mrb[0].mxu0
    %v2845 = vadd.f32 0.0, %v2844
    %v2846 = vpop.f32.mrb[0].mxu0
    %v2847 = vadd.f32 0.0, %v2846
    %v2848 = vpop.f32.mrb[0].mxu0
    %v2849 = vadd.f32 0.0, %v2848
    %2850 = vmatprep.mubr.bf16.mxu0 0
    %2851 = vmatmul.mubr.bf16.gmra.mrb[0].mxu0 %v786
    %v2852 = vpop.f32.mrb[0].mxu0
    %v2853 = vadd.f32 0.0, %v2852
    %v2854 = vpop.f32.mrb[0].mxu0
    %v2855 = vadd.f32 0.0, %v2854
    %v2856 = vpop.f32.mrb[0].mxu0
    %v2857 = vadd.f32 0.0, %v2856
    %v2858 = vpop.f32.mrb[0].mxu0
    %v2859 = vadd.f32 0.0, %v2858
    %2860 = vmatprep.mubr.bf16.mxu0 0
    %2861 = vmatmul.mubr.bf16.gmra.mrb[0].mxu0 %v787
    %v2862 = vpop.f32.mrb[0].mxu0
    %v2863 = vadd.f32 0.0, %v2862
    %v2864 = vpop.f32.mrb[0].mxu0
    %v2865 = vadd.f32 0.0, %v2864
    %v2866 = vpop.f32.mrb[0].mxu0
    %v2867 = vadd.f32 0.0, %v2866
    %v2868 = vpop.f32.mrb[0].mxu0
    %v2869 = vadd.f32 0.0, %v2868
    %2870 = vmatprep.mubr.bf16.mxu0 0
    %2871 = vmatmul.mubr.bf16.gmra.mrb[0].mxu0 %v788
    %v2872 = vpop.f32.mrb[0].mxu0
    %v2873 = vadd.f32 0.0, %v2872
    %v2874 = vpop.f32.mrb[0].mxu0
    %v2875 = vadd.f32 0.0, %v2874
    %v2876 = vpop.f32.mrb[0].mxu0
    %v2877 = vadd.f32 0.0, %v2876
    %v2878 = vpop.f32.mrb[0].mxu0
    %v2879 = vadd.f32 0.0, %v2878
    %2880 = vmatprep.mubr.bf16.mxu0 0
    %2881 = vmatmul.mubr.bf16.gmra.mrb[0].mxu0 %v789
    %v2882 = vpop.f32.mrb[0].mxu0
    %v2883 = vadd.f32 0.0, %v2882
    %v2884 = vpop.f32.mrb[0].mxu0
    %v2885 = vadd.f32 0.0, %v2884
    %v2886 = vpop.f32.mrb[0].mxu0
    %v2887 = vadd.f32 0.0, %v2886
    %v2888 = vpop.f32.mrb[0].mxu0
    %v2889 = vadd.f32 0.0, %v2888
    %2890 = vmatprep.mubr.bf16.mxu0 0
    %2891 = vmatmul.mubr.bf16.gmra.mrb[0].mxu0 %v790
    %v2892 = vpop.f32.mrb[0].mxu0
    %v2893 = vadd.f32 0.0, %v2892
    %v2894 = vpop.f32.mrb[0].mxu0
    %v2895 = vadd.f32 0.0, %v2894
    %v2896 = vpop.f32.mrb[0].mxu0
    %v2897 = vadd.f32 0.0, %v2896
    %v2898 = vpop.f32.mrb[0].mxu0
    %v2899 = vadd.f32 0.0, %v2898
    %2900 = vmatprep.mubr.bf16.mxu0 0
    %2901 = vmatmul.mubr.bf16.gmra.mrb[0].mxu0 %v791
    %v2902 = vpop.f32.mrb[0].mxu0
    %v2903 = vadd.f32 0.0, %v2902
    %v2904 = vpop.f32.mrb[0].mxu0
    %v2905 = vadd.f32 0.0, %v2904
    %v2906 = vpop.f32.mrb[0].mxu0
    %v2907 = vadd.f32 0.0, %v2906
    %v2908 = vpop.f32.mrb[0].mxu0
    %v2909 = vadd.f32 0.0, %v2908
    %2910 = vdwg.mxu0
    %v2911 = vrot.slane %v2593, 7
    %v2912 = vrot.slane %v2597, 7
    %v2913 = vrot.slane %v2603, 7
    %v2914 = vrot.slane %v2607, 7
    %v2915 = vrot.slane %v2613, 7
    %v2916 = vrot.slane %v2617, 7
    %v2917 = vrot.slane %v2623, 7
    %v2918 = vrot.slane %v2627, 7
    %v2919 = vrot.slane %v2633, 7
    %v2920 = vrot.slane %v2637, 7
    %v2921 = vrot.slane %v2643, 7
    %v2922 = vrot.slane %v2647, 7
    %v2923 = vrot.slane %v2653, 7
    %v2924 = vrot.slane %v2657, 7
    %v2925 = vrot.slane %v2663, 7
    %v2926 = vrot.slane %v2667, 7
    %v2927 = vrot.slane %v2673, 7
    %v2928 = vrot.slane %v2677, 7
    %v2929 = vrot.slane %v2683, 7
    %v2930 = vrot.slane %v2687, 7
    %v2931 = vrot.slane %v2693, 7
    %v2932 = vrot.slane %v2697, 7
    %v2933 = vrot.slane %v2703, 7
    %v2934 = vrot.slane %v2707, 7
    %v2935 = vrot.slane %v2713, 7
    %v2936 = vrot.slane %v2717, 7
    %v2937 = vrot.slane %v2723, 7
    %v2938 = vrot.slane %v2727, 7
    %v2939 = vrot.slane %v2733, 7
    %v2940 = vrot.slane %v2737, 7
    %v2941 = vrot.slane %v2743, 7
    %v2942 = vrot.slane %v2747, 7
    %v2943 = vrot.slane %v2753, 7
    %v2944 = vrot.slane %v2757, 7
    %v2945 = vrot.slane %v2763, 7
    %v2946 = vrot.slane %v2767, 7
    %v2947 = vrot.slane %v2773, 7
    %v2948 = vrot.slane %v2777, 7
    %v2949 = vrot.slane %v2783, 7
    %v2950 = vrot.slane %v2787, 7
    %v2951 = vrot.slane %v2793, 7
    %v2952 = vrot.slane %v2797, 7
    %v2953 = vrot.slane %v2803, 7
    %v2954 = vrot.slane %v2807, 7
    %v2955 = vrot.slane %v2813, 7
    %v2956 = vrot.slane %v2817, 7
    %v2957 = vrot.slane %v2823, 7
    %v2958 = vrot.slane %v2827, 7
    %v2959 = vrot.slane %v2833, 7
    %v2960 = vrot.slane %v2837, 7
    %v2961 = vrot.slane %v2843, 7
    %v2962 = vrot.slane %v2847, 7
    %v2963 = vrot.slane %v2853, 7
    %v2964 = vrot.slane %v2857, 7
    %v2965 = vrot.slane %v2863, 7
    %v2966 = vrot.slane %v2867, 7
    %v2967 = vrot.slane %v2873, 7
    %v2968 = vrot.slane %v2877, 7
    %v2969 = vrot.slane %v2883, 7
    %v2970 = vrot.slane %v2887, 7
    %v2971 = vrot.slane %v2893, 7
    %v2972 = vrot.slane %v2897, 7
    %v2973 = vrot.slane %v2903, 7
    %v2974 = vrot.slane %v2907, 7
    %vm2975 = vcmp.lt.s32.totalorder %v1306, 1
    %v2976 = vsel %vm2975, %v2973, %v2974
    %v2977 = vsel %vm2975, %v2972, %v2973
    %v2978 = vsel %vm2975, %v2971, %v2972
    %v2979 = vsel %vm2975, %v2970, %v2971
    %v2980 = vsel %vm2975, %v2969, %v2970
    %v2981 = vsel %vm2975, %v2968, %v2969
    %v2982 = vsel %vm2975, %v2967, %v2968
    %v2983 = vsel %vm2975, %v2966, %v2967
    %v2984 = vsel %vm2975, %v2965, %v2966
    %v2985 = vsel %vm2975, %v2964, %v2965
    %v2986 = vsel %vm2975, %v2963, %v2964
    %v2987 = vsel %vm2975, %v2962, %v2963
    %v2988 = vsel %vm2975, %v2961, %v2962
    %v2989 = vsel %vm2975, %v2960, %v2961
    %v2990 = vsel %vm2975, %v2959, %v2960
    %v2991 = vsel %vm2975, %v2958, %v2959
    %v2992 = vsel %vm2975, %v2957, %v2958
    %v2993 = vsel %vm2975, %v2956, %v2957
    %v2994 = vsel %vm2975, %v2955, %v2956
    %v2995 = vsel %vm2975, %v2954, %v2955
    %v2996 = vsel %vm2975, %v2953, %v2954
    %v2997 = vsel %vm2975, %v2952, %v2953
    %v2998 = vsel %vm2975, %v2951, %v2952
    %v2999 = vsel %vm2975, %v2950, %v2951
    %v3000 = vsel %vm2975, %v2949, %v2950
    %v3001 = vsel %vm2975, %v2948, %v2949
    %v3002 = vsel %vm2975, %v2947, %v2948
    %v3003 = vsel %vm2975, %v2946, %v2947
    %v3004 = vsel %vm2975, %v2945, %v2946
    %v3005 = vsel %vm2975, %v2944, %v2945
    %v3006 = vsel %vm2975, %v2943, %v2944
    %v3007 = vsel %vm2975, %v2942, %v2943
    %v3008 = vsel %vm2975, %v2941, %v2942
    %v3009 = vsel %vm2975, %v2940, %v2941
    %v3010 = vsel %vm2975, %v2939, %v2940
    %v3011 = vsel %vm2975, %v2938, %v2939
    %v3012 = vsel %vm2975, %v2937, %v2938
    %v3013 = vsel %vm2975, %v2936, %v2937
    %v3014 = vsel %vm2975, %v2935, %v2936
    %v3015 = vsel %vm2975, %v2934, %v2935
    %v3016 = vsel %vm2975, %v2933, %v2934
    %v3017 = vsel %vm2975, %v2932, %v2933
    %v3018 = vsel %vm2975, %v2931, %v2932
    %v3019 = vsel %vm2975, %v2930, %v2931
    %v3020 = vsel %vm2975, %v2929, %v2930
    %v3021 = vsel %vm2975, %v2928, %v2929
    %v3022 = vsel %vm2975, %v2927, %v2928
    %v3023 = vsel %vm2975, %v2926, %v2927
    %v3024 = vsel %vm2975, %v2925, %v2926
    %v3025 = vsel %vm2975, %v2924, %v2925
    %v3026 = vsel %vm2975, %v2923, %v2924
    %v3027 = vsel %vm2975, %v2922, %v2923
    %v3028 = vsel %vm2975, %v2921, %v2922
    %v3029 = vsel %vm2975, %v2920, %v2921
    %v3030 = vsel %vm2975, %v2919, %v2920
    %v3031 = vsel %vm2975, %v2918, %v2919
    %v3032 = vsel %vm2975, %v2917, %v2918
    %v3033 = vsel %vm2975, %v2916, %v2917
    %v3034 = vsel %vm2975, %v2915, %v2916
    %v3035 = vsel %vm2975, %v2914, %v2915
    %v3036 = vsel %vm2975, %v2913, %v2914
    %v3037 = vsel %vm2975, %v2912, %v2913
    %v3038 = vsel %vm2975, %v2911, %v2912
    %v3039 = vsel %vm2975, %v2974, %v2911
    %s3040 = scalar_lea.vmem %s10, 1024
    %v3041 = vld [vmem:[%s3040] sm:$0xff]
    %v3042 = vld [vmem:[%s3040 + $0x8] sm:$0xff]
    %v3043 = vld [vmem:[%s3040 + $0x10] sm:$0xff]
    %v3044 = vld [vmem:[%s3040 + $0x18] sm:$0xff]
    %v3045 = vld [vmem:[%s3040 + $0x20] sm:$0xff]
    %v3046 = vld [vmem:[%s3040 + $0x28] sm:$0xff]
    %v3047 = vld [vmem:[%s3040 + $0x30] sm:$0xff]
    %v3048 = vld [vmem:[%s3040 + $0x38] sm:$0xff]
    %v3049 = vld [vmem:[%s3040 + $0x40] sm:$0xff]
    %v3050 = vld [vmem:[%s3040 + $0x48] sm:$0xff]
    %v3051 = vld [vmem:[%s3040 + $0x50] sm:$0xff]
    %v3052 = vld [vmem:[%s3040 + $0x58] sm:$0xff]
    %v3053 = vld [vmem:[%s3040 + $0x60] sm:$0xff]
    %v3054 = vld [vmem:[%s3040 + $0x68] sm:$0xff]
    %v3055 = vld [vmem:[%s3040 + $0x70] sm:$0xff]
    %v3056 = vld [vmem:[%s3040 + $0x78] sm:$0xff]
    %v3057 = vld [vmem:[%s3040 + $0x80] sm:$0xff]
    %v3058 = vld [vmem:[%s3040 + $0x88] sm:$0xff]
    %v3059 = vld [vmem:[%s3040 + $0x90] sm:$0xff]
    %v3060 = vld [vmem:[%s3040 + $0x98] sm:$0xff]
    %v3061 = vld [vmem:[%s3040 + $0xa0] sm:$0xff]
    %v3062 = vld [vmem:[%s3040 + $0xa8] sm:$0xff]
    %v3063 = vld [vmem:[%s3040 + $0xb0] sm:$0xff]
    %v3064 = vld [vmem:[%s3040 + $0xb8] sm:$0xff]
    %v3065 = vld [vmem:[%s3040 + $0xc0] sm:$0xff]
    %v3066 = vld [vmem:[%s3040 + $0xc8] sm:$0xff]
    %v3067 = vld [vmem:[%s3040 + $0xd0] sm:$0xff]
    %v3068 = vld [vmem:[%s3040 + $0xd8] sm:$0xff]
    %v3069 = vld [vmem:[%s3040 + $0xe0] sm:$0xff]
    %v3070 = vld [vmem:[%s3040 + $0xe8] sm:$0xff]
    %v3071 = vld [vmem:[%s3040 + $0xf0] sm:$0xff]
    %v3072 = vld [vmem:[%s3040 + $0xf8] sm:$0xff]
    %v3073 = vld [vmem:[%s3040 + $0x100] sm:$0xff]
    %v3074 = vld [vmem:[%s3040 + $0x108] sm:$0xff]
    %v3075 = vld [vmem:[%s3040 + $0x110] sm:$0xff]
    %v3076 = vld [vmem:[%s3040 + $0x118] sm:$0xff]
    %v3077 = vld [vmem:[%s3040 + $0x120] sm:$0xff]
    %v3078 = vld [vmem:[%s3040 + $0x128] sm:$0xff]
    %v3079 = vld [vmem:[%s3040 + $0x130] sm:$0xff]
    %v3080 = vld [vmem:[%s3040 + $0x138] sm:$0xff]
    %v3081 = vld [vmem:[%s3040 + $0x140] sm:$0xff]
    %v3082 = vld [vmem:[%s3040 + $0x148] sm:$0xff]
    %v3083 = vld [vmem:[%s3040 + $0x150] sm:$0xff]
    %v3084 = vld [vmem:[%s3040 + $0x158] sm:$0xff]
    %v3085 = vld [vmem:[%s3040 + $0x160] sm:$0xff]
    %v3086 = vld [vmem:[%s3040 + $0x168] sm:$0xff]
    %v3087 = vld [vmem:[%s3040 + $0x170] sm:$0xff]
    %v3088 = vld [vmem:[%s3040 + $0x178] sm:$0xff]
    %v3089 = vld [vmem:[%s3040 + $0x180] sm:$0xff]
    %v3090 = vld [vmem:[%s3040 + $0x188] sm:$0xff]
    %v3091 = vld [vmem:[%s3040 + $0x190] sm:$0xff]
    %v3092 = vld [vmem:[%s3040 + $0x198] sm:$0xff]
    %v3093 = vld [vmem:[%s3040 + $0x1a0] sm:$0xff]
    %v3094 = vld [vmem:[%s3040 + $0x1a8] sm:$0xff]
    %v3095 = vld [vmem:[%s3040 + $0x1b0] sm:$0xff]
    %v3096 = vld [vmem:[%s3040 + $0x1b8] sm:$0xff]
    %v3097 = vld [vmem:[%s3040 + $0x1c0] sm:$0xff]
    %v3098 = vld [vmem:[%s3040 + $0x1c8] sm:$0xff]
    %v3099 = vld [vmem:[%s3040 + $0x1d0] sm:$0xff]
    %v3100 = vld [vmem:[%s3040 + $0x1d8] sm:$0xff]
    %v3101 = vld [vmem:[%s3040 + $0x1e0] sm:$0xff]
    %v3102 = vld [vmem:[%s3040 + $0x1e8] sm:$0xff]
    %v3103 = vld [vmem:[%s3040 + $0x1f0] sm:$0xff]
    %v3104 = vld [vmem:[%s3040 + $0x1f8] sm:$0xff]
    %3106 = vset.pattern.permute.xlu0 0
    %3107 = vperm.xlu0 %3106, %v3041
    %v3108 = vpop.permute.xlu0 %3107
    %3111 = vset.pattern.permute.xlu0 0
    %3112 = vperm.xlu0 %3111, %v3042
    %v3113 = vpop.permute.xlu0 %3112
    %3116 = vset.pattern.permute.xlu0 0
    %3117 = vperm.xlu0 %3116, %v3043
    %v3118 = vpop.permute.xlu0 %3117
    %3121 = vset.pattern.permute.xlu0 0
    %3122 = vperm.xlu0 %3121, %v3044
    %v3123 = vpop.permute.xlu0 %3122
    %3126 = vset.pattern.permute.xlu0 0
    %3127 = vperm.xlu0 %3126, %v3045
    %v3128 = vpop.permute.xlu0 %3127
    %3131 = vset.pattern.permute.xlu0 0
    %3132 = vperm.xlu0 %3131, %v3046
    %v3133 = vpop.permute.xlu0 %3132
    %3136 = vset.pattern.permute.xlu0 0
    %3137 = vperm.xlu0 %3136, %v3047
    %v3138 = vpop.permute.xlu0 %3137
    %3141 = vset.pattern.permute.xlu0 0
    %3142 = vperm.xlu0 %3141, %v3048
    %v3143 = vpop.permute.xlu0 %3142
    %3146 = vset.pattern.permute.xlu0 0
    %3147 = vperm.xlu0 %3146, %v3049
    %v3148 = vpop.permute.xlu0 %3147
    %3151 = vset.pattern.permute.xlu0 0
    %3152 = vperm.xlu0 %3151, %v3050
    %v3153 = vpop.permute.xlu0 %3152
    %3156 = vset.pattern.permute.xlu0 0
    %3157 = vperm.xlu0 %3156, %v3051
    %v3158 = vpop.permute.xlu0 %3157
    %3161 = vset.pattern.permute.xlu0 0
    %3162 = vperm.xlu0 %3161, %v3052
    %v3163 = vpop.permute.xlu0 %3162
    %3166 = vset.pattern.permute.xlu0 0
    %3167 = vperm.xlu0 %3166, %v3053
    %v3168 = vpop.permute.xlu0 %3167
    %3171 = vset.pattern.permute.xlu0 0
    %3172 = vperm.xlu0 %3171, %v3054
    %v3173 = vpop.permute.xlu0 %3172
    %3176 = vset.pattern.permute.xlu0 0
    %3177 = vperm.xlu0 %3176, %v3055
    %v3178 = vpop.permute.xlu0 %3177
    %3181 = vset.pattern.permute.xlu0 0
    %3182 = vperm.xlu0 %3181, %v3056
    %v3183 = vpop.permute.xlu0 %3182
    %3186 = vset.pattern.permute.xlu0 0
    %3187 = vperm.xlu0 %3186, %v3057
    %v3188 = vpop.permute.xlu0 %3187
    %3191 = vset.pattern.permute.xlu0 0
    %3192 = vperm.xlu0 %3191, %v3058
    %v3193 = vpop.permute.xlu0 %3192
    %3196 = vset.pattern.permute.xlu0 0
    %3197 = vperm.xlu0 %3196, %v3059
    %v3198 = vpop.permute.xlu0 %3197
    %3201 = vset.pattern.permute.xlu0 0
    %3202 = vperm.xlu0 %3201, %v3060
    %v3203 = vpop.permute.xlu0 %3202
    %3206 = vset.pattern.permute.xlu0 0
    %3207 = vperm.xlu0 %3206, %v3061
    %v3208 = vpop.permute.xlu0 %3207
    %3211 = vset.pattern.permute.xlu0 0
    %3212 = vperm.xlu0 %3211, %v3062
    %v3213 = vpop.permute.xlu0 %3212
    %3216 = vset.pattern.permute.xlu0 0
    %3217 = vperm.xlu0 %3216, %v3063
    %v3218 = vpop.permute.xlu0 %3217
    %3221 = vset.pattern.permute.xlu0 0
    %3222 = vperm.xlu0 %3221, %v3064
    %v3223 = vpop.permute.xlu0 %3222
    %3226 = vset.pattern.permute.xlu0 0
    %3227 = vperm.xlu0 %3226, %v3065
    %v3228 = vpop.permute.xlu0 %3227
    %3231 = vset.pattern.permute.xlu0 0
    %3232 = vperm.xlu0 %3231, %v3066
    %v3233 = vpop.permute.xlu0 %3232
    %3236 = vset.pattern.permute.xlu0 0
    %3237 = vperm.xlu0 %3236, %v3067
    %v3238 = vpop.permute.xlu0 %3237
    %3241 = vset.pattern.permute.xlu0 0
    %3242 = vperm.xlu0 %3241, %v3068
    %v3243 = vpop.permute.xlu0 %3242
    %3246 = vset.pattern.permute.xlu0 0
    %3247 = vperm.xlu0 %3246, %v3069
    %v3248 = vpop.permute.xlu0 %3247
    %3251 = vset.pattern.permute.xlu0 0
    %3252 = vperm.xlu0 %3251, %v3070
    %v3253 = vpop.permute.xlu0 %3252
    %3256 = vset.pattern.permute.xlu0 0
    %3257 = vperm.xlu0 %3256, %v3071
    %v3258 = vpop.permute.xlu0 %3257
    %3261 = vset.pattern.permute.xlu0 0
    %3262 = vperm.xlu0 %3261, %v3072
    %v3263 = vpop.permute.xlu0 %3262
    %3266 = vset.pattern.permute.xlu0 0
    %3267 = vperm.xlu0 %3266, %v3073
    %v3268 = vpop.permute.xlu0 %3267
    %3271 = vset.pattern.permute.xlu0 0
    %3272 = vperm.xlu0 %3271, %v3074
    %v3273 = vpop.permute.xlu0 %3272
    %3276 = vset.pattern.permute.xlu0 0
    %3277 = vperm.xlu0 %3276, %v3075
    %v3278 = vpop.permute.xlu0 %3277
    %3281 = vset.pattern.permute.xlu0 0
    %3282 = vperm.xlu0 %3281, %v3076
    %v3283 = vpop.permute.xlu0 %3282
    %3286 = vset.pattern.permute.xlu0 0
    %3287 = vperm.xlu0 %3286, %v3077
    %v3288 = vpop.permute.xlu0 %3287
    %3291 = vset.pattern.permute.xlu0 0
    %3292 = vperm.xlu0 %3291, %v3078
    %v3293 = vpop.permute.xlu0 %3292
    %3296 = vset.pattern.permute.xlu0 0
    %3297 = vperm.xlu0 %3296, %v3079
    %v3298 = vpop.permute.xlu0 %3297
    %3301 = vset.pattern.permute.xlu0 0
    %3302 = vperm.xlu0 %3301, %v3080
    %v3303 = vpop.permute.xlu0 %3302
    %3306 = vset.pattern.permute.xlu0 0
    %3307 = vperm.xlu0 %3306, %v3081
    %v3308 = vpop.permute.xlu0 %3307
    %3311 = vset.pattern.permute.xlu0 0
    %3312 = vperm.xlu0 %3311, %v3082
    %v3313 = vpop.permute.xlu0 %3312
    %3316 = vset.pattern.permute.xlu0 0
    %3317 = vperm.xlu0 %3316, %v3083
    %v3318 = vpop.permute.xlu0 %3317
    %3321 = vset.pattern.permute.xlu0 0
    %3322 = vperm.xlu0 %3321, %v3084
    %v3323 = vpop.permute.xlu0 %3322
    %3326 = vset.pattern.permute.xlu0 0
    %3327 = vperm.xlu0 %3326, %v3085
    %v3328 = vpop.permute.xlu0 %3327
    %3331 = vset.pattern.permute.xlu0 0
    %3332 = vperm.xlu0 %3331, %v3086
    %v3333 = vpop.permute.xlu0 %3332
    %3336 = vset.pattern.permute.xlu0 0
    %3337 = vperm.xlu0 %3336, %v3087
    %v3338 = vpop.permute.xlu0 %3337
    %3341 = vset.pattern.permute.xlu0 0
    %3342 = vperm.xlu0 %3341, %v3088
    %v3343 = vpop.permute.xlu0 %3342
    %3346 = vset.pattern.permute.xlu0 0
    %3347 = vperm.xlu0 %3346, %v3089
    %v3348 = vpop.permute.xlu0 %3347
    %3351 = vset.pattern.permute.xlu0 0
    %3352 = vperm.xlu0 %3351, %v3090
    %v3353 = vpop.permute.xlu0 %3352
    %3356 = vset.pattern.permute.xlu0 0
    %3357 = vperm.xlu0 %3356, %v3091
    %v3358 = vpop.permute.xlu0 %3357
    %3361 = vset.pattern.permute.xlu0 0
    %3362 = vperm.xlu0 %3361, %v3092
    %v3363 = vpop.permute.xlu0 %3362
    %3366 = vset.pattern.permute.xlu0 0
    %3367 = vperm.xlu0 %3366, %v3093
    %v3368 = vpop.permute.xlu0 %3367
    %3371 = vset.pattern.permute.xlu0 0
    %3372 = vperm.xlu0 %3371, %v3094
    %v3373 = vpop.permute.xlu0 %3372
    %3376 = vset.pattern.permute.xlu0 0
    %3377 = vperm.xlu0 %3376, %v3095
    %v3378 = vpop.permute.xlu0 %3377
    %3381 = vset.pattern.permute.xlu0 0
    %3382 = vperm.xlu0 %3381, %v3096
    %v3383 = vpop.permute.xlu0 %3382
    %3386 = vset.pattern.permute.xlu0 0
    %3387 = vperm.xlu0 %3386, %v3097
    %v3388 = vpop.permute.xlu0 %3387
    %3391 = vset.pattern.permute.xlu0 0
    %3392 = vperm.xlu0 %3391, %v3098
    %v3393 = vpop.permute.xlu0 %3392
    %3396 = vset.pattern.permute.xlu0 0
    %3397 = vperm.xlu0 %3396, %v3099
    %v3398 = vpop.permute.xlu0 %3397
    %3401 = vset.pattern.permute.xlu0 0
    %3402 = vperm.xlu0 %3401, %v3100
    %v3403 = vpop.permute.xlu0 %3402
    %3406 = vset.pattern.permute.xlu0 0
    %3407 = vperm.xlu0 %3406, %v3101
    %v3408 = vpop.permute.xlu0 %3407
    %3411 = vset.pattern.permute.xlu0 0
    %3412 = vperm.xlu0 %3411, %v3102
    %v3413 = vpop.permute.xlu0 %3412
    %3416 = vset.pattern.permute.xlu0 0
    %3417 = vperm.xlu0 %3416, %v3103
    %v3418 = vpop.permute.xlu0 %3417
    %3421 = vset.pattern.permute.xlu0 0
    %3422 = vperm.xlu0 %3421, %v3104
    %v3423 = vpop.permute.xlu0 %3422
    %v3425 = vmul.f32 %v3039, %v3108
    %v3426 = vmul.f32 %v3038, %v3113
    %v3427 = vmul.f32 %v3037, %v3118
    %v3428 = vmul.f32 %v3036, %v3123
    %v3429 = vmul.f32 %v3035, %v3128
    %v3430 = vmul.f32 %v3034, %v3133
    %v3431 = vmul.f32 %v3033, %v3138
    %v3432 = vmul.f32 %v3032, %v3143
    %v3433 = vmul.f32 %v3031, %v3148
    %v3434 = vmul.f32 %v3030, %v3153
    %v3435 = vmul.f32 %v3029, %v3158
    %v3436 = vmul.f32 %v3028, %v3163
    %v3437 = vmul.f32 %v3027, %v3168
    %v3438 = vmul.f32 %v3026, %v3173
    %v3439 = vmul.f32 %v3025, %v3178
    %v3440 = vmul.f32 %v3024, %v3183
    %v3441 = vmul.f32 %v3023, %v3188
    %v3442 = vmul.f32 %v3022, %v3193
    %v3443 = vmul.f32 %v3021, %v3198
    %v3444 = vmul.f32 %v3020, %v3203
    %v3445 = vmul.f32 %v3019, %v3208
    %v3446 = vmul.f32 %v3018, %v3213
    %v3447 = vmul.f32 %v3017, %v3218
    %v3448 = vmul.f32 %v3016, %v3223
    %v3449 = vmul.f32 %v3015, %v3228
    %v3450 = vmul.f32 %v3014, %v3233
    %v3451 = vmul.f32 %v3013, %v3238
    %v3452 = vmul.f32 %v3012, %v3243
    %v3453 = vmul.f32 %v3011, %v3248
    %v3454 = vmul.f32 %v3010, %v3253
    %v3455 = vmul.f32 %v3009, %v3258
    %v3456 = vmul.f32 %v3008, %v3263
    %v3457 = vmul.f32 %v3007, %v3268
    %v3458 = vmul.f32 %v3006, %v3273
    %v3459 = vmul.f32 %v3005, %v3278
    %v3460 = vmul.f32 %v3004, %v3283
    %v3461 = vmul.f32 %v3003, %v3288
    %v3462 = vmul.f32 %v3002, %v3293
    %v3463 = vmul.f32 %v3001, %v3298
    %v3464 = vmul.f32 %v3000, %v3303
    %v3465 = vmul.f32 %v2999, %v3308
    %v3466 = vmul.f32 %v2998, %v3313
    %v3467 = vmul.f32 %v2997, %v3318
    %v3468 = vmul.f32 %v2996, %v3323
    %v3469 = vmul.f32 %v2995, %v3328
    %v3470 = vmul.f32 %v2994, %v3333
    %v3471 = vmul.f32 %v2993, %v3338
    %v3472 = vmul.f32 %v2992, %v3343
    %v3473 = vmul.f32 %v2991, %v3348
    %v3474 = vmul.f32 %v2990, %v3353
    %v3475 = vmul.f32 %v2989, %v3358
    %v3476 = vmul.f32 %v2988, %v3363
    %v3477 = vmul.f32 %v2987, %v3368
    %v3478 = vmul.f32 %v2986, %v3373
    %v3479 = vmul.f32 %v2985, %v3378
    %v3480 = vmul.f32 %v2984, %v3383
    %v3481 = vmul.f32 %v2983, %v3388
    %v3482 = vmul.f32 %v2982, %v3393
    %v3483 = vmul.f32 %v2981, %v3398
    %v3484 = vmul.f32 %v2980, %v3403
    %v3485 = vmul.f32 %v2979, %v3408
    %v3486 = vmul.f32 %v2978, %v3413
    %v3487 = vmul.f32 %v2977, %v3418
    %v3488 = vmul.f32 %v2976, %v3423
    %v3489 = vadd.f32 %v2398, %v3425
    %v3490 = vadd.f32 %v2399, %v3426
    %v3491 = vadd.f32 %v2400, %v3427
    %v3492 = vadd.f32 %v2401, %v3428
    %v3493 = vadd.f32 %v2402, %v3429
    %v3494 = vadd.f32 %v2403, %v3430
    %v3495 = vadd.f32 %v2404, %v3431
    %v3496 = vadd.f32 %v2405, %v3432
    %v3497 = vadd.f32 %v2406, %v3433
    %v3498 = vadd.f32 %v2407, %v3434
    %v3499 = vadd.f32 %v2408, %v3435
    %v3500 = vadd.f32 %v2409, %v3436
    %v3501 = vadd.f32 %v2410, %v3437
    %v3502 = vadd.f32 %v2411, %v3438
    %v3503 = vadd.f32 %v2412, %v3439
    %v3504 = vadd.f32 %v2413, %v3440
    %v3505 = vadd.f32 %v2414, %v3441
    %v3506 = vadd.f32 %v2415, %v3442
    %v3507 = vadd.f32 %v2416, %v3443
    %v3508 = vadd.f32 %v2417, %v3444
    %v3509 = vadd.f32 %v2418, %v3445
    %v3510 = vadd.f32 %v2419, %v3446
    %v3511 = vadd.f32 %v2420, %v3447
    %v3512 = vadd.f32 %v2421, %v3448
    %v3513 = vadd.f32 %v2422, %v3449
    %v3514 = vadd.f32 %v2423, %v3450
    %v3515 = vadd.f32 %v2424, %v3451
    %v3516 = vadd.f32 %v2425, %v3452
    %v3517 = vadd.f32 %v2426, %v3453
    %v3518 = vadd.f32 %v2427, %v3454
    %v3519 = vadd.f32 %v2428, %v3455
    %v3520 = vadd.f32 %v2429, %v3456
    %v3521 = vadd.f32 %v2430, %v3457
    %v3522 = vadd.f32 %v2431, %v3458
    %v3523 = vadd.f32 %v2432, %v3459
    %v3524 = vadd.f32 %v2433, %v3460
    %v3525 = vadd.f32 %v2434, %v3461
    %v3526 = vadd.f32 %v2435, %v3462
    %v3527 = vadd.f32 %v2436, %v3463
    %v3528 = vadd.f32 %v2437, %v3464
    %v3529 = vadd.f32 %v2438, %v3465
    %v3530 = vadd.f32 %v2439, %v3466
    %v3531 = vadd.f32 %v2440, %v3467
    %v3532 = vadd.f32 %v2441, %v3468
    %v3533 = vadd.f32 %v2442, %v3469
    %v3534 = vadd.f32 %v2443, %v3470
    %v3535 = vadd.f32 %v2444, %v3471
    %v3536 = vadd.f32 %v2445, %v3472
    %v3537 = vadd.f32 %v2446, %v3473
    %v3538 = vadd.f32 %v2447, %v3474
    %v3539 = vadd.f32 %v2448, %v3475
    %v3540 = vadd.f32 %v2449, %v3476
    %v3541 = vadd.f32 %v2450, %v3477
    %v3542 = vadd.f32 %v2451, %v3478
    %v3543 = vadd.f32 %v2452, %v3479
    %v3544 = vadd.f32 %v2453, %v3480
    %v3545 = vadd.f32 %v2454, %v3481
    %v3546 = vadd.f32 %v2455, %v3482
    %v3547 = vadd.f32 %v2456, %v3483
    %v3548 = vadd.f32 %v2457, %v3484
    %v3549 = vadd.f32 %v2458, %v3485
    %v3550 = vadd.f32 %v2459, %v3486
    %v3551 = vadd.f32 %v2460, %v3487
    %v3552 = vadd.f32 %v2461, %v3488
    %v3553 = vadd.f32 %v3489, %v2595
    %v3554 = vadd.f32 %v3490, %v2599
    %v3555 = vadd.f32 %v3491, %v2605
    %v3556 = vadd.f32 %v3492, %v2609
    %v3557 = vadd.f32 %v3493, %v2615
    %v3558 = vadd.f32 %v3494, %v2619
    %v3559 = vadd.f32 %v3495, %v2625
    %v3560 = vadd.f32 %v3496, %v2629
    %v3561 = vadd.f32 %v3497, %v2635
    %v3562 = vadd.f32 %v3498, %v2639
    %v3563 = vadd.f32 %v3499, %v2645
    %v3564 = vadd.f32 %v3500, %v2649
    %v3565 = vadd.f32 %v3501, %v2655
    %v3566 = vadd.f32 %v3502, %v2659
    %v3567 = vadd.f32 %v3503, %v2665
    %v3568 = vadd.f32 %v3504, %v2669
    %v3569 = vadd.f32 %v3505, %v2675
    %v3570 = vadd.f32 %v3506, %v2679
    %v3571 = vadd.f32 %v3507, %v2685
    %v3572 = vadd.f32 %v3508, %v2689
    %v3573 = vadd.f32 %v3509, %v2695
    %v3574 = vadd.f32 %v3510, %v2699
    %v3575 = vadd.f32 %v3511, %v2705
    %v3576 = vadd.f32 %v3512, %v2709
    %v3577 = vadd.f32 %v3513, %v2715
    %v3578 = vadd.f32 %v3514, %v2719
    %v3579 = vadd.f32 %v3515, %v2725
    %v3580 = vadd.f32 %v3516, %v2729
    %v3581 = vadd.f32 %v3517, %v2735
    %v3582 = vadd.f32 %v3518, %v2739
    %v3583 = vadd.f32 %v3519, %v2745
    %v3584 = vadd.f32 %v3520, %v2749
    %v3585 = vadd.f32 %v3521, %v2755
    %v3586 = vadd.f32 %v3522, %v2759
    %v3587 = vadd.f32 %v3523, %v2765
    %v3588 = vadd.f32 %v3524, %v2769
    %v3589 = vadd.f32 %v3525, %v2775
    %v3590 = vadd.f32 %v3526, %v2779
    %v3591 = vadd.f32 %v3527, %v2785
    %v3592 = vadd.f32 %v3528, %v2789
    %v3593 = vadd.f32 %v3529, %v2795
    %v3594 = vadd.f32 %v3530, %v2799
    %v3595 = vadd.f32 %v3531, %v2805
    %v3596 = vadd.f32 %v3532, %v2809
    %v3597 = vadd.f32 %v3533, %v2815
    %v3598 = vadd.f32 %v3534, %v2819
    %v3599 = vadd.f32 %v3535, %v2825
    %v3600 = vadd.f32 %v3536, %v2829
    %v3601 = vadd.f32 %v3537, %v2835
    %v3602 = vadd.f32 %v3538, %v2839
    %v3603 = vadd.f32 %v3539, %v2845
    %v3604 = vadd.f32 %v3540, %v2849
    %v3605 = vadd.f32 %v3541, %v2855
    %v3606 = vadd.f32 %v3542, %v2859
    %v3607 = vadd.f32 %v3543, %v2865
    %v3608 = vadd.f32 %v3544, %v2869
    %v3609 = vadd.f32 %v3545, %v2875
    %v3610 = vadd.f32 %v3546, %v2879
    %v3611 = vadd.f32 %v3547, %v2885
    %v3612 = vadd.f32 %v3548, %v2889
    %v3613 = vadd.f32 %v3549, %v2895
    %v3614 = vadd.f32 %v3550, %v2899
    %v3615 = vadd.f32 %v3551, %v2905
    %v3616 = vadd.f32 %v3552, %v2909
    %v3617 = vld [vmem:[%s3 + $0x10] sm:$0xff]
    %v3618 = vld [vmem:[%s3 + $0x2c] sm:$0xff]
    %v3619 = vld [vmem:[%s3 + $0x48] sm:$0xff]
    %v3620 = vld [vmem:[%s3 + $0x64] sm:$0xff]
    %v3621 = vld [vmem:[%s3 + $0x80] sm:$0xff]
    %v3622 = vld [vmem:[%s3 + $0x9c] sm:$0xff]
    %v3623 = vld [vmem:[%s3 + $0xb8] sm:$0xff]
    %v3624 = vld [vmem:[%s3 + $0xd4] sm:$0xff]
    %v3625 = vld [vmem:[%s3 + $0xf0] sm:$0xff]
    %v3626 = vld [vmem:[%s3 + $0x10c] sm:$0xff]
    %v3627 = vld [vmem:[%s3 + $0x128] sm:$0xff]
    %v3628 = vld [vmem:[%s3 + $0x144] sm:$0xff]
    %v3629 = vld [vmem:[%s3 + $0x160] sm:$0xff]
    %v3630 = vld [vmem:[%s3 + $0x17c] sm:$0xff]
    %v3631 = vld [vmem:[%s3 + $0x198] sm:$0xff]
    %v3632 = vld [vmem:[%s3 + $0x1b4] sm:$0xff]
    %v3649 = vunpack.c.l.b16 %v3617
    %v3650 = vunpack.c.h.b16 %v3617
    %v3651 = vunpack.c.l.b16 %v3618
    %v3652 = vunpack.c.h.b16 %v3618
    %v3653 = vunpack.c.l.b16 %v3619
    %v3654 = vunpack.c.h.b16 %v3619
    %v3655 = vunpack.c.l.b16 %v3620
    %v3656 = vunpack.c.h.b16 %v3620
    %v3657 = vunpack.c.l.b16 %v3621
    %v3658 = vunpack.c.h.b16 %v3621
    %v3659 = vunpack.c.l.b16 %v3622
    %v3660 = vunpack.c.h.b16 %v3622
    %v3661 = vunpack.c.l.b16 %v3623
    %v3662 = vunpack.c.h.b16 %v3623
    %v3663 = vunpack.c.l.b16 %v3624
    %v3664 = vunpack.c.h.b16 %v3624
    %v3665 = vunpack.c.l.b16 %v3625
    %v3666 = vunpack.c.h.b16 %v3625
    %v3667 = vunpack.c.l.b16 %v3626
    %v3668 = vunpack.c.h.b16 %v3626
    %v3669 = vunpack.c.l.b16 %v3627
    %v3670 = vunpack.c.h.b16 %v3627
    %v3671 = vunpack.c.l.b16 %v3628
    %v3672 = vunpack.c.h.b16 %v3628
    %v3673 = vunpack.c.l.b16 %v3629
    %v3674 = vunpack.c.h.b16 %v3629
    %v3675 = vunpack.c.l.b16 %v3630
    %v3676 = vunpack.c.h.b16 %v3630
    %v3677 = vunpack.c.l.b16 %v3631
    %v3678 = vunpack.c.h.b16 %v3631
    %v3679 = vunpack.c.l.b16 %v3632
    %v3680 = vunpack.c.h.b16 %v3632
    %v3681 = vpack.c.b16 %v3651, %v3649
    %v3682 = vpack.c.b16 %v3652, %v3650
    %v3683 = vpack.c.b16 %v3655, %v3653
    %v3684 = vpack.c.b16 %v3656, %v3654
    %v3685 = vpack.c.b16 %v3659, %v3657
    %v3686 = vpack.c.b16 %v3660, %v3658
    %v3687 = vpack.c.b16 %v3663, %v3661
    %v3688 = vpack.c.b16 %v3664, %v3662
    %v3689 = vpack.c.b16 %v3667, %v3665
    %v3690 = vpack.c.b16 %v3668, %v3666
    %v3691 = vpack.c.b16 %v3671, %v3669
    %v3692 = vpack.c.b16 %v3672, %v3670
    %v3693 = vpack.c.b16 %v3675, %v3673
    %v3694 = vpack.c.b16 %v3676, %v3674
    %v3695 = vpack.c.b16 %v3679, %v3677
    %v3696 = vpack.c.b16 %v3680, %v3678
    %3713 = vmatprep.subr.bf16.mxu0 %v3682
    %3714 = vmatpush1.bf16.msra.mxu0 %v3681
    %3715 = vmatprep.subr.bf16.mxu0 %v3684
    %3716 = vmatpush1.bf16.msra.mxu0 %v3683
    %3717 = vmatprep.subr.bf16.mxu0 %v3686
    %3718 = vmatpush1.bf16.msra.mxu0 %v3685
    %3719 = vmatprep.subr.bf16.mxu0 %v3688
    %3720 = vmatpush1.bf16.msra.mxu0 %v3687
    %3721 = vmatprep.subr.bf16.mxu0 %v3690
    %3722 = vmatpush1.bf16.msra.mxu0 %v3689
    %3723 = vmatprep.subr.bf16.mxu0 %v3692
    %3724 = vmatpush1.bf16.msra.mxu0 %v3691
    %3725 = vmatprep.subr.bf16.mxu0 %v3694
    %3726 = vmatpush1.bf16.msra.mxu0 %v3693
    %3727 = vmatprep.subr.bf16.mxu0 %v3696
    %3728 = vmatpush1.bf16.msra.mxu0 %v3695
    %3729 = vmatprep.subr.bf16.mxu0 0
    %3730 = vmatpush1.bf16.msra.mxu0 0
    %3731 = vmatprep.subr.bf16.mxu0 0
    %3732 = vmatpush1.bf16.msra.mxu0 0
    %3733 = vmatprep.subr.bf16.mxu0 0
    %3734 = vmatpush1.bf16.msra.mxu0 0
    %3735 = vmatprep.subr.bf16.mxu0 0
    %3736 = vmatpush1.bf16.msra.mxu0 0
    %3737 = vmatprep.subr.bf16.mxu0 0
    %3738 = vmatpush1.bf16.msra.mxu0 0
    %3739 = vmatprep.subr.bf16.mxu0 0
    %3740 = vmatpush1.bf16.msra.mxu0 0
    %3741 = vmatprep.subr.bf16.mxu0 0
    %3742 = vmatpush1.bf16.msra.mxu0 0
    %3743 = vmatprep.subr.bf16.mxu0 0
    %3744 = vmatpush1.bf16.msra.mxu0 0
    %3745 = vmatprep.mubr.bf16.mxu0 0
    %3746 = vmatmul.mubr.bf16.gmra.mrb[0].mxu0 %v760
    %v3747 = vpop.f32.mrb[0].mxu0
    %v3748 = vadd.f32 0.0, %v3747
    %v3749 = vpop.f32.mrb[0].mxu0
    %v3750 = vadd.f32 0.0, %v3749
    %v3751 = vpop.f32.mrb[0].mxu0
    %v3752 = vadd.f32 0.0, %v3751
    %v3753 = vpop.f32.mrb[0].mxu0
    %v3754 = vadd.f32 0.0, %v3753
    %3755 = vmatprep.mubr.bf16.mxu0 0
    %3756 = vmatmul.mubr.bf16.gmra.mrb[0].mxu0 %v761
    %v3757 = vpop.f32.mrb[0].mxu0
    %v3758 = vadd.f32 0.0, %v3757
    %v3759 = vpop.f32.mrb[0].mxu0
    %v3760 = vadd.f32 0.0, %v3759
    %v3761 = vpop.f32.mrb[0].mxu0
    %v3762 = vadd.f32 0.0, %v3761
    %v3763 = vpop.f32.mrb[0].mxu0
    %v3764 = vadd.f32 0.0, %v3763
    %3765 = vmatprep.mubr.bf16.mxu0 0
    %3766 = vmatmul.mubr.bf16.gmra.mrb[0].mxu0 %v762
    %v3767 = vpop.f32.mrb[0].mxu0
    %v3768 = vadd.f32 0.0, %v3767
    %v3769 = vpop.f32.mrb[0].mxu0
    %v3770 = vadd.f32 0.0, %v3769
    %v3771 = vpop.f32.mrb[0].mxu0
    %v3772 = vadd.f32 0.0, %v3771
    %v3773 = vpop.f32.mrb[0].mxu0
    %v3774 = vadd.f32 0.0, %v3773
    %3775 = vmatprep.mubr.bf16.mxu0 0
    %3776 = vmatmul.mubr.bf16.gmra.mrb[0].mxu0 %v763
    %v3777 = vpop.f32.mrb[0].mxu0
    %v3778 = vadd.f32 0.0, %v3777
    %v3779 = vpop.f32.mrb[0].mxu0
    %v3780 = vadd.f32 0.0, %v3779
    %v3781 = vpop.f32.mrb[0].mxu0
    %v3782 = vadd.f32 0.0, %v3781
    %v3783 = vpop.f32.mrb[0].mxu0
    %v3784 = vadd.f32 0.0, %v3783
    %3785 = vmatprep.mubr.bf16.mxu0 0
    %3786 = vmatmul.mubr.bf16.gmra.mrb[0].mxu0 %v764
    %v3787 = vpop.f32.mrb[0].mxu0
    %v3788 = vadd.f32 0.0, %v3787
    %v3789 = vpop.f32.mrb[0].mxu0
    %v3790 = vadd.f32 0.0, %v3789
    %v3791 = vpop.f32.mrb[0].mxu0
    %v3792 = vadd.f32 0.0, %v3791
    %v3793 = vpop.f32.mrb[0].mxu0
    %v3794 = vadd.f32 0.0, %v3793
    %3795 = vmatprep.mubr.bf16.mxu0 0
    %3796 = vmatmul.mubr.bf16.gmra.mrb[0].mxu0 %v765
    %v3797 = vpop.f32.mrb[0].mxu0
    %v3798 = vadd.f32 0.0, %v3797
    %v3799 = vpop.f32.mrb[0].mxu0
    %v3800 = vadd.f32 0.0, %v3799
    %v3801 = vpop.f32.mrb[0].mxu0
    %v3802 = vadd.f32 0.0, %v3801
    %v3803 = vpop.f32.mrb[0].mxu0
    %v3804 = vadd.f32 0.0, %v3803
    %3805 = vmatprep.mubr.bf16.mxu0 0
    %3806 = vmatmul.mubr.bf16.gmra.mrb[0].mxu0 %v766
    %v3807 = vpop.f32.mrb[0].mxu0
    %v3808 = vadd.f32 0.0, %v3807
    %v3809 = vpop.f32.mrb[0].mxu0
    %v3810 = vadd.f32 0.0, %v3809
    %v3811 = vpop.f32.mrb[0].mxu0
    %v3812 = vadd.f32 0.0, %v3811
    %v3813 = vpop.f32.mrb[0].mxu0
    %v3814 = vadd.f32 0.0, %v3813
    %3815 = vmatprep.mubr.bf16.mxu0 0
    %3816 = vmatmul.mubr.bf16.gmra.mrb[0].mxu0 %v767
    %v3817 = vpop.f32.mrb[0].mxu0
    %v3818 = vadd.f32 0.0, %v3817
    %v3819 = vpop.f32.mrb[0].mxu0
    %v3820 = vadd.f32 0.0, %v3819
    %v3821 = vpop.f32.mrb[0].mxu0
    %v3822 = vadd.f32 0.0, %v3821
    %v3823 = vpop.f32.mrb[0].mxu0
    %v3824 = vadd.f32 0.0, %v3823
    %3825 = vmatprep.mubr.bf16.mxu0 0
    %3826 = vmatmul.mubr.bf16.gmra.mrb[0].mxu0 %v768
    %v3827 = vpop.f32.mrb[0].mxu0
    %v3828 = vadd.f32 0.0, %v3827
    %v3829 = vpop.f32.mrb[0].mxu0
    %v3830 = vadd.f32 0.0, %v3829
    %v3831 = vpop.f32.mrb[0].mxu0
    %v3832 = vadd.f32 0.0, %v3831
    %v3833 = vpop.f32.mrb[0].mxu0
    %v3834 = vadd.f32 0.0, %v3833
    %3835 = vmatprep.mubr.bf16.mxu0 0
    %3836 = vmatmul.mubr.bf16.gmra.mrb[0].mxu0 %v769
    %v3837 = vpop.f32.mrb[0].mxu0
    %v3838 = vadd.f32 0.0, %v3837
    %v3839 = vpop.f32.mrb[0].mxu0
    %v3840 = vadd.f32 0.0, %v3839
    %v3841 = vpop.f32.mrb[0].mxu0
    %v3842 = vadd.f32 0.0, %v3841
    %v3843 = vpop.f32.mrb[0].mxu0
    %v3844 = vadd.f32 0.0, %v3843
    %3845 = vmatprep.mubr.bf16.mxu0 0
    %3846 = vmatmul.mubr.bf16.gmra.mrb[0].mxu0 %v770
    %v3847 = vpop.f32.mrb[0].mxu0
    %v3848 = vadd.f32 0.0, %v3847
    %v3849 = vpop.f32.mrb[0].mxu0
    %v3850 = vadd.f32 0.0, %v3849
    %v3851 = vpop.f32.mrb[0].mxu0
    %v3852 = vadd.f32 0.0, %v3851
    %v3853 = vpop.f32.mrb[0].mxu0
    %v3854 = vadd.f32 0.0, %v3853
    %3855 = vmatprep.mubr.bf16.mxu0 0
    %3856 = vmatmul.mubr.bf16.gmra.mrb[0].mxu0 %v771
    %v3857 = vpop.f32.mrb[0].mxu0
    %v3858 = vadd.f32 0.0, %v3857
    %v3859 = vpop.f32.mrb[0].mxu0
    %v3860 = vadd.f32 0.0, %v3859
    %v3861 = vpop.f32.mrb[0].mxu0
    %v3862 = vadd.f32 0.0, %v3861
    %v3863 = vpop.f32.mrb[0].mxu0
    %v3864 = vadd.f32 0.0, %v3863
    %3865 = vmatprep.mubr.bf16.mxu0 0
    %3866 = vmatmul.mubr.bf16.gmra.mrb[0].mxu0 %v772
    %v3867 = vpop.f32.mrb[0].mxu0
    %v3868 = vadd.f32 0.0, %v3867
    %v3869 = vpop.f32.mrb[0].mxu0
    %v3870 = vadd.f32 0.0, %v3869
    %v3871 = vpop.f32.mrb[0].mxu0
    %v3872 = vadd.f32 0.0, %v3871
    %v3873 = vpop.f32.mrb[0].mxu0
    %v3874 = vadd.f32 0.0, %v3873
    %3875 = vmatprep.mubr.bf16.mxu0 0
    %3876 = vmatmul.mubr.bf16.gmra.mrb[0].mxu0 %v773
    %v3877 = vpop.f32.mrb[0].mxu0
    %v3878 = vadd.f32 0.0, %v3877
    %v3879 = vpop.f32.mrb[0].mxu0
    %v3880 = vadd.f32 0.0, %v3879
    %v3881 = vpop.f32.mrb[0].mxu0
    %v3882 = vadd.f32 0.0, %v3881
    %v3883 = vpop.f32.mrb[0].mxu0
    %v3884 = vadd.f32 0.0, %v3883
    %3885 = vmatprep.mubr.bf16.mxu0 0
    %3886 = vmatmul.mubr.bf16.gmra.mrb[0].mxu0 %v774
    %v3887 = vpop.f32.mrb[0].mxu0
    %v3888 = vadd.f32 0.0, %v3887
    %v3889 = vpop.f32.mrb[0].mxu0
    %v3890 = vadd.f32 0.0, %v3889
    %v3891 = vpop.f32.mrb[0].mxu0
    %v3892 = vadd.f32 0.0, %v3891
    %v3893 = vpop.f32.mrb[0].mxu0
    %v3894 = vadd.f32 0.0, %v3893
    %3895 = vmatprep.mubr.bf16.mxu0 0
    %3896 = vmatmul.mubr.bf16.gmra.mrb[0].mxu0 %v775
    %v3897 = vpop.f32.mrb[0].mxu0
    %v3898 = vadd.f32 0.0, %v3897
    %v3899 = vpop.f32.mrb[0].mxu0
    %v3900 = vadd.f32 0.0, %v3899
    %v3901 = vpop.f32.mrb[0].mxu0
    %v3902 = vadd.f32 0.0, %v3901
    %v3903 = vpop.f32.mrb[0].mxu0
    %v3904 = vadd.f32 0.0, %v3903
    %3905 = vmatprep.mubr.bf16.mxu0 0
    %3906 = vmatmul.mubr.bf16.gmra.mrb[0].mxu0 %v776
    %v3907 = vpop.f32.mrb[0].mxu0
    %v3908 = vadd.f32 0.0, %v3907
    %v3909 = vpop.f32.mrb[0].mxu0
    %v3910 = vadd.f32 0.0, %v3909
    %v3911 = vpop.f32.mrb[0].mxu0
    %v3912 = vadd.f32 0.0, %v3911
    %v3913 = vpop.f32.mrb[0].mxu0
    %v3914 = vadd.f32 0.0, %v3913
    %3915 = vmatprep.mubr.bf16.mxu0 0
    %3916 = vmatmul.mubr.bf16.gmra.mrb[0].mxu0 %v777
    %v3917 = vpop.f32.mrb[0].mxu0
    %v3918 = vadd.f32 0.0, %v3917
    %v3919 = vpop.f32.mrb[0].mxu0
    %v3920 = vadd.f32 0.0, %v3919
    %v3921 = vpop.f32.mrb[0].mxu0
    %v3922 = vadd.f32 0.0, %v3921
    %v3923 = vpop.f32.mrb[0].mxu0
    %v3924 = vadd.f32 0.0, %v3923
    %3925 = vmatprep.mubr.bf16.mxu0 0
    %3926 = vmatmul.mubr.bf16.gmra.mrb[0].mxu0 %v778
    %v3927 = vpop.f32.mrb[0].mxu0
    %v3928 = vadd.f32 0.0, %v3927
    %v3929 = vpop.f32.mrb[0].mxu0
    %v3930 = vadd.f32 0.0, %v3929
    %v3931 = vpop.f32.mrb[0].mxu0
    %v3932 = vadd.f32 0.0, %v3931
    %v3933 = vpop.f32.mrb[0].mxu0
    %v3934 = vadd.f32 0.0, %v3933
    %3935 = vmatprep.mubr.bf16.mxu0 0
    %3936 = vmatmul.mubr.bf16.gmra.mrb[0].mxu0 %v779
    %v3937 = vpop.f32.mrb[0].mxu0
    %v3938 = vadd.f32 0.0, %v3937
    %v3939 = vpop.f32.mrb[0].mxu0
    %v3940 = vadd.f32 0.0, %v3939
    %v3941 = vpop.f32.mrb[0].mxu0
    %v3942 = vadd.f32 0.0, %v3941
    %v3943 = vpop.f32.mrb[0].mxu0
    %v3944 = vadd.f32 0.0, %v3943
    %3945 = vmatprep.mubr.bf16.mxu0 0
    %3946 = vmatmul.mubr.bf16.gmra.mrb[0].mxu0 %v780
    %v3947 = vpop.f32.mrb[0].mxu0
    %v3948 = vadd.f32 0.0, %v3947
    %v3949 = vpop.f32.mrb[0].mxu0
    %v3950 = vadd.f32 0.0, %v3949
    %v3951 = vpop.f32.mrb[0].mxu0
    %v3952 = vadd.f32 0.0, %v3951
    %v3953 = vpop.f32.mrb[0].mxu0
    %v3954 = vadd.f32 0.0, %v3953
    %3955 = vmatprep.mubr.bf16.mxu0 0
    %3956 = vmatmul.mubr.bf16.gmra.mrb[0].mxu0 %v781
    %v3957 = vpop.f32.mrb[0].mxu0
    %v3958 = vadd.f32 0.0, %v3957
    %v3959 = vpop.f32.mrb[0].mxu0
    %v3960 = vadd.f32 0.0, %v3959
    %v3961 = vpop.f32.mrb[0].mxu0
    %v3962 = vadd.f32 0.0, %v3961
    %v3963 = vpop.f32.mrb[0].mxu0
    %v3964 = vadd.f32 0.0, %v3963
    %3965 = vmatprep.mubr.bf16.mxu0 0
    %3966 = vmatmul.mubr.bf16.gmra.mrb[0].mxu0 %v782
    %v3967 = vpop.f32.mrb[0].mxu0
    %v3968 = vadd.f32 0.0, %v3967
    %v3969 = vpop.f32.mrb[0].mxu0
    %v3970 = vadd.f32 0.0, %v3969
    %v3971 = vpop.f32.mrb[0].mxu0
    %v3972 = vadd.f32 0.0, %v3971
    %v3973 = vpop.f32.mrb[0].mxu0
    %v3974 = vadd.f32 0.0, %v3973
    %3975 = vmatprep.mubr.bf16.mxu0 0
    %3976 = vmatmul.mubr.bf16.gmra.mrb[0].mxu0 %v783
    %v3977 = vpop.f32.mrb[0].mxu0
    %v3978 = vadd.f32 0.0, %v3977
    %v3979 = vpop.f32.mrb[0].mxu0
    %v3980 = vadd.f32 0.0, %v3979
    %v3981 = vpop.f32.mrb[0].mxu0
    %v3982 = vadd.f32 0.0, %v3981
    %v3983 = vpop.f32.mrb[0].mxu0
    %v3984 = vadd.f32 0.0, %v3983
    %3985 = vmatprep.mubr.bf16.mxu0 0
    %3986 = vmatmul.mubr.bf16.gmra.mrb[0].mxu0 %v784
    %v3987 = vpop.f32.mrb[0].mxu0
    %v3988 = vadd.f32 0.0, %v3987
    %v3989 = vpop.f32.mrb[0].mxu0
    %v3990 = vadd.f32 0.0, %v3989
    %v3991 = vpop.f32.mrb[0].mxu0
    %v3992 = vadd.f32 0.0, %v3991
    %v3993 = vpop.f32.mrb[0].mxu0
    %v3994 = vadd.f32 0.0, %v3993
    %3995 = vmatprep.mubr.bf16.mxu0 0
    %3996 = vmatmul.mubr.bf16.gmra.mrb[0].mxu0 %v785
    %v3997 = vpop.f32.mrb[0].mxu0
    %v3998 = vadd.f32 0.0, %v3997
    %v3999 = vpop.f32.mrb[0].mxu0
    %v4000 = vadd.f32 0.0, %v3999
    %v4001 = vpop.f32.mrb[0].mxu0
    %v4002 = vadd.f32 0.0, %v4001
    %v4003 = vpop.f32.mrb[0].mxu0
    %v4004 = vadd.f32 0.0, %v4003
    %4005 = vmatprep.mubr.bf16.mxu0 0
    %4006 = vmatmul.mubr.bf16.gmra.mrb[0].mxu0 %v786
    %v4007 = vpop.f32.mrb[0].mxu0
    %v4008 = vadd.f32 0.0, %v4007
    %v4009 = vpop.f32.mrb[0].mxu0
    %v4010 = vadd.f32 0.0, %v4009
    %v4011 = vpop.f32.mrb[0].mxu0
    %v4012 = vadd.f32 0.0, %v4011
    %v4013 = vpop.f32.mrb[0].mxu0
    %v4014 = vadd.f32 0.0, %v4013
    %4015 = vmatprep.mubr.bf16.mxu0 0
    %4016 = vmatmul.mubr.bf16.gmra.mrb[0].mxu0 %v787
    %v4017 = vpop.f32.mrb[0].mxu0
    %v4018 = vadd.f32 0.0, %v4017
    %v4019 = vpop.f32.mrb[0].mxu0
    %v4020 = vadd.f32 0.0, %v4019
    %v4021 = vpop.f32.mrb[0].mxu0
    %v4022 = vadd.f32 0.0, %v4021
    %v4023 = vpop.f32.mrb[0].mxu0
    %v4024 = vadd.f32 0.0, %v4023
    %4025 = vmatprep.mubr.bf16.mxu0 0
    %4026 = vmatmul.mubr.bf16.gmra.mrb[0].mxu0 %v788
    %v4027 = vpop.f32.mrb[0].mxu0
    %v4028 = vadd.f32 0.0, %v4027
    %v4029 = vpop.f32.mrb[0].mxu0
    %v4030 = vadd.f32 0.0, %v4029
    %v4031 = vpop.f32.mrb[0].mxu0
    %v4032 = vadd.f32 0.0, %v4031
    %v4033 = vpop.f32.mrb[0].mxu0
    %v4034 = vadd.f32 0.0, %v4033
    %4035 = vmatprep.mubr.bf16.mxu0 0
    %4036 = vmatmul.mubr.bf16.gmra.mrb[0].mxu0 %v789
    %v4037 = vpop.f32.mrb[0].mxu0
    %v4038 = vadd.f32 0.0, %v4037
    %v4039 = vpop.f32.mrb[0].mxu0
    %v4040 = vadd.f32 0.0, %v4039
    %v4041 = vpop.f32.mrb[0].mxu0
    %v4042 = vadd.f32 0.0, %v4041
    %v4043 = vpop.f32.mrb[0].mxu0
    %v4044 = vadd.f32 0.0, %v4043
    %4045 = vmatprep.mubr.bf16.mxu0 0
    %4046 = vmatmul.mubr.bf16.gmra.mrb[0].mxu0 %v790
    %v4047 = vpop.f32.mrb[0].mxu0
    %v4048 = vadd.f32 0.0, %v4047
    %v4049 = vpop.f32.mrb[0].mxu0
    %v4050 = vadd.f32 0.0, %v4049
    %v4051 = vpop.f32.mrb[0].mxu0
    %v4052 = vadd.f32 0.0, %v4051
    %v4053 = vpop.f32.mrb[0].mxu0
    %v4054 = vadd.f32 0.0, %v4053
    %4055 = vmatprep.mubr.bf16.mxu0 0
    %4056 = vmatmul.mubr.bf16.gmra.mrb[0].mxu0 %v791
    %v4057 = vpop.f32.mrb[0].mxu0
    %v4058 = vadd.f32 0.0, %v4057
    %v4059 = vpop.f32.mrb[0].mxu0
    %v4060 = vadd.f32 0.0, %v4059
    %v4061 = vpop.f32.mrb[0].mxu0
    %v4062 = vadd.f32 0.0, %v4061
    %v4063 = vpop.f32.mrb[0].mxu0
    %v4064 = vadd.f32 0.0, %v4063
    %4065 = vdwg.mxu0
    %v4066 = vrot.slane %v3748, 1
    %v4067 = vrot.slane %v3752, 1
    %v4068 = vrot.slane %v3758, 1
    %v4069 = vrot.slane %v3762, 1
    %v4070 = vrot.slane %v3768, 1
    %v4071 = vrot.slane %v3772, 1
    %v4072 = vrot.slane %v3778, 1
    %v4073 = vrot.slane %v3782, 1
    %v4074 = vrot.slane %v3788, 1
    %v4075 = vrot.slane %v3792, 1
    %v4076 = vrot.slane %v3798, 1
    %v4077 = vrot.slane %v3802, 1
    %v4078 = vrot.slane %v3808, 1
    %v4079 = vrot.slane %v3812, 1
    %v4080 = vrot.slane %v3818, 1
    %v4081 = vrot.slane %v3822, 1
    %v4082 = vrot.slane %v3828, 1
    %v4083 = vrot.slane %v3832, 1
    %v4084 = vrot.slane %v3838, 1
    %v4085 = vrot.slane %v3842, 1
    %v4086 = vrot.slane %v3848, 1
    %v4087 = vrot.slane %v3852, 1
    %v4088 = vrot.slane %v3858, 1
    %v4089 = vrot.slane %v3862, 1
    %v4090 = vrot.slane %v3868, 1
    %v4091 = vrot.slane %v3872, 1
    %v4092 = vrot.slane %v3878, 1
    %v4093 = vrot.slane %v3882, 1
    %v4094 = vrot.slane %v3888, 1
    %v4095 = vrot.slane %v3892, 1
    %v4096 = vrot.slane %v3898, 1
    %v4097 = vrot.slane %v3902, 1
    %v4098 = vrot.slane %v3908, 1
    %v4099 = vrot.slane %v3912, 1
    %v4100 = vrot.slane %v3918, 1
    %v4101 = vrot.slane %v3922, 1
    %v4102 = vrot.slane %v3928, 1
    %v4103 = vrot.slane %v3932, 1
    %v4104 = vrot.slane %v3938, 1
    %v4105 = vrot.slane %v3942, 1
    %v4106 = vrot.slane %v3948, 1
    %v4107 = vrot.slane %v3952, 1
    %v4108 = vrot.slane %v3958, 1
    %v4109 = vrot.slane %v3962, 1
    %v4110 = vrot.slane %v3968, 1
    %v4111 = vrot.slane %v3972, 1
    %v4112 = vrot.slane %v3978, 1
    %v4113 = vrot.slane %v3982, 1
    %v4114 = vrot.slane %v3988, 1
    %v4115 = vrot.slane %v3992, 1
    %v4116 = vrot.slane %v3998, 1
    %v4117 = vrot.slane %v4002, 1
    %v4118 = vrot.slane %v4008, 1
    %v4119 = vrot.slane %v4012, 1
    %v4120 = vrot.slane %v4018, 1
    %v4121 = vrot.slane %v4022, 1
    %v4122 = vrot.slane %v4028, 1
    %v4123 = vrot.slane %v4032, 1
    %v4124 = vrot.slane %v4038, 1
    %v4125 = vrot.slane %v4042, 1
    %v4126 = vrot.slane %v4048, 1
    %v4127 = vrot.slane %v4052, 1
    %v4128 = vrot.slane %v4058, 1
    %v4129 = vrot.slane %v4062, 1
    %vm4130 = vcmp.lt.s32.totalorder %v1306, 7
    %v4131 = vsel %vm4130, %v4128, %v4129
    %v4132 = vsel %vm4130, %v4127, %v4128
    %v4133 = vsel %vm4130, %v4126, %v4127
    %v4134 = vsel %vm4130, %v4125, %v4126
    %v4135 = vsel %vm4130, %v4124, %v4125
    %v4136 = vsel %vm4130, %v4123, %v4124
    %v4137 = vsel %vm4130, %v4122, %v4123
    %v4138 = vsel %vm4130, %v4121, %v4122
    %v4139 = vsel %vm4130, %v4120, %v4121
    %v4140 = vsel %vm4130, %v4119, %v4120
    %v4141 = vsel %vm4130, %v4118, %v4119
    %v4142 = vsel %vm4130, %v4117, %v4118
    %v4143 = vsel %vm4130, %v4116, %v4117
    %v4144 = vsel %vm4130, %v4115, %v4116
    %v4145 = vsel %vm4130, %v4114, %v4115
    %v4146 = vsel %vm4130, %v4113, %v4114
    %v4147 = vsel %vm4130, %v4112, %v4113
    %v4148 = vsel %vm4130, %v4111, %v4112
    %v4149 = vsel %vm4130, %v4110, %v4111
    %v4150 = vsel %vm4130, %v4109, %v4110
    %v4151 = vsel %vm4130, %v4108, %v4109
    %v4152 = vsel %vm4130, %v4107, %v4108
    %v4153 = vsel %vm4130, %v4106, %v4107
    %v4154 = vsel %vm4130, %v4105, %v4106
    %v4155 = vsel %vm4130, %v4104, %v4105
    %v4156 = vsel %vm4130, %v4103, %v4104
    %v4157 = vsel %vm4130, %v4102, %v4103
    %v4158 = vsel %vm4130, %v4101, %v4102
    %v4159 = vsel %vm4130, %v4100, %v4101
    %v4160 = vsel %vm4130, %v4099, %v4100
    %v4161 = vsel %vm4130, %v4098, %v4099
    %v4162 = vsel %vm4130, %v4097, %v4098
    %v4163 = vsel %vm4130, %v4096, %v4097
    %v4164 = vsel %vm4130, %v4095, %v4096
    %v4165 = vsel %vm4130, %v4094, %v4095
    %v4166 = vsel %vm4130, %v4093, %v4094
    %v4167 = vsel %vm4130, %v4092, %v4093
    %v4168 = vsel %vm4130, %v4091, %v4092
    %v4169 = vsel %vm4130, %v4090, %v4091
    %v4170 = vsel %vm4130, %v4089, %v4090
    %v4171 = vsel %vm4130, %v4088, %v4089
    %v4172 = vsel %vm4130, %v4087, %v4088
    %v4173 = vsel %vm4130, %v4086, %v4087
    %v4174 = vsel %vm4130, %v4085, %v4086
    %v4175 = vsel %vm4130, %v4084, %v4085
    %v4176 = vsel %vm4130, %v4083, %v4084
    %v4177 = vsel %vm4130, %v4082, %v4083
    %v4178 = vsel %vm4130, %v4081, %v4082
    %v4179 = vsel %vm4130, %v4080, %v4081
    %v4180 = vsel %vm4130, %v4079, %v4080
    %v4181 = vsel %vm4130, %v4078, %v4079
    %v4182 = vsel %vm4130, %v4077, %v4078
    %v4183 = vsel %vm4130, %v4076, %v4077
    %v4184 = vsel %vm4130, %v4075, %v4076
    %v4185 = vsel %vm4130, %v4074, %v4075
    %v4186 = vsel %vm4130, %v4073, %v4074
    %v4187 = vsel %vm4130, %v4072, %v4073
    %v4188 = vsel %vm4130, %v4071, %v4072
    %v4189 = vsel %vm4130, %v4070, %v4071
    %v4190 = vsel %vm4130, %v4069, %v4070
    %v4191 = vsel %vm4130, %v4068, %v4069
    %v4192 = vsel %vm4130, %v4067, %v4068
    %v4193 = vsel %vm4130, %v4066, %v4067
    %v4194 = vsel %vm4130, %v4129, %v4066
    %s4195 = scalar_lea.vmem %s10, 2048
    %v4196 = vld [vmem:[%s4195] sm:$0xff]
    %v4197 = vld [vmem:[%s4195 + $0x8] sm:$0xff]
    %v4198 = vld [vmem:[%s4195 + $0x10] sm:$0xff]
    %v4199 = vld [vmem:[%s4195 + $0x18] sm:$0xff]
    %v4200 = vld [vmem:[%s4195 + $0x20] sm:$0xff]
    %v4201 = vld [vmem:[%s4195 + $0x28] sm:$0xff]
    %v4202 = vld [vmem:[%s4195 + $0x30] sm:$0xff]
    %v4203 = vld [vmem:[%s4195 + $0x38] sm:$0xff]
    %v4204 = vld [vmem:[%s4195 + $0x40] sm:$0xff]
    %v4205 = vld [vmem:[%s4195 + $0x48] sm:$0xff]
    %v4206 = vld [vmem:[%s4195 + $0x50] sm:$0xff]
    %v4207 = vld [vmem:[%s4195 + $0x58] sm:$0xff]
    %v4208 = vld [vmem:[%s4195 + $0x60] sm:$0xff]
    %v4209 = vld [vmem:[%s4195 + $0x68] sm:$0xff]
    %v4210 = vld [vmem:[%s4195 + $0x70] sm:$0xff]
    %v4211 = vld [vmem:[%s4195 + $0x78] sm:$0xff]
    %v4212 = vld [vmem:[%s4195 + $0x80] sm:$0xff]
    %v4213 = vld [vmem:[%s4195 + $0x88] sm:$0xff]
    %v4214 = vld [vmem:[%s4195 + $0x90] sm:$0xff]
    %v4215 = vld [vmem:[%s4195 + $0x98] sm:$0xff]
    %v4216 = vld [vmem:[%s4195 + $0xa0] sm:$0xff]
    %v4217 = vld [vmem:[%s4195 + $0xa8] sm:$0xff]
    %v4218 = vld [vmem:[%s4195 + $0xb0] sm:$0xff]
    %v4219 = vld [vmem:[%s4195 + $0xb8] sm:$0xff]
    %v4220 = vld [vmem:[%s4195 + $0xc0] sm:$0xff]
    %v4221 = vld [vmem:[%s4195 + $0xc8] sm:$0xff]
    %v4222 = vld [vmem:[%s4195 + $0xd0] sm:$0xff]
    %v4223 = vld [vmem:[%s4195 + $0xd8] sm:$0xff]
    %v4224 = vld [vmem:[%s4195 + $0xe0] sm:$0xff]
    %v4225 = vld [vmem:[%s4195 + $0xe8] sm:$0xff]
    %v4226 = vld [vmem:[%s4195 + $0xf0] sm:$0xff]
    %v4227 = vld [vmem:[%s4195 + $0xf8] sm:$0xff]
    %v4228 = vld [vmem:[%s4195 + $0x100] sm:$0xff]
    %v4229 = vld [vmem:[%s4195 + $0x108] sm:$0xff]
    %v4230 = vld [vmem:[%s4195 + $0x110] sm:$0xff]
    %v4231 = vld [vmem:[%s4195 + $0x118] sm:$0xff]
    %v4232 = vld [vmem:[%s4195 + $0x120] sm:$0xff]
    %v4233 = vld [vmem:[%s4195 + $0x128] sm:$0xff]
    %v4234 = vld [vmem:[%s4195 + $0x130] sm:$0xff]
    %v4235 = vld [vmem:[%s4195 + $0x138] sm:$0xff]
    %v4236 = vld [vmem:[%s4195 + $0x140] sm:$0xff]
    %v4237 = vld [vmem:[%s4195 + $0x148] sm:$0xff]
    %v4238 = vld [vmem:[%s4195 + $0x150] sm:$0xff]
    %v4239 = vld [vmem:[%s4195 + $0x158] sm:$0xff]
    %v4240 = vld [vmem:[%s4195 + $0x160] sm:$0xff]
    %v4241 = vld [vmem:[%s4195 + $0x168] sm:$0xff]
    %v4242 = vld [vmem:[%s4195 + $0x170] sm:$0xff]
    %v4243 = vld [vmem:[%s4195 + $0x178] sm:$0xff]
    %v4244 = vld [vmem:[%s4195 + $0x180] sm:$0xff]
    %v4245 = vld [vmem:[%s4195 + $0x188] sm:$0xff]
    %v4246 = vld [vmem:[%s4195 + $0x190] sm:$0xff]
    %v4247 = vld [vmem:[%s4195 + $0x198] sm:$0xff]
    %v4248 = vld [vmem:[%s4195 + $0x1a0] sm:$0xff]
    %v4249 = vld [vmem:[%s4195 + $0x1a8] sm:$0xff]
    %v4250 = vld [vmem:[%s4195 + $0x1b0] sm:$0xff]
    %v4251 = vld [vmem:[%s4195 + $0x1b8] sm:$0xff]
    %v4252 = vld [vmem:[%s4195 + $0x1c0] sm:$0xff]
    %v4253 = vld [vmem:[%s4195 + $0x1c8] sm:$0xff]
    %v4254 = vld [vmem:[%s4195 + $0x1d0] sm:$0xff]
    %v4255 = vld [vmem:[%s4195 + $0x1d8] sm:$0xff]
    %v4256 = vld [vmem:[%s4195 + $0x1e0] sm:$0xff]
    %v4257 = vld [vmem:[%s4195 + $0x1e8] sm:$0xff]
    %v4258 = vld [vmem:[%s4195 + $0x1f0] sm:$0xff]
    %v4259 = vld [vmem:[%s4195 + $0x1f8] sm:$0xff]
    %4261 = vset.pattern.permute.xlu0 0
    %4262 = vperm.xlu0 %4261, %v4196
    %v4263 = vpop.permute.xlu0 %4262
    %4266 = vset.pattern.permute.xlu0 0
    %4267 = vperm.xlu0 %4266, %v4197
    %v4268 = vpop.permute.xlu0 %4267
    %4271 = vset.pattern.permute.xlu0 0
    %4272 = vperm.xlu0 %4271, %v4198
    %v4273 = vpop.permute.xlu0 %4272
    %4276 = vset.pattern.permute.xlu0 0
    %4277 = vperm.xlu0 %4276, %v4199
    %v4278 = vpop.permute.xlu0 %4277
    %4281 = vset.pattern.permute.xlu0 0
    %4282 = vperm.xlu0 %4281, %v4200
    %v4283 = vpop.permute.xlu0 %4282
    %4286 = vset.pattern.permute.xlu0 0
    %4287 = vperm.xlu0 %4286, %v4201
    %v4288 = vpop.permute.xlu0 %4287
    %4291 = vset.pattern.permute.xlu0 0
    %4292 = vperm.xlu0 %4291, %v4202
    %v4293 = vpop.permute.xlu0 %4292
    %4296 = vset.pattern.permute.xlu0 0
    %4297 = vperm.xlu0 %4296, %v4203
    %v4298 = vpop.permute.xlu0 %4297
    %4301 = vset.pattern.permute.xlu0 0
    %4302 = vperm.xlu0 %4301, %v4204
    %v4303 = vpop.permute.xlu0 %4302
    %4306 = vset.pattern.permute.xlu0 0
    %4307 = vperm.xlu0 %4306, %v4205
    %v4308 = vpop.permute.xlu0 %4307
    %4311 = vset.pattern.permute.xlu0 0
    %4312 = vperm.xlu0 %4311, %v4206
    %v4313 = vpop.permute.xlu0 %4312
    %4316 = vset.pattern.permute.xlu0 0
    %4317 = vperm.xlu0 %4316, %v4207
    %v4318 = vpop.permute.xlu0 %4317
    %4321 = vset.pattern.permute.xlu0 0
    %4322 = vperm.xlu0 %4321, %v4208
    %v4323 = vpop.permute.xlu0 %4322
    %4326 = vset.pattern.permute.xlu0 0
    %4327 = vperm.xlu0 %4326, %v4209
    %v4328 = vpop.permute.xlu0 %4327
    %4331 = vset.pattern.permute.xlu0 0
    %4332 = vperm.xlu0 %4331, %v4210
    %v4333 = vpop.permute.xlu0 %4332
    %4336 = vset.pattern.permute.xlu0 0
    %4337 = vperm.xlu0 %4336, %v4211
    %v4338 = vpop.permute.xlu0 %4337
    %4341 = vset.pattern.permute.xlu0 0
    %4342 = vperm.xlu0 %4341, %v4212
    %v4343 = vpop.permute.xlu0 %4342
    %4346 = vset.pattern.permute.xlu0 0
    %4347 = vperm.xlu0 %4346, %v4213
    %v4348 = vpop.permute.xlu0 %4347
    %4351 = vset.pattern.permute.xlu0 0
    %4352 = vperm.xlu0 %4351, %v4214
    %v4353 = vpop.permute.xlu0 %4352
    %4356 = vset.pattern.permute.xlu0 0
    %4357 = vperm.xlu0 %4356, %v4215
    %v4358 = vpop.permute.xlu0 %4357
    %4361 = vset.pattern.permute.xlu0 0
    %4362 = vperm.xlu0 %4361, %v4216
    %v4363 = vpop.permute.xlu0 %4362
    %4366 = vset.pattern.permute.xlu0 0
    %4367 = vperm.xlu0 %4366, %v4217
    %v4368 = vpop.permute.xlu0 %4367
    %4371 = vset.pattern.permute.xlu0 0
    %4372 = vperm.xlu0 %4371, %v4218
    %v4373 = vpop.permute.xlu0 %4372
    %4376 = vset.pattern.permute.xlu0 0
    %4377 = vperm.xlu0 %4376, %v4219
    %v4378 = vpop.permute.xlu0 %4377
    %4381 = vset.pattern.permute.xlu0 0
    %4382 = vperm.xlu0 %4381, %v4220
    %v4383 = vpop.permute.xlu0 %4382
    %4386 = vset.pattern.permute.xlu0 0
    %4387 = vperm.xlu0 %4386, %v4221
    %v4388 = vpop.permute.xlu0 %4387
    %4391 = vset.pattern.permute.xlu0 0
    %4392 = vperm.xlu0 %4391, %v4222
    %v4393 = vpop.permute.xlu0 %4392
    %4396 = vset.pattern.permute.xlu0 0
    %4397 = vperm.xlu0 %4396, %v4223
    %v4398 = vpop.permute.xlu0 %4397
    %4401 = vset.pattern.permute.xlu0 0
    %4402 = vperm.xlu0 %4401, %v4224
    %v4403 = vpop.permute.xlu0 %4402
    %4406 = vset.pattern.permute.xlu0 0
    %4407 = vperm.xlu0 %4406, %v4225
    %v4408 = vpop.permute.xlu0 %4407
    %4411 = vset.pattern.permute.xlu0 0
    %4412 = vperm.xlu0 %4411, %v4226
    %v4413 = vpop.permute.xlu0 %4412
    %4416 = vset.pattern.permute.xlu0 0
    %4417 = vperm.xlu0 %4416, %v4227
    %v4418 = vpop.permute.xlu0 %4417
    %4421 = vset.pattern.permute.xlu0 0
    %4422 = vperm.xlu0 %4421, %v4228
    %v4423 = vpop.permute.xlu0 %4422
    %4426 = vset.pattern.permute.xlu0 0
    %4427 = vperm.xlu0 %4426, %v4229
    %v4428 = vpop.permute.xlu0 %4427
    %4431 = vset.pattern.permute.xlu0 0
    %4432 = vperm.xlu0 %4431, %v4230
    %v4433 = vpop.permute.xlu0 %4432
    %4436 = vset.pattern.permute.xlu0 0
    %4437 = vperm.xlu0 %4436, %v4231
    %v4438 = vpop.permute.xlu0 %4437
    %4441 = vset.pattern.permute.xlu0 0
    %4442 = vperm.xlu0 %4441, %v4232
    %v4443 = vpop.permute.xlu0 %4442
    %4446 = vset.pattern.permute.xlu0 0
    %4447 = vperm.xlu0 %4446, %v4233
    %v4448 = vpop.permute.xlu0 %4447
    %4451 = vset.pattern.permute.xlu0 0
    %4452 = vperm.xlu0 %4451, %v4234
    %v4453 = vpop.permute.xlu0 %4452
    %4456 = vset.pattern.permute.xlu0 0
    %4457 = vperm.xlu0 %4456, %v4235
    %v4458 = vpop.permute.xlu0 %4457
    %4461 = vset.pattern.permute.xlu0 0
    %4462 = vperm.xlu0 %4461, %v4236
    %v4463 = vpop.permute.xlu0 %4462
    %4466 = vset.pattern.permute.xlu0 0
    %4467 = vperm.xlu0 %4466, %v4237
    %v4468 = vpop.permute.xlu0 %4467
    %4471 = vset.pattern.permute.xlu0 0
    %4472 = vperm.xlu0 %4471, %v4238
    %v4473 = vpop.permute.xlu0 %4472
    %4476 = vset.pattern.permute.xlu0 0
    %4477 = vperm.xlu0 %4476, %v4239
    %v4478 = vpop.permute.xlu0 %4477
    %4481 = vset.pattern.permute.xlu0 0
    %4482 = vperm.xlu0 %4481, %v4240
    %v4483 = vpop.permute.xlu0 %4482
    %4486 = vset.pattern.permute.xlu0 0
    %4487 = vperm.xlu0 %4486, %v4241
    %v4488 = vpop.permute.xlu0 %4487
    %4491 = vset.pattern.permute.xlu0 0
    %4492 = vperm.xlu0 %4491, %v4242
    %v4493 = vpop.permute.xlu0 %4492
    %4496 = vset.pattern.permute.xlu0 0
    %4497 = vperm.xlu0 %4496, %v4243
    %v4498 = vpop.permute.xlu0 %4497
    %4501 = vset.pattern.permute.xlu0 0
    %4502 = vperm.xlu0 %4501, %v4244
    %v4503 = vpop.permute.xlu0 %4502
    %4506 = vset.pattern.permute.xlu0 0
    %4507 = vperm.xlu0 %4506, %v4245
    %v4508 = vpop.permute.xlu0 %4507
    %4511 = vset.pattern.permute.xlu0 0
    %4512 = vperm.xlu0 %4511, %v4246
    %v4513 = vpop.permute.xlu0 %4512
    %4516 = vset.pattern.permute.xlu0 0
    %4517 = vperm.xlu0 %4516, %v4247
    %v4518 = vpop.permute.xlu0 %4517
    %4521 = vset.pattern.permute.xlu0 0
    %4522 = vperm.xlu0 %4521, %v4248
    %v4523 = vpop.permute.xlu0 %4522
    %4526 = vset.pattern.permute.xlu0 0
    %4527 = vperm.xlu0 %4526, %v4249
    %v4528 = vpop.permute.xlu0 %4527
    %4531 = vset.pattern.permute.xlu0 0
    %4532 = vperm.xlu0 %4531, %v4250
    %v4533 = vpop.permute.xlu0 %4532
    %4536 = vset.pattern.permute.xlu0 0
    %4537 = vperm.xlu0 %4536, %v4251
    %v4538 = vpop.permute.xlu0 %4537
    %4541 = vset.pattern.permute.xlu0 0
    %4542 = vperm.xlu0 %4541, %v4252
    %v4543 = vpop.permute.xlu0 %4542
    %4546 = vset.pattern.permute.xlu0 0
    %4547 = vperm.xlu0 %4546, %v4253
    %v4548 = vpop.permute.xlu0 %4547
    %4551 = vset.pattern.permute.xlu0 0
    %4552 = vperm.xlu0 %4551, %v4254
    %v4553 = vpop.permute.xlu0 %4552
    %4556 = vset.pattern.permute.xlu0 0
    %4557 = vperm.xlu0 %4556, %v4255
    %v4558 = vpop.permute.xlu0 %4557
    %4561 = vset.pattern.permute.xlu0 0
    %4562 = vperm.xlu0 %4561, %v4256
    %v4563 = vpop.permute.xlu0 %4562
    %4566 = vset.pattern.permute.xlu0 0
    %4567 = vperm.xlu0 %4566, %v4257
    %v4568 = vpop.permute.xlu0 %4567
    %4571 = vset.pattern.permute.xlu0 0
    %4572 = vperm.xlu0 %4571, %v4258
    %v4573 = vpop.permute.xlu0 %4572
    %4576 = vset.pattern.permute.xlu0 0
    %4577 = vperm.xlu0 %4576, %v4259
    %v4578 = vpop.permute.xlu0 %4577
    %v4580 = vmul.f32 %v4193, %v4263
    %v4581 = vmul.f32 %v4192, %v4268
    %v4582 = vmul.f32 %v4191, %v4273
    %v4583 = vmul.f32 %v4190, %v4278
    %v4584 = vmul.f32 %v4189, %v4283
    %v4585 = vmul.f32 %v4188, %v4288
    %v4586 = vmul.f32 %v4187, %v4293
    %v4587 = vmul.f32 %v4186, %v4298
    %v4588 = vmul.f32 %v4185, %v4303
    %v4589 = vmul.f32 %v4184, %v4308
    %v4590 = vmul.f32 %v4183, %v4313
    %v4591 = vmul.f32 %v4182, %v4318
    %v4592 = vmul.f32 %v4181, %v4323
    %v4593 = vmul.f32 %v4180, %v4328
    %v4594 = vmul.f32 %v4179, %v4333
    %v4595 = vmul.f32 %v4178, %v4338
    %v4596 = vmul.f32 %v4177, %v4343
    %v4597 = vmul.f32 %v4176, %v4348
    %v4598 = vmul.f32 %v4175, %v4353
    %v4599 = vmul.f32 %v4174, %v4358
    %v4600 = vmul.f32 %v4173, %v4363
    %v4601 = vmul.f32 %v4172, %v4368
    %v4602 = vmul.f32 %v4171, %v4373
    %v4603 = vmul.f32 %v4170, %v4378
    %v4604 = vmul.f32 %v4169, %v4383
    %v4605 = vmul.f32 %v4168, %v4388
    %v4606 = vmul.f32 %v4167, %v4393
    %v4607 = vmul.f32 %v4166, %v4398
    %v4608 = vmul.f32 %v4165, %v4403
    %v4609 = vmul.f32 %v4164, %v4408
    %v4610 = vmul.f32 %v4163, %v4413
    %v4611 = vmul.f32 %v4162, %v4418
    %v4612 = vmul.f32 %v4161, %v4423
    %v4613 = vmul.f32 %v4160, %v4428
    %v4614 = vmul.f32 %v4159, %v4433
    %v4615 = vmul.f32 %v4158, %v4438
    %v4616 = vmul.f32 %v4157, %v4443
    %v4617 = vmul.f32 %v4156, %v4448
    %v4618 = vmul.f32 %v4155, %v4453
    %v4619 = vmul.f32 %v4154, %v4458
    %v4620 = vmul.f32 %v4153, %v4463
    %v4621 = vmul.f32 %v4152, %v4468
    %v4622 = vmul.f32 %v4151, %v4473
    %v4623 = vmul.f32 %v4150, %v4478
    %v4624 = vmul.f32 %v4149, %v4483
    %v4625 = vmul.f32 %v4148, %v4488
    %v4626 = vmul.f32 %v4147, %v4493
    %v4627 = vmul.f32 %v4146, %v4498
    %v4628 = vmul.f32 %v4145, %v4503
    %v4629 = vmul.f32 %v4144, %v4508
    %v4630 = vmul.f32 %v4143, %v4513
    %v4631 = vmul.f32 %v4142, %v4518
    %v4632 = vmul.f32 %v4141, %v4523
    %v4633 = vmul.f32 %v4140, %v4528
    %v4634 = vmul.f32 %v4139, %v4533
    %v4635 = vmul.f32 %v4138, %v4538
    %v4636 = vmul.f32 %v4137, %v4543
    %v4637 = vmul.f32 %v4136, %v4548
    %v4638 = vmul.f32 %v4135, %v4553
    %v4639 = vmul.f32 %v4134, %v4558
    %v4640 = vmul.f32 %v4133, %v4563
    %v4641 = vmul.f32 %v4132, %v4568
    %v4642 = vmul.f32 %v4131, %v4573
    %v4643 = vmul.f32 %v4194, %v4578
    %v4644 = vadd.f32 %v3553, %v4580
    %v4645 = vadd.f32 %v3554, %v4581
    %v4646 = vadd.f32 %v3555, %v4582
    %v4647 = vadd.f32 %v3556, %v4583
    %v4648 = vadd.f32 %v3557, %v4584
    %v4649 = vadd.f32 %v3558, %v4585
    %v4650 = vadd.f32 %v3559, %v4586
    %v4651 = vadd.f32 %v3560, %v4587
    %v4652 = vadd.f32 %v3561, %v4588
    %v4653 = vadd.f32 %v3562, %v4589
    %v4654 = vadd.f32 %v3563, %v4590
    %v4655 = vadd.f32 %v3564, %v4591
    %v4656 = vadd.f32 %v3565, %v4592
    %v4657 = vadd.f32 %v3566, %v4593
    %v4658 = vadd.f32 %v3567, %v4594
    %v4659 = vadd.f32 %v3568, %v4595
    %v4660 = vadd.f32 %v3569, %v4596
    %v4661 = vadd.f32 %v3570, %v4597
    %v4662 = vadd.f32 %v3571, %v4598
    %v4663 = vadd.f32 %v3572, %v4599
    %v4664 = vadd.f32 %v3573, %v4600
    %v4665 = vadd.f32 %v3574, %v4601
    %v4666 = vadd.f32 %v3575, %v4602
    %v4667 = vadd.f32 %v3576, %v4603
    %v4668 = vadd.f32 %v3577, %v4604
    %v4669 = vadd.f32 %v3578, %v4605
    %v4670 = vadd.f32 %v3579, %v4606
    %v4671 = vadd.f32 %v3580, %v4607
    %v4672 = vadd.f32 %v3581, %v4608
    %v4673 = vadd.f32 %v3582, %v4609
    %v4674 = vadd.f32 %v3583, %v4610
    %v4675 = vadd.f32 %v3584, %v4611
    %v4676 = vadd.f32 %v3585, %v4612
    %v4677 = vadd.f32 %v3586, %v4613
    %v4678 = vadd.f32 %v3587, %v4614
    %v4679 = vadd.f32 %v3588, %v4615
    %v4680 = vadd.f32 %v3589, %v4616
    %v4681 = vadd.f32 %v3590, %v4617
    %v4682 = vadd.f32 %v3591, %v4618
    %v4683 = vadd.f32 %v3592, %v4619
    %v4684 = vadd.f32 %v3593, %v4620
    %v4685 = vadd.f32 %v3594, %v4621
    %v4686 = vadd.f32 %v3595, %v4622
    %v4687 = vadd.f32 %v3596, %v4623
    %v4688 = vadd.f32 %v3597, %v4624
    %v4689 = vadd.f32 %v3598, %v4625
    %v4690 = vadd.f32 %v3599, %v4626
    %v4691 = vadd.f32 %v3600, %v4627
    %v4692 = vadd.f32 %v3601, %v4628
    %v4693 = vadd.f32 %v3602, %v4629
    %v4694 = vadd.f32 %v3603, %v4630
    %v4695 = vadd.f32 %v3604, %v4631
    %v4696 = vadd.f32 %v3605, %v4632
    %v4697 = vadd.f32 %v3606, %v4633
    %v4698 = vadd.f32 %v3607, %v4634
    %v4699 = vadd.f32 %v3608, %v4635
    %v4700 = vadd.f32 %v3609, %v4636
    %v4701 = vadd.f32 %v3610, %v4637
    %v4702 = vadd.f32 %v3611, %v4638
    %v4703 = vadd.f32 %v3612, %v4639
    %v4704 = vadd.f32 %v3613, %v4640
    %v4705 = vadd.f32 %v3614, %v4641
    %v4706 = vadd.f32 %v3615, %v4642
    %v4707 = vadd.f32 %v3616, %v4643
    %v4708 = vrot.slane %v3750, 2
    %v4709 = vrot.slane %v3754, 2
    %v4710 = vrot.slane %v3760, 2
    %v4711 = vrot.slane %v3764, 2
    %v4712 = vrot.slane %v3770, 2
    %v4713 = vrot.slane %v3774, 2
    %v4714 = vrot.slane %v3780, 2
    %v4715 = vrot.slane %v3784, 2
    %v4716 = vrot.slane %v3790, 2
    %v4717 = vrot.slane %v3794, 2
    %v4718 = vrot.slane %v3800, 2
    %v4719 = vrot.slane %v3804, 2
    %v4720 = vrot.slane %v3810, 2
    %v4721 = vrot.slane %v3814, 2
    %v4722 = vrot.slane %v3820, 2
    %v4723 = vrot.slane %v3824, 2
    %v4724 = vrot.slane %v3830, 2
    %v4725 = vrot.slane %v3834, 2
    %v4726 = vrot.slane %v3840, 2
    %v4727 = vrot.slane %v3844, 2
    %v4728 = vrot.slane %v3850, 2
    %v4729 = vrot.slane %v3854, 2
    %v4730 = vrot.slane %v3860, 2
    %v4731 = vrot.slane %v3864, 2
    %v4732 = vrot.slane %v3870, 2
    %v4733 = vrot.slane %v3874, 2
    %v4734 = vrot.slane %v3880, 2
    %v4735 = vrot.slane %v3884, 2
    %v4736 = vrot.slane %v3890, 2
    %v4737 = vrot.slane %v3894, 2
    %v4738 = vrot.slane %v3900, 2
    %v4739 = vrot.slane %v3904, 2
    %v4740 = vrot.slane %v3910, 2
    %v4741 = vrot.slane %v3914, 2
    %v4742 = vrot.slane %v3920, 2
    %v4743 = vrot.slane %v3924, 2
    %v4744 = vrot.slane %v3930, 2
    %v4745 = vrot.slane %v3934, 2
    %v4746 = vrot.slane %v3940, 2
    %v4747 = vrot.slane %v3944, 2
    %v4748 = vrot.slane %v3950, 2
    %v4749 = vrot.slane %v3954, 2
    %v4750 = vrot.slane %v3960, 2
    %v4751 = vrot.slane %v3964, 2
    %v4752 = vrot.slane %v3970, 2
    %v4753 = vrot.slane %v3974, 2
    %v4754 = vrot.slane %v3980, 2
    %v4755 = vrot.slane %v3984, 2
    %v4756 = vrot.slane %v3990, 2
    %v4757 = vrot.slane %v3994, 2
    %v4758 = vrot.slane %v4000, 2
    %v4759 = vrot.slane %v4004, 2
    %v4760 = vrot.slane %v4010, 2
    %v4761 = vrot.slane %v4014, 2
    %v4762 = vrot.slane %v4020, 2
    %v4763 = vrot.slane %v4024, 2
    %v4764 = vrot.slane %v4030, 2
    %v4765 = vrot.slane %v4034, 2
    %v4766 = vrot.slane %v4040, 2
    %v4767 = vrot.slane %v4044, 2
    %v4768 = vrot.slane %v4050, 2
    %v4769 = vrot.slane %v4054, 2
    %v4770 = vrot.slane %v4060, 2
    %v4771 = vrot.slane %v4064, 2
    %vm4772 = vcmp.lt.s32.totalorder %v1306, 6
    %v4773 = vsel %vm4772, %v4770, %v4771
    %v4774 = vsel %vm4772, %v4769, %v4770
    %v4775 = vsel %vm4772, %v4768, %v4769
    %v4776 = vsel %vm4772, %v4767, %v4768
    %v4777 = vsel %vm4772, %v4766, %v4767
    %v4778 = vsel %vm4772, %v4765, %v4766
    %v4779 = vsel %vm4772, %v4764, %v4765
    %v4780 = vsel %vm4772, %v4763, %v4764
    %v4781 = vsel %vm4772, %v4762, %v4763
    %v4782 = vsel %vm4772, %v4761, %v4762
    %v4783 = vsel %vm4772, %v4760, %v4761
    %v4784 = vsel %vm4772, %v4759, %v4760
    %v4785 = vsel %vm4772, %v4758, %v4759
    %v4786 = vsel %vm4772, %v4757, %v4758
    %v4787 = vsel %vm4772, %v4756, %v4757
    %v4788 = vsel %vm4772, %v4755, %v4756
    %v4789 = vsel %vm4772, %v4754, %v4755
    %v4790 = vsel %vm4772, %v4753, %v4754
    %v4791 = vsel %vm4772, %v4752, %v4753
    %v4792 = vsel %vm4772, %v4751, %v4752
    %v4793 = vsel %vm4772, %v4750, %v4751
    %v4794 = vsel %vm4772, %v4749, %v4750
    %v4795 = vsel %vm4772, %v4748, %v4749
    %v4796 = vsel %vm4772, %v4747, %v4748
    %v4797 = vsel %vm4772, %v4746, %v4747
    %v4798 = vsel %vm4772, %v4745, %v4746
    %v4799 = vsel %vm4772, %v4744, %v4745
    %v4800 = vsel %vm4772, %v4743, %v4744
    %v4801 = vsel %vm4772, %v4742, %v4743
    %v4802 = vsel %vm4772, %v4741, %v4742
    %v4803 = vsel %vm4772, %v4740, %v4741
    %v4804 = vsel %vm4772, %v4739, %v4740
    %v4805 = vsel %vm4772, %v4738, %v4739
    %v4806 = vsel %vm4772, %v4737, %v4738
    %v4807 = vsel %vm4772, %v4736, %v4737
    %v4808 = vsel %vm4772, %v4735, %v4736
    %v4809 = vsel %vm4772, %v4734, %v4735
    %v4810 = vsel %vm4772, %v4733, %v4734
    %v4811 = vsel %vm4772, %v4732, %v4733
    %v4812 = vsel %vm4772, %v4731, %v4732
    %v4813 = vsel %vm4772, %v4730, %v4731
    %v4814 = vsel %vm4772, %v4729, %v4730
    %v4815 = vsel %vm4772, %v4728, %v4729
    %v4816 = vsel %vm4772, %v4727, %v4728
    %v4817 = vsel %vm4772, %v4726, %v4727
    %v4818 = vsel %vm4772, %v4725, %v4726
    %v4819 = vsel %vm4772, %v4724, %v4725
    %v4820 = vsel %vm4772, %v4723, %v4724
    %v4821 = vsel %vm4772, %v4722, %v4723
    %v4822 = vsel %vm4772, %v4721, %v4722
    %v4823 = vsel %vm4772, %v4720, %v4721
    %v4824 = vsel %vm4772, %v4719, %v4720
    %v4825 = vsel %vm4772, %v4718, %v4719
    %v4826 = vsel %vm4772, %v4717, %v4718
    %v4827 = vsel %vm4772, %v4716, %v4717
    %v4828 = vsel %vm4772, %v4715, %v4716
    %v4829 = vsel %vm4772, %v4714, %v4715
    %v4830 = vsel %vm4772, %v4713, %v4714
    %v4831 = vsel %vm4772, %v4712, %v4713
    %v4832 = vsel %vm4772, %v4711, %v4712
    %v4833 = vsel %vm4772, %v4710, %v4711
    %v4834 = vsel %vm4772, %v4709, %v4710
    %v4835 = vsel %vm4772, %v4708, %v4709
    %v4836 = vsel %vm4772, %v4771, %v4708
    %s4837 = scalar_lea.vmem %s10, 2560
    %v4838 = vld [vmem:[%s4837] sm:$0xff]
    %v4839 = vld [vmem:[%s4837 + $0x8] sm:$0xff]
    %v4840 = vld [vmem:[%s4837 + $0x10] sm:$0xff]
    %v4841 = vld [vmem:[%s4837 + $0x18] sm:$0xff]
    %v4842 = vld [vmem:[%s4837 + $0x20] sm:$0xff]
    %v4843 = vld [vmem:[%s4837 + $0x28] sm:$0xff]
    %v4844 = vld [vmem:[%s4837 + $0x30] sm:$0xff]
    %v4845 = vld [vmem:[%s4837 + $0x38] sm:$0xff]
    %v4846 = vld [vmem:[%s4837 + $0x40] sm:$0xff]
    %v4847 = vld [vmem:[%s4837 + $0x48] sm:$0xff]
    %v4848 = vld [vmem:[%s4837 + $0x50] sm:$0xff]
    %v4849 = vld [vmem:[%s4837 + $0x58] sm:$0xff]
    %v4850 = vld [vmem:[%s4837 + $0x60] sm:$0xff]
    %v4851 = vld [vmem:[%s4837 + $0x68] sm:$0xff]
    %v4852 = vld [vmem:[%s4837 + $0x70] sm:$0xff]
    %v4853 = vld [vmem:[%s4837 + $0x78] sm:$0xff]
    %v4854 = vld [vmem:[%s4837 + $0x80] sm:$0xff]
    %v4855 = vld [vmem:[%s4837 + $0x88] sm:$0xff]
    %v4856 = vld [vmem:[%s4837 + $0x90] sm:$0xff]
    %v4857 = vld [vmem:[%s4837 + $0x98] sm:$0xff]
    %v4858 = vld [vmem:[%s4837 + $0xa0] sm:$0xff]
    %v4859 = vld [vmem:[%s4837 + $0xa8] sm:$0xff]
    %v4860 = vld [vmem:[%s4837 + $0xb0] sm:$0xff]
    %v4861 = vld [vmem:[%s4837 + $0xb8] sm:$0xff]
    %v4862 = vld [vmem:[%s4837 + $0xc0] sm:$0xff]
    %v4863 = vld [vmem:[%s4837 + $0xc8] sm:$0xff]
    %v4864 = vld [vmem:[%s4837 + $0xd0] sm:$0xff]
    %v4865 = vld [vmem:[%s4837 + $0xd8] sm:$0xff]
    %v4866 = vld [vmem:[%s4837 + $0xe0] sm:$0xff]
    %v4867 = vld [vmem:[%s4837 + $0xe8] sm:$0xff]
    %v4868 = vld [vmem:[%s4837 + $0xf0] sm:$0xff]
    %v4869 = vld [vmem:[%s4837 + $0xf8] sm:$0xff]
    %v4870 = vld [vmem:[%s4837 + $0x100] sm:$0xff]
    %v4871 = vld [vmem:[%s4837 + $0x108] sm:$0xff]
    %v4872 = vld [vmem:[%s4837 + $0x110] sm:$0xff]
    %v4873 = vld [vmem:[%s4837 + $0x118] sm:$0xff]
    %v4874 = vld [vmem:[%s4837 + $0x120] sm:$0xff]
    %v4875 = vld [vmem:[%s4837 + $0x128] sm:$0xff]
    %v4876 = vld [vmem:[%s4837 + $0x130] sm:$0xff]
    %v4877 = vld [vmem:[%s4837 + $0x138] sm:$0xff]
    %v4878 = vld [vmem:[%s4837 + $0x140] sm:$0xff]
    %v4879 = vld [vmem:[%s4837 + $0x148] sm:$0xff]
    %v4880 = vld [vmem:[%s4837 + $0x150] sm:$0xff]
    %v4881 = vld [vmem:[%s4837 + $0x158] sm:$0xff]
    %v4882 = vld [vmem:[%s4837 + $0x160] sm:$0xff]
    %v4883 = vld [vmem:[%s4837 + $0x168] sm:$0xff]
    %v4884 = vld [vmem:[%s4837 + $0x170] sm:$0xff]
    %v4885 = vld [vmem:[%s4837 + $0x178] sm:$0xff]
    %v4886 = vld [vmem:[%s4837 + $0x180] sm:$0xff]
    %v4887 = vld [vmem:[%s4837 + $0x188] sm:$0xff]
    %v4888 = vld [vmem:[%s4837 + $0x190] sm:$0xff]
    %v4889 = vld [vmem:[%s4837 + $0x198] sm:$0xff]
    %v4890 = vld [vmem:[%s4837 + $0x1a0] sm:$0xff]
    %v4891 = vld [vmem:[%s4837 + $0x1a8] sm:$0xff]
    %v4892 = vld [vmem:[%s4837 + $0x1b0] sm:$0xff]
    %v4893 = vld [vmem:[%s4837 + $0x1b8] sm:$0xff]
    %v4894 = vld [vmem:[%s4837 + $0x1c0] sm:$0xff]
    %v4895 = vld [vmem:[%s4837 + $0x1c8] sm:$0xff]
    %v4896 = vld [vmem:[%s4837 + $0x1d0] sm:$0xff]
    %v4897 = vld [vmem:[%s4837 + $0x1d8] sm:$0xff]
    %v4898 = vld [vmem:[%s4837 + $0x1e0] sm:$0xff]
    %v4899 = vld [vmem:[%s4837 + $0x1e8] sm:$0xff]
    %v4900 = vld [vmem:[%s4837 + $0x1f0] sm:$0xff]
    %v4901 = vld [vmem:[%s4837 + $0x1f8] sm:$0xff]
    %4903 = vset.pattern.permute.xlu0 0
    %4904 = vperm.xlu0 %4903, %v4838
    %v4905 = vpop.permute.xlu0 %4904
    %4908 = vset.pattern.permute.xlu0 0
    %4909 = vperm.xlu0 %4908, %v4839
    %v4910 = vpop.permute.xlu0 %4909
    %4913 = vset.pattern.permute.xlu0 0
    %4914 = vperm.xlu0 %4913, %v4840
    %v4915 = vpop.permute.xlu0 %4914
    %4918 = vset.pattern.permute.xlu0 0
    %4919 = vperm.xlu0 %4918, %v4841
    %v4920 = vpop.permute.xlu0 %4919
    %4923 = vset.pattern.permute.xlu0 0
    %4924 = vperm.xlu0 %4923, %v4842
    %v4925 = vpop.permute.xlu0 %4924
    %4928 = vset.pattern.permute.xlu0 0
    %4929 = vperm.xlu0 %4928, %v4843
    %v4930 = vpop.permute.xlu0 %4929
    %4933 = vset.pattern.permute.xlu0 0
    %4934 = vperm.xlu0 %4933, %v4844
    %v4935 = vpop.permute.xlu0 %4934
    %4938 = vset.pattern.permute.xlu0 0
    %4939 = vperm.xlu0 %4938, %v4845
    %v4940 = vpop.permute.xlu0 %4939
    %4943 = vset.pattern.permute.xlu0 0
    %4944 = vperm.xlu0 %4943, %v4846
    %v4945 = vpop.permute.xlu0 %4944
    %4948 = vset.pattern.permute.xlu0 0
    %4949 = vperm.xlu0 %4948, %v4847
    %v4950 = vpop.permute.xlu0 %4949
    %4953 = vset.pattern.permute.xlu0 0
    %4954 = vperm.xlu0 %4953, %v4848
    %v4955 = vpop.permute.xlu0 %4954
    %4958 = vset.pattern.permute.xlu0 0
    %4959 = vperm.xlu0 %4958, %v4849
    %v4960 = vpop.permute.xlu0 %4959
    %4963 = vset.pattern.permute.xlu0 0
    %4964 = vperm.xlu0 %4963, %v4850
    %v4965 = vpop.permute.xlu0 %4964
    %4968 = vset.pattern.permute.xlu0 0
    %4969 = vperm.xlu0 %4968, %v4851
    %v4970 = vpop.permute.xlu0 %4969
    %4973 = vset.pattern.permute.xlu0 0
    %4974 = vperm.xlu0 %4973, %v4852
    %v4975 = vpop.permute.xlu0 %4974
    %4978 = vset.pattern.permute.xlu0 0
    %4979 = vperm.xlu0 %4978, %v4853
    %v4980 = vpop.permute.xlu0 %4979
    %4983 = vset.pattern.permute.xlu0 0
    %4984 = vperm.xlu0 %4983, %v4854
    %v4985 = vpop.permute.xlu0 %4984
    %4988 = vset.pattern.permute.xlu0 0
    %4989 = vperm.xlu0 %4988, %v4855
    %v4990 = vpop.permute.xlu0 %4989
    %4993 = vset.pattern.permute.xlu0 0
    %4994 = vperm.xlu0 %4993, %v4856
    %v4995 = vpop.permute.xlu0 %4994
    %4998 = vset.pattern.permute.xlu0 0
    %4999 = vperm.xlu0 %4998, %v4857
    %v5000 = vpop.permute.xlu0 %4999
    %5003 = vset.pattern.permute.xlu0 0
    %5004 = vperm.xlu0 %5003, %v4858
    %v5005 = vpop.permute.xlu0 %5004
    %5008 = vset.pattern.permute.xlu0 0
    %5009 = vperm.xlu0 %5008, %v4859
    %v5010 = vpop.permute.xlu0 %5009
    %5013 = vset.pattern.permute.xlu0 0
    %5014 = vperm.xlu0 %5013, %v4860
    %v5015 = vpop.permute.xlu0 %5014
    %5018 = vset.pattern.permute.xlu0 0
    %5019 = vperm.xlu0 %5018, %v4861
    %v5020 = vpop.permute.xlu0 %5019
    %5023 = vset.pattern.permute.xlu0 0
    %5024 = vperm.xlu0 %5023, %v4862
    %v5025 = vpop.permute.xlu0 %5024
    %5028 = vset.pattern.permute.xlu0 0
    %5029 = vperm.xlu0 %5028, %v4863
    %v5030 = vpop.permute.xlu0 %5029
    %5033 = vset.pattern.permute.xlu0 0
    %5034 = vperm.xlu0 %5033, %v4864
    %v5035 = vpop.permute.xlu0 %5034
    %5038 = vset.pattern.permute.xlu0 0
    %5039 = vperm.xlu0 %5038, %v4865
    %v5040 = vpop.permute.xlu0 %5039
    %5043 = vset.pattern.permute.xlu0 0
    %5044 = vperm.xlu0 %5043, %v4866
    %v5045 = vpop.permute.xlu0 %5044
    %5048 = vset.pattern.permute.xlu0 0
    %5049 = vperm.xlu0 %5048, %v4867
    %v5050 = vpop.permute.xlu0 %5049
    %5053 = vset.pattern.permute.xlu0 0
    %5054 = vperm.xlu0 %5053, %v4868
    %v5055 = vpop.permute.xlu0 %5054
    %5058 = vset.pattern.permute.xlu0 0
    %5059 = vperm.xlu0 %5058, %v4869
    %v5060 = vpop.permute.xlu0 %5059
    %5063 = vset.pattern.permute.xlu0 0
    %5064 = vperm.xlu0 %5063, %v4870
    %v5065 = vpop.permute.xlu0 %5064
    %5068 = vset.pattern.permute.xlu0 0
    %5069 = vperm.xlu0 %5068, %v4871
    %v5070 = vpop.permute.xlu0 %5069
    %5073 = vset.pattern.permute.xlu0 0
    %5074 = vperm.xlu0 %5073, %v4872
    %v5075 = vpop.permute.xlu0 %5074
    %5078 = vset.pattern.permute.xlu0 0
    %5079 = vperm.xlu0 %5078, %v4873
    %v5080 = vpop.permute.xlu0 %5079
    %5083 = vset.pattern.permute.xlu0 0
    %5084 = vperm.xlu0 %5083, %v4874
    %v5085 = vpop.permute.xlu0 %5084
    %5088 = vset.pattern.permute.xlu0 0
    %5089 = vperm.xlu0 %5088, %v4875
    %v5090 = vpop.permute.xlu0 %5089
    %5093 = vset.pattern.permute.xlu0 0
    %5094 = vperm.xlu0 %5093, %v4876
    %v5095 = vpop.permute.xlu0 %5094
    %5098 = vset.pattern.permute.xlu0 0
    %5099 = vperm.xlu0 %5098, %v4877
    %v5100 = vpop.permute.xlu0 %5099
    %5103 = vset.pattern.permute.xlu0 0
    %5104 = vperm.xlu0 %5103, %v4878
    %v5105 = vpop.permute.xlu0 %5104
    %5108 = vset.pattern.permute.xlu0 0
    %5109 = vperm.xlu0 %5108, %v4879
    %v5110 = vpop.permute.xlu0 %5109
    %5113 = vset.pattern.permute.xlu0 0
    %5114 = vperm.xlu0 %5113, %v4880
    %v5115 = vpop.permute.xlu0 %5114
    %5118 = vset.pattern.permute.xlu0 0
    %5119 = vperm.xlu0 %5118, %v4881
    %v5120 = vpop.permute.xlu0 %5119
    %5123 = vset.pattern.permute.xlu0 0
    %5124 = vperm.xlu0 %5123, %v4882
    %v5125 = vpop.permute.xlu0 %5124
    %5128 = vset.pattern.permute.xlu0 0
    %5129 = vperm.xlu0 %5128, %v4883
    %v5130 = vpop.permute.xlu0 %5129
    %5133 = vset.pattern.permute.xlu0 0
    %5134 = vperm.xlu0 %5133, %v4884
    %v5135 = vpop.permute.xlu0 %5134
    %5138 = vset.pattern.permute.xlu0 0
    %5139 = vperm.xlu0 %5138, %v4885
    %v5140 = vpop.permute.xlu0 %5139
    %5143 = vset.pattern.permute.xlu0 0
    %5144 = vperm.xlu0 %5143, %v4886
    %v5145 = vpop.permute.xlu0 %5144
    %5148 = vset.pattern.permute.xlu0 0
    %5149 = vperm.xlu0 %5148, %v4887
    %v5150 = vpop.permute.xlu0 %5149
    %5153 = vset.pattern.permute.xlu0 0
    %5154 = vperm.xlu0 %5153, %v4888
    %v5155 = vpop.permute.xlu0 %5154
    %5158 = vset.pattern.permute.xlu0 0
    %5159 = vperm.xlu0 %5158, %v4889
    %v5160 = vpop.permute.xlu0 %5159
    %5163 = vset.pattern.permute.xlu0 0
    %5164 = vperm.xlu0 %5163, %v4890
    %v5165 = vpop.permute.xlu0 %5164
    %5168 = vset.pattern.permute.xlu0 0
    %5169 = vperm.xlu0 %5168, %v4891
    %v5170 = vpop.permute.xlu0 %5169
    %5173 = vset.pattern.permute.xlu0 0
    %5174 = vperm.xlu0 %5173, %v4892
    %v5175 = vpop.permute.xlu0 %5174
    %5178 = vset.pattern.permute.xlu0 0
    %5179 = vperm.xlu0 %5178, %v4893
    %v5180 = vpop.permute.xlu0 %5179
    %5183 = vset.pattern.permute.xlu0 0
    %5184 = vperm.xlu0 %5183, %v4894
    %v5185 = vpop.permute.xlu0 %5184
    %5188 = vset.pattern.permute.xlu0 0
    %5189 = vperm.xlu0 %5188, %v4895
    %v5190 = vpop.permute.xlu0 %5189
    %5193 = vset.pattern.permute.xlu0 0
    %5194 = vperm.xlu0 %5193, %v4896
    %v5195 = vpop.permute.xlu0 %5194
    %5198 = vset.pattern.permute.xlu0 0
    %5199 = vperm.xlu0 %5198, %v4897
    %v5200 = vpop.permute.xlu0 %5199
    %5203 = vset.pattern.permute.xlu0 0
    %5204 = vperm.xlu0 %5203, %v4898
    %v5205 = vpop.permute.xlu0 %5204
    %5208 = vset.pattern.permute.xlu0 0
    %5209 = vperm.xlu0 %5208, %v4899
    %v5210 = vpop.permute.xlu0 %5209
    %5213 = vset.pattern.permute.xlu0 0
    %5214 = vperm.xlu0 %5213, %v4900
    %v5215 = vpop.permute.xlu0 %5214
    %5218 = vset.pattern.permute.xlu0 0
    %5219 = vperm.xlu0 %5218, %v4901
    %v5220 = vpop.permute.xlu0 %5219
    %v5222 = vmul.f32 %v4835, %v4905
    %v5223 = vmul.f32 %v4834, %v4910
    %v5224 = vmul.f32 %v4833, %v4915
    %v5225 = vmul.f32 %v4832, %v4920
    %v5226 = vmul.f32 %v4831, %v4925
    %v5227 = vmul.f32 %v4830, %v4930
    %v5228 = vmul.f32 %v4829, %v4935
    %v5229 = vmul.f32 %v4828, %v4940
    %v5230 = vmul.f32 %v4827, %v4945
    %v5231 = vmul.f32 %v4826, %v4950
    %v5232 = vmul.f32 %v4825, %v4955
    %v5233 = vmul.f32 %v4824, %v4960
    %v5234 = vmul.f32 %v4823, %v4965
    %v5235 = vmul.f32 %v4822, %v4970
    %v5236 = vmul.f32 %v4821, %v4975
    %v5237 = vmul.f32 %v4820, %v4980
    %v5238 = vmul.f32 %v4819, %v4985
    %v5239 = vmul.f32 %v4818, %v4990
    %v5240 = vmul.f32 %v4817, %v4995
    %v5241 = vmul.f32 %v4816, %v5000
    %v5242 = vmul.f32 %v4815, %v5005
    %v5243 = vmul.f32 %v4814, %v5010
    %v5244 = vmul.f32 %v4813, %v5015
    %v5245 = vmul.f32 %v4812, %v5020
    %v5246 = vmul.f32 %v4811, %v5025
    %v5247 = vmul.f32 %v4810, %v5030
    %v5248 = vmul.f32 %v4809, %v5035
    %v5249 = vmul.f32 %v4808, %v5040
    %v5250 = vmul.f32 %v4807, %v5045
    %v5251 = vmul.f32 %v4806, %v5050
    %v5252 = vmul.f32 %v4805, %v5055
    %v5253 = vmul.f32 %v4804, %v5060
    %v5254 = vmul.f32 %v4803, %v5065
    %v5255 = vmul.f32 %v4802, %v5070
    %v5256 = vmul.f32 %v4801, %v5075
    %v5257 = vmul.f32 %v4800, %v5080
    %v5258 = vmul.f32 %v4799, %v5085
    %v5259 = vmul.f32 %v4798, %v5090
    %v5260 = vmul.f32 %v4797, %v5095
    %v5261 = vmul.f32 %v4796, %v5100
    %v5262 = vmul.f32 %v4795, %v5105
    %v5263 = vmul.f32 %v4794, %v5110
    %v5264 = vmul.f32 %v4793, %v5115
    %v5265 = vmul.f32 %v4792, %v5120
    %v5266 = vmul.f32 %v4791, %v5125
    %v5267 = vmul.f32 %v4790, %v5130
    %v5268 = vmul.f32 %v4789, %v5135
    %v5269 = vmul.f32 %v4788, %v5140
    %v5270 = vmul.f32 %v4787, %v5145
    %v5271 = vmul.f32 %v4786, %v5150
    %v5272 = vmul.f32 %v4785, %v5155
    %v5273 = vmul.f32 %v4784, %v5160
    %v5274 = vmul.f32 %v4783, %v5165
    %v5275 = vmul.f32 %v4782, %v5170
    %v5276 = vmul.f32 %v4781, %v5175
    %v5277 = vmul.f32 %v4780, %v5180
    %v5278 = vmul.f32 %v4779, %v5185
    %v5279 = vmul.f32 %v4778, %v5190
    %v5280 = vmul.f32 %v4777, %v5195
    %v5281 = vmul.f32 %v4776, %v5200
    %v5282 = vmul.f32 %v4775, %v5205
    %v5283 = vmul.f32 %v4774, %v5210
    %v5284 = vmul.f32 %v4773, %v5215
    %v5285 = vmul.f32 %v4836, %v5220
    %v5286 = vadd.f32 %v4644, %v5222
    %v5287 = vadd.f32 %v4645, %v5223
    %v5288 = vadd.f32 %v4646, %v5224
    %v5289 = vadd.f32 %v4647, %v5225
    %v5290 = vadd.f32 %v4648, %v5226
    %v5291 = vadd.f32 %v4649, %v5227
    %v5292 = vadd.f32 %v4650, %v5228
    %v5293 = vadd.f32 %v4651, %v5229
    %v5294 = vadd.f32 %v4652, %v5230
    %v5295 = vadd.f32 %v4653, %v5231
    %v5296 = vadd.f32 %v4654, %v5232
    %v5297 = vadd.f32 %v4655, %v5233
    %v5298 = vadd.f32 %v4656, %v5234
    %v5299 = vadd.f32 %v4657, %v5235
    %v5300 = vadd.f32 %v4658, %v5236
    %v5301 = vadd.f32 %v4659, %v5237
    %v5302 = vadd.f32 %v4660, %v5238
    %v5303 = vadd.f32 %v4661, %v5239
    %v5304 = vadd.f32 %v4662, %v5240
    %v5305 = vadd.f32 %v4663, %v5241
    %v5306 = vadd.f32 %v4664, %v5242
    %v5307 = vadd.f32 %v4665, %v5243
    %v5308 = vadd.f32 %v4666, %v5244
    %v5309 = vadd.f32 %v4667, %v5245
    %v5310 = vadd.f32 %v4668, %v5246
    %v5311 = vadd.f32 %v4669, %v5247
    %v5312 = vadd.f32 %v4670, %v5248
    %v5313 = vadd.f32 %v4671, %v5249
    %v5314 = vadd.f32 %v4672, %v5250
    %v5315 = vadd.f32 %v4673, %v5251
    %v5316 = vadd.f32 %v4674, %v5252
    %v5317 = vadd.f32 %v4675, %v5253
    %v5318 = vadd.f32 %v4676, %v5254
    %v5319 = vadd.f32 %v4677, %v5255
    %v5320 = vadd.f32 %v4678, %v5256
    %v5321 = vadd.f32 %v4679, %v5257
    %v5322 = vadd.f32 %v4680, %v5258
    %v5323 = vadd.f32 %v4681, %v5259
    %v5324 = vadd.f32 %v4682, %v5260
    %v5325 = vadd.f32 %v4683, %v5261
    %v5326 = vadd.f32 %v4684, %v5262
    %v5327 = vadd.f32 %v4685, %v5263
    %v5328 = vadd.f32 %v4686, %v5264
    %v5329 = vadd.f32 %v4687, %v5265
    %v5330 = vadd.f32 %v4688, %v5266
    %v5331 = vadd.f32 %v4689, %v5267
    %v5332 = vadd.f32 %v4690, %v5268
    %v5333 = vadd.f32 %v4691, %v5269
    %v5334 = vadd.f32 %v4692, %v5270
    %v5335 = vadd.f32 %v4693, %v5271
    %v5336 = vadd.f32 %v4694, %v5272
    %v5337 = vadd.f32 %v4695, %v5273
    %v5338 = vadd.f32 %v4696, %v5274
    %v5339 = vadd.f32 %v4697, %v5275
    %v5340 = vadd.f32 %v4698, %v5276
    %v5341 = vadd.f32 %v4699, %v5277
    %v5342 = vadd.f32 %v4700, %v5278
    %v5343 = vadd.f32 %v4701, %v5279
    %v5344 = vadd.f32 %v4702, %v5280
    %v5345 = vadd.f32 %v4703, %v5281
    %v5346 = vadd.f32 %v4704, %v5282
    %v5347 = vadd.f32 %v4705, %v5283
    %v5348 = vadd.f32 %v4706, %v5284
    %v5349 = vadd.f32 %v4707, %v5285
    %v5350 = vld [vmem:[%s3 + $0x18] sm:$0xf]
    %v5351 = vld [vmem:[%s3 + $0x34] sm:$0xf]
    %v5352 = vld [vmem:[%s3 + $0x50] sm:$0xf]
    %v5353 = vld [vmem:[%s3 + $0x6c] sm:$0xf]
    %v5354 = vld [vmem:[%s3 + $0x88] sm:$0xf]
    %v5355 = vld [vmem:[%s3 + $0xa4] sm:$0xf]
    %v5356 = vld [vmem:[%s3 + $0xc0] sm:$0xf]
    %v5357 = vld [vmem:[%s3 + $0xdc] sm:$0xf]
    %v5358 = vld [vmem:[%s3 + $0xf8] sm:$0xf]
    %v5359 = vld [vmem:[%s3 + $0x114] sm:$0xf]
    %v5360 = vld [vmem:[%s3 + $0x130] sm:$0xf]
    %v5361 = vld [vmem:[%s3 + $0x14c] sm:$0xf]
    %v5362 = vld [vmem:[%s3 + $0x168] sm:$0xf]
    %v5363 = vld [vmem:[%s3 + $0x184] sm:$0xf]
    %v5364 = vld [vmem:[%s3 + $0x1a0] sm:$0xf]
    %v5365 = vld [vmem:[%s3 + $0x1bc] sm:$0xf]
    %v5382 = vunpack.c.l.b16 %v5350
    %v5383 = vunpack.c.l.b16 %v5351
    %v5384 = vunpack.c.l.b16 %v5352
    %v5385 = vunpack.c.l.b16 %v5353
    %v5386 = vunpack.c.l.b16 %v5354
    %v5387 = vunpack.c.l.b16 %v5355
    %v5388 = vunpack.c.l.b16 %v5356
    %v5389 = vunpack.c.l.b16 %v5357
    %v5390 = vunpack.c.l.b16 %v5358
    %v5391 = vunpack.c.l.b16 %v5359
    %v5392 = vunpack.c.l.b16 %v5360
    %v5393 = vunpack.c.l.b16 %v5361
    %v5394 = vunpack.c.l.b16 %v5362
    %v5395 = vunpack.c.l.b16 %v5363
    %v5396 = vunpack.c.l.b16 %v5364
    %v5397 = vunpack.c.l.b16 %v5365
    %v5398 = vpack.c.b16 %v5383, %v5382
    %v5399 = vpack.c.b16 %v5385, %v5384
    %v5400 = vpack.c.b16 %v5387, %v5386
    %v5401 = vpack.c.b16 %v5389, %v5388
    %v5402 = vpack.c.b16 %v5391, %v5390
    %v5403 = vpack.c.b16 %v5393, %v5392
    %v5404 = vpack.c.b16 %v5395, %v5394
    %v5405 = vpack.c.b16 %v5397, %v5396
    %5414 = vmatprep.subr.bf16.mxu0 0
    %5415 = vmatpush1.bf16.msra.mxu0 %v5398
    %5416 = vmatprep.subr.bf16.mxu0 0
    %5417 = vmatpush1.bf16.msra.mxu0 %v5399
    %5418 = vmatprep.subr.bf16.mxu0 0
    %5419 = vmatpush1.bf16.msra.mxu0 %v5400
    %5420 = vmatprep.subr.bf16.mxu0 0
    %5421 = vmatpush1.bf16.msra.mxu0 %v5401
    %5422 = vmatprep.subr.bf16.mxu0 0
    %5423 = vmatpush1.bf16.msra.mxu0 %v5402
    %5424 = vmatprep.subr.bf16.mxu0 0
    %5425 = vmatpush1.bf16.msra.mxu0 %v5403
    %5426 = vmatprep.subr.bf16.mxu0 0
    %5427 = vmatpush1.bf16.msra.mxu0 %v5404
    %5428 = vmatprep.subr.bf16.mxu0 0
    %5429 = vmatpush1.bf16.msra.mxu0 %v5405
    %5430 = vmatprep.subr.bf16.mxu0 0
    %5431 = vmatpush1.bf16.msra.mxu0 0
    %5432 = vmatprep.subr.bf16.mxu0 0
    %5433 = vmatpush1.bf16.msra.mxu0 0
    %5434 = vmatprep.subr.bf16.mxu0 0
    %5435 = vmatpush1.bf16.msra.mxu0 0
    %5436 = vmatprep.subr.bf16.mxu0 0
    %5437 = vmatpush1.bf16.msra.mxu0 0
    %5438 = vmatprep.subr.bf16.mxu0 0
    %5439 = vmatpush1.bf16.msra.mxu0 0
    %5440 = vmatprep.subr.bf16.mxu0 0
    %5441 = vmatpush1.bf16.msra.mxu0 0
    %5442 = vmatprep.subr.bf16.mxu0 0
    %5443 = vmatpush1.bf16.msra.mxu0 0
    %5444 = vmatprep.subr.bf16.mxu0 0
    %5445 = vmatpush1.bf16.msra.mxu0 0
    %5446 = vmatprep.mubr.bf16.mxu0 0
    %5447 = vmatmul.mubr.bf16.gmra.mrb[0].mxu0 %v760
    %v5448 = vpop.f32.mrb[0].mxu0
    %v5449 = vadd.f32 0.0, %v5448
    %v5450 = vpop.f32.mrb[0].mxu0
    %v5451 = vpop.f32.mrb[0].mxu0
    %v5452 = vadd.f32 0.0, %v5451
    %v5453 = vpop.f32.mrb[0].mxu0
    %5454 = vmatprep.mubr.bf16.mxu0 0
    %5455 = vmatmul.mubr.bf16.gmra.mrb[0].mxu0 %v761
    %v5456 = vpop.f32.mrb[0].mxu0
    %v5457 = vadd.f32 0.0, %v5456
    %v5458 = vpop.f32.mrb[0].mxu0
    %v5459 = vpop.f32.mrb[0].mxu0
    %v5460 = vadd.f32 0.0, %v5459
    %v5461 = vpop.f32.mrb[0].mxu0
    %5462 = vmatprep.mubr.bf16.mxu0 0
    %5463 = vmatmul.mubr.bf16.gmra.mrb[0].mxu0 %v762
    %v5464 = vpop.f32.mrb[0].mxu0
    %v5465 = vadd.f32 0.0, %v5464
    %v5466 = vpop.f32.mrb[0].mxu0
    %v5467 = vpop.f32.mrb[0].mxu0
    %v5468 = vadd.f32 0.0, %v5467
    %v5469 = vpop.f32.mrb[0].mxu0
    %5470 = vmatprep.mubr.bf16.mxu0 0
    %5471 = vmatmul.mubr.bf16.gmra.mrb[0].mxu0 %v763
    %v5472 = vpop.f32.mrb[0].mxu0
    %v5473 = vadd.f32 0.0, %v5472
    %v5474 = vpop.f32.mrb[0].mxu0
    %v5475 = vpop.f32.mrb[0].mxu0
    %v5476 = vadd.f32 0.0, %v5475
    %v5477 = vpop.f32.mrb[0].mxu0
    %5478 = vmatprep.mubr.bf16.mxu0 0
    %5479 = vmatmul.mubr.bf16.gmra.mrb[0].mxu0 %v764
    %v5480 = vpop.f32.mrb[0].mxu0
    %v5481 = vadd.f32 0.0, %v5480
    %v5482 = vpop.f32.mrb[0].mxu0
    %v5483 = vpop.f32.mrb[0].mxu0
    %v5484 = vadd.f32 0.0, %v5483
    %v5485 = vpop.f32.mrb[0].mxu0
    %5486 = vmatprep.mubr.bf16.mxu0 0
    %5487 = vmatmul.mubr.bf16.gmra.mrb[0].mxu0 %v765
    %v5488 = vpop.f32.mrb[0].mxu0
    %v5489 = vadd.f32 0.0, %v5488
    %v5490 = vpop.f32.mrb[0].mxu0
    %v5491 = vpop.f32.mrb[0].mxu0
    %v5492 = vadd.f32 0.0, %v5491
    %v5493 = vpop.f32.mrb[0].mxu0
    %5494 = vmatprep.mubr.bf16.mxu0 0
    %5495 = vmatmul.mubr.bf16.gmra.mrb[0].mxu0 %v766
    %v5496 = vpop.f32.mrb[0].mxu0
    %v5497 = vadd.f32 0.0, %v5496
    %v5498 = vpop.f32.mrb[0].mxu0
    %v5499 = vpop.f32.mrb[0].mxu0
    %v5500 = vadd.f32 0.0, %v5499
    %v5501 = vpop.f32.mrb[0].mxu0
    %5502 = vmatprep.mubr.bf16.mxu0 0
    %5503 = vmatmul.mubr.bf16.gmra.mrb[0].mxu0 %v767
    %v5504 = vpop.f32.mrb[0].mxu0
    %v5505 = vadd.f32 0.0, %v5504
    %v5506 = vpop.f32.mrb[0].mxu0
    %v5507 = vpop.f32.mrb[0].mxu0
    %v5508 = vadd.f32 0.0, %v5507
    %v5509 = vpop.f32.mrb[0].mxu0
    %5510 = vmatprep.mubr.bf16.mxu0 0
    %5511 = vmatmul.mubr.bf16.gmra.mrb[0].mxu0 %v768
    %v5512 = vpop.f32.mrb[0].mxu0
    %v5513 = vadd.f32 0.0, %v5512
    %v5514 = vpop.f32.mrb[0].mxu0
    %v5515 = vpop.f32.mrb[0].mxu0
    %v5516 = vadd.f32 0.0, %v5515
    %v5517 = vpop.f32.mrb[0].mxu0
    %5518 = vmatprep.mubr.bf16.mxu0 0
    %5519 = vmatmul.mubr.bf16.gmra.mrb[0].mxu0 %v769
    %v5520 = vpop.f32.mrb[0].mxu0
    %v5521 = vadd.f32 0.0, %v5520
    %v5522 = vpop.f32.mrb[0].mxu0
    %v5523 = vpop.f32.mrb[0].mxu0
    %v5524 = vadd.f32 0.0, %v5523
    %v5525 = vpop.f32.mrb[0].mxu0
    %5526 = vmatprep.mubr.bf16.mxu0 0
    %5527 = vmatmul.mubr.bf16.gmra.mrb[0].mxu0 %v770
    %v5528 = vpop.f32.mrb[0].mxu0
    %v5529 = vadd.f32 0.0, %v5528
    %v5530 = vpop.f32.mrb[0].mxu0
    %v5531 = vpop.f32.mrb[0].mxu0
    %v5532 = vadd.f32 0.0, %v5531
    %v5533 = vpop.f32.mrb[0].mxu0
    %5534 = vmatprep.mubr.bf16.mxu0 0
    %5535 = vmatmul.mubr.bf16.gmra.mrb[0].mxu0 %v771
    %v5536 = vpop.f32.mrb[0].mxu0
    %v5537 = vadd.f32 0.0, %v5536
    %v5538 = vpop.f32.mrb[0].mxu0
    %v5539 = vpop.f32.mrb[0].mxu0
    %v5540 = vadd.f32 0.0, %v5539
    %v5541 = vpop.f32.mrb[0].mxu0
    %5542 = vmatprep.mubr.bf16.mxu0 0
    %5543 = vmatmul.mubr.bf16.gmra.mrb[0].mxu0 %v772
    %v5544 = vpop.f32.mrb[0].mxu0
    %v5545 = vadd.f32 0.0, %v5544
    %v5546 = vpop.f32.mrb[0].mxu0
    %v5547 = vpop.f32.mrb[0].mxu0
    %v5548 = vadd.f32 0.0, %v5547
    %v5549 = vpop.f32.mrb[0].mxu0
    %5550 = vmatprep.mubr.bf16.mxu0 0
    %5551 = vmatmul.mubr.bf16.gmra.mrb[0].mxu0 %v773
    %v5552 = vpop.f32.mrb[0].mxu0
    %v5553 = vadd.f32 0.0, %v5552
    %v5554 = vpop.f32.mrb[0].mxu0
    %v5555 = vpop.f32.mrb[0].mxu0
    %v5556 = vadd.f32 0.0, %v5555
    %v5557 = vpop.f32.mrb[0].mxu0
    %5558 = vmatprep.mubr.bf16.mxu0 0
    %5559 = vmatmul.mubr.bf16.gmra.mrb[0].mxu0 %v774
    %v5560 = vpop.f32.mrb[0].mxu0
    %v5561 = vadd.f32 0.0, %v5560
    %v5562 = vpop.f32.mrb[0].mxu0
    %v5563 = vpop.f32.mrb[0].mxu0
    %v5564 = vadd.f32 0.0, %v5563
    %v5565 = vpop.f32.mrb[0].mxu0
    %5566 = vmatprep.mubr.bf16.mxu0 0
    %5567 = vmatmul.mubr.bf16.gmra.mrb[0].mxu0 %v775
    %v5568 = vpop.f32.mrb[0].mxu0
    %v5569 = vadd.f32 0.0, %v5568
    %v5570 = vpop.f32.mrb[0].mxu0
    %v5571 = vpop.f32.mrb[0].mxu0
    %v5572 = vadd.f32 0.0, %v5571
    %v5573 = vpop.f32.mrb[0].mxu0
    %5574 = vmatprep.mubr.bf16.mxu0 0
    %5575 = vmatmul.mubr.bf16.gmra.mrb[0].mxu0 %v776
    %v5576 = vpop.f32.mrb[0].mxu0
    %v5577 = vadd.f32 0.0, %v5576
    %v5578 = vpop.f32.mrb[0].mxu0
    %v5579 = vpop.f32.mrb[0].mxu0
    %v5580 = vadd.f32 0.0, %v5579
    %v5581 = vpop.f32.mrb[0].mxu0
    %5582 = vmatprep.mubr.bf16.mxu0 0
    %5583 = vmatmul.mubr.bf16.gmra.mrb[0].mxu0 %v777
    %v5584 = vpop.f32.mrb[0].mxu0
    %v5585 = vadd.f32 0.0, %v5584
    %v5586 = vpop.f32.mrb[0].mxu0
    %v5587 = vpop.f32.mrb[0].mxu0
    %v5588 = vadd.f32 0.0, %v5587
    %v5589 = vpop.f32.mrb[0].mxu0
    %5590 = vmatprep.mubr.bf16.mxu0 0
    %5591 = vmatmul.mubr.bf16.gmra.mrb[0].mxu0 %v778
    %v5592 = vpop.f32.mrb[0].mxu0
    %v5593 = vadd.f32 0.0, %v5592
    %v5594 = vpop.f32.mrb[0].mxu0
    %v5595 = vpop.f32.mrb[0].mxu0
    %v5596 = vadd.f32 0.0, %v5595
    %v5597 = vpop.f32.mrb[0].mxu0
    %5598 = vmatprep.mubr.bf16.mxu0 0
    %5599 = vmatmul.mubr.bf16.gmra.mrb[0].mxu0 %v779
    %v5600 = vpop.f32.mrb[0].mxu0
    %v5601 = vadd.f32 0.0, %v5600
    %v5602 = vpop.f32.mrb[0].mxu0
    %v5603 = vpop.f32.mrb[0].mxu0
    %v5604 = vadd.f32 0.0, %v5603
    %v5605 = vpop.f32.mrb[0].mxu0
    %5606 = vmatprep.mubr.bf16.mxu0 0
    %5607 = vmatmul.mubr.bf16.gmra.mrb[0].mxu0 %v780
    %v5608 = vpop.f32.mrb[0].mxu0
    %v5609 = vadd.f32 0.0, %v5608
    %v5610 = vpop.f32.mrb[0].mxu0
    %v5611 = vpop.f32.mrb[0].mxu0
    %v5612 = vadd.f32 0.0, %v5611
    %v5613 = vpop.f32.mrb[0].mxu0
    %5614 = vmatprep.mubr.bf16.mxu0 0
    %5615 = vmatmul.mubr.bf16.gmra.mrb[0].mxu0 %v781
    %v5616 = vpop.f32.mrb[0].mxu0
    %v5617 = vadd.f32 0.0, %v5616
    %v5618 = vpop.f32.mrb[0].mxu0
    %v5619 = vpop.f32.mrb[0].mxu0
    %v5620 = vadd.f32 0.0, %v5619
    %v5621 = vpop.f32.mrb[0].mxu0
    %5622 = vmatprep.mubr.bf16.mxu0 0
    %5623 = vmatmul.mubr.bf16.gmra.mrb[0].mxu0 %v782
    %v5624 = vpop.f32.mrb[0].mxu0
    %v5625 = vadd.f32 0.0, %v5624
    %v5626 = vpop.f32.mrb[0].mxu0
    %v5627 = vpop.f32.mrb[0].mxu0
    %v5628 = vadd.f32 0.0, %v5627
    %v5629 = vpop.f32.mrb[0].mxu0
    %5630 = vmatprep.mubr.bf16.mxu0 0
    %5631 = vmatmul.mubr.bf16.gmra.mrb[0].mxu0 %v783
    %v5632 = vpop.f32.mrb[0].mxu0
    %v5633 = vadd.f32 0.0, %v5632
    %v5634 = vpop.f32.mrb[0].mxu0
    %v5635 = vpop.f32.mrb[0].mxu0
    %v5636 = vadd.f32 0.0, %v5635
    %v5637 = vpop.f32.mrb[0].mxu0
    %5638 = vmatprep.mubr.bf16.mxu0 0
    %5639 = vmatmul.mubr.bf16.gmra.mrb[0].mxu0 %v784
    %v5640 = vpop.f32.mrb[0].mxu0
    %v5641 = vadd.f32 0.0, %v5640
    %v5642 = vpop.f32.mrb[0].mxu0
    %v5643 = vpop.f32.mrb[0].mxu0
    %v5644 = vadd.f32 0.0, %v5643
    %v5645 = vpop.f32.mrb[0].mxu0
    %5646 = vmatprep.mubr.bf16.mxu0 0
    %5647 = vmatmul.mubr.bf16.gmra.mrb[0].mxu0 %v785
    %v5648 = vpop.f32.mrb[0].mxu0
    %v5649 = vadd.f32 0.0, %v5648
    %v5650 = vpop.f32.mrb[0].mxu0
    %v5651 = vpop.f32.mrb[0].mxu0
    %v5652 = vadd.f32 0.0, %v5651
    %v5653 = vpop.f32.mrb[0].mxu0
    %5654 = vmatprep.mubr.bf16.mxu0 0
    %5655 = vmatmul.mubr.bf16.gmra.mrb[0].mxu0 %v786
    %v5656 = vpop.f32.mrb[0].mxu0
    %v5657 = vadd.f32 0.0, %v5656
    %v5658 = vpop.f32.mrb[0].mxu0
    %v5659 = vpop.f32.mrb[0].mxu0
    %v5660 = vadd.f32 0.0, %v5659
    %v5661 = vpop.f32.mrb[0].mxu0
    %5662 = vmatprep.mubr.bf16.mxu0 0
    %5663 = vmatmul.mubr.bf16.gmra.mrb[0].mxu0 %v787
    %v5664 = vpop.f32.mrb[0].mxu0
    %v5665 = vadd.f32 0.0, %v5664
    %v5666 = vpop.f32.mrb[0].mxu0
    %v5667 = vpop.f32.mrb[0].mxu0
    %v5668 = vadd.f32 0.0, %v5667
    %v5669 = vpop.f32.mrb[0].mxu0
    %5670 = vmatprep.mubr.bf16.mxu0 0
    %5671 = vmatmul.mubr.bf16.gmra.mrb[0].mxu0 %v788
    %v5672 = vpop.f32.mrb[0].mxu0
    %v5673 = vadd.f32 0.0, %v5672
    %v5674 = vpop.f32.mrb[0].mxu0
    %v5675 = vpop.f32.mrb[0].mxu0
    %v5676 = vadd.f32 0.0, %v5675
    %v5677 = vpop.f32.mrb[0].mxu0
    %5678 = vmatprep.mubr.bf16.mxu0 0
    %5679 = vmatmul.mubr.bf16.gmra.mrb[0].mxu0 %v789
    %v5680 = vpop.f32.mrb[0].mxu0
    %v5681 = vadd.f32 0.0, %v5680
    %v5682 = vpop.f32.mrb[0].mxu0
    %v5683 = vpop.f32.mrb[0].mxu0
    %v5684 = vadd.f32 0.0, %v5683
    %v5685 = vpop.f32.mrb[0].mxu0
    %5686 = vmatprep.mubr.bf16.mxu0 0
    %5687 = vmatmul.mubr.bf16.gmra.mrb[0].mxu0 %v790
    %v5688 = vpop.f32.mrb[0].mxu0
    %v5689 = vadd.f32 0.0, %v5688
    %v5690 = vpop.f32.mrb[0].mxu0
    %v5691 = vpop.f32.mrb[0].mxu0
    %v5692 = vadd.f32 0.0, %v5691
    %v5693 = vpop.f32.mrb[0].mxu0
    %5694 = vmatprep.mubr.bf16.mxu0 0
    %5695 = vmatmul.mubr.bf16.gmra.mrb[0].mxu0 %v791
    %v5696 = vpop.f32.mrb[0].mxu0
    %v5697 = vadd.f32 0.0, %v5696
    %v5698 = vpop.f32.mrb[0].mxu0
    %v5699 = vpop.f32.mrb[0].mxu0
    %v5700 = vadd.f32 0.0, %v5699
    %v5701 = vpop.f32.mrb[0].mxu0
    %5702 = vdwg.mxu0
    %v5703 = vrot.slane %v5449, 3
    %v5704 = vrot.slane %v5452, 3
    %v5705 = vrot.slane %v5457, 3
    %v5706 = vrot.slane %v5460, 3
    %v5707 = vrot.slane %v5465, 3
    %v5708 = vrot.slane %v5468, 3
    %v5709 = vrot.slane %v5473, 3
    %v5710 = vrot.slane %v5476, 3
    %v5711 = vrot.slane %v5481, 3
    %v5712 = vrot.slane %v5484, 3
    %v5713 = vrot.slane %v5489, 3
    %v5714 = vrot.slane %v5492, 3
    %v5715 = vrot.slane %v5497, 3
    %v5716 = vrot.slane %v5500, 3
    %v5717 = vrot.slane %v5505, 3
    %v5718 = vrot.slane %v5508, 3
    %v5719 = vrot.slane %v5513, 3
    %v5720 = vrot.slane %v5516, 3
    %v5721 = vrot.slane %v5521, 3
    %v5722 = vrot.slane %v5524, 3
    %v5723 = vrot.slane %v5529, 3
    %v5724 = vrot.slane %v5532, 3
    %v5725 = vrot.slane %v5537, 3
    %v5726 = vrot.slane %v5540, 3
    %v5727 = vrot.slane %v5545, 3
    %v5728 = vrot.slane %v5548, 3
    %v5729 = vrot.slane %v5553, 3
    %v5730 = vrot.slane %v5556, 3
    %v5731 = vrot.slane %v5561, 3
    %v5732 = vrot.slane %v5564, 3
    %v5733 = vrot.slane %v5569, 3
    %v5734 = vrot.slane %v5572, 3
    %v5735 = vrot.slane %v5577, 3
    %v5736 = vrot.slane %v5580, 3
    %v5737 = vrot.slane %v5585, 3
    %v5738 = vrot.slane %v5588, 3
    %v5739 = vrot.slane %v5593, 3
    %v5740 = vrot.slane %v5596, 3
    %v5741 = vrot.slane %v5601, 3
    %v5742 = vrot.slane %v5604, 3
    %v5743 = vrot.slane %v5609, 3
    %v5744 = vrot.slane %v5612, 3
    %v5745 = vrot.slane %v5617, 3
    %v5746 = vrot.slane %v5620, 3
    %v5747 = vrot.slane %v5625, 3
    %v5748 = vrot.slane %v5628, 3
    %v5749 = vrot.slane %v5633, 3
    %v5750 = vrot.slane %v5636, 3
    %v5751 = vrot.slane %v5641, 3
    %v5752 = vrot.slane %v5644, 3
    %v5753 = vrot.slane %v5649, 3
    %v5754 = vrot.slane %v5652, 3
    %v5755 = vrot.slane %v5657, 3
    %v5756 = vrot.slane %v5660, 3
    %v5757 = vrot.slane %v5665, 3
    %v5758 = vrot.slane %v5668, 3
    %v5759 = vrot.slane %v5673, 3
    %v5760 = vrot.slane %v5676, 3
    %v5761 = vrot.slane %v5681, 3
    %v5762 = vrot.slane %v5684, 3
    %v5763 = vrot.slane %v5689, 3
    %v5764 = vrot.slane %v5692, 3
    %v5765 = vrot.slane %v5697, 3
    %v5766 = vrot.slane %v5700, 3
    %vm5767 = vcmp.lt.s32.totalorder %v1306, 5
    %v5768 = vsel %vm5767, %v5765, %v5766
    %v5769 = vsel %vm5767, %v5764, %v5765
    %v5770 = vsel %vm5767, %v5763, %v5764
    %v5771 = vsel %vm5767, %v5762, %v5763
    %v5772 = vsel %vm5767, %v5761, %v5762
    %v5773 = vsel %vm5767, %v5760, %v5761
    %v5774 = vsel %vm5767, %v5759, %v5760
    %v5775 = vsel %vm5767, %v5758, %v5759
    %v5776 = vsel %vm5767, %v5757, %v5758
    %v5777 = vsel %vm5767, %v5756, %v5757
    %v5778 = vsel %vm5767, %v5755, %v5756
    %v5779 = vsel %vm5767, %v5754, %v5755
    %v5780 = vsel %vm5767, %v5753, %v5754
    %v5781 = vsel %vm5767, %v5752, %v5753
    %v5782 = vsel %vm5767, %v5751, %v5752
    %v5783 = vsel %vm5767, %v5750, %v5751
    %v5784 = vsel %vm5767, %v5749, %v5750
    %v5785 = vsel %vm5767, %v5748, %v5749
    %v5786 = vsel %vm5767, %v5747, %v5748
    %v5787 = vsel %vm5767, %v5746, %v5747
    %v5788 = vsel %vm5767, %v5745, %v5746
    %v5789 = vsel %vm5767, %v5744, %v5745
    %v5790 = vsel %vm5767, %v5743, %v5744
    %v5791 = vsel %vm5767, %v5742, %v5743
    %v5792 = vsel %vm5767, %v5741, %v5742
    %v5793 = vsel %vm5767, %v5740, %v5741
    %v5794 = vsel %vm5767, %v5739, %v5740
    %v5795 = vsel %vm5767, %v5738, %v5739
    %v5796 = vsel %vm5767, %v5737, %v5738
    %v5797 = vsel %vm5767, %v5736, %v5737
    %v5798 = vsel %vm5767, %v5735, %v5736
    %v5799 = vsel %vm5767, %v5734, %v5735
    %v5800 = vsel %vm5767, %v5733, %v5734
    %v5801 = vsel %vm5767, %v5732, %v5733
    %v5802 = vsel %vm5767, %v5731, %v5732
    %v5803 = vsel %vm5767, %v5730, %v5731
    %v5804 = vsel %vm5767, %v5729, %v5730
    %v5805 = vsel %vm5767, %v5728, %v5729
    %v5806 = vsel %vm5767, %v5727, %v5728
    %v5807 = vsel %vm5767, %v5726, %v5727
    %v5808 = vsel %vm5767, %v5725, %v5726
    %v5809 = vsel %vm5767, %v5724, %v5725
    %v5810 = vsel %vm5767, %v5723, %v5724
    %v5811 = vsel %vm5767, %v5722, %v5723
    %v5812 = vsel %vm5767, %v5721, %v5722
    %v5813 = vsel %vm5767, %v5720, %v5721
    %v5814 = vsel %vm5767, %v5719, %v5720
    %v5815 = vsel %vm5767, %v5718, %v5719
    %v5816 = vsel %vm5767, %v5717, %v5718
    %v5817 = vsel %vm5767, %v5716, %v5717
    %v5818 = vsel %vm5767, %v5715, %v5716
    %v5819 = vsel %vm5767, %v5714, %v5715
    %v5820 = vsel %vm5767, %v5713, %v5714
    %v5821 = vsel %vm5767, %v5712, %v5713
    %v5822 = vsel %vm5767, %v5711, %v5712
    %v5823 = vsel %vm5767, %v5710, %v5711
    %v5824 = vsel %vm5767, %v5709, %v5710
    %v5825 = vsel %vm5767, %v5708, %v5709
    %v5826 = vsel %vm5767, %v5707, %v5708
    %v5827 = vsel %vm5767, %v5706, %v5707
    %v5828 = vsel %vm5767, %v5705, %v5706
    %v5829 = vsel %vm5767, %v5704, %v5705
    %v5830 = vsel %vm5767, %v5703, %v5704
    %v5831 = vsel %vm5767, %v5766, %v5703
    %s5832 = scalar_lea.vmem %s10, 3072
    %v5833 = vld [vmem:[%s5832] sm:$0xff]
    %v5834 = vld [vmem:[%s5832 + $0x8] sm:$0xff]
    %v5835 = vld [vmem:[%s5832 + $0x10] sm:$0xff]
    %v5836 = vld [vmem:[%s5832 + $0x18] sm:$0xff]
    %v5837 = vld [vmem:[%s5832 + $0x20] sm:$0xff]
    %v5838 = vld [vmem:[%s5832 + $0x28] sm:$0xff]
    %v5839 = vld [vmem:[%s5832 + $0x30] sm:$0xff]
    %v5840 = vld [vmem:[%s5832 + $0x38] sm:$0xff]
    %v5841 = vld [vmem:[%s5832 + $0x40] sm:$0xff]
    %v5842 = vld [vmem:[%s5832 + $0x48] sm:$0xff]
    %v5843 = vld [vmem:[%s5832 + $0x50] sm:$0xff]
    %v5844 = vld [vmem:[%s5832 + $0x58] sm:$0xff]
    %v5845 = vld [vmem:[%s5832 + $0x60] sm:$0xff]
    %v5846 = vld [vmem:[%s5832 + $0x68] sm:$0xff]
    %v5847 = vld [vmem:[%s5832 + $0x70] sm:$0xff]
    %v5848 = vld [vmem:[%s5832 + $0x78] sm:$0xff]
    %v5849 = vld [vmem:[%s5832 + $0x80] sm:$0xff]
    %v5850 = vld [vmem:[%s5832 + $0x88] sm:$0xff]
    %v5851 = vld [vmem:[%s5832 + $0x90] sm:$0xff]
    %v5852 = vld [vmem:[%s5832 + $0x98] sm:$0xff]
    %v5853 = vld [vmem:[%s5832 + $0xa0] sm:$0xff]
    %v5854 = vld [vmem:[%s5832 + $0xa8] sm:$0xff]
    %v5855 = vld [vmem:[%s5832 + $0xb0] sm:$0xff]
    %v5856 = vld [vmem:[%s5832 + $0xb8] sm:$0xff]
    %v5857 = vld [vmem:[%s5832 + $0xc0] sm:$0xff]
    %v5858 = vld [vmem:[%s5832 + $0xc8] sm:$0xff]
    %v5859 = vld [vmem:[%s5832 + $0xd0] sm:$0xff]
    %v5860 = vld [vmem:[%s5832 + $0xd8] sm:$0xff]
    %v5861 = vld [vmem:[%s5832 + $0xe0] sm:$0xff]
    %v5862 = vld [vmem:[%s5832 + $0xe8] sm:$0xff]
    %v5863 = vld [vmem:[%s5832 + $0xf0] sm:$0xff]
    %v5864 = vld [vmem:[%s5832 + $0xf8] sm:$0xff]
    %v5865 = vld [vmem:[%s5832 + $0x100] sm:$0xff]
    %v5866 = vld [vmem:[%s5832 + $0x108] sm:$0xff]
    %v5867 = vld [vmem:[%s5832 + $0x110] sm:$0xff]
    %v5868 = vld [vmem:[%s5832 + $0x118] sm:$0xff]
    %v5869 = vld [vmem:[%s5832 + $0x120] sm:$0xff]
    %v5870 = vld [vmem:[%s5832 + $0x128] sm:$0xff]
    %v5871 = vld [vmem:[%s5832 + $0x130] sm:$0xff]
    %v5872 = vld [vmem:[%s5832 + $0x138] sm:$0xff]
    %v5873 = vld [vmem:[%s5832 + $0x140] sm:$0xff]
    %v5874 = vld [vmem:[%s5832 + $0x148] sm:$0xff]
    %v5875 = vld [vmem:[%s5832 + $0x150] sm:$0xff]
    %v5876 = vld [vmem:[%s5832 + $0x158] sm:$0xff]
    %v5877 = vld [vmem:[%s5832 + $0x160] sm:$0xff]
    %v5878 = vld [vmem:[%s5832 + $0x168] sm:$0xff]
    %v5879 = vld [vmem:[%s5832 + $0x170] sm:$0xff]
    %v5880 = vld [vmem:[%s5832 + $0x178] sm:$0xff]
    %v5881 = vld [vmem:[%s5832 + $0x180] sm:$0xff]
    %v5882 = vld [vmem:[%s5832 + $0x188] sm:$0xff]
    %v5883 = vld [vmem:[%s5832 + $0x190] sm:$0xff]
    %v5884 = vld [vmem:[%s5832 + $0x198] sm:$0xff]
    %v5885 = vld [vmem:[%s5832 + $0x1a0] sm:$0xff]
    %v5886 = vld [vmem:[%s5832 + $0x1a8] sm:$0xff]
    %v5887 = vld [vmem:[%s5832 + $0x1b0] sm:$0xff]
    %v5888 = vld [vmem:[%s5832 + $0x1b8] sm:$0xff]
    %v5889 = vld [vmem:[%s5832 + $0x1c0] sm:$0xff]
    %v5890 = vld [vmem:[%s5832 + $0x1c8] sm:$0xff]
    %v5891 = vld [vmem:[%s5832 + $0x1d0] sm:$0xff]
    %v5892 = vld [vmem:[%s5832 + $0x1d8] sm:$0xff]
    %v5893 = vld [vmem:[%s5832 + $0x1e0] sm:$0xff]
    %v5894 = vld [vmem:[%s5832 + $0x1e8] sm:$0xff]
    %v5895 = vld [vmem:[%s5832 + $0x1f0] sm:$0xff]
    %v5896 = vld [vmem:[%s5832 + $0x1f8] sm:$0xff]
    %5898 = vset.pattern.permute.xlu0 0
    %5899 = vperm.xlu0 %5898, %v5833
    %v5900 = vpop.permute.xlu0 %5899
    %5903 = vset.pattern.permute.xlu0 0
    %5904 = vperm.xlu0 %5903, %v5834
    %v5905 = vpop.permute.xlu0 %5904
    %5908 = vset.pattern.permute.xlu0 0
    %5909 = vperm.xlu0 %5908, %v5835
    %v5910 = vpop.permute.xlu0 %5909
    %5913 = vset.pattern.permute.xlu0 0
    %5914 = vperm.xlu0 %5913, %v5836
    %v5915 = vpop.permute.xlu0 %5914
    %5918 = vset.pattern.permute.xlu0 0
    %5919 = vperm.xlu0 %5918, %v5837
    %v5920 = vpop.permute.xlu0 %5919
    %5923 = vset.pattern.permute.xlu0 0
    %5924 = vperm.xlu0 %5923, %v5838
    %v5925 = vpop.permute.xlu0 %5924
    %5928 = vset.pattern.permute.xlu0 0
    %5929 = vperm.xlu0 %5928, %v5839
    %v5930 = vpop.permute.xlu0 %5929
    %5933 = vset.pattern.permute.xlu0 0
    %5934 = vperm.xlu0 %5933, %v5840
    %v5935 = vpop.permute.xlu0 %5934
    %5938 = vset.pattern.permute.xlu0 0
    %5939 = vperm.xlu0 %5938, %v5841
    %v5940 = vpop.permute.xlu0 %5939
    %5943 = vset.pattern.permute.xlu0 0
    %5944 = vperm.xlu0 %5943, %v5842
    %v5945 = vpop.permute.xlu0 %5944
    %5948 = vset.pattern.permute.xlu0 0
    %5949 = vperm.xlu0 %5948, %v5843
    %v5950 = vpop.permute.xlu0 %5949
    %5953 = vset.pattern.permute.xlu0 0
    %5954 = vperm.xlu0 %5953, %v5844
    %v5955 = vpop.permute.xlu0 %5954
    %5958 = vset.pattern.permute.xlu0 0
    %5959 = vperm.xlu0 %5958, %v5845
    %v5960 = vpop.permute.xlu0 %5959
    %5963 = vset.pattern.permute.xlu0 0
    %5964 = vperm.xlu0 %5963, %v5846
    %v5965 = vpop.permute.xlu0 %5964
    %5968 = vset.pattern.permute.xlu0 0
    %5969 = vperm.xlu0 %5968, %v5847
    %v5970 = vpop.permute.xlu0 %5969
    %5973 = vset.pattern.permute.xlu0 0
    %5974 = vperm.xlu0 %5973, %v5848
    %v5975 = vpop.permute.xlu0 %5974
    %5978 = vset.pattern.permute.xlu0 0
    %5979 = vperm.xlu0 %5978, %v5849
    %v5980 = vpop.permute.xlu0 %5979
    %5983 = vset.pattern.permute.xlu0 0
    %5984 = vperm.xlu0 %5983, %v5850
    %v5985 = vpop.permute.xlu0 %5984
    %5988 = vset.pattern.permute.xlu0 0
    %5989 = vperm.xlu0 %5988, %v5851
    %v5990 = vpop.permute.xlu0 %5989
    %5993 = vset.pattern.permute.xlu0 0
    %5994 = vperm.xlu0 %5993, %v5852
    %v5995 = vpop.permute.xlu0 %5994
    %5998 = vset.pattern.permute.xlu0 0
    %5999 = vperm.xlu0 %5998, %v5853
    %v6000 = vpop.permute.xlu0 %5999
    %6003 = vset.pattern.permute.xlu0 0
    %6004 = vperm.xlu0 %6003, %v5854
    %v6005 = vpop.permute.xlu0 %6004
    %6008 = vset.pattern.permute.xlu0 0
    %6009 = vperm.xlu0 %6008, %v5855
    %v6010 = vpop.permute.xlu0 %6009
    %6013 = vset.pattern.permute.xlu0 0
    %6014 = vperm.xlu0 %6013, %v5856
    %v6015 = vpop.permute.xlu0 %6014
    %6018 = vset.pattern.permute.xlu0 0
    %6019 = vperm.xlu0 %6018, %v5857
    %v6020 = vpop.permute.xlu0 %6019
    %6023 = vset.pattern.permute.xlu0 0
    %6024 = vperm.xlu0 %6023, %v5858
    %v6025 = vpop.permute.xlu0 %6024
    %6028 = vset.pattern.permute.xlu0 0
    %6029 = vperm.xlu0 %6028, %v5859
    %v6030 = vpop.permute.xlu0 %6029
    %6033 = vset.pattern.permute.xlu0 0
    %6034 = vperm.xlu0 %6033, %v5860
    %v6035 = vpop.permute.xlu0 %6034
    %6038 = vset.pattern.permute.xlu0 0
    %6039 = vperm.xlu0 %6038, %v5861
    %v6040 = vpop.permute.xlu0 %6039
    %6043 = vset.pattern.permute.xlu0 0
    %6044 = vperm.xlu0 %6043, %v5862
    %v6045 = vpop.permute.xlu0 %6044
    %6048 = vset.pattern.permute.xlu0 0
    %6049 = vperm.xlu0 %6048, %v5863
    %v6050 = vpop.permute.xlu0 %6049
    %6053 = vset.pattern.permute.xlu0 0
    %6054 = vperm.xlu0 %6053, %v5864
    %v6055 = vpop.permute.xlu0 %6054
    %6058 = vset.pattern.permute.xlu0 0
    %6059 = vperm.xlu0 %6058, %v5865
    %v6060 = vpop.permute.xlu0 %6059
    %6063 = vset.pattern.permute.xlu0 0
    %6064 = vperm.xlu0 %6063, %v5866
    %v6065 = vpop.permute.xlu0 %6064
    %6068 = vset.pattern.permute.xlu0 0
    %6069 = vperm.xlu0 %6068, %v5867
    %v6070 = vpop.permute.xlu0 %6069
    %6073 = vset.pattern.permute.xlu0 0
    %6074 = vperm.xlu0 %6073, %v5868
    %v6075 = vpop.permute.xlu0 %6074
    %6078 = vset.pattern.permute.xlu0 0
    %6079 = vperm.xlu0 %6078, %v5869
    %v6080 = vpop.permute.xlu0 %6079
    %6083 = vset.pattern.permute.xlu0 0
    %6084 = vperm.xlu0 %6083, %v5870
    %v6085 = vpop.permute.xlu0 %6084
    %6088 = vset.pattern.permute.xlu0 0
    %6089 = vperm.xlu0 %6088, %v5871
    %v6090 = vpop.permute.xlu0 %6089
    %6093 = vset.pattern.permute.xlu0 0
    %6094 = vperm.xlu0 %6093, %v5872
    %v6095 = vpop.permute.xlu0 %6094
    %6098 = vset.pattern.permute.xlu0 0
    %6099 = vperm.xlu0 %6098, %v5873
    %v6100 = vpop.permute.xlu0 %6099
    %6103 = vset.pattern.permute.xlu0 0
    %6104 = vperm.xlu0 %6103, %v5874
    %v6105 = vpop.permute.xlu0 %6104
    %6108 = vset.pattern.permute.xlu0 0
    %6109 = vperm.xlu0 %6108, %v5875
    %v6110 = vpop.permute.xlu0 %6109
    %6113 = vset.pattern.permute.xlu0 0
    %6114 = vperm.xlu0 %6113, %v5876
    %v6115 = vpop.permute.xlu0 %6114
    %6118 = vset.pattern.permute.xlu0 0
    %6119 = vperm.xlu0 %6118, %v5877
    %v6120 = vpop.permute.xlu0 %6119
    %6123 = vset.pattern.permute.xlu0 0
    %6124 = vperm.xlu0 %6123, %v5878
    %v6125 = vpop.permute.xlu0 %6124
    %6128 = vset.pattern.permute.xlu0 0
    %6129 = vperm.xlu0 %6128, %v5879
    %v6130 = vpop.permute.xlu0 %6129
    %6133 = vset.pattern.permute.xlu0 0
    %6134 = vperm.xlu0 %6133, %v5880
    %v6135 = vpop.permute.xlu0 %6134
    %6138 = vset.pattern.permute.xlu0 0
    %6139 = vperm.xlu0 %6138, %v5881
    %v6140 = vpop.permute.xlu0 %6139
    %6143 = vset.pattern.permute.xlu0 0
    %6144 = vperm.xlu0 %6143, %v5882
    %v6145 = vpop.permute.xlu0 %6144
    %6148 = vset.pattern.permute.xlu0 0
    %6149 = vperm.xlu0 %6148, %v5883
    %v6150 = vpop.permute.xlu0 %6149
    %6153 = vset.pattern.permute.xlu0 0
    %6154 = vperm.xlu0 %6153, %v5884
    %v6155 = vpop.permute.xlu0 %6154
    %6158 = vset.pattern.permute.xlu0 0
    %6159 = vperm.xlu0 %6158, %v5885
    %v6160 = vpop.permute.xlu0 %6159
    %6163 = vset.pattern.permute.xlu0 0
    %6164 = vperm.xlu0 %6163, %v5886
    %v6165 = vpop.permute.xlu0 %6164
    %6168 = vset.pattern.permute.xlu0 0
    %6169 = vperm.xlu0 %6168, %v5887
    %v6170 = vpop.permute.xlu0 %6169
    %6173 = vset.pattern.permute.xlu0 0
    %6174 = vperm.xlu0 %6173, %v5888
    %v6175 = vpop.permute.xlu0 %6174
    %6178 = vset.pattern.permute.xlu0 0
    %6179 = vperm.xlu0 %6178, %v5889
    %v6180 = vpop.permute.xlu0 %6179
    %6183 = vset.pattern.permute.xlu0 0
    %6184 = vperm.xlu0 %6183, %v5890
    %v6185 = vpop.permute.xlu0 %6184
    %6188 = vset.pattern.permute.xlu0 0
    %6189 = vperm.xlu0 %6188, %v5891
    %v6190 = vpop.permute.xlu0 %6189
    %6193 = vset.pattern.permute.xlu0 0
    %6194 = vperm.xlu0 %6193, %v5892
    %v6195 = vpop.permute.xlu0 %6194
    %6198 = vset.pattern.permute.xlu0 0
    %6199 = vperm.xlu0 %6198, %v5893
    %v6200 = vpop.permute.xlu0 %6199
    %6203 = vset.pattern.permute.xlu0 0
    %6204 = vperm.xlu0 %6203, %v5894
    %v6205 = vpop.permute.xlu0 %6204
    %6208 = vset.pattern.permute.xlu0 0
    %6209 = vperm.xlu0 %6208, %v5895
    %v6210 = vpop.permute.xlu0 %6209
    %6213 = vset.pattern.permute.xlu0 0
    %6214 = vperm.xlu0 %6213, %v5896
    %v6215 = vpop.permute.xlu0 %6214
    %v6217 = vmul.f32 %v5830, %v5900
    %v6218 = vmul.f32 %v5829, %v5905
    %v6219 = vmul.f32 %v5828, %v5910
    %v6220 = vmul.f32 %v5827, %v5915
    %v6221 = vmul.f32 %v5826, %v5920
    %v6222 = vmul.f32 %v5825, %v5925
    %v6223 = vmul.f32 %v5824, %v5930
    %v6224 = vmul.f32 %v5823, %v5935
    %v6225 = vmul.f32 %v5822, %v5940
    %v6226 = vmul.f32 %v5821, %v5945
    %v6227 = vmul.f32 %v5820, %v5950
    %v6228 = vmul.f32 %v5819, %v5955
    %v6229 = vmul.f32 %v5818, %v5960
    %v6230 = vmul.f32 %v5817, %v5965
    %v6231 = vmul.f32 %v5816, %v5970
    %v6232 = vmul.f32 %v5815, %v5975
    %v6233 = vmul.f32 %v5814, %v5980
    %v6234 = vmul.f32 %v5813, %v5985
    %v6235 = vmul.f32 %v5812, %v5990
    %v6236 = vmul.f32 %v5811, %v5995
    %v6237 = vmul.f32 %v5810, %v6000
    %v6238 = vmul.f32 %v5809, %v6005
    %v6239 = vmul.f32 %v5808, %v6010
    %v6240 = vmul.f32 %v5807, %v6015
    %v6241 = vmul.f32 %v5806, %v6020
    %v6242 = vmul.f32 %v5805, %v6025
    %v6243 = vmul.f32 %v5804, %v6030
    %v6244 = vmul.f32 %v5803, %v6035
    %v6245 = vmul.f32 %v5802, %v6040
    %v6246 = vmul.f32 %v5801, %v6045
    %v6247 = vmul.f32 %v5800, %v6050
    %v6248 = vmul.f32 %v5799, %v6055
    %v6249 = vmul.f32 %v5798, %v6060
    %v6250 = vmul.f32 %v5797, %v6065
    %v6251 = vmul.f32 %v5796, %v6070
    %v6252 = vmul.f32 %v5795, %v6075
    %v6253 = vmul.f32 %v5794, %v6080
    %v6254 = vmul.f32 %v5793, %v6085
    %v6255 = vmul.f32 %v5792, %v6090
    %v6256 = vmul.f32 %v5791, %v6095
    %v6257 = vmul.f32 %v5790, %v6100
    %v6258 = vmul.f32 %v5789, %v6105
    %v6259 = vmul.f32 %v5788, %v6110
    %v6260 = vmul.f32 %v5787, %v6115
    %v6261 = vmul.f32 %v5786, %v6120
    %v6262 = vmul.f32 %v5785, %v6125
    %v6263 = vmul.f32 %v5784, %v6130
    %v6264 = vmul.f32 %v5783, %v6135
    %v6265 = vmul.f32 %v5782, %v6140
    %v6266 = vmul.f32 %v5781, %v6145
    %v6267 = vmul.f32 %v5780, %v6150
    %v6268 = vmul.f32 %v5779, %v6155
    %v6269 = vmul.f32 %v5778, %v6160
    %v6270 = vmul.f32 %v5777, %v6165
    %v6271 = vmul.f32 %v5776, %v6170
    %v6272 = vmul.f32 %v5775, %v6175
    %v6273 = vmul.f32 %v5774, %v6180
    %v6274 = vmul.f32 %v5773, %v6185
    %v6275 = vmul.f32 %v5772, %v6190
    %v6276 = vmul.f32 %v5771, %v6195
    %v6277 = vmul.f32 %v5770, %v6200
    %v6278 = vmul.f32 %v5769, %v6205
    %v6279 = vmul.f32 %v5768, %v6210
    %v6280 = vmul.f32 %v5831, %v6215
    %v6281 = vadd.f32 %v5286, %v6217
    %v6282 = vadd.f32 %v5287, %v6218
    %v6283 = vadd.f32 %v5288, %v6219
    %v6284 = vadd.f32 %v5289, %v6220
    %v6285 = vadd.f32 %v5290, %v6221
    %v6286 = vadd.f32 %v5291, %v6222
    %v6287 = vadd.f32 %v5292, %v6223
    %v6288 = vadd.f32 %v5293, %v6224
    %v6289 = vadd.f32 %v5294, %v6225
    %v6290 = vadd.f32 %v5295, %v6226
    %v6291 = vadd.f32 %v5296, %v6227
    %v6292 = vadd.f32 %v5297, %v6228
    %v6293 = vadd.f32 %v5298, %v6229
    %v6294 = vadd.f32 %v5299, %v6230
    %v6295 = vadd.f32 %v5300, %v6231
    %v6296 = vadd.f32 %v5301, %v6232
    %v6297 = vadd.f32 %v5302, %v6233
    %v6298 = vadd.f32 %v5303, %v6234
    %v6299 = vadd.f32 %v5304, %v6235
    %v6300 = vadd.f32 %v5305, %v6236
    %v6301 = vadd.f32 %v5306, %v6237
    %v6302 = vadd.f32 %v5307, %v6238
    %v6303 = vadd.f32 %v5308, %v6239
    %v6304 = vadd.f32 %v5309, %v6240
    %v6305 = vadd.f32 %v5310, %v6241
    %v6306 = vadd.f32 %v5311, %v6242
    %v6307 = vadd.f32 %v5312, %v6243
    %v6308 = vadd.f32 %v5313, %v6244
    %v6309 = vadd.f32 %v5314, %v6245
    %v6310 = vadd.f32 %v5315, %v6246
    %v6311 = vadd.f32 %v5316, %v6247
    %v6312 = vadd.f32 %v5317, %v6248
    %v6313 = vadd.f32 %v5318, %v6249
    %v6314 = vadd.f32 %v5319, %v6250
    %v6315 = vadd.f32 %v5320, %v6251
    %v6316 = vadd.f32 %v5321, %v6252
    %v6317 = vadd.f32 %v5322, %v6253
    %v6318 = vadd.f32 %v5323, %v6254
    %v6319 = vadd.f32 %v5324, %v6255
    %v6320 = vadd.f32 %v5325, %v6256
    %v6321 = vadd.f32 %v5326, %v6257
    %v6322 = vadd.f32 %v5327, %v6258
    %v6323 = vadd.f32 %v5328, %v6259
    %v6324 = vadd.f32 %v5329, %v6260
    %v6325 = vadd.f32 %v5330, %v6261
    %v6326 = vadd.f32 %v5331, %v6262
    %v6327 = vadd.f32 %v5332, %v6263
    %v6328 = vadd.f32 %v5333, %v6264
    %v6329 = vadd.f32 %v5334, %v6265
    %v6330 = vadd.f32 %v5335, %v6266
    %v6331 = vadd.f32 %v5336, %v6267
    %v6332 = vadd.f32 %v5337, %v6268
    %v6333 = vadd.f32 %v5338, %v6269
    %v6334 = vadd.f32 %v5339, %v6270
    %v6335 = vadd.f32 %v5340, %v6271
    %v6336 = vadd.f32 %v5341, %v6272
    %v6337 = vadd.f32 %v5342, %v6273
    %v6338 = vadd.f32 %v5343, %v6274
    %v6339 = vadd.f32 %v5344, %v6275
    %v6340 = vadd.f32 %v5345, %v6276
    %v6341 = vadd.f32 %v5346, %v6277
    %v6342 = vadd.f32 %v5347, %v6278
    %v6343 = vadd.f32 %v5348, %v6279
    %v6344 = vadd.f32 %v5349, %v6280
    %v6345 = vld [vmem:[%s4] sm:$0x1]
    %v6347 = vlaneseq
    %v6348 = vshrl.u32 %v6347, 7
    %v6349 = vsub.s32 0, %v6348
    %v6350 = vrot.slane %v6345, %v6349
    %v6352 = vadd.f32 %v6281, %v6350
    %v6353 = vadd.f32 %v6282, %v6350
    %v6354 = vadd.f32 %v6283, %v6350
    %v6355 = vadd.f32 %v6284, %v6350
    %v6356 = vadd.f32 %v6285, %v6350
    %v6357 = vadd.f32 %v6286, %v6350
    %v6358 = vadd.f32 %v6287, %v6350
    %v6359 = vadd.f32 %v6288, %v6350
    %v6360 = vadd.f32 %v6289, %v6350
    %v6361 = vadd.f32 %v6290, %v6350
    %v6362 = vadd.f32 %v6291, %v6350
    %v6363 = vadd.f32 %v6292, %v6350
    %v6364 = vadd.f32 %v6293, %v6350
    %v6365 = vadd.f32 %v6294, %v6350
    %v6366 = vadd.f32 %v6295, %v6350
    %v6367 = vadd.f32 %v6296, %v6350
    %v6368 = vadd.f32 %v6297, %v6350
    %v6369 = vadd.f32 %v6298, %v6350
    %v6370 = vadd.f32 %v6299, %v6350
    %v6371 = vadd.f32 %v6300, %v6350
    %v6372 = vadd.f32 %v6301, %v6350
    %v6373 = vadd.f32 %v6302, %v6350
    %v6374 = vadd.f32 %v6303, %v6350
    %v6375 = vadd.f32 %v6304, %v6350
    %v6376 = vadd.f32 %v6305, %v6350
    %v6377 = vadd.f32 %v6306, %v6350
    %v6378 = vadd.f32 %v6307, %v6350
    %v6379 = vadd.f32 %v6308, %v6350
    %v6380 = vadd.f32 %v6309, %v6350
    %v6381 = vadd.f32 %v6310, %v6350
    %v6382 = vadd.f32 %v6311, %v6350
    %v6383 = vadd.f32 %v6312, %v6350
    %v6384 = vadd.f32 %v6313, %v6350
    %v6385 = vadd.f32 %v6314, %v6350
    %v6386 = vadd.f32 %v6315, %v6350
    %v6387 = vadd.f32 %v6316, %v6350
    %v6388 = vadd.f32 %v6317, %v6350
    %v6389 = vadd.f32 %v6318, %v6350
    %v6390 = vadd.f32 %v6319, %v6350
    %v6391 = vadd.f32 %v6320, %v6350
    %v6392 = vadd.f32 %v6321, %v6350
    %v6393 = vadd.f32 %v6322, %v6350
    %v6394 = vadd.f32 %v6323, %v6350
    %v6395 = vadd.f32 %v6324, %v6350
    %v6396 = vadd.f32 %v6325, %v6350
    %v6397 = vadd.f32 %v6326, %v6350
    %v6398 = vadd.f32 %v6327, %v6350
    %v6399 = vadd.f32 %v6328, %v6350
    %v6400 = vadd.f32 %v6329, %v6350
    %v6401 = vadd.f32 %v6330, %v6350
    %v6402 = vadd.f32 %v6331, %v6350
    %v6403 = vadd.f32 %v6332, %v6350
    %v6404 = vadd.f32 %v6333, %v6350
    %v6405 = vadd.f32 %v6334, %v6350
    %v6406 = vadd.f32 %v6335, %v6350
    %v6407 = vadd.f32 %v6336, %v6350
    %v6408 = vadd.f32 %v6337, %v6350
    %v6409 = vadd.f32 %v6338, %v6350
    %v6410 = vadd.f32 %v6339, %v6350
    %v6411 = vadd.f32 %v6340, %v6350
    %v6412 = vadd.f32 %v6341, %v6350
    %v6413 = vadd.f32 %v6342, %v6350
    %v6414 = vadd.f32 %v6343, %v6350
    %v6415 = vadd.f32 %v6344, %v6350
    %v6416 = vmax.f32 %v6352, 0.0
    %v6417 = vmax.f32 %v6353, 0.0
    %v6418 = vmax.f32 %v6354, 0.0
    %v6419 = vmax.f32 %v6355, 0.0
    %v6420 = vmax.f32 %v6356, 0.0
    %v6421 = vmax.f32 %v6357, 0.0
    %v6422 = vmax.f32 %v6358, 0.0
    %v6423 = vmax.f32 %v6359, 0.0
    %v6424 = vmax.f32 %v6360, 0.0
    %v6425 = vmax.f32 %v6361, 0.0
    %v6426 = vmax.f32 %v6362, 0.0
    %v6427 = vmax.f32 %v6363, 0.0
    %v6428 = vmax.f32 %v6364, 0.0
    %v6429 = vmax.f32 %v6365, 0.0
    %v6430 = vmax.f32 %v6366, 0.0
    %v6431 = vmax.f32 %v6367, 0.0
    %v6432 = vmax.f32 %v6368, 0.0
    %v6433 = vmax.f32 %v6369, 0.0
    %v6434 = vmax.f32 %v6370, 0.0
    %v6435 = vmax.f32 %v6371, 0.0
    %v6436 = vmax.f32 %v6372, 0.0
    %v6437 = vmax.f32 %v6373, 0.0
    %v6438 = vmax.f32 %v6374, 0.0
    %v6439 = vmax.f32 %v6375, 0.0
    %v6440 = vmax.f32 %v6376, 0.0
    %v6441 = vmax.f32 %v6377, 0.0
    %v6442 = vmax.f32 %v6378, 0.0
    %v6443 = vmax.f32 %v6379, 0.0
    %v6444 = vmax.f32 %v6380, 0.0
    %v6445 = vmax.f32 %v6381, 0.0
    %v6446 = vmax.f32 %v6382, 0.0
    %v6447 = vmax.f32 %v6383, 0.0
    %v6448 = vmax.f32 %v6384, 0.0
    %v6449 = vmax.f32 %v6385, 0.0
    %v6450 = vmax.f32 %v6386, 0.0
    %v6451 = vmax.f32 %v6387, 0.0
    %v6452 = vmax.f32 %v6388, 0.0
    %v6453 = vmax.f32 %v6389, 0.0
    %v6454 = vmax.f32 %v6390, 0.0
    %v6455 = vmax.f32 %v6391, 0.0
    %v6456 = vmax.f32 %v6392, 0.0
    %v6457 = vmax.f32 %v6393, 0.0
    %v6458 = vmax.f32 %v6394, 0.0
    %v6459 = vmax.f32 %v6395, 0.0
    %v6460 = vmax.f32 %v6396, 0.0
    %v6461 = vmax.f32 %v6397, 0.0
    %v6462 = vmax.f32 %v6398, 0.0
    %v6463 = vmax.f32 %v6399, 0.0
    %v6464 = vmax.f32 %v6400, 0.0
    %v6465 = vmax.f32 %v6401, 0.0
    %v6466 = vmax.f32 %v6402, 0.0
    %v6467 = vmax.f32 %v6403, 0.0
    %v6468 = vmax.f32 %v6404, 0.0
    %v6469 = vmax.f32 %v6405, 0.0
    %v6470 = vmax.f32 %v6406, 0.0
    %v6471 = vmax.f32 %v6407, 0.0
    %v6472 = vmax.f32 %v6408, 0.0
    %v6473 = vmax.f32 %v6409, 0.0
    %v6474 = vmax.f32 %v6410, 0.0
    %v6475 = vmax.f32 %v6411, 0.0
    %v6476 = vmax.f32 %v6412, 0.0
    %v6477 = vmax.f32 %v6413, 0.0
    %v6478 = vmax.f32 %v6414, 0.0
    %v6479 = vmax.f32 %v6415, 0.0
    %v6480 = vpack.c.bf16 %v6417, %v6416
    %v6481 = vpack.c.bf16 %v6419, %v6418
    %v6482 = vpack.c.bf16 %v6421, %v6420
    %v6483 = vpack.c.bf16 %v6423, %v6422
    %v6484 = vpack.c.bf16 %v6425, %v6424
    %v6485 = vpack.c.bf16 %v6427, %v6426
    %v6486 = vpack.c.bf16 %v6429, %v6428
    %v6487 = vpack.c.bf16 %v6431, %v6430
    %v6488 = vpack.c.bf16 %v6433, %v6432
    %v6489 = vpack.c.bf16 %v6435, %v6434
    %v6490 = vpack.c.bf16 %v6437, %v6436
    %v6491 = vpack.c.bf16 %v6439, %v6438
    %v6492 = vpack.c.bf16 %v6441, %v6440
    %v6493 = vpack.c.bf16 %v6443, %v6442
    %v6494 = vpack.c.bf16 %v6445, %v6444
    %v6495 = vpack.c.bf16 %v6447, %v6446
    %v6496 = vpack.c.bf16 %v6449, %v6448
    %v6497 = vpack.c.bf16 %v6451, %v6450
    %v6498 = vpack.c.bf16 %v6453, %v6452
    %v6499 = vpack.c.bf16 %v6455, %v6454
    %v6500 = vpack.c.bf16 %v6457, %v6456
    %v6501 = vpack.c.bf16 %v6459, %v6458
    %v6502 = vpack.c.bf16 %v6461, %v6460
    %v6503 = vpack.c.bf16 %v6463, %v6462
    %v6504 = vpack.c.bf16 %v6465, %v6464
    %v6505 = vpack.c.bf16 %v6467, %v6466
    %v6506 = vpack.c.bf16 %v6469, %v6468
    %v6507 = vpack.c.bf16 %v6471, %v6470
    %v6508 = vpack.c.bf16 %v6473, %v6472
    %v6509 = vpack.c.bf16 %v6475, %v6474
    %v6510 = vpack.c.bf16 %v6477, %v6476
    %v6511 = vpack.c.bf16 %v6479, %v6478
    %v6512 = vld [vmem:[%s5] sm:$0xff]
    %v6513 = vld [vmem:[%s5 + $0x1c] sm:$0xff]
    %v6514 = vld [vmem:[%s5 + $0x38] sm:$0xff]
    %v6515 = vld [vmem:[%s5 + $0x54] sm:$0xff]
    %v6516 = vld [vmem:[%s5 + $0x70] sm:$0xff]
    %v6517 = vld [vmem:[%s5 + $0x8c] sm:$0xff]
    %v6518 = vld [vmem:[%s5 + $0xa8] sm:$0xff]
    %v6519 = vld [vmem:[%s5 + $0xc4] sm:$0xff]
    %v6520 = vld [vmem:[%s5 + $0xe0] sm:$0xff]
    %v6521 = vld [vmem:[%s5 + $0xfc] sm:$0xff]
    %v6522 = vld [vmem:[%s5 + $0x118] sm:$0xff]
    %v6523 = vld [vmem:[%s5 + $0x134] sm:$0xff]
    %v6524 = vld [vmem:[%s5 + $0x150] sm:$0xff]
    %v6525 = vld [vmem:[%s5 + $0x16c] sm:$0xff]
    %v6526 = vld [vmem:[%s5 + $0x188] sm:$0xff]
    %v6527 = vld [vmem:[%s5 + $0x1a4] sm:$0xff]
    %v6544 = vunpack.c.l.b16 %v6512
    %v6545 = vunpack.c.h.b16 %v6512
    %v6546 = vunpack.c.l.b16 %v6513
    %v6547 = vunpack.c.h.b16 %v6513
    %v6548 = vunpack.c.l.b16 %v6514
    %v6549 = vunpack.c.h.b16 %v6514
    %v6550 = vunpack.c.l.b16 %v6515
    %v6551 = vunpack.c.h.b16 %v6515
    %v6552 = vunpack.c.l.b16 %v6516
    %v6553 = vunpack.c.h.b16 %v6516
    %v6554 = vunpack.c.l.b16 %v6517
    %v6555 = vunpack.c.h.b16 %v6517
    %v6556 = vunpack.c.l.b16 %v6518
    %v6557 = vunpack.c.h.b16 %v6518
    %v6558 = vunpack.c.l.b16 %v6519
    %v6559 = vunpack.c.h.b16 %v6519
    %v6560 = vunpack.c.l.b16 %v6520
    %v6561 = vunpack.c.h.b16 %v6520
    %v6562 = vunpack.c.l.b16 %v6521
    %v6563 = vunpack.c.h.b16 %v6521
    %v6564 = vunpack.c.l.b16 %v6522
    %v6565 = vunpack.c.h.b16 %v6522
    %v6566 = vunpack.c.l.b16 %v6523
    %v6567 = vunpack.c.h.b16 %v6523
    %v6568 = vunpack.c.l.b16 %v6524
    %v6569 = vunpack.c.h.b16 %v6524
    %v6570 = vunpack.c.l.b16 %v6525
    %v6571 = vunpack.c.h.b16 %v6525
    %v6572 = vunpack.c.l.b16 %v6526
    %v6573 = vunpack.c.h.b16 %v6526
    %v6574 = vunpack.c.l.b16 %v6527
    %v6575 = vunpack.c.h.b16 %v6527
    %v6576 = vpack.c.b16 %v6546, %v6544
    %v6577 = vpack.c.b16 %v6547, %v6545
    %v6578 = vpack.c.b16 %v6550, %v6548
    %v6579 = vpack.c.b16 %v6551, %v6549
    %v6580 = vpack.c.b16 %v6554, %v6552
    %v6581 = vpack.c.b16 %v6555, %v6553
    %v6582 = vpack.c.b16 %v6558, %v6556
    %v6583 = vpack.c.b16 %v6559, %v6557
    %v6584 = vpack.c.b16 %v6562, %v6560
    %v6585 = vpack.c.b16 %v6563, %v6561
    %v6586 = vpack.c.b16 %v6566, %v6564
    %v6587 = vpack.c.b16 %v6567, %v6565
    %v6588 = vpack.c.b16 %v6570, %v6568
    %v6589 = vpack.c.b16 %v6571, %v6569
    %v6590 = vpack.c.b16 %v6574, %v6572
    %v6591 = vpack.c.b16 %v6575, %v6573
    %6608 = vmatprep.subr.bf16.mxu0 %v6577
    %6609 = vmatpush1.bf16.msra.mxu0 %v6576
    %6610 = vmatprep.subr.bf16.mxu0 %v6579
    %6611 = vmatpush1.bf16.msra.mxu0 %v6578
    %6612 = vmatprep.subr.bf16.mxu0 %v6581
    %6613 = vmatpush1.bf16.msra.mxu0 %v6580
    %6614 = vmatprep.subr.bf16.mxu0 %v6583
    %6615 = vmatpush1.bf16.msra.mxu0 %v6582
    %6616 = vmatprep.subr.bf16.mxu0 %v6585
    %6617 = vmatpush1.bf16.msra.mxu0 %v6584
    %6618 = vmatprep.subr.bf16.mxu0 %v6587
    %6619 = vmatpush1.bf16.msra.mxu0 %v6586
    %6620 = vmatprep.subr.bf16.mxu0 %v6589
    %6621 = vmatpush1.bf16.msra.mxu0 %v6588
    %6622 = vmatprep.subr.bf16.mxu0 %v6591
    %6623 = vmatpush1.bf16.msra.mxu0 %v6590
    %6624 = vmatprep.subr.bf16.mxu0 0
    %6625 = vmatpush1.bf16.msra.mxu0 0
    %6626 = vmatprep.subr.bf16.mxu0 0
    %6627 = vmatpush1.bf16.msra.mxu0 0
    %6628 = vmatprep.subr.bf16.mxu0 0
    %6629 = vmatpush1.bf16.msra.mxu0 0
    %6630 = vmatprep.subr.bf16.mxu0 0
    %6631 = vmatpush1.bf16.msra.mxu0 0
    %6632 = vmatprep.subr.bf16.mxu0 0
    %6633 = vmatpush1.bf16.msra.mxu0 0
    %6634 = vmatprep.subr.bf16.mxu0 0
    %6635 = vmatpush1.bf16.msra.mxu0 0
    %6636 = vmatprep.subr.bf16.mxu0 0
    %6637 = vmatpush1.bf16.msra.mxu0 0
    %6638 = vmatprep.subr.bf16.mxu0 0
    %6639 = vmatpush1.bf16.msra.mxu0 0
    %6640 = vmatprep.mubr.bf16.mxu0 0
    %6641 = vmatmul.mubr.bf16.gmra.mrb[0].mxu0 %v6480
    %v6642 = vpop.f32.mrb[0].mxu0
    %v6643 = vadd.f32 0.0, %v6642
    %v6644 = vpop.f32.mrb[0].mxu0
    %v6645 = vadd.f32 0.0, %v6644
    %v6646 = vpop.f32.mrb[0].mxu0
    %v6647 = vadd.f32 0.0, %v6646
    %v6648 = vpop.f32.mrb[0].mxu0
    %v6649 = vadd.f32 0.0, %v6648
    %6650 = vmatprep.mubr.bf16.mxu0 0
    %6651 = vmatmul.mubr.bf16.gmra.mrb[0].mxu0 %v6481
    %v6652 = vpop.f32.mrb[0].mxu0
    %v6653 = vadd.f32 0.0, %v6652
    %v6654 = vpop.f32.mrb[0].mxu0
    %v6655 = vadd.f32 0.0, %v6654
    %v6656 = vpop.f32.mrb[0].mxu0
    %v6657 = vadd.f32 0.0, %v6656
    %v6658 = vpop.f32.mrb[0].mxu0
    %v6659 = vadd.f32 0.0, %v6658
    %6660 = vmatprep.mubr.bf16.mxu0 0
    %6661 = vmatmul.mubr.bf16.gmra.mrb[0].mxu0 %v6482
    %v6662 = vpop.f32.mrb[0].mxu0
    %v6663 = vadd.f32 0.0, %v6662
    %v6664 = vpop.f32.mrb[0].mxu0
    %v6665 = vadd.f32 0.0, %v6664
    %v6666 = vpop.f32.mrb[0].mxu0
    %v6667 = vadd.f32 0.0, %v6666
    %v6668 = vpop.f32.mrb[0].mxu0
    %v6669 = vadd.f32 0.0, %v6668
    %6670 = vmatprep.mubr.bf16.mxu0 0
    %6671 = vmatmul.mubr.bf16.gmra.mrb[0].mxu0 %v6483
    %v6672 = vpop.f32.mrb[0].mxu0
    %v6673 = vadd.f32 0.0, %v6672
    %v6674 = vpop.f32.mrb[0].mxu0
    %v6675 = vadd.f32 0.0, %v6674
    %v6676 = vpop.f32.mrb[0].mxu0
    %v6677 = vadd.f32 0.0, %v6676
    %v6678 = vpop.f32.mrb[0].mxu0
    %v6679 = vadd.f32 0.0, %v6678
    %6680 = vmatprep.mubr.bf16.mxu0 0
    %6681 = vmatmul.mubr.bf16.gmra.mrb[0].mxu0 %v6484
    %v6682 = vpop.f32.mrb[0].mxu0
    %v6683 = vadd.f32 0.0, %v6682
    %v6684 = vpop.f32.mrb[0].mxu0
    %v6685 = vadd.f32 0.0, %v6684
    %v6686 = vpop.f32.mrb[0].mxu0
    %v6687 = vadd.f32 0.0, %v6686
    %v6688 = vpop.f32.mrb[0].mxu0
    %v6689 = vadd.f32 0.0, %v6688
    %6690 = vmatprep.mubr.bf16.mxu0 0
    %6691 = vmatmul.mubr.bf16.gmra.mrb[0].mxu0 %v6485
    %v6692 = vpop.f32.mrb[0].mxu0
    %v6693 = vadd.f32 0.0, %v6692
    %v6694 = vpop.f32.mrb[0].mxu0
    %v6695 = vadd.f32 0.0, %v6694
    %v6696 = vpop.f32.mrb[0].mxu0
    %v6697 = vadd.f32 0.0, %v6696
    %v6698 = vpop.f32.mrb[0].mxu0
    %v6699 = vadd.f32 0.0, %v6698
    %6700 = vmatprep.mubr.bf16.mxu0 0
    %6701 = vmatmul.mubr.bf16.gmra.mrb[0].mxu0 %v6486
    %v6702 = vpop.f32.mrb[0].mxu0
    %v6703 = vadd.f32 0.0, %v6702
    %v6704 = vpop.f32.mrb[0].mxu0
    %v6705 = vadd.f32 0.0, %v6704
    %v6706 = vpop.f32.mrb[0].mxu0
    %v6707 = vadd.f32 0.0, %v6706
    %v6708 = vpop.f32.mrb[0].mxu0
    %v6709 = vadd.f32 0.0, %v6708
    %6710 = vmatprep.mubr.bf16.mxu0 0
    %6711 = vmatmul.mubr.bf16.gmra.mrb[0].mxu0 %v6487
    %v6712 = vpop.f32.mrb[0].mxu0
    %v6713 = vadd.f32 0.0, %v6712
    %v6714 = vpop.f32.mrb[0].mxu0
    %v6715 = vadd.f32 0.0, %v6714
    %v6716 = vpop.f32.mrb[0].mxu0
    %v6717 = vadd.f32 0.0, %v6716
    %v6718 = vpop.f32.mrb[0].mxu0
    %v6719 = vadd.f32 0.0, %v6718
    %6720 = vmatprep.mubr.bf16.mxu0 0
    %6721 = vmatmul.mubr.bf16.gmra.mrb[0].mxu0 %v6488
    %v6722 = vpop.f32.mrb[0].mxu0
    %v6723 = vadd.f32 0.0, %v6722
    %v6724 = vpop.f32.mrb[0].mxu0
    %v6725 = vadd.f32 0.0, %v6724
    %v6726 = vpop.f32.mrb[0].mxu0
    %v6727 = vadd.f32 0.0, %v6726
    %v6728 = vpop.f32.mrb[0].mxu0
    %v6729 = vadd.f32 0.0, %v6728
    %6730 = vmatprep.mubr.bf16.mxu0 0
    %6731 = vmatmul.mubr.bf16.gmra.mrb[0].mxu0 %v6489
    %v6732 = vpop.f32.mrb[0].mxu0
    %v6733 = vadd.f32 0.0, %v6732
    %v6734 = vpop.f32.mrb[0].mxu0
    %v6735 = vadd.f32 0.0, %v6734
    %v6736 = vpop.f32.mrb[0].mxu0
    %v6737 = vadd.f32 0.0, %v6736
    %v6738 = vpop.f32.mrb[0].mxu0
    %v6739 = vadd.f32 0.0, %v6738
    %6740 = vmatprep.mubr.bf16.mxu0 0
    %6741 = vmatmul.mubr.bf16.gmra.mrb[0].mxu0 %v6490
    %v6742 = vpop.f32.mrb[0].mxu0
    %v6743 = vadd.f32 0.0, %v6742
    %v6744 = vpop.f32.mrb[0].mxu0
    %v6745 = vadd.f32 0.0, %v6744
    %v6746 = vpop.f32.mrb[0].mxu0
    %v6747 = vadd.f32 0.0, %v6746
    %v6748 = vpop.f32.mrb[0].mxu0
    %v6749 = vadd.f32 0.0, %v6748
    %6750 = vmatprep.mubr.bf16.mxu0 0
    %6751 = vmatmul.mubr.bf16.gmra.mrb[0].mxu0 %v6491
    %v6752 = vpop.f32.mrb[0].mxu0
    %v6753 = vadd.f32 0.0, %v6752
    %v6754 = vpop.f32.mrb[0].mxu0
    %v6755 = vadd.f32 0.0, %v6754
    %v6756 = vpop.f32.mrb[0].mxu0
    %v6757 = vadd.f32 0.0, %v6756
    %v6758 = vpop.f32.mrb[0].mxu0
    %v6759 = vadd.f32 0.0, %v6758
    %6760 = vmatprep.mubr.bf16.mxu0 0
    %6761 = vmatmul.mubr.bf16.gmra.mrb[0].mxu0 %v6492
    %v6762 = vpop.f32.mrb[0].mxu0
    %v6763 = vadd.f32 0.0, %v6762
    %v6764 = vpop.f32.mrb[0].mxu0
    %v6765 = vadd.f32 0.0, %v6764
    %v6766 = vpop.f32.mrb[0].mxu0
    %v6767 = vadd.f32 0.0, %v6766
    %v6768 = vpop.f32.mrb[0].mxu0
    %v6769 = vadd.f32 0.0, %v6768
    %6770 = vmatprep.mubr.bf16.mxu0 0
    %6771 = vmatmul.mubr.bf16.gmra.mrb[0].mxu0 %v6493
    %v6772 = vpop.f32.mrb[0].mxu0
    %v6773 = vadd.f32 0.0, %v6772
    %v6774 = vpop.f32.mrb[0].mxu0
    %v6775 = vadd.f32 0.0, %v6774
    %v6776 = vpop.f32.mrb[0].mxu0
    %v6777 = vadd.f32 0.0, %v6776
    %v6778 = vpop.f32.mrb[0].mxu0
    %v6779 = vadd.f32 0.0, %v6778
    %6780 = vmatprep.mubr.bf16.mxu0 0
    %6781 = vmatmul.mubr.bf16.gmra.mrb[0].mxu0 %v6494
    %v6782 = vpop.f32.mrb[0].mxu0
    %v6783 = vadd.f32 0.0, %v6782
    %v6784 = vpop.f32.mrb[0].mxu0
    %v6785 = vadd.f32 0.0, %v6784
    %v6786 = vpop.f32.mrb[0].mxu0
    %v6787 = vadd.f32 0.0, %v6786
    %v6788 = vpop.f32.mrb[0].mxu0
    %v6789 = vadd.f32 0.0, %v6788
    %6790 = vmatprep.mubr.bf16.mxu0 0
    %6791 = vmatmul.mubr.bf16.gmra.mrb[0].mxu0 %v6495
    %v6792 = vpop.f32.mrb[0].mxu0
    %v6793 = vadd.f32 0.0, %v6792
    %v6794 = vpop.f32.mrb[0].mxu0
    %v6795 = vadd.f32 0.0, %v6794
    %v6796 = vpop.f32.mrb[0].mxu0
    %v6797 = vadd.f32 0.0, %v6796
    %v6798 = vpop.f32.mrb[0].mxu0
    %v6799 = vadd.f32 0.0, %v6798
    %6800 = vmatprep.mubr.bf16.mxu0 0
    %6801 = vmatmul.mubr.bf16.gmra.mrb[0].mxu0 %v6496
    %v6802 = vpop.f32.mrb[0].mxu0
    %v6803 = vadd.f32 0.0, %v6802
    %v6804 = vpop.f32.mrb[0].mxu0
    %v6805 = vadd.f32 0.0, %v6804
    %v6806 = vpop.f32.mrb[0].mxu0
    %v6807 = vadd.f32 0.0, %v6806
    %v6808 = vpop.f32.mrb[0].mxu0
    %v6809 = vadd.f32 0.0, %v6808
    %6810 = vmatprep.mubr.bf16.mxu0 0
    %6811 = vmatmul.mubr.bf16.gmra.mrb[0].mxu0 %v6497
    %v6812 = vpop.f32.mrb[0].mxu0
    %v6813 = vadd.f32 0.0, %v6812
    %v6814 = vpop.f32.mrb[0].mxu0
    %v6815 = vadd.f32 0.0, %v6814
    %v6816 = vpop.f32.mrb[0].mxu0
    %v6817 = vadd.f32 0.0, %v6816
    %v6818 = vpop.f32.mrb[0].mxu0
    %v6819 = vadd.f32 0.0, %v6818
    %6820 = vmatprep.mubr.bf16.mxu0 0
    %6821 = vmatmul.mubr.bf16.gmra.mrb[0].mxu0 %v6498
    %v6822 = vpop.f32.mrb[0].mxu0
    %v6823 = vadd.f32 0.0, %v6822
    %v6824 = vpop.f32.mrb[0].mxu0
    %v6825 = vadd.f32 0.0, %v6824
    %v6826 = vpop.f32.mrb[0].mxu0
    %v6827 = vadd.f32 0.0, %v6826
    %v6828 = vpop.f32.mrb[0].mxu0
    %v6829 = vadd.f32 0.0, %v6828
    %6830 = vmatprep.mubr.bf16.mxu0 0
    %6831 = vmatmul.mubr.bf16.gmra.mrb[0].mxu0 %v6499
    %v6832 = vpop.f32.mrb[0].mxu0
    %v6833 = vadd.f32 0.0, %v6832
    %v6834 = vpop.f32.mrb[0].mxu0
    %v6835 = vadd.f32 0.0, %v6834
    %v6836 = vpop.f32.mrb[0].mxu0
    %v6837 = vadd.f32 0.0, %v6836
    %v6838 = vpop.f32.mrb[0].mxu0
    %v6839 = vadd.f32 0.0, %v6838
    %6840 = vmatprep.mubr.bf16.mxu0 0
    %6841 = vmatmul.mubr.bf16.gmra.mrb[0].mxu0 %v6500
    %v6842 = vpop.f32.mrb[0].mxu0
    %v6843 = vadd.f32 0.0, %v6842
    %v6844 = vpop.f32.mrb[0].mxu0
    %v6845 = vadd.f32 0.0, %v6844
    %v6846 = vpop.f32.mrb[0].mxu0
    %v6847 = vadd.f32 0.0, %v6846
    %v6848 = vpop.f32.mrb[0].mxu0
    %v6849 = vadd.f32 0.0, %v6848
    %6850 = vmatprep.mubr.bf16.mxu0 0
    %6851 = vmatmul.mubr.bf16.gmra.mrb[0].mxu0 %v6501
    %v6852 = vpop.f32.mrb[0].mxu0
    %v6853 = vadd.f32 0.0, %v6852
    %v6854 = vpop.f32.mrb[0].mxu0
    %v6855 = vadd.f32 0.0, %v6854
    %v6856 = vpop.f32.mrb[0].mxu0
    %v6857 = vadd.f32 0.0, %v6856
    %v6858 = vpop.f32.mrb[0].mxu0
    %v6859 = vadd.f32 0.0, %v6858
    %6860 = vmatprep.mubr.bf16.mxu0 0
    %6861 = vmatmul.mubr.bf16.gmra.mrb[0].mxu0 %v6502
    %v6862 = vpop.f32.mrb[0].mxu0
    %v6863 = vadd.f32 0.0, %v6862
    %v6864 = vpop.f32.mrb[0].mxu0
    %v6865 = vadd.f32 0.0, %v6864
    %v6866 = vpop.f32.mrb[0].mxu0
    %v6867 = vadd.f32 0.0, %v6866
    %v6868 = vpop.f32.mrb[0].mxu0
    %v6869 = vadd.f32 0.0, %v6868
    %6870 = vmatprep.mubr.bf16.mxu0 0
    %6871 = vmatmul.mubr.bf16.gmra.mrb[0].mxu0 %v6503
    %v6872 = vpop.f32.mrb[0].mxu0
    %v6873 = vadd.f32 0.0, %v6872
    %v6874 = vpop.f32.mrb[0].mxu0
    %v6875 = vadd.f32 0.0, %v6874
    %v6876 = vpop.f32.mrb[0].mxu0
    %v6877 = vadd.f32 0.0, %v6876
    %v6878 = vpop.f32.mrb[0].mxu0
    %v6879 = vadd.f32 0.0, %v6878
    %6880 = vmatprep.mubr.bf16.mxu0 0
    %6881 = vmatmul.mubr.bf16.gmra.mrb[0].mxu0 %v6504
    %v6882 = vpop.f32.mrb[0].mxu0
    %v6883 = vadd.f32 0.0, %v6882
    %v6884 = vpop.f32.mrb[0].mxu0
    %v6885 = vadd.f32 0.0, %v6884
    %v6886 = vpop.f32.mrb[0].mxu0
    %v6887 = vadd.f32 0.0, %v6886
    %v6888 = vpop.f32.mrb[0].mxu0
    %v6889 = vadd.f32 0.0, %v6888
    %6890 = vmatprep.mubr.bf16.mxu0 0
    %6891 = vmatmul.mubr.bf16.gmra.mrb[0].mxu0 %v6505
    %v6892 = vpop.f32.mrb[0].mxu0
    %v6893 = vadd.f32 0.0, %v6892
    %v6894 = vpop.f32.mrb[0].mxu0
    %v6895 = vadd.f32 0.0, %v6894
    %v6896 = vpop.f32.mrb[0].mxu0
    %v6897 = vadd.f32 0.0, %v6896
    %v6898 = vpop.f32.mrb[0].mxu0
    %v6899 = vadd.f32 0.0, %v6898
    %6900 = vmatprep.mubr.bf16.mxu0 0
    %6901 = vmatmul.mubr.bf16.gmra.mrb[0].mxu0 %v6506
    %v6902 = vpop.f32.mrb[0].mxu0
    %v6903 = vadd.f32 0.0, %v6902
    %v6904 = vpop.f32.mrb[0].mxu0
    %v6905 = vadd.f32 0.0, %v6904
    %v6906 = vpop.f32.mrb[0].mxu0
    %v6907 = vadd.f32 0.0, %v6906
    %v6908 = vpop.f32.mrb[0].mxu0
    %v6909 = vadd.f32 0.0, %v6908
    %6910 = vmatprep.mubr.bf16.mxu0 0
    %6911 = vmatmul.mubr.bf16.gmra.mrb[0].mxu0 %v6507
    %v6912 = vpop.f32.mrb[0].mxu0
    %v6913 = vadd.f32 0.0, %v6912
    %v6914 = vpop.f32.mrb[0].mxu0
    %v6915 = vadd.f32 0.0, %v6914
    %v6916 = vpop.f32.mrb[0].mxu0
    %v6917 = vadd.f32 0.0, %v6916
    %v6918 = vpop.f32.mrb[0].mxu0
    %v6919 = vadd.f32 0.0, %v6918
    %6920 = vmatprep.mubr.bf16.mxu0 0
    %6921 = vmatmul.mubr.bf16.gmra.mrb[0].mxu0 %v6508
    %v6922 = vpop.f32.mrb[0].mxu0
    %v6923 = vadd.f32 0.0, %v6922
    %v6924 = vpop.f32.mrb[0].mxu0
    %v6925 = vadd.f32 0.0, %v6924
    %v6926 = vpop.f32.mrb[0].mxu0
    %v6927 = vadd.f32 0.0, %v6926
    %v6928 = vpop.f32.mrb[0].mxu0
    %v6929 = vadd.f32 0.0, %v6928
    %6930 = vmatprep.mubr.bf16.mxu0 0
    %6931 = vmatmul.mubr.bf16.gmra.mrb[0].mxu0 %v6509
    %v6932 = vpop.f32.mrb[0].mxu0
    %v6933 = vadd.f32 0.0, %v6932
    %v6934 = vpop.f32.mrb[0].mxu0
    %v6935 = vadd.f32 0.0, %v6934
    %v6936 = vpop.f32.mrb[0].mxu0
    %v6937 = vadd.f32 0.0, %v6936
    %v6938 = vpop.f32.mrb[0].mxu0
    %v6939 = vadd.f32 0.0, %v6938
    %6940 = vmatprep.mubr.bf16.mxu0 0
    %6941 = vmatmul.mubr.bf16.gmra.mrb[0].mxu0 %v6510
    %v6942 = vpop.f32.mrb[0].mxu0
    %v6943 = vadd.f32 0.0, %v6942
    %v6944 = vpop.f32.mrb[0].mxu0
    %v6945 = vadd.f32 0.0, %v6944
    %v6946 = vpop.f32.mrb[0].mxu0
    %v6947 = vadd.f32 0.0, %v6946
    %v6948 = vpop.f32.mrb[0].mxu0
    %v6949 = vadd.f32 0.0, %v6948
    %6950 = vmatprep.mubr.bf16.mxu0 0
    %6951 = vmatmul.mubr.bf16.gmra.mrb[0].mxu0 %v6511
    %v6952 = vpop.f32.mrb[0].mxu0
    %v6953 = vadd.f32 0.0, %v6952
    %v6954 = vpop.f32.mrb[0].mxu0
    %v6955 = vadd.f32 0.0, %v6954
    %v6956 = vpop.f32.mrb[0].mxu0
    %v6957 = vadd.f32 0.0, %v6956
    %v6958 = vpop.f32.mrb[0].mxu0
    %v6959 = vadd.f32 0.0, %v6958
    %6960 = vdwg.mxu0
    %v6961 = vld [vmem:[%s11] sm:$0xff]
    %v6962 = vld [vmem:[%s11 + $0x8] sm:$0xff]
    %v6963 = vld [vmem:[%s11 + $0x10] sm:$0xff]
    %v6964 = vld [vmem:[%s11 + $0x18] sm:$0xff]
    %v6965 = vld [vmem:[%s11 + $0x20] sm:$0xff]
    %v6966 = vld [vmem:[%s11 + $0x28] sm:$0xff]
    %v6967 = vld [vmem:[%s11 + $0x30] sm:$0xff]
    %v6968 = vld [vmem:[%s11 + $0x38] sm:$0xff]
    %v6969 = vld [vmem:[%s11 + $0x40] sm:$0xff]
    %v6970 = vld [vmem:[%s11 + $0x48] sm:$0xff]
    %v6971 = vld [vmem:[%s11 + $0x50] sm:$0xff]
    %v6972 = vld [vmem:[%s11 + $0x58] sm:$0xff]
    %v6973 = vld [vmem:[%s11 + $0x60] sm:$0xff]
    %v6974 = vld [vmem:[%s11 + $0x68] sm:$0xff]
    %v6975 = vld [vmem:[%s11 + $0x70] sm:$0xff]
    %v6976 = vld [vmem:[%s11 + $0x78] sm:$0xff]
    %v6977 = vld [vmem:[%s11 + $0x80] sm:$0xff]
    %v6978 = vld [vmem:[%s11 + $0x88] sm:$0xff]
    %v6979 = vld [vmem:[%s11 + $0x90] sm:$0xff]
    %v6980 = vld [vmem:[%s11 + $0x98] sm:$0xff]
    %v6981 = vld [vmem:[%s11 + $0xa0] sm:$0xff]
    %v6982 = vld [vmem:[%s11 + $0xa8] sm:$0xff]
    %v6983 = vld [vmem:[%s11 + $0xb0] sm:$0xff]
    %v6984 = vld [vmem:[%s11 + $0xb8] sm:$0xff]
    %v6985 = vld [vmem:[%s11 + $0xc0] sm:$0xff]
    %v6986 = vld [vmem:[%s11 + $0xc8] sm:$0xff]
    %v6987 = vld [vmem:[%s11 + $0xd0] sm:$0xff]
    %v6988 = vld [vmem:[%s11 + $0xd8] sm:$0xff]
    %v6989 = vld [vmem:[%s11 + $0xe0] sm:$0xff]
    %v6990 = vld [vmem:[%s11 + $0xe8] sm:$0xff]
    %v6991 = vld [vmem:[%s11 + $0xf0] sm:$0xff]
    %v6992 = vld [vmem:[%s11 + $0xf8] sm:$0xff]
    %v6993 = vld [vmem:[%s11 + $0x100] sm:$0xff]
    %v6994 = vld [vmem:[%s11 + $0x108] sm:$0xff]
    %v6995 = vld [vmem:[%s11 + $0x110] sm:$0xff]
    %v6996 = vld [vmem:[%s11 + $0x118] sm:$0xff]
    %v6997 = vld [vmem:[%s11 + $0x120] sm:$0xff]
    %v6998 = vld [vmem:[%s11 + $0x128] sm:$0xff]
    %v6999 = vld [vmem:[%s11 + $0x130] sm:$0xff]
    %v7000 = vld [vmem:[%s11 + $0x138] sm:$0xff]
    %v7001 = vld [vmem:[%s11 + $0x140] sm:$0xff]
    %v7002 = vld [vmem:[%s11 + $0x148] sm:$0xff]
    %v7003 = vld [vmem:[%s11 + $0x150] sm:$0xff]
    %v7004 = vld [vmem:[%s11 + $0x158] sm:$0xff]
    %v7005 = vld [vmem:[%s11 + $0x160] sm:$0xff]
    %v7006 = vld [vmem:[%s11 + $0x168] sm:$0xff]
    %v7007 = vld [vmem:[%s11 + $0x170] sm:$0xff]
    %v7008 = vld [vmem:[%s11 + $0x178] sm:$0xff]
    %v7009 = vld [vmem:[%s11 + $0x180] sm:$0xff]
    %v7010 = vld [vmem:[%s11 + $0x188] sm:$0xff]
    %v7011 = vld [vmem:[%s11 + $0x190] sm:$0xff]
    %v7012 = vld [vmem:[%s11 + $0x198] sm:$0xff]
    %v7013 = vld [vmem:[%s11 + $0x1a0] sm:$0xff]
    %v7014 = vld [vmem:[%s11 + $0x1a8] sm:$0xff]
    %v7015 = vld [vmem:[%s11 + $0x1b0] sm:$0xff]
    %v7016 = vld [vmem:[%s11 + $0x1b8] sm:$0xff]
    %v7017 = vld [vmem:[%s11 + $0x1c0] sm:$0xff]
    %v7018 = vld [vmem:[%s11 + $0x1c8] sm:$0xff]
    %v7019 = vld [vmem:[%s11 + $0x1d0] sm:$0xff]
    %v7020 = vld [vmem:[%s11 + $0x1d8] sm:$0xff]
    %v7021 = vld [vmem:[%s11 + $0x1e0] sm:$0xff]
    %v7022 = vld [vmem:[%s11 + $0x1e8] sm:$0xff]
    %v7023 = vld [vmem:[%s11 + $0x1f0] sm:$0xff]
    %v7024 = vld [vmem:[%s11 + $0x1f8] sm:$0xff]
    %7026 = vset.pattern.permute.xlu0 0
    %7027 = vperm.xlu0 %7026, %v6961
    %v7028 = vpop.permute.xlu0 %7027
    %7031 = vset.pattern.permute.xlu0 0
    %7032 = vperm.xlu0 %7031, %v6962
    %v7033 = vpop.permute.xlu0 %7032
    %7036 = vset.pattern.permute.xlu0 0
    %7037 = vperm.xlu0 %7036, %v6963
    %v7038 = vpop.permute.xlu0 %7037
    %7041 = vset.pattern.permute.xlu0 0
    %7042 = vperm.xlu0 %7041, %v6964
    %v7043 = vpop.permute.xlu0 %7042
    %7046 = vset.pattern.permute.xlu0 0
    %7047 = vperm.xlu0 %7046, %v6965
    %v7048 = vpop.permute.xlu0 %7047
    %7051 = vset.pattern.permute.xlu0 0
    %7052 = vperm.xlu0 %7051, %v6966
    %v7053 = vpop.permute.xlu0 %7052
    %7056 = vset.pattern.permute.xlu0 0
    %7057 = vperm.xlu0 %7056, %v6967
    %v7058 = vpop.permute.xlu0 %7057
    %7061 = vset.pattern.permute.xlu0 0
    %7062 = vperm.xlu0 %7061, %v6968
    %v7063 = vpop.permute.xlu0 %7062
    %7066 = vset.pattern.permute.xlu0 0
    %7067 = vperm.xlu0 %7066, %v6969
    %v7068 = vpop.permute.xlu0 %7067
    %7071 = vset.pattern.permute.xlu0 0
    %7072 = vperm.xlu0 %7071, %v6970
    %v7073 = vpop.permute.xlu0 %7072
    %7076 = vset.pattern.permute.xlu0 0
    %7077 = vperm.xlu0 %7076, %v6971
    %v7078 = vpop.permute.xlu0 %7077
    %7081 = vset.pattern.permute.xlu0 0
    %7082 = vperm.xlu0 %7081, %v6972
    %v7083 = vpop.permute.xlu0 %7082
    %7086 = vset.pattern.permute.xlu0 0
    %7087 = vperm.xlu0 %7086, %v6973
    %v7088 = vpop.permute.xlu0 %7087
    %7091 = vset.pattern.permute.xlu0 0
    %7092 = vperm.xlu0 %7091, %v6974
    %v7093 = vpop.permute.xlu0 %7092
    %7096 = vset.pattern.permute.xlu0 0
    %7097 = vperm.xlu0 %7096, %v6975
    %v7098 = vpop.permute.xlu0 %7097
    %7101 = vset.pattern.permute.xlu0 0
    %7102 = vperm.xlu0 %7101, %v6976
    %v7103 = vpop.permute.xlu0 %7102
    %7106 = vset.pattern.permute.xlu0 0
    %7107 = vperm.xlu0 %7106, %v6977
    %v7108 = vpop.permute.xlu0 %7107
    %7111 = vset.pattern.permute.xlu0 0
    %7112 = vperm.xlu0 %7111, %v6978
    %v7113 = vpop.permute.xlu0 %7112
    %7116 = vset.pattern.permute.xlu0 0
    %7117 = vperm.xlu0 %7116, %v6979
    %v7118 = vpop.permute.xlu0 %7117
    %7121 = vset.pattern.permute.xlu0 0
    %7122 = vperm.xlu0 %7121, %v6980
    %v7123 = vpop.permute.xlu0 %7122
    %7126 = vset.pattern.permute.xlu0 0
    %7127 = vperm.xlu0 %7126, %v6981
    %v7128 = vpop.permute.xlu0 %7127
    %7131 = vset.pattern.permute.xlu0 0
    %7132 = vperm.xlu0 %7131, %v6982
    %v7133 = vpop.permute.xlu0 %7132
    %7136 = vset.pattern.permute.xlu0 0
    %7137 = vperm.xlu0 %7136, %v6983
    %v7138 = vpop.permute.xlu0 %7137
    %7141 = vset.pattern.permute.xlu0 0
    %7142 = vperm.xlu0 %7141, %v6984
    %v7143 = vpop.permute.xlu0 %7142
    %7146 = vset.pattern.permute.xlu0 0
    %7147 = vperm.xlu0 %7146, %v6985
    %v7148 = vpop.permute.xlu0 %7147
    %7151 = vset.pattern.permute.xlu0 0
    %7152 = vperm.xlu0 %7151, %v6986
    %v7153 = vpop.permute.xlu0 %7152
    %7156 = vset.pattern.permute.xlu0 0
    %7157 = vperm.xlu0 %7156, %v6987
    %v7158 = vpop.permute.xlu0 %7157
    %7161 = vset.pattern.permute.xlu0 0
    %7162 = vperm.xlu0 %7161, %v6988
    %v7163 = vpop.permute.xlu0 %7162
    %7166 = vset.pattern.permute.xlu0 0
    %7167 = vperm.xlu0 %7166, %v6989
    %v7168 = vpop.permute.xlu0 %7167
    %7171 = vset.pattern.permute.xlu0 0
    %7172 = vperm.xlu0 %7171, %v6990
    %v7173 = vpop.permute.xlu0 %7172
    %7176 = vset.pattern.permute.xlu0 0
    %7177 = vperm.xlu0 %7176, %v6991
    %v7178 = vpop.permute.xlu0 %7177
    %7181 = vset.pattern.permute.xlu0 0
    %7182 = vperm.xlu0 %7181, %v6992
    %v7183 = vpop.permute.xlu0 %7182
    %7186 = vset.pattern.permute.xlu0 0
    %7187 = vperm.xlu0 %7186, %v6993
    %v7188 = vpop.permute.xlu0 %7187
    %7191 = vset.pattern.permute.xlu0 0
    %7192 = vperm.xlu0 %7191, %v6994
    %v7193 = vpop.permute.xlu0 %7192
    %7196 = vset.pattern.permute.xlu0 0
    %7197 = vperm.xlu0 %7196, %v6995
    %v7198 = vpop.permute.xlu0 %7197
    %7201 = vset.pattern.permute.xlu0 0
    %7202 = vperm.xlu0 %7201, %v6996
    %v7203 = vpop.permute.xlu0 %7202
    %7206 = vset.pattern.permute.xlu0 0
    %7207 = vperm.xlu0 %7206, %v6997
    %v7208 = vpop.permute.xlu0 %7207
    %7211 = vset.pattern.permute.xlu0 0
    %7212 = vperm.xlu0 %7211, %v6998
    %v7213 = vpop.permute.xlu0 %7212
    %7216 = vset.pattern.permute.xlu0 0
    %7217 = vperm.xlu0 %7216, %v6999
    %v7218 = vpop.permute.xlu0 %7217
    %7221 = vset.pattern.permute.xlu0 0
    %7222 = vperm.xlu0 %7221, %v7000
    %v7223 = vpop.permute.xlu0 %7222
    %7226 = vset.pattern.permute.xlu0 0
    %7227 = vperm.xlu0 %7226, %v7001
    %v7228 = vpop.permute.xlu0 %7227
    %7231 = vset.pattern.permute.xlu0 0
    %7232 = vperm.xlu0 %7231, %v7002
    %v7233 = vpop.permute.xlu0 %7232
    %7236 = vset.pattern.permute.xlu0 0
    %7237 = vperm.xlu0 %7236, %v7003
    %v7238 = vpop.permute.xlu0 %7237
    %7241 = vset.pattern.permute.xlu0 0
    %7242 = vperm.xlu0 %7241, %v7004
    %v7243 = vpop.permute.xlu0 %7242
    %7246 = vset.pattern.permute.xlu0 0
    %7247 = vperm.xlu0 %7246, %v7005
    %v7248 = vpop.permute.xlu0 %7247
    %7251 = vset.pattern.permute.xlu0 0
    %7252 = vperm.xlu0 %7251, %v7006
    %v7253 = vpop.permute.xlu0 %7252
    %7256 = vset.pattern.permute.xlu0 0
    %7257 = vperm.xlu0 %7256, %v7007
    %v7258 = vpop.permute.xlu0 %7257
    %7261 = vset.pattern.permute.xlu0 0
    %7262 = vperm.xlu0 %7261, %v7008
    %v7263 = vpop.permute.xlu0 %7262
    %7266 = vset.pattern.permute.xlu0 0
    %7267 = vperm.xlu0 %7266, %v7009
    %v7268 = vpop.permute.xlu0 %7267
    %7271 = vset.pattern.permute.xlu0 0
    %7272 = vperm.xlu0 %7271, %v7010
    %v7273 = vpop.permute.xlu0 %7272
    %7276 = vset.pattern.permute.xlu0 0
    %7277 = vperm.xlu0 %7276, %v7011
    %v7278 = vpop.permute.xlu0 %7277
    %7281 = vset.pattern.permute.xlu0 0
    %7282 = vperm.xlu0 %7281, %v7012
    %v7283 = vpop.permute.xlu0 %7282
    %7286 = vset.pattern.permute.xlu0 0
    %7287 = vperm.xlu0 %7286, %v7013
    %v7288 = vpop.permute.xlu0 %7287
    %7291 = vset.pattern.permute.xlu0 0
    %7292 = vperm.xlu0 %7291, %v7014
    %v7293 = vpop.permute.xlu0 %7292
    %7296 = vset.pattern.permute.xlu0 0
    %7297 = vperm.xlu0 %7296, %v7015
    %v7298 = vpop.permute.xlu0 %7297
    %7301 = vset.pattern.permute.xlu0 0
    %7302 = vperm.xlu0 %7301, %v7016
    %v7303 = vpop.permute.xlu0 %7302
    %7306 = vset.pattern.permute.xlu0 0
    %7307 = vperm.xlu0 %7306, %v7017
    %v7308 = vpop.permute.xlu0 %7307
    %7311 = vset.pattern.permute.xlu0 0
    %7312 = vperm.xlu0 %7311, %v7018
    %v7313 = vpop.permute.xlu0 %7312
    %7316 = vset.pattern.permute.xlu0 0
    %7317 = vperm.xlu0 %7316, %v7019
    %v7318 = vpop.permute.xlu0 %7317
    %7321 = vset.pattern.permute.xlu0 0
    %7322 = vperm.xlu0 %7321, %v7020
    %v7323 = vpop.permute.xlu0 %7322
    %7326 = vset.pattern.permute.xlu0 0
    %7327 = vperm.xlu0 %7326, %v7021
    %v7328 = vpop.permute.xlu0 %7327
    %7331 = vset.pattern.permute.xlu0 0
    %7332 = vperm.xlu0 %7331, %v7022
    %v7333 = vpop.permute.xlu0 %7332
    %7336 = vset.pattern.permute.xlu0 0
    %7337 = vperm.xlu0 %7336, %v7023
    %v7338 = vpop.permute.xlu0 %7337
    %7341 = vset.pattern.permute.xlu0 0
    %7342 = vperm.xlu0 %7341, %v7024
    %v7343 = vpop.permute.xlu0 %7342
    %v7345 = vmul.f32 %v6933, %v7028
    %v7346 = vmul.f32 %v6937, %v7033
    %v7347 = vmul.f32 %v6943, %v7038
    %v7348 = vmul.f32 %v6947, %v7043
    %v7349 = vmul.f32 %v6953, %v7048
    %v7350 = vmul.f32 %v6957, %v7053
    %v7351 = vmul.f32 %v6643, %v7058
    %v7352 = vmul.f32 %v6647, %v7063
    %v7353 = vmul.f32 %v6653, %v7068
    %v7354 = vmul.f32 %v6657, %v7073
    %v7355 = vmul.f32 %v6663, %v7078
    %v7356 = vmul.f32 %v6667, %v7083
    %v7357 = vmul.f32 %v6673, %v7088
    %v7358 = vmul.f32 %v6677, %v7093
    %v7359 = vmul.f32 %v6683, %v7098
    %v7360 = vmul.f32 %v6687, %v7103
    %v7361 = vmul.f32 %v6693, %v7108
    %v7362 = vmul.f32 %v6697, %v7113
    %v7363 = vmul.f32 %v6703, %v7118
    %v7364 = vmul.f32 %v6707, %v7123
    %v7365 = vmul.f32 %v6713, %v7128
    %v7366 = vmul.f32 %v6717, %v7133
    %v7367 = vmul.f32 %v6723, %v7138
    %v7368 = vmul.f32 %v6727, %v7143
    %v7369 = vmul.f32 %v6733, %v7148
    %v7370 = vmul.f32 %v6737, %v7153
    %v7371 = vmul.f32 %v6743, %v7158
    %v7372 = vmul.f32 %v6747, %v7163
    %v7373 = vmul.f32 %v6753, %v7168
    %v7374 = vmul.f32 %v6757, %v7173
    %v7375 = vmul.f32 %v6763, %v7178
    %v7376 = vmul.f32 %v6767, %v7183
    %v7377 = vmul.f32 %v6773, %v7188
    %v7378 = vmul.f32 %v6777, %v7193
    %v7379 = vmul.f32 %v6783, %v7198
    %v7380 = vmul.f32 %v6787, %v7203
    %v7381 = vmul.f32 %v6793, %v7208
    %v7382 = vmul.f32 %v6797, %v7213
    %v7383 = vmul.f32 %v6803, %v7218
    %v7384 = vmul.f32 %v6807, %v7223
    %v7385 = vmul.f32 %v6813, %v7228
    %v7386 = vmul.f32 %v6817, %v7233
    %v7387 = vmul.f32 %v6823, %v7238
    %v7388 = vmul.f32 %v6827, %v7243
    %v7389 = vmul.f32 %v6833, %v7248
    %v7390 = vmul.f32 %v6837, %v7253
    %v7391 = vmul.f32 %v6843, %v7258
    %v7392 = vmul.f32 %v6847, %v7263
    %v7393 = vmul.f32 %v6853, %v7268
    %v7394 = vmul.f32 %v6857, %v7273
    %v7395 = vmul.f32 %v6863, %v7278
    %v7396 = vmul.f32 %v6867, %v7283
    %v7397 = vmul.f32 %v6873, %v7288
    %v7398 = vmul.f32 %v6877, %v7293
    %v7399 = vmul.f32 %v6883, %v7298
    %v7400 = vmul.f32 %v6887, %v7303
    %v7401 = vmul.f32 %v6893, %v7308
    %v7402 = vmul.f32 %v6897, %v7313
    %v7403 = vmul.f32 %v6903, %v7318
    %v7404 = vmul.f32 %v6907, %v7323
    %v7405 = vmul.f32 %v6913, %v7328
    %v7406 = vmul.f32 %v6917, %v7333
    %v7407 = vmul.f32 %v6923, %v7338
    %v7408 = vmul.f32 %v6927, %v7343
    %s7409 = scalar_lea.vmem %s11, 512
    %v7410 = vld [vmem:[%s7409] sm:$0xff]
    %v7411 = vld [vmem:[%s7409 + $0x8] sm:$0xff]
    %v7412 = vld [vmem:[%s7409 + $0x10] sm:$0xff]
    %v7413 = vld [vmem:[%s7409 + $0x18] sm:$0xff]
    %v7414 = vld [vmem:[%s7409 + $0x20] sm:$0xff]
    %v7415 = vld [vmem:[%s7409 + $0x28] sm:$0xff]
    %v7416 = vld [vmem:[%s7409 + $0x30] sm:$0xff]
    %v7417 = vld [vmem:[%s7409 + $0x38] sm:$0xff]
    %v7418 = vld [vmem:[%s7409 + $0x40] sm:$0xff]
    %v7419 = vld [vmem:[%s7409 + $0x48] sm:$0xff]
    %v7420 = vld [vmem:[%s7409 + $0x50] sm:$0xff]
    %v7421 = vld [vmem:[%s7409 + $0x58] sm:$0xff]
    %v7422 = vld [vmem:[%s7409 + $0x60] sm:$0xff]
    %v7423 = vld [vmem:[%s7409 + $0x68] sm:$0xff]
    %v7424 = vld [vmem:[%s7409 + $0x70] sm:$0xff]
    %v7425 = vld [vmem:[%s7409 + $0x78] sm:$0xff]
    %v7426 = vld [vmem:[%s7409 + $0x80] sm:$0xff]
    %v7427 = vld [vmem:[%s7409 + $0x88] sm:$0xff]
    %v7428 = vld [vmem:[%s7409 + $0x90] sm:$0xff]
    %v7429 = vld [vmem:[%s7409 + $0x98] sm:$0xff]
    %v7430 = vld [vmem:[%s7409 + $0xa0] sm:$0xff]
    %v7431 = vld [vmem:[%s7409 + $0xa8] sm:$0xff]
    %v7432 = vld [vmem:[%s7409 + $0xb0] sm:$0xff]
    %v7433 = vld [vmem:[%s7409 + $0xb8] sm:$0xff]
    %v7434 = vld [vmem:[%s7409 + $0xc0] sm:$0xff]
    %v7435 = vld [vmem:[%s7409 + $0xc8] sm:$0xff]
    %v7436 = vld [vmem:[%s7409 + $0xd0] sm:$0xff]
    %v7437 = vld [vmem:[%s7409 + $0xd8] sm:$0xff]
    %v7438 = vld [vmem:[%s7409 + $0xe0] sm:$0xff]
    %v7439 = vld [vmem:[%s7409 + $0xe8] sm:$0xff]
    %v7440 = vld [vmem:[%s7409 + $0xf0] sm:$0xff]
    %v7441 = vld [vmem:[%s7409 + $0xf8] sm:$0xff]
    %v7442 = vld [vmem:[%s7409 + $0x100] sm:$0xff]
    %v7443 = vld [vmem:[%s7409 + $0x108] sm:$0xff]
    %v7444 = vld [vmem:[%s7409 + $0x110] sm:$0xff]
    %v7445 = vld [vmem:[%s7409 + $0x118] sm:$0xff]
    %v7446 = vld [vmem:[%s7409 + $0x120] sm:$0xff]
    %v7447 = vld [vmem:[%s7409 + $0x128] sm:$0xff]
    %v7448 = vld [vmem:[%s7409 + $0x130] sm:$0xff]
    %v7449 = vld [vmem:[%s7409 + $0x138] sm:$0xff]
    %v7450 = vld [vmem:[%s7409 + $0x140] sm:$0xff]
    %v7451 = vld [vmem:[%s7409 + $0x148] sm:$0xff]
    %v7452 = vld [vmem:[%s7409 + $0x150] sm:$0xff]
    %v7453 = vld [vmem:[%s7409 + $0x158] sm:$0xff]
    %v7454 = vld [vmem:[%s7409 + $0x160] sm:$0xff]
    %v7455 = vld [vmem:[%s7409 + $0x168] sm:$0xff]
    %v7456 = vld [vmem:[%s7409 + $0x170] sm:$0xff]
    %v7457 = vld [vmem:[%s7409 + $0x178] sm:$0xff]
    %v7458 = vld [vmem:[%s7409 + $0x180] sm:$0xff]
    %v7459 = vld [vmem:[%s7409 + $0x188] sm:$0xff]
    %v7460 = vld [vmem:[%s7409 + $0x190] sm:$0xff]
    %v7461 = vld [vmem:[%s7409 + $0x198] sm:$0xff]
    %v7462 = vld [vmem:[%s7409 + $0x1a0] sm:$0xff]
    %v7463 = vld [vmem:[%s7409 + $0x1a8] sm:$0xff]
    %v7464 = vld [vmem:[%s7409 + $0x1b0] sm:$0xff]
    %v7465 = vld [vmem:[%s7409 + $0x1b8] sm:$0xff]
    %v7466 = vld [vmem:[%s7409 + $0x1c0] sm:$0xff]
    %v7467 = vld [vmem:[%s7409 + $0x1c8] sm:$0xff]
    %v7468 = vld [vmem:[%s7409 + $0x1d0] sm:$0xff]
    %v7469 = vld [vmem:[%s7409 + $0x1d8] sm:$0xff]
    %v7470 = vld [vmem:[%s7409 + $0x1e0] sm:$0xff]
    %v7471 = vld [vmem:[%s7409 + $0x1e8] sm:$0xff]
    %v7472 = vld [vmem:[%s7409 + $0x1f0] sm:$0xff]
    %v7473 = vld [vmem:[%s7409 + $0x1f8] sm:$0xff]
    %7475 = vset.pattern.permute.xlu0 0
    %7476 = vperm.xlu0 %7475, %v7410
    %v7477 = vpop.permute.xlu0 %7476
    %7480 = vset.pattern.permute.xlu0 0
    %7481 = vperm.xlu0 %7480, %v7411
    %v7482 = vpop.permute.xlu0 %7481
    %7485 = vset.pattern.permute.xlu0 0
    %7486 = vperm.xlu0 %7485, %v7412
    %v7487 = vpop.permute.xlu0 %7486
    %7490 = vset.pattern.permute.xlu0 0
    %7491 = vperm.xlu0 %7490, %v7413
    %v7492 = vpop.permute.xlu0 %7491
    %7495 = vset.pattern.permute.xlu0 0
    %7496 = vperm.xlu0 %7495, %v7414
    %v7497 = vpop.permute.xlu0 %7496
    %7500 = vset.pattern.permute.xlu0 0
    %7501 = vperm.xlu0 %7500, %v7415
    %v7502 = vpop.permute.xlu0 %7501
    %7505 = vset.pattern.permute.xlu0 0
    %7506 = vperm.xlu0 %7505, %v7416
    %v7507 = vpop.permute.xlu0 %7506
    %7510 = vset.pattern.permute.xlu0 0
    %7511 = vperm.xlu0 %7510, %v7417
    %v7512 = vpop.permute.xlu0 %7511
    %7515 = vset.pattern.permute.xlu0 0
    %7516 = vperm.xlu0 %7515, %v7418
    %v7517 = vpop.permute.xlu0 %7516
    %7520 = vset.pattern.permute.xlu0 0
    %7521 = vperm.xlu0 %7520, %v7419
    %v7522 = vpop.permute.xlu0 %7521
    %7525 = vset.pattern.permute.xlu0 0
    %7526 = vperm.xlu0 %7525, %v7420
    %v7527 = vpop.permute.xlu0 %7526
    %7530 = vset.pattern.permute.xlu0 0
    %7531 = vperm.xlu0 %7530, %v7421
    %v7532 = vpop.permute.xlu0 %7531
    %7535 = vset.pattern.permute.xlu0 0
    %7536 = vperm.xlu0 %7535, %v7422
    %v7537 = vpop.permute.xlu0 %7536
    %7540 = vset.pattern.permute.xlu0 0
    %7541 = vperm.xlu0 %7540, %v7423
    %v7542 = vpop.permute.xlu0 %7541
    %7545 = vset.pattern.permute.xlu0 0
    %7546 = vperm.xlu0 %7545, %v7424
    %v7547 = vpop.permute.xlu0 %7546
    %7550 = vset.pattern.permute.xlu0 0
    %7551 = vperm.xlu0 %7550, %v7425
    %v7552 = vpop.permute.xlu0 %7551
    %7555 = vset.pattern.permute.xlu0 0
    %7556 = vperm.xlu0 %7555, %v7426
    %v7557 = vpop.permute.xlu0 %7556
    %7560 = vset.pattern.permute.xlu0 0
    %7561 = vperm.xlu0 %7560, %v7427
    %v7562 = vpop.permute.xlu0 %7561
    %7565 = vset.pattern.permute.xlu0 0
    %7566 = vperm.xlu0 %7565, %v7428
    %v7567 = vpop.permute.xlu0 %7566
    %7570 = vset.pattern.permute.xlu0 0
    %7571 = vperm.xlu0 %7570, %v7429
    %v7572 = vpop.permute.xlu0 %7571
    %7575 = vset.pattern.permute.xlu0 0
    %7576 = vperm.xlu0 %7575, %v7430
    %v7577 = vpop.permute.xlu0 %7576
    %7580 = vset.pattern.permute.xlu0 0
    %7581 = vperm.xlu0 %7580, %v7431
    %v7582 = vpop.permute.xlu0 %7581
    %7585 = vset.pattern.permute.xlu0 0
    %7586 = vperm.xlu0 %7585, %v7432
    %v7587 = vpop.permute.xlu0 %7586
    %7590 = vset.pattern.permute.xlu0 0
    %7591 = vperm.xlu0 %7590, %v7433
    %v7592 = vpop.permute.xlu0 %7591
    %7595 = vset.pattern.permute.xlu0 0
    %7596 = vperm.xlu0 %7595, %v7434
    %v7597 = vpop.permute.xlu0 %7596
    %7600 = vset.pattern.permute.xlu0 0
    %7601 = vperm.xlu0 %7600, %v7435
    %v7602 = vpop.permute.xlu0 %7601
    %7605 = vset.pattern.permute.xlu0 0
    %7606 = vperm.xlu0 %7605, %v7436
    %v7607 = vpop.permute.xlu0 %7606
    %7610 = vset.pattern.permute.xlu0 0
    %7611 = vperm.xlu0 %7610, %v7437
    %v7612 = vpop.permute.xlu0 %7611
    %7615 = vset.pattern.permute.xlu0 0
    %7616 = vperm.xlu0 %7615, %v7438
    %v7617 = vpop.permute.xlu0 %7616
    %7620 = vset.pattern.permute.xlu0 0
    %7621 = vperm.xlu0 %7620, %v7439
    %v7622 = vpop.permute.xlu0 %7621
    %7625 = vset.pattern.permute.xlu0 0
    %7626 = vperm.xlu0 %7625, %v7440
    %v7627 = vpop.permute.xlu0 %7626
    %7630 = vset.pattern.permute.xlu0 0
    %7631 = vperm.xlu0 %7630, %v7441
    %v7632 = vpop.permute.xlu0 %7631
    %7635 = vset.pattern.permute.xlu0 0
    %7636 = vperm.xlu0 %7635, %v7442
    %v7637 = vpop.permute.xlu0 %7636
    %7640 = vset.pattern.permute.xlu0 0
    %7641 = vperm.xlu0 %7640, %v7443
    %v7642 = vpop.permute.xlu0 %7641
    %7645 = vset.pattern.permute.xlu0 0
    %7646 = vperm.xlu0 %7645, %v7444
    %v7647 = vpop.permute.xlu0 %7646
    %7650 = vset.pattern.permute.xlu0 0
    %7651 = vperm.xlu0 %7650, %v7445
    %v7652 = vpop.permute.xlu0 %7651
    %7655 = vset.pattern.permute.xlu0 0
    %7656 = vperm.xlu0 %7655, %v7446
    %v7657 = vpop.permute.xlu0 %7656
    %7660 = vset.pattern.permute.xlu0 0
    %7661 = vperm.xlu0 %7660, %v7447
    %v7662 = vpop.permute.xlu0 %7661
    %7665 = vset.pattern.permute.xlu0 0
    %7666 = vperm.xlu0 %7665, %v7448
    %v7667 = vpop.permute.xlu0 %7666
    %7670 = vset.pattern.permute.xlu0 0
    %7671 = vperm.xlu0 %7670, %v7449
    %v7672 = vpop.permute.xlu0 %7671
    %7675 = vset.pattern.permute.xlu0 0
    %7676 = vperm.xlu0 %7675, %v7450
    %v7677 = vpop.permute.xlu0 %7676
    %7680 = vset.pattern.permute.xlu0 0
    %7681 = vperm.xlu0 %7680, %v7451
    %v7682 = vpop.permute.xlu0 %7681
    %7685 = vset.pattern.permute.xlu0 0
    %7686 = vperm.xlu0 %7685, %v7452
    %v7687 = vpop.permute.xlu0 %7686
    %7690 = vset.pattern.permute.xlu0 0
    %7691 = vperm.xlu0 %7690, %v7453
    %v7692 = vpop.permute.xlu0 %7691
    %7695 = vset.pattern.permute.xlu0 0
    %7696 = vperm.xlu0 %7695, %v7454
    %v7697 = vpop.permute.xlu0 %7696
    %7700 = vset.pattern.permute.xlu0 0
    %7701 = vperm.xlu0 %7700, %v7455
    %v7702 = vpop.permute.xlu0 %7701
    %7705 = vset.pattern.permute.xlu0 0
    %7706 = vperm.xlu0 %7705, %v7456
    %v7707 = vpop.permute.xlu0 %7706
    %7710 = vset.pattern.permute.xlu0 0
    %7711 = vperm.xlu0 %7710, %v7457
    %v7712 = vpop.permute.xlu0 %7711
    %7715 = vset.pattern.permute.xlu0 0
    %7716 = vperm.xlu0 %7715, %v7458
    %v7717 = vpop.permute.xlu0 %7716
    %7720 = vset.pattern.permute.xlu0 0
    %7721 = vperm.xlu0 %7720, %v7459
    %v7722 = vpop.permute.xlu0 %7721
    %7725 = vset.pattern.permute.xlu0 0
    %7726 = vperm.xlu0 %7725, %v7460
    %v7727 = vpop.permute.xlu0 %7726
    %7730 = vset.pattern.permute.xlu0 0
    %7731 = vperm.xlu0 %7730, %v7461
    %v7732 = vpop.permute.xlu0 %7731
    %7735 = vset.pattern.permute.xlu0 0
    %7736 = vperm.xlu0 %7735, %v7462
    %v7737 = vpop.permute.xlu0 %7736
    %7740 = vset.pattern.permute.xlu0 0
    %7741 = vperm.xlu0 %7740, %v7463
    %v7742 = vpop.permute.xlu0 %7741
    %7745 = vset.pattern.permute.xlu0 0
    %7746 = vperm.xlu0 %7745, %v7464
    %v7747 = vpop.permute.xlu0 %7746
    %7750 = vset.pattern.permute.xlu0 0
    %7751 = vperm.xlu0 %7750, %v7465
    %v7752 = vpop.permute.xlu0 %7751
    %7755 = vset.pattern.permute.xlu0 0
    %7756 = vperm.xlu0 %7755, %v7466
    %v7757 = vpop.permute.xlu0 %7756
    %7760 = vset.pattern.permute.xlu0 0
    %7761 = vperm.xlu0 %7760, %v7467
    %v7762 = vpop.permute.xlu0 %7761
    %7765 = vset.pattern.permute.xlu0 0
    %7766 = vperm.xlu0 %7765, %v7468
    %v7767 = vpop.permute.xlu0 %7766
    %7770 = vset.pattern.permute.xlu0 0
    %7771 = vperm.xlu0 %7770, %v7469
    %v7772 = vpop.permute.xlu0 %7771
    %7775 = vset.pattern.permute.xlu0 0
    %7776 = vperm.xlu0 %7775, %v7470
    %v7777 = vpop.permute.xlu0 %7776
    %7780 = vset.pattern.permute.xlu0 0
    %7781 = vperm.xlu0 %7780, %v7471
    %v7782 = vpop.permute.xlu0 %7781
    %7785 = vset.pattern.permute.xlu0 0
    %7786 = vperm.xlu0 %7785, %v7472
    %v7787 = vpop.permute.xlu0 %7786
    %7790 = vset.pattern.permute.xlu0 0
    %7791 = vperm.xlu0 %7790, %v7473
    %v7792 = vpop.permute.xlu0 %7791
    %v7794 = vmul.f32 %v6945, %v7477
    %v7795 = vmul.f32 %v6949, %v7482
    %v7796 = vmul.f32 %v6955, %v7487
    %v7797 = vmul.f32 %v6959, %v7492
    %v7798 = vmul.f32 %v6645, %v7497
    %v7799 = vmul.f32 %v6649, %v7502
    %v7800 = vmul.f32 %v6655, %v7507
    %v7801 = vmul.f32 %v6659, %v7512
    %v7802 = vmul.f32 %v6665, %v7517
    %v7803 = vmul.f32 %v6669, %v7522
    %v7804 = vmul.f32 %v6675, %v7527
    %v7805 = vmul.f32 %v6679, %v7532
    %v7806 = vmul.f32 %v6685, %v7537
    %v7807 = vmul.f32 %v6689, %v7542
    %v7808 = vmul.f32 %v6695, %v7547
    %v7809 = vmul.f32 %v6699, %v7552
    %v7810 = vmul.f32 %v6705, %v7557
    %v7811 = vmul.f32 %v6709, %v7562
    %v7812 = vmul.f32 %v6715, %v7567
    %v7813 = vmul.f32 %v6719, %v7572
    %v7814 = vmul.f32 %v6725, %v7577
    %v7815 = vmul.f32 %v6729, %v7582
    %v7816 = vmul.f32 %v6735, %v7587
    %v7817 = vmul.f32 %v6739, %v7592
    %v7818 = vmul.f32 %v6745, %v7597
    %v7819 = vmul.f32 %v6749, %v7602
    %v7820 = vmul.f32 %v6755, %v7607
    %v7821 = vmul.f32 %v6759, %v7612
    %v7822 = vmul.f32 %v6765, %v7617
    %v7823 = vmul.f32 %v6769, %v7622
    %v7824 = vmul.f32 %v6775, %v7627
    %v7825 = vmul.f32 %v6779, %v7632
    %v7826 = vmul.f32 %v6785, %v7637
    %v7827 = vmul.f32 %v6789, %v7642
    %v7828 = vmul.f32 %v6795, %v7647
    %v7829 = vmul.f32 %v6799, %v7652
    %v7830 = vmul.f32 %v6805, %v7657
    %v7831 = vmul.f32 %v6809, %v7662
    %v7832 = vmul.f32 %v6815, %v7667
    %v7833 = vmul.f32 %v6819, %v7672
    %v7834 = vmul.f32 %v6825, %v7677
    %v7835 = vmul.f32 %v6829, %v7682
    %v7836 = vmul.f32 %v6835, %v7687
    %v7837 = vmul.f32 %v6839, %v7692
    %v7838 = vmul.f32 %v6845, %v7697
    %v7839 = vmul.f32 %v6849, %v7702
    %v7840 = vmul.f32 %v6855, %v7707
    %v7841 = vmul.f32 %v6859, %v7712
    %v7842 = vmul.f32 %v6865, %v7717
    %v7843 = vmul.f32 %v6869, %v7722
    %v7844 = vmul.f32 %v6875, %v7727
    %v7845 = vmul.f32 %v6879, %v7732
    %v7846 = vmul.f32 %v6885, %v7737
    %v7847 = vmul.f32 %v6889, %v7742
    %v7848 = vmul.f32 %v6895, %v7747
    %v7849 = vmul.f32 %v6899, %v7752
    %v7850 = vmul.f32 %v6905, %v7757
    %v7851 = vmul.f32 %v6909, %v7762
    %v7852 = vmul.f32 %v6915, %v7767
    %v7853 = vmul.f32 %v6919, %v7772
    %v7854 = vmul.f32 %v6925, %v7777
    %v7855 = vmul.f32 %v6929, %v7782
    %v7856 = vmul.f32 %v6935, %v7787
    %v7857 = vmul.f32 %v6939, %v7792
    %v7858 = vadd.f32 %v7345, %v7794
    %v7859 = vadd.f32 %v7346, %v7795
    %v7860 = vadd.f32 %v7347, %v7796
    %v7861 = vadd.f32 %v7348, %v7797
    %v7862 = vadd.f32 %v7349, %v7798
    %v7863 = vadd.f32 %v7350, %v7799
    %v7864 = vadd.f32 %v7351, %v7800
    %v7865 = vadd.f32 %v7352, %v7801
    %v7866 = vadd.f32 %v7353, %v7802
    %v7867 = vadd.f32 %v7354, %v7803
    %v7868 = vadd.f32 %v7355, %v7804
    %v7869 = vadd.f32 %v7356, %v7805
    %v7870 = vadd.f32 %v7357, %v7806
    %v7871 = vadd.f32 %v7358, %v7807
    %v7872 = vadd.f32 %v7359, %v7808
    %v7873 = vadd.f32 %v7360, %v7809
    %v7874 = vadd.f32 %v7361, %v7810
    %v7875 = vadd.f32 %v7362, %v7811
    %v7876 = vadd.f32 %v7363, %v7812
    %v7877 = vadd.f32 %v7364, %v7813
    %v7878 = vadd.f32 %v7365, %v7814
    %v7879 = vadd.f32 %v7366, %v7815
    %v7880 = vadd.f32 %v7367, %v7816
    %v7881 = vadd.f32 %v7368, %v7817
    %v7882 = vadd.f32 %v7369, %v7818
    %v7883 = vadd.f32 %v7370, %v7819
    %v7884 = vadd.f32 %v7371, %v7820
    %v7885 = vadd.f32 %v7372, %v7821
    %v7886 = vadd.f32 %v7373, %v7822
    %v7887 = vadd.f32 %v7374, %v7823
    %v7888 = vadd.f32 %v7375, %v7824
    %v7889 = vadd.f32 %v7376, %v7825
    %v7890 = vadd.f32 %v7377, %v7826
    %v7891 = vadd.f32 %v7378, %v7827
    %v7892 = vadd.f32 %v7379, %v7828
    %v7893 = vadd.f32 %v7380, %v7829
    %v7894 = vadd.f32 %v7381, %v7830
    %v7895 = vadd.f32 %v7382, %v7831
    %v7896 = vadd.f32 %v7383, %v7832
    %v7897 = vadd.f32 %v7384, %v7833
    %v7898 = vadd.f32 %v7385, %v7834
    %v7899 = vadd.f32 %v7386, %v7835
    %v7900 = vadd.f32 %v7387, %v7836
    %v7901 = vadd.f32 %v7388, %v7837
    %v7902 = vadd.f32 %v7389, %v7838
    %v7903 = vadd.f32 %v7390, %v7839
    %v7904 = vadd.f32 %v7391, %v7840
    %v7905 = vadd.f32 %v7392, %v7841
    %v7906 = vadd.f32 %v7393, %v7842
    %v7907 = vadd.f32 %v7394, %v7843
    %v7908 = vadd.f32 %v7395, %v7844
    %v7909 = vadd.f32 %v7396, %v7845
    %v7910 = vadd.f32 %v7397, %v7846
    %v7911 = vadd.f32 %v7398, %v7847
    %v7912 = vadd.f32 %v7399, %v7848
    %v7913 = vadd.f32 %v7400, %v7849
    %v7914 = vadd.f32 %v7401, %v7850
    %v7915 = vadd.f32 %v7402, %v7851
    %v7916 = vadd.f32 %v7403, %v7852
    %v7917 = vadd.f32 %v7404, %v7853
    %v7918 = vadd.f32 %v7405, %v7854
    %v7919 = vadd.f32 %v7406, %v7855
    %v7920 = vadd.f32 %v7407, %v7856
    %v7921 = vadd.f32 %v7408, %v7857
    %v7922 = vld [vmem:[%s5 + $0x8] sm:$0xff]
    %v7923 = vld [vmem:[%s5 + $0x24] sm:$0xff]
    %v7924 = vld [vmem:[%s5 + $0x40] sm:$0xff]
    %v7925 = vld [vmem:[%s5 + $0x5c] sm:$0xff]
    %v7926 = vld [vmem:[%s5 + $0x78] sm:$0xff]
    %v7927 = vld [vmem:[%s5 + $0x94] sm:$0xff]
    %v7928 = vld [vmem:[%s5 + $0xb0] sm:$0xff]
    %v7929 = vld [vmem:[%s5 + $0xcc] sm:$0xff]
    %v7930 = vld [vmem:[%s5 + $0xe8] sm:$0xff]
    %v7931 = vld [vmem:[%s5 + $0x104] sm:$0xff]
    %v7932 = vld [vmem:[%s5 + $0x120] sm:$0xff]
    %v7933 = vld [vmem:[%s5 + $0x13c] sm:$0xff]
    %v7934 = vld [vmem:[%s5 + $0x158] sm:$0xff]
    %v7935 = vld [vmem:[%s5 + $0x174] sm:$0xff]
    %v7936 = vld [vmem:[%s5 + $0x190] sm:$0xff]
    %v7937 = vld [vmem:[%s5 + $0x1ac] sm:$0xff]
    %v7954 = vunpack.c.l.b16 %v7922
    %v7955 = vunpack.c.h.b16 %v7922
    %v7956 = vunpack.c.l.b16 %v7923
    %v7957 = vunpack.c.h.b16 %v7923
    %v7958 = vunpack.c.l.b16 %v7924
    %v7959 = vunpack.c.h.b16 %v7924
    %v7960 = vunpack.c.l.b16 %v7925
    %v7961 = vunpack.c.h.b16 %v7925
    %v7962 = vunpack.c.l.b16 %v7926
    %v7963 = vunpack.c.h.b16 %v7926
    %v7964 = vunpack.c.l.b16 %v7927
    %v7965 = vunpack.c.h.b16 %v7927
    %v7966 = vunpack.c.l.b16 %v7928
    %v7967 = vunpack.c.h.b16 %v7928
    %v7968 = vunpack.c.l.b16 %v7929
    %v7969 = vunpack.c.h.b16 %v7929
    %v7970 = vunpack.c.l.b16 %v7930
    %v7971 = vunpack.c.h.b16 %v7930
    %v7972 = vunpack.c.l.b16 %v7931
    %v7973 = vunpack.c.h.b16 %v7931
    %v7974 = vunpack.c.l.b16 %v7932
    %v7975 = vunpack.c.h.b16 %v7932
    %v7976 = vunpack.c.l.b16 %v7933
    %v7977 = vunpack.c.h.b16 %v7933
    %v7978 = vunpack.c.l.b16 %v7934
    %v7979 = vunpack.c.h.b16 %v7934
    %v7980 = vunpack.c.l.b16 %v7935
    %v7981 = vunpack.c.h.b16 %v7935
    %v7982 = vunpack.c.l.b16 %v7936
    %v7983 = vunpack.c.h.b16 %v7936
    %v7984 = vunpack.c.l.b16 %v7937
    %v7985 = vunpack.c.h.b16 %v7937
    %v7986 = vpack.c.b16 %v7956, %v7954
    %v7987 = vpack.c.b16 %v7957, %v7955
    %v7988 = vpack.c.b16 %v7960, %v7958
    %v7989 = vpack.c.b16 %v7961, %v7959
    %v7990 = vpack.c.b16 %v7964, %v7962
    %v7991 = vpack.c.b16 %v7965, %v7963
    %v7992 = vpack.c.b16 %v7968, %v7966
    %v7993 = vpack.c.b16 %v7969, %v7967
    %v7994 = vpack.c.b16 %v7972, %v7970
    %v7995 = vpack.c.b16 %v7973, %v7971
    %v7996 = vpack.c.b16 %v7976, %v7974
    %v7997 = vpack.c.b16 %v7977, %v7975
    %v7998 = vpack.c.b16 %v7980, %v7978
    %v7999 = vpack.c.b16 %v7981, %v7979
    %v8000 = vpack.c.b16 %v7984, %v7982
    %v8001 = vpack.c.b16 %v7985, %v7983
    %8018 = vmatprep.subr.bf16.mxu0 %v7987
    %8019 = vmatpush1.bf16.msra.mxu0 %v7986
    %8020 = vmatprep.subr.bf16.mxu0 %v7989
    %8021 = vmatpush1.bf16.msra.mxu0 %v7988
    %8022 = vmatprep.subr.bf16.mxu0 %v7991
    %8023 = vmatpush1.bf16.msra.mxu0 %v7990
    %8024 = vmatprep.subr.bf16.mxu0 %v7993
    %8025 = vmatpush1.bf16.msra.mxu0 %v7992
    %8026 = vmatprep.subr.bf16.mxu0 %v7995
    %8027 = vmatpush1.bf16.msra.mxu0 %v7994
    %8028 = vmatprep.subr.bf16.mxu0 %v7997
    %8029 = vmatpush1.bf16.msra.mxu0 %v7996
    %8030 = vmatprep.subr.bf16.mxu0 %v7999
    %8031 = vmatpush1.bf16.msra.mxu0 %v7998
    %8032 = vmatprep.subr.bf16.mxu0 %v8001
    %8033 = vmatpush1.bf16.msra.mxu0 %v8000
    %8034 = vmatprep.subr.bf16.mxu0 0
    %8035 = vmatpush1.bf16.msra.mxu0 0
    %8036 = vmatprep.subr.bf16.mxu0 0
    %8037 = vmatpush1.bf16.msra.mxu0 0
    %8038 = vmatprep.subr.bf16.mxu0 0
    %8039 = vmatpush1.bf16.msra.mxu0 0
    %8040 = vmatprep.subr.bf16.mxu0 0
    %8041 = vmatpush1.bf16.msra.mxu0 0
    %8042 = vmatprep.subr.bf16.mxu0 0
    %8043 = vmatpush1.bf16.msra.mxu0 0
    %8044 = vmatprep.subr.bf16.mxu0 0
    %8045 = vmatpush1.bf16.msra.mxu0 0
    %8046 = vmatprep.subr.bf16.mxu0 0
    %8047 = vmatpush1.bf16.msra.mxu0 0
    %8048 = vmatprep.subr.bf16.mxu0 0
    %8049 = vmatpush1.bf16.msra.mxu0 0
    %8050 = vmatprep.mubr.bf16.mxu0 0
    %8051 = vmatmul.mubr.bf16.gmra.mrb[0].mxu0 %v6480
    %v8052 = vpop.f32.mrb[0].mxu0
    %v8053 = vadd.f32 0.0, %v8052
    %v8054 = vpop.f32.mrb[0].mxu0
    %v8055 = vadd.f32 0.0, %v8054
    %v8056 = vpop.f32.mrb[0].mxu0
    %v8057 = vadd.f32 0.0, %v8056
    %v8058 = vpop.f32.mrb[0].mxu0
    %v8059 = vadd.f32 0.0, %v8058
    %8060 = vmatprep.mubr.bf16.mxu0 0
    %8061 = vmatmul.mubr.bf16.gmra.mrb[0].mxu0 %v6481
    %v8062 = vpop.f32.mrb[0].mxu0
    %v8063 = vadd.f32 0.0, %v8062
    %v8064 = vpop.f32.mrb[0].mxu0
    %v8065 = vadd.f32 0.0, %v8064
    %v8066 = vpop.f32.mrb[0].mxu0
    %v8067 = vadd.f32 0.0, %v8066
    %v8068 = vpop.f32.mrb[0].mxu0
    %v8069 = vadd.f32 0.0, %v8068
    %8070 = vmatprep.mubr.bf16.mxu0 0
    %8071 = vmatmul.mubr.bf16.gmra.mrb[0].mxu0 %v6482
    %v8072 = vpop.f32.mrb[0].mxu0
    %v8073 = vadd.f32 0.0, %v8072
    %v8074 = vpop.f32.mrb[0].mxu0
    %v8075 = vadd.f32 0.0, %v8074
    %v8076 = vpop.f32.mrb[0].mxu0
    %v8077 = vadd.f32 0.0, %v8076
    %v8078 = vpop.f32.mrb[0].mxu0
    %v8079 = vadd.f32 0.0, %v8078
    %8080 = vmatprep.mubr.bf16.mxu0 0
    %8081 = vmatmul.mubr.bf16.gmra.mrb[0].mxu0 %v6483
    %v8082 = vpop.f32.mrb[0].mxu0
    %v8083 = vadd.f32 0.0, %v8082
    %v8084 = vpop.f32.mrb[0].mxu0
    %v8085 = vadd.f32 0.0, %v8084
    %v8086 = vpop.f32.mrb[0].mxu0
    %v8087 = vadd.f32 0.0, %v8086
    %v8088 = vpop.f32.mrb[0].mxu0
    %v8089 = vadd.f32 0.0, %v8088
    %8090 = vmatprep.mubr.bf16.mxu0 0
    %8091 = vmatmul.mubr.bf16.gmra.mrb[0].mxu0 %v6484
    %v8092 = vpop.f32.mrb[0].mxu0
    %v8093 = vadd.f32 0.0, %v8092
    %v8094 = vpop.f32.mrb[0].mxu0
    %v8095 = vadd.f32 0.0, %v8094
    %v8096 = vpop.f32.mrb[0].mxu0
    %v8097 = vadd.f32 0.0, %v8096
    %v8098 = vpop.f32.mrb[0].mxu0
    %v8099 = vadd.f32 0.0, %v8098
    %8100 = vmatprep.mubr.bf16.mxu0 0
    %8101 = vmatmul.mubr.bf16.gmra.mrb[0].mxu0 %v6485
    %v8102 = vpop.f32.mrb[0].mxu0
    %v8103 = vadd.f32 0.0, %v8102
    %v8104 = vpop.f32.mrb[0].mxu0
    %v8105 = vadd.f32 0.0, %v8104
    %v8106 = vpop.f32.mrb[0].mxu0
    %v8107 = vadd.f32 0.0, %v8106
    %v8108 = vpop.f32.mrb[0].mxu0
    %v8109 = vadd.f32 0.0, %v8108
    %8110 = vmatprep.mubr.bf16.mxu0 0
    %8111 = vmatmul.mubr.bf16.gmra.mrb[0].mxu0 %v6486
    %v8112 = vpop.f32.mrb[0].mxu0
    %v8113 = vadd.f32 0.0, %v8112
    %v8114 = vpop.f32.mrb[0].mxu0
    %v8115 = vadd.f32 0.0, %v8114
    %v8116 = vpop.f32.mrb[0].mxu0
    %v8117 = vadd.f32 0.0, %v8116
    %v8118 = vpop.f32.mrb[0].mxu0
    %v8119 = vadd.f32 0.0, %v8118
    %8120 = vmatprep.mubr.bf16.mxu0 0
    %8121 = vmatmul.mubr.bf16.gmra.mrb[0].mxu0 %v6487
    %v8122 = vpop.f32.mrb[0].mxu0
    %v8123 = vadd.f32 0.0, %v8122
    %v8124 = vpop.f32.mrb[0].mxu0
    %v8125 = vadd.f32 0.0, %v8124
    %v8126 = vpop.f32.mrb[0].mxu0
    %v8127 = vadd.f32 0.0, %v8126
    %v8128 = vpop.f32.mrb[0].mxu0
    %v8129 = vadd.f32 0.0, %v8128
    %8130 = vmatprep.mubr.bf16.mxu0 0
    %8131 = vmatmul.mubr.bf16.gmra.mrb[0].mxu0 %v6488
    %v8132 = vpop.f32.mrb[0].mxu0
    %v8133 = vadd.f32 0.0, %v8132
    %v8134 = vpop.f32.mrb[0].mxu0
    %v8135 = vadd.f32 0.0, %v8134
    %v8136 = vpop.f32.mrb[0].mxu0
    %v8137 = vadd.f32 0.0, %v8136
    %v8138 = vpop.f32.mrb[0].mxu0
    %v8139 = vadd.f32 0.0, %v8138
    %8140 = vmatprep.mubr.bf16.mxu0 0
    %8141 = vmatmul.mubr.bf16.gmra.mrb[0].mxu0 %v6489
    %v8142 = vpop.f32.mrb[0].mxu0
    %v8143 = vadd.f32 0.0, %v8142
    %v8144 = vpop.f32.mrb[0].mxu0
    %v8145 = vadd.f32 0.0, %v8144
    %v8146 = vpop.f32.mrb[0].mxu0
    %v8147 = vadd.f32 0.0, %v8146
    %v8148 = vpop.f32.mrb[0].mxu0
    %v8149 = vadd.f32 0.0, %v8148
    %8150 = vmatprep.mubr.bf16.mxu0 0
    %8151 = vmatmul.mubr.bf16.gmra.mrb[0].mxu0 %v6490
    %v8152 = vpop.f32.mrb[0].mxu0
    %v8153 = vadd.f32 0.0, %v8152
    %v8154 = vpop.f32.mrb[0].mxu0
    %v8155 = vadd.f32 0.0, %v8154
    %v8156 = vpop.f32.mrb[0].mxu0
    %v8157 = vadd.f32 0.0, %v8156
    %v8158 = vpop.f32.mrb[0].mxu0
    %v8159 = vadd.f32 0.0, %v8158
    %8160 = vmatprep.mubr.bf16.mxu0 0
    %8161 = vmatmul.mubr.bf16.gmra.mrb[0].mxu0 %v6491
    %v8162 = vpop.f32.mrb[0].mxu0
    %v8163 = vadd.f32 0.0, %v8162
    %v8164 = vpop.f32.mrb[0].mxu0
    %v8165 = vadd.f32 0.0, %v8164
    %v8166 = vpop.f32.mrb[0].mxu0
    %v8167 = vadd.f32 0.0, %v8166
    %v8168 = vpop.f32.mrb[0].mxu0
    %v8169 = vadd.f32 0.0, %v8168
    %8170 = vmatprep.mubr.bf16.mxu0 0
    %8171 = vmatmul.mubr.bf16.gmra.mrb[0].mxu0 %v6492
    %v8172 = vpop.f32.mrb[0].mxu0
    %v8173 = vadd.f32 0.0, %v8172
    %v8174 = vpop.f32.mrb[0].mxu0
    %v8175 = vadd.f32 0.0, %v8174
    %v8176 = vpop.f32.mrb[0].mxu0
    %v8177 = vadd.f32 0.0, %v8176
    %v8178 = vpop.f32.mrb[0].mxu0
    %v8179 = vadd.f32 0.0, %v8178
    %8180 = vmatprep.mubr.bf16.mxu0 0
    %8181 = vmatmul.mubr.bf16.gmra.mrb[0].mxu0 %v6493
    %v8182 = vpop.f32.mrb[0].mxu0
    %v8183 = vadd.f32 0.0, %v8182
    %v8184 = vpop.f32.mrb[0].mxu0
    %v8185 = vadd.f32 0.0, %v8184
    %v8186 = vpop.f32.mrb[0].mxu0
    %v8187 = vadd.f32 0.0, %v8186
    %v8188 = vpop.f32.mrb[0].mxu0
    %v8189 = vadd.f32 0.0, %v8188
    %8190 = vmatprep.mubr.bf16.mxu0 0
    %8191 = vmatmul.mubr.bf16.gmra.mrb[0].mxu0 %v6494
    %v8192 = vpop.f32.mrb[0].mxu0
    %v8193 = vadd.f32 0.0, %v8192
    %v8194 = vpop.f32.mrb[0].mxu0
    %v8195 = vadd.f32 0.0, %v8194
    %v8196 = vpop.f32.mrb[0].mxu0
    %v8197 = vadd.f32 0.0, %v8196
    %v8198 = vpop.f32.mrb[0].mxu0
    %v8199 = vadd.f32 0.0, %v8198
    %8200 = vmatprep.mubr.bf16.mxu0 0
    %8201 = vmatmul.mubr.bf16.gmra.mrb[0].mxu0 %v6495
    %v8202 = vpop.f32.mrb[0].mxu0
    %v8203 = vadd.f32 0.0, %v8202
    %v8204 = vpop.f32.mrb[0].mxu0
    %v8205 = vadd.f32 0.0, %v8204
    %v8206 = vpop.f32.mrb[0].mxu0
    %v8207 = vadd.f32 0.0, %v8206
    %v8208 = vpop.f32.mrb[0].mxu0
    %v8209 = vadd.f32 0.0, %v8208
    %8210 = vmatprep.mubr.bf16.mxu0 0
    %8211 = vmatmul.mubr.bf16.gmra.mrb[0].mxu0 %v6496
    %v8212 = vpop.f32.mrb[0].mxu0
    %v8213 = vadd.f32 0.0, %v8212
    %v8214 = vpop.f32.mrb[0].mxu0
    %v8215 = vadd.f32 0.0, %v8214
    %v8216 = vpop.f32.mrb[0].mxu0
    %v8217 = vadd.f32 0.0, %v8216
    %v8218 = vpop.f32.mrb[0].mxu0
    %v8219 = vadd.f32 0.0, %v8218
    %8220 = vmatprep.mubr.bf16.mxu0 0
    %8221 = vmatmul.mubr.bf16.gmra.mrb[0].mxu0 %v6497
    %v8222 = vpop.f32.mrb[0].mxu0
    %v8223 = vadd.f32 0.0, %v8222
    %v8224 = vpop.f32.mrb[0].mxu0
    %v8225 = vadd.f32 0.0, %v8224
    %v8226 = vpop.f32.mrb[0].mxu0
    %v8227 = vadd.f32 0.0, %v8226
    %v8228 = vpop.f32.mrb[0].mxu0
    %v8229 = vadd.f32 0.0, %v8228
    %8230 = vmatprep.mubr.bf16.mxu0 0
    %8231 = vmatmul.mubr.bf16.gmra.mrb[0].mxu0 %v6498
    %v8232 = vpop.f32.mrb[0].mxu0
    %v8233 = vadd.f32 0.0, %v8232
    %v8234 = vpop.f32.mrb[0].mxu0
    %v8235 = vadd.f32 0.0, %v8234
    %v8236 = vpop.f32.mrb[0].mxu0
    %v8237 = vadd.f32 0.0, %v8236
    %v8238 = vpop.f32.mrb[0].mxu0
    %v8239 = vadd.f32 0.0, %v8238
    %8240 = vmatprep.mubr.bf16.mxu0 0
    %8241 = vmatmul.mubr.bf16.gmra.mrb[0].mxu0 %v6499
    %v8242 = vpop.f32.mrb[0].mxu0
    %v8243 = vadd.f32 0.0, %v8242
    %v8244 = vpop.f32.mrb[0].mxu0
    %v8245 = vadd.f32 0.0, %v8244
    %v8246 = vpop.f32.mrb[0].mxu0
    %v8247 = vadd.f32 0.0, %v8246
    %v8248 = vpop.f32.mrb[0].mxu0
    %v8249 = vadd.f32 0.0, %v8248
    %8250 = vmatprep.mubr.bf16.mxu0 0
    %8251 = vmatmul.mubr.bf16.gmra.mrb[0].mxu0 %v6500
    %v8252 = vpop.f32.mrb[0].mxu0
    %v8253 = vadd.f32 0.0, %v8252
    %v8254 = vpop.f32.mrb[0].mxu0
    %v8255 = vadd.f32 0.0, %v8254
    %v8256 = vpop.f32.mrb[0].mxu0
    %v8257 = vadd.f32 0.0, %v8256
    %v8258 = vpop.f32.mrb[0].mxu0
    %v8259 = vadd.f32 0.0, %v8258
    %8260 = vmatprep.mubr.bf16.mxu0 0
    %8261 = vmatmul.mubr.bf16.gmra.mrb[0].mxu0 %v6501
    %v8262 = vpop.f32.mrb[0].mxu0
    %v8263 = vadd.f32 0.0, %v8262
    %v8264 = vpop.f32.mrb[0].mxu0
    %v8265 = vadd.f32 0.0, %v8264
    %v8266 = vpop.f32.mrb[0].mxu0
    %v8267 = vadd.f32 0.0, %v8266
    %v8268 = vpop.f32.mrb[0].mxu0
    %v8269 = vadd.f32 0.0, %v8268
    %8270 = vmatprep.mubr.bf16.mxu0 0
    %8271 = vmatmul.mubr.bf16.gmra.mrb[0].mxu0 %v6502
    %v8272 = vpop.f32.mrb[0].mxu0
    %v8273 = vadd.f32 0.0, %v8272
    %v8274 = vpop.f32.mrb[0].mxu0
    %v8275 = vadd.f32 0.0, %v8274
    %v8276 = vpop.f32.mrb[0].mxu0
    %v8277 = vadd.f32 0.0, %v8276
    %v8278 = vpop.f32.mrb[0].mxu0
    %v8279 = vadd.f32 0.0, %v8278
    %8280 = vmatprep.mubr.bf16.mxu0 0
    %8281 = vmatmul.mubr.bf16.gmra.mrb[0].mxu0 %v6503
    %v8282 = vpop.f32.mrb[0].mxu0
    %v8283 = vadd.f32 0.0, %v8282
    %v8284 = vpop.f32.mrb[0].mxu0
    %v8285 = vadd.f32 0.0, %v8284
    %v8286 = vpop.f32.mrb[0].mxu0
    %v8287 = vadd.f32 0.0, %v8286
    %v8288 = vpop.f32.mrb[0].mxu0
    %v8289 = vadd.f32 0.0, %v8288
    %8290 = vmatprep.mubr.bf16.mxu0 0
    %8291 = vmatmul.mubr.bf16.gmra.mrb[0].mxu0 %v6504
    %v8292 = vpop.f32.mrb[0].mxu0
    %v8293 = vadd.f32 0.0, %v8292
    %v8294 = vpop.f32.mrb[0].mxu0
    %v8295 = vadd.f32 0.0, %v8294
    %v8296 = vpop.f32.mrb[0].mxu0
    %v8297 = vadd.f32 0.0, %v8296
    %v8298 = vpop.f32.mrb[0].mxu0
    %v8299 = vadd.f32 0.0, %v8298
    %8300 = vmatprep.mubr.bf16.mxu0 0
    %8301 = vmatmul.mubr.bf16.gmra.mrb[0].mxu0 %v6505
    %v8302 = vpop.f32.mrb[0].mxu0
    %v8303 = vadd.f32 0.0, %v8302
    %v8304 = vpop.f32.mrb[0].mxu0
    %v8305 = vadd.f32 0.0, %v8304
    %v8306 = vpop.f32.mrb[0].mxu0
    %v8307 = vadd.f32 0.0, %v8306
    %v8308 = vpop.f32.mrb[0].mxu0
    %v8309 = vadd.f32 0.0, %v8308
    %8310 = vmatprep.mubr.bf16.mxu0 0
    %8311 = vmatmul.mubr.bf16.gmra.mrb[0].mxu0 %v6506
    %v8312 = vpop.f32.mrb[0].mxu0
    %v8313 = vadd.f32 0.0, %v8312
    %v8314 = vpop.f32.mrb[0].mxu0
    %v8315 = vadd.f32 0.0, %v8314
    %v8316 = vpop.f32.mrb[0].mxu0
    %v8317 = vadd.f32 0.0, %v8316
    %v8318 = vpop.f32.mrb[0].mxu0
    %v8319 = vadd.f32 0.0, %v8318
    %8320 = vmatprep.mubr.bf16.mxu0 0
    %8321 = vmatmul.mubr.bf16.gmra.mrb[0].mxu0 %v6507
    %v8322 = vpop.f32.mrb[0].mxu0
    %v8323 = vadd.f32 0.0, %v8322
    %v8324 = vpop.f32.mrb[0].mxu0
    %v8325 = vadd.f32 0.0, %v8324
    %v8326 = vpop.f32.mrb[0].mxu0
    %v8327 = vadd.f32 0.0, %v8326
    %v8328 = vpop.f32.mrb[0].mxu0
    %v8329 = vadd.f32 0.0, %v8328
    %8330 = vmatprep.mubr.bf16.mxu0 0
    %8331 = vmatmul.mubr.bf16.gmra.mrb[0].mxu0 %v6508
    %v8332 = vpop.f32.mrb[0].mxu0
    %v8333 = vadd.f32 0.0, %v8332
    %v8334 = vpop.f32.mrb[0].mxu0
    %v8335 = vadd.f32 0.0, %v8334
    %v8336 = vpop.f32.mrb[0].mxu0
    %v8337 = vadd.f32 0.0, %v8336
    %v8338 = vpop.f32.mrb[0].mxu0
    %v8339 = vadd.f32 0.0, %v8338
    %8340 = vmatprep.mubr.bf16.mxu0 0
    %8341 = vmatmul.mubr.bf16.gmra.mrb[0].mxu0 %v6509
    %v8342 = vpop.f32.mrb[0].mxu0
    %v8343 = vadd.f32 0.0, %v8342
    %v8344 = vpop.f32.mrb[0].mxu0
    %v8345 = vadd.f32 0.0, %v8344
    %v8346 = vpop.f32.mrb[0].mxu0
    %v8347 = vadd.f32 0.0, %v8346
    %v8348 = vpop.f32.mrb[0].mxu0
    %v8349 = vadd.f32 0.0, %v8348
    %8350 = vmatprep.mubr.bf16.mxu0 0
    %8351 = vmatmul.mubr.bf16.gmra.mrb[0].mxu0 %v6510
    %v8352 = vpop.f32.mrb[0].mxu0
    %v8353 = vadd.f32 0.0, %v8352
    %v8354 = vpop.f32.mrb[0].mxu0
    %v8355 = vadd.f32 0.0, %v8354
    %v8356 = vpop.f32.mrb[0].mxu0
    %v8357 = vadd.f32 0.0, %v8356
    %v8358 = vpop.f32.mrb[0].mxu0
    %v8359 = vadd.f32 0.0, %v8358
    %8360 = vmatprep.mubr.bf16.mxu0 0
    %8361 = vmatmul.mubr.bf16.gmra.mrb[0].mxu0 %v6511
    %v8362 = vpop.f32.mrb[0].mxu0
    %v8363 = vadd.f32 0.0, %v8362
    %v8364 = vpop.f32.mrb[0].mxu0
    %v8365 = vadd.f32 0.0, %v8364
    %v8366 = vpop.f32.mrb[0].mxu0
    %v8367 = vadd.f32 0.0, %v8366
    %v8368 = vpop.f32.mrb[0].mxu0
    %v8369 = vadd.f32 0.0, %v8368
    %8370 = vdwg.mxu0
    %s8371 = scalar_lea.vmem %s11, 1024
    %v8372 = vld [vmem:[%s8371] sm:$0xff]
    %v8373 = vld [vmem:[%s8371 + $0x8] sm:$0xff]
    %v8374 = vld [vmem:[%s8371 + $0x10] sm:$0xff]
    %v8375 = vld [vmem:[%s8371 + $0x18] sm:$0xff]
    %v8376 = vld [vmem:[%s8371 + $0x20] sm:$0xff]
    %v8377 = vld [vmem:[%s8371 + $0x28] sm:$0xff]
    %v8378 = vld [vmem:[%s8371 + $0x30] sm:$0xff]
    %v8379 = vld [vmem:[%s8371 + $0x38] sm:$0xff]
    %v8380 = vld [vmem:[%s8371 + $0x40] sm:$0xff]
    %v8381 = vld [vmem:[%s8371 + $0x48] sm:$0xff]
    %v8382 = vld [vmem:[%s8371 + $0x50] sm:$0xff]
    %v8383 = vld [vmem:[%s8371 + $0x58] sm:$0xff]
    %v8384 = vld [vmem:[%s8371 + $0x60] sm:$0xff]
    %v8385 = vld [vmem:[%s8371 + $0x68] sm:$0xff]
    %v8386 = vld [vmem:[%s8371 + $0x70] sm:$0xff]
    %v8387 = vld [vmem:[%s8371 + $0x78] sm:$0xff]
    %v8388 = vld [vmem:[%s8371 + $0x80] sm:$0xff]
    %v8389 = vld [vmem:[%s8371 + $0x88] sm:$0xff]
    %v8390 = vld [vmem:[%s8371 + $0x90] sm:$0xff]
    %v8391 = vld [vmem:[%s8371 + $0x98] sm:$0xff]
    %v8392 = vld [vmem:[%s8371 + $0xa0] sm:$0xff]
    %v8393 = vld [vmem:[%s8371 + $0xa8] sm:$0xff]
    %v8394 = vld [vmem:[%s8371 + $0xb0] sm:$0xff]
    %v8395 = vld [vmem:[%s8371 + $0xb8] sm:$0xff]
    %v8396 = vld [vmem:[%s8371 + $0xc0] sm:$0xff]
    %v8397 = vld [vmem:[%s8371 + $0xc8] sm:$0xff]
    %v8398 = vld [vmem:[%s8371 + $0xd0] sm:$0xff]
    %v8399 = vld [vmem:[%s8371 + $0xd8] sm:$0xff]
    %v8400 = vld [vmem:[%s8371 + $0xe0] sm:$0xff]
    %v8401 = vld [vmem:[%s8371 + $0xe8] sm:$0xff]
    %v8402 = vld [vmem:[%s8371 + $0xf0] sm:$0xff]
    %v8403 = vld [vmem:[%s8371 + $0xf8] sm:$0xff]
    %v8404 = vld [vmem:[%s8371 + $0x100] sm:$0xff]
    %v8405 = vld [vmem:[%s8371 + $0x108] sm:$0xff]
    %v8406 = vld [vmem:[%s8371 + $0x110] sm:$0xff]
    %v8407 = vld [vmem:[%s8371 + $0x118] sm:$0xff]
    %v8408 = vld [vmem:[%s8371 + $0x120] sm:$0xff]
    %v8409 = vld [vmem:[%s8371 + $0x128] sm:$0xff]
    %v8410 = vld [vmem:[%s8371 + $0x130] sm:$0xff]
    %v8411 = vld [vmem:[%s8371 + $0x138] sm:$0xff]
    %v8412 = vld [vmem:[%s8371 + $0x140] sm:$0xff]
    %v8413 = vld [vmem:[%s8371 + $0x148] sm:$0xff]
    %v8414 = vld [vmem:[%s8371 + $0x150] sm:$0xff]
    %v8415 = vld [vmem:[%s8371 + $0x158] sm:$0xff]
    %v8416 = vld [vmem:[%s8371 + $0x160] sm:$0xff]
    %v8417 = vld [vmem:[%s8371 + $0x168] sm:$0xff]
    %v8418 = vld [vmem:[%s8371 + $0x170] sm:$0xff]
    %v8419 = vld [vmem:[%s8371 + $0x178] sm:$0xff]
    %v8420 = vld [vmem:[%s8371 + $0x180] sm:$0xff]
    %v8421 = vld [vmem:[%s8371 + $0x188] sm:$0xff]
    %v8422 = vld [vmem:[%s8371 + $0x190] sm:$0xff]
    %v8423 = vld [vmem:[%s8371 + $0x198] sm:$0xff]
    %v8424 = vld [vmem:[%s8371 + $0x1a0] sm:$0xff]
    %v8425 = vld [vmem:[%s8371 + $0x1a8] sm:$0xff]
    %v8426 = vld [vmem:[%s8371 + $0x1b0] sm:$0xff]
    %v8427 = vld [vmem:[%s8371 + $0x1b8] sm:$0xff]
    %v8428 = vld [vmem:[%s8371 + $0x1c0] sm:$0xff]
    %v8429 = vld [vmem:[%s8371 + $0x1c8] sm:$0xff]
    %v8430 = vld [vmem:[%s8371 + $0x1d0] sm:$0xff]
    %v8431 = vld [vmem:[%s8371 + $0x1d8] sm:$0xff]
    %v8432 = vld [vmem:[%s8371 + $0x1e0] sm:$0xff]
    %v8433 = vld [vmem:[%s8371 + $0x1e8] sm:$0xff]
    %v8434 = vld [vmem:[%s8371 + $0x1f0] sm:$0xff]
    %v8435 = vld [vmem:[%s8371 + $0x1f8] sm:$0xff]
    %8437 = vset.pattern.permute.xlu0 0
    %8438 = vperm.xlu0 %8437, %v8372
    %v8439 = vpop.permute.xlu0 %8438
    %8442 = vset.pattern.permute.xlu0 0
    %8443 = vperm.xlu0 %8442, %v8373
    %v8444 = vpop.permute.xlu0 %8443
    %8447 = vset.pattern.permute.xlu0 0
    %8448 = vperm.xlu0 %8447, %v8374
    %v8449 = vpop.permute.xlu0 %8448
    %8452 = vset.pattern.permute.xlu0 0
    %8453 = vperm.xlu0 %8452, %v8375
    %v8454 = vpop.permute.xlu0 %8453
    %8457 = vset.pattern.permute.xlu0 0
    %8458 = vperm.xlu0 %8457, %v8376
    %v8459 = vpop.permute.xlu0 %8458
    %8462 = vset.pattern.permute.xlu0 0
    %8463 = vperm.xlu0 %8462, %v8377
    %v8464 = vpop.permute.xlu0 %8463
    %8467 = vset.pattern.permute.xlu0 0
    %8468 = vperm.xlu0 %8467, %v8378
    %v8469 = vpop.permute.xlu0 %8468
    %8472 = vset.pattern.permute.xlu0 0
    %8473 = vperm.xlu0 %8472, %v8379
    %v8474 = vpop.permute.xlu0 %8473
    %8477 = vset.pattern.permute.xlu0 0
    %8478 = vperm.xlu0 %8477, %v8380
    %v8479 = vpop.permute.xlu0 %8478
    %8482 = vset.pattern.permute.xlu0 0
    %8483 = vperm.xlu0 %8482, %v8381
    %v8484 = vpop.permute.xlu0 %8483
    %8487 = vset.pattern.permute.xlu0 0
    %8488 = vperm.xlu0 %8487, %v8382
    %v8489 = vpop.permute.xlu0 %8488
    %8492 = vset.pattern.permute.xlu0 0
    %8493 = vperm.xlu0 %8492, %v8383
    %v8494 = vpop.permute.xlu0 %8493
    %8497 = vset.pattern.permute.xlu0 0
    %8498 = vperm.xlu0 %8497, %v8384
    %v8499 = vpop.permute.xlu0 %8498
    %8502 = vset.pattern.permute.xlu0 0
    %8503 = vperm.xlu0 %8502, %v8385
    %v8504 = vpop.permute.xlu0 %8503
    %8507 = vset.pattern.permute.xlu0 0
    %8508 = vperm.xlu0 %8507, %v8386
    %v8509 = vpop.permute.xlu0 %8508
    %8512 = vset.pattern.permute.xlu0 0
    %8513 = vperm.xlu0 %8512, %v8387
    %v8514 = vpop.permute.xlu0 %8513
    %8517 = vset.pattern.permute.xlu0 0
    %8518 = vperm.xlu0 %8517, %v8388
    %v8519 = vpop.permute.xlu0 %8518
    %8522 = vset.pattern.permute.xlu0 0
    %8523 = vperm.xlu0 %8522, %v8389
    %v8524 = vpop.permute.xlu0 %8523
    %8527 = vset.pattern.permute.xlu0 0
    %8528 = vperm.xlu0 %8527, %v8390
    %v8529 = vpop.permute.xlu0 %8528
    %8532 = vset.pattern.permute.xlu0 0
    %8533 = vperm.xlu0 %8532, %v8391
    %v8534 = vpop.permute.xlu0 %8533
    %8537 = vset.pattern.permute.xlu0 0
    %8538 = vperm.xlu0 %8537, %v8392
    %v8539 = vpop.permute.xlu0 %8538
    %8542 = vset.pattern.permute.xlu0 0
    %8543 = vperm.xlu0 %8542, %v8393
    %v8544 = vpop.permute.xlu0 %8543
    %8547 = vset.pattern.permute.xlu0 0
    %8548 = vperm.xlu0 %8547, %v8394
    %v8549 = vpop.permute.xlu0 %8548
    %8552 = vset.pattern.permute.xlu0 0
    %8553 = vperm.xlu0 %8552, %v8395
    %v8554 = vpop.permute.xlu0 %8553
    %8557 = vset.pattern.permute.xlu0 0
    %8558 = vperm.xlu0 %8557, %v8396
    %v8559 = vpop.permute.xlu0 %8558
    %8562 = vset.pattern.permute.xlu0 0
    %8563 = vperm.xlu0 %8562, %v8397
    %v8564 = vpop.permute.xlu0 %8563
    %8567 = vset.pattern.permute.xlu0 0
    %8568 = vperm.xlu0 %8567, %v8398
    %v8569 = vpop.permute.xlu0 %8568
    %8572 = vset.pattern.permute.xlu0 0
    %8573 = vperm.xlu0 %8572, %v8399
    %v8574 = vpop.permute.xlu0 %8573
    %8577 = vset.pattern.permute.xlu0 0
    %8578 = vperm.xlu0 %8577, %v8400
    %v8579 = vpop.permute.xlu0 %8578
    %8582 = vset.pattern.permute.xlu0 0
    %8583 = vperm.xlu0 %8582, %v8401
    %v8584 = vpop.permute.xlu0 %8583
    %8587 = vset.pattern.permute.xlu0 0
    %8588 = vperm.xlu0 %8587, %v8402
    %v8589 = vpop.permute.xlu0 %8588
    %8592 = vset.pattern.permute.xlu0 0
    %8593 = vperm.xlu0 %8592, %v8403
    %v8594 = vpop.permute.xlu0 %8593
    %8597 = vset.pattern.permute.xlu0 0
    %8598 = vperm.xlu0 %8597, %v8404
    %v8599 = vpop.permute.xlu0 %8598
    %8602 = vset.pattern.permute.xlu0 0
    %8603 = vperm.xlu0 %8602, %v8405
    %v8604 = vpop.permute.xlu0 %8603
    %8607 = vset.pattern.permute.xlu0 0
    %8608 = vperm.xlu0 %8607, %v8406
    %v8609 = vpop.permute.xlu0 %8608
    %8612 = vset.pattern.permute.xlu0 0
    %8613 = vperm.xlu0 %8612, %v8407
    %v8614 = vpop.permute.xlu0 %8613
    %8617 = vset.pattern.permute.xlu0 0
    %8618 = vperm.xlu0 %8617, %v8408
    %v8619 = vpop.permute.xlu0 %8618
    %8622 = vset.pattern.permute.xlu0 0
    %8623 = vperm.xlu0 %8622, %v8409
    %v8624 = vpop.permute.xlu0 %8623
    %8627 = vset.pattern.permute.xlu0 0
    %8628 = vperm.xlu0 %8627, %v8410
    %v8629 = vpop.permute.xlu0 %8628
    %8632 = vset.pattern.permute.xlu0 0
    %8633 = vperm.xlu0 %8632, %v8411
    %v8634 = vpop.permute.xlu0 %8633
    %8637 = vset.pattern.permute.xlu0 0
    %8638 = vperm.xlu0 %8637, %v8412
    %v8639 = vpop.permute.xlu0 %8638
    %8642 = vset.pattern.permute.xlu0 0
    %8643 = vperm.xlu0 %8642, %v8413
    %v8644 = vpop.permute.xlu0 %8643
    %8647 = vset.pattern.permute.xlu0 0
    %8648 = vperm.xlu0 %8647, %v8414
    %v8649 = vpop.permute.xlu0 %8648
    %8652 = vset.pattern.permute.xlu0 0
    %8653 = vperm.xlu0 %8652, %v8415
    %v8654 = vpop.permute.xlu0 %8653
    %8657 = vset.pattern.permute.xlu0 0
    %8658 = vperm.xlu0 %8657, %v8416
    %v8659 = vpop.permute.xlu0 %8658
    %8662 = vset.pattern.permute.xlu0 0
    %8663 = vperm.xlu0 %8662, %v8417
    %v8664 = vpop.permute.xlu0 %8663
    %8667 = vset.pattern.permute.xlu0 0
    %8668 = vperm.xlu0 %8667, %v8418
    %v8669 = vpop.permute.xlu0 %8668
    %8672 = vset.pattern.permute.xlu0 0
    %8673 = vperm.xlu0 %8672, %v8419
    %v8674 = vpop.permute.xlu0 %8673
    %8677 = vset.pattern.permute.xlu0 0
    %8678 = vperm.xlu0 %8677, %v8420
    %v8679 = vpop.permute.xlu0 %8678
    %8682 = vset.pattern.permute.xlu0 0
    %8683 = vperm.xlu0 %8682, %v8421
    %v8684 = vpop.permute.xlu0 %8683
    %8687 = vset.pattern.permute.xlu0 0
    %8688 = vperm.xlu0 %8687, %v8422
    %v8689 = vpop.permute.xlu0 %8688
    %8692 = vset.pattern.permute.xlu0 0
    %8693 = vperm.xlu0 %8692, %v8423
    %v8694 = vpop.permute.xlu0 %8693
    %8697 = vset.pattern.permute.xlu0 0
    %8698 = vperm.xlu0 %8697, %v8424
    %v8699 = vpop.permute.xlu0 %8698
    %8702 = vset.pattern.permute.xlu0 0
    %8703 = vperm.xlu0 %8702, %v8425
    %v8704 = vpop.permute.xlu0 %8703
    %8707 = vset.pattern.permute.xlu0 0
    %8708 = vperm.xlu0 %8707, %v8426
    %v8709 = vpop.permute.xlu0 %8708
    %8712 = vset.pattern.permute.xlu0 0
    %8713 = vperm.xlu0 %8712, %v8427
    %v8714 = vpop.permute.xlu0 %8713
    %8717 = vset.pattern.permute.xlu0 0
    %8718 = vperm.xlu0 %8717, %v8428
    %v8719 = vpop.permute.xlu0 %8718
    %8722 = vset.pattern.permute.xlu0 0
    %8723 = vperm.xlu0 %8722, %v8429
    %v8724 = vpop.permute.xlu0 %8723
    %8727 = vset.pattern.permute.xlu0 0
    %8728 = vperm.xlu0 %8727, %v8430
    %v8729 = vpop.permute.xlu0 %8728
    %8732 = vset.pattern.permute.xlu0 0
    %8733 = vperm.xlu0 %8732, %v8431
    %v8734 = vpop.permute.xlu0 %8733
    %8737 = vset.pattern.permute.xlu0 0
    %8738 = vperm.xlu0 %8737, %v8432
    %v8739 = vpop.permute.xlu0 %8738
    %8742 = vset.pattern.permute.xlu0 0
    %8743 = vperm.xlu0 %8742, %v8433
    %v8744 = vpop.permute.xlu0 %8743
    %8747 = vset.pattern.permute.xlu0 0
    %8748 = vperm.xlu0 %8747, %v8434
    %v8749 = vpop.permute.xlu0 %8748
    %8752 = vset.pattern.permute.xlu0 0
    %8753 = vperm.xlu0 %8752, %v8435
    %v8754 = vpop.permute.xlu0 %8753
    %v8756 = vmul.f32 %v8363, %v8439
    %v8757 = vmul.f32 %v8367, %v8444
    %v8758 = vmul.f32 %v8053, %v8449
    %v8759 = vmul.f32 %v8057, %v8454
    %v8760 = vmul.f32 %v8063, %v8459
    %v8761 = vmul.f32 %v8067, %v8464
    %v8762 = vmul.f32 %v8073, %v8469
    %v8763 = vmul.f32 %v8077, %v8474
    %v8764 = vmul.f32 %v8083, %v8479
    %v8765 = vmul.f32 %v8087, %v8484
    %v8766 = vmul.f32 %v8093, %v8489
    %v8767 = vmul.f32 %v8097, %v8494
    %v8768 = vmul.f32 %v8103, %v8499
    %v8769 = vmul.f32 %v8107, %v8504
    %v8770 = vmul.f32 %v8113, %v8509
    %v8771 = vmul.f32 %v8117, %v8514
    %v8772 = vmul.f32 %v8123, %v8519
    %v8773 = vmul.f32 %v8127, %v8524
    %v8774 = vmul.f32 %v8133, %v8529
    %v8775 = vmul.f32 %v8137, %v8534
    %v8776 = vmul.f32 %v8143, %v8539
    %v8777 = vmul.f32 %v8147, %v8544
    %v8778 = vmul.f32 %v8153, %v8549
    %v8779 = vmul.f32 %v8157, %v8554
    %v8780 = vmul.f32 %v8163, %v8559
    %v8781 = vmul.f32 %v8167, %v8564
    %v8782 = vmul.f32 %v8173, %v8569
    %v8783 = vmul.f32 %v8177, %v8574
    %v8784 = vmul.f32 %v8183, %v8579
    %v8785 = vmul.f32 %v8187, %v8584
    %v8786 = vmul.f32 %v8193, %v8589
    %v8787 = vmul.f32 %v8197, %v8594
    %v8788 = vmul.f32 %v8203, %v8599
    %v8789 = vmul.f32 %v8207, %v8604
    %v8790 = vmul.f32 %v8213, %v8609
    %v8791 = vmul.f32 %v8217, %v8614
    %v8792 = vmul.f32 %v8223, %v8619
    %v8793 = vmul.f32 %v8227, %v8624
    %v8794 = vmul.f32 %v8233, %v8629
    %v8795 = vmul.f32 %v8237, %v8634
    %v8796 = vmul.f32 %v8243, %v8639
    %v8797 = vmul.f32 %v8247, %v8644
    %v8798 = vmul.f32 %v8253, %v8649
    %v8799 = vmul.f32 %v8257, %v8654
    %v8800 = vmul.f32 %v8263, %v8659
    %v8801 = vmul.f32 %v8267, %v8664
    %v8802 = vmul.f32 %v8273, %v8669
    %v8803 = vmul.f32 %v8277, %v8674
    %v8804 = vmul.f32 %v8283, %v8679
    %v8805 = vmul.f32 %v8287, %v8684
    %v8806 = vmul.f32 %v8293, %v8689
    %v8807 = vmul.f32 %v8297, %v8694
    %v8808 = vmul.f32 %v8303, %v8699
    %v8809 = vmul.f32 %v8307, %v8704
    %v8810 = vmul.f32 %v8313, %v8709
    %v8811 = vmul.f32 %v8317, %v8714
    %v8812 = vmul.f32 %v8323, %v8719
    %v8813 = vmul.f32 %v8327, %v8724
    %v8814 = vmul.f32 %v8333, %v8729
    %v8815 = vmul.f32 %v8337, %v8734
    %v8816 = vmul.f32 %v8343, %v8739
    %v8817 = vmul.f32 %v8347, %v8744
    %v8818 = vmul.f32 %v8353, %v8749
    %v8819 = vmul.f32 %v8357, %v8754
    %v8820 = vadd.f32 %v7858, %v8756
    %v8821 = vadd.f32 %v7859, %v8757
    %v8822 = vadd.f32 %v7860, %v8758
    %v8823 = vadd.f32 %v7861, %v8759
    %v8824 = vadd.f32 %v7862, %v8760
    %v8825 = vadd.f32 %v7863, %v8761
    %v8826 = vadd.f32 %v7864, %v8762
    %v8827 = vadd.f32 %v7865, %v8763
    %v8828 = vadd.f32 %v7866, %v8764
    %v8829 = vadd.f32 %v7867, %v8765
    %v8830 = vadd.f32 %v7868, %v8766
    %v8831 = vadd.f32 %v7869, %v8767
    %v8832 = vadd.f32 %v7870, %v8768
    %v8833 = vadd.f32 %v7871, %v8769
    %v8834 = vadd.f32 %v7872, %v8770
    %v8835 = vadd.f32 %v7873, %v8771
    %v8836 = vadd.f32 %v7874, %v8772
    %v8837 = vadd.f32 %v7875, %v8773
    %v8838 = vadd.f32 %v7876, %v8774
    %v8839 = vadd.f32 %v7877, %v8775
    %v8840 = vadd.f32 %v7878, %v8776
    %v8841 = vadd.f32 %v7879, %v8777
    %v8842 = vadd.f32 %v7880, %v8778
    %v8843 = vadd.f32 %v7881, %v8779
    %v8844 = vadd.f32 %v7882, %v8780
    %v8845 = vadd.f32 %v7883, %v8781
    %v8846 = vadd.f32 %v7884, %v8782
    %v8847 = vadd.f32 %v7885, %v8783
    %v8848 = vadd.f32 %v7886, %v8784
    %v8849 = vadd.f32 %v7887, %v8785
    %v8850 = vadd.f32 %v7888, %v8786
    %v8851 = vadd.f32 %v7889, %v8787
    %v8852 = vadd.f32 %v7890, %v8788
    %v8853 = vadd.f32 %v7891, %v8789
    %v8854 = vadd.f32 %v7892, %v8790
    %v8855 = vadd.f32 %v7893, %v8791
    %v8856 = vadd.f32 %v7894, %v8792
    %v8857 = vadd.f32 %v7895, %v8793
    %v8858 = vadd.f32 %v7896, %v8794
    %v8859 = vadd.f32 %v7897, %v8795
    %v8860 = vadd.f32 %v7898, %v8796
    %v8861 = vadd.f32 %v7899, %v8797
    %v8862 = vadd.f32 %v7900, %v8798
    %v8863 = vadd.f32 %v7901, %v8799
    %v8864 = vadd.f32 %v7902, %v8800
    %v8865 = vadd.f32 %v7903, %v8801
    %v8866 = vadd.f32 %v7904, %v8802
    %v8867 = vadd.f32 %v7905, %v8803
    %v8868 = vadd.f32 %v7906, %v8804
    %v8869 = vadd.f32 %v7907, %v8805
    %v8870 = vadd.f32 %v7908, %v8806
    %v8871 = vadd.f32 %v7909, %v8807
    %v8872 = vadd.f32 %v7910, %v8808
    %v8873 = vadd.f32 %v7911, %v8809
    %v8874 = vadd.f32 %v7912, %v8810
    %v8875 = vadd.f32 %v7913, %v8811
    %v8876 = vadd.f32 %v7914, %v8812
    %v8877 = vadd.f32 %v7915, %v8813
    %v8878 = vadd.f32 %v7916, %v8814
    %v8879 = vadd.f32 %v7917, %v8815
    %v8880 = vadd.f32 %v7918, %v8816
    %v8881 = vadd.f32 %v7919, %v8817
    %v8882 = vadd.f32 %v7920, %v8818
    %v8883 = vadd.f32 %v7921, %v8819
    %v8884 = vadd.f32 %v8820, %v8055
    %v8885 = vadd.f32 %v8821, %v8059
    %v8886 = vadd.f32 %v8822, %v8065
    %v8887 = vadd.f32 %v8823, %v8069
    %v8888 = vadd.f32 %v8824, %v8075
    %v8889 = vadd.f32 %v8825, %v8079
    %v8890 = vadd.f32 %v8826, %v8085
    %v8891 = vadd.f32 %v8827, %v8089
    %v8892 = vadd.f32 %v8828, %v8095
    %v8893 = vadd.f32 %v8829, %v8099
    %v8894 = vadd.f32 %v8830, %v8105
    %v8895 = vadd.f32 %v8831, %v8109
    %v8896 = vadd.f32 %v8832, %v8115
    %v8897 = vadd.f32 %v8833, %v8119
    %v8898 = vadd.f32 %v8834, %v8125
    %v8899 = vadd.f32 %v8835, %v8129
    %v8900 = vadd.f32 %v8836, %v8135
    %v8901 = vadd.f32 %v8837, %v8139
    %v8902 = vadd.f32 %v8838, %v8145
    %v8903 = vadd.f32 %v8839, %v8149
    %v8904 = vadd.f32 %v8840, %v8155
    %v8905 = vadd.f32 %v8841, %v8159
    %v8906 = vadd.f32 %v8842, %v8165
    %v8907 = vadd.f32 %v8843, %v8169
    %v8908 = vadd.f32 %v8844, %v8175
    %v8909 = vadd.f32 %v8845, %v8179
    %v8910 = vadd.f32 %v8846, %v8185
    %v8911 = vadd.f32 %v8847, %v8189
    %v8912 = vadd.f32 %v8848, %v8195
    %v8913 = vadd.f32 %v8849, %v8199
    %v8914 = vadd.f32 %v8850, %v8205
    %v8915 = vadd.f32 %v8851, %v8209
    %v8916 = vadd.f32 %v8852, %v8215
    %v8917 = vadd.f32 %v8853, %v8219
    %v8918 = vadd.f32 %v8854, %v8225
    %v8919 = vadd.f32 %v8855, %v8229
    %v8920 = vadd.f32 %v8856, %v8235
    %v8921 = vadd.f32 %v8857, %v8239
    %v8922 = vadd.f32 %v8858, %v8245
    %v8923 = vadd.f32 %v8859, %v8249
    %v8924 = vadd.f32 %v8860, %v8255
    %v8925 = vadd.f32 %v8861, %v8259
    %v8926 = vadd.f32 %v8862, %v8265
    %v8927 = vadd.f32 %v8863, %v8269
    %v8928 = vadd.f32 %v8864, %v8275
    %v8929 = vadd.f32 %v8865, %v8279
    %v8930 = vadd.f32 %v8866, %v8285
    %v8931 = vadd.f32 %v8867, %v8289
    %v8932 = vadd.f32 %v8868, %v8295
    %v8933 = vadd.f32 %v8869, %v8299
    %v8934 = vadd.f32 %v8870, %v8305
    %v8935 = vadd.f32 %v8871, %v8309
    %v8936 = vadd.f32 %v8872, %v8315
    %v8937 = vadd.f32 %v8873, %v8319
    %v8938 = vadd.f32 %v8874, %v8325
    %v8939 = vadd.f32 %v8875, %v8329
    %v8940 = vadd.f32 %v8876, %v8335
    %v8941 = vadd.f32 %v8877, %v8339
    %v8942 = vadd.f32 %v8878, %v8345
    %v8943 = vadd.f32 %v8879, %v8349
    %v8944 = vadd.f32 %v8880, %v8355
    %v8945 = vadd.f32 %v8881, %v8359
    %v8946 = vadd.f32 %v8882, %v8365
    %v8947 = vadd.f32 %v8883, %v8369
    %v8948 = vld [vmem:[%s5 + $0x10] sm:$0xff]
    %v8949 = vld [vmem:[%s5 + $0x2c] sm:$0xff]
    %v8950 = vld [vmem:[%s5 + $0x48] sm:$0xff]
    %v8951 = vld [vmem:[%s5 + $0x64] sm:$0xff]
    %v8952 = vld [vmem:[%s5 + $0x80] sm:$0xff]
    %v8953 = vld [vmem:[%s5 + $0x9c] sm:$0xff]
    %v8954 = vld [vmem:[%s5 + $0xb8] sm:$0xff]
    %v8955 = vld [vmem:[%s5 + $0xd4] sm:$0xff]
    %v8956 = vld [vmem:[%s5 + $0xf0] sm:$0xff]
    %v8957 = vld [vmem:[%s5 + $0x10c] sm:$0xff]
    %v8958 = vld [vmem:[%s5 + $0x128] sm:$0xff]
    %v8959 = vld [vmem:[%s5 + $0x144] sm:$0xff]
    %v8960 = vld [vmem:[%s5 + $0x160] sm:$0xff]
    %v8961 = vld [vmem:[%s5 + $0x17c] sm:$0xff]
    %v8962 = vld [vmem:[%s5 + $0x198] sm:$0xff]
    %v8963 = vld [vmem:[%s5 + $0x1b4] sm:$0xff]
    %v8980 = vunpack.c.l.b16 %v8948
    %v8981 = vunpack.c.h.b16 %v8948
    %v8982 = vunpack.c.l.b16 %v8949
    %v8983 = vunpack.c.h.b16 %v8949
    %v8984 = vunpack.c.l.b16 %v8950
    %v8985 = vunpack.c.h.b16 %v8950
    %v8986 = vunpack.c.l.b16 %v8951
    %v8987 = vunpack.c.h.b16 %v8951
    %v8988 = vunpack.c.l.b16 %v8952
    %v8989 = vunpack.c.h.b16 %v8952
    %v8990 = vunpack.c.l.b16 %v8953
    %v8991 = vunpack.c.h.b16 %v8953
    %v8992 = vunpack.c.l.b16 %v8954
    %v8993 = vunpack.c.h.b16 %v8954
    %v8994 = vunpack.c.l.b16 %v8955
    %v8995 = vunpack.c.h.b16 %v8955
    %v8996 = vunpack.c.l.b16 %v8956
    %v8997 = vunpack.c.h.b16 %v8956
    %v8998 = vunpack.c.l.b16 %v8957
    %v8999 = vunpack.c.h.b16 %v8957
    %v9000 = vunpack.c.l.b16 %v8958
    %v9001 = vunpack.c.h.b16 %v8958
    %v9002 = vunpack.c.l.b16 %v8959
    %v9003 = vunpack.c.h.b16 %v8959
    %v9004 = vunpack.c.l.b16 %v8960
    %v9005 = vunpack.c.h.b16 %v8960
    %v9006 = vunpack.c.l.b16 %v8961
    %v9007 = vunpack.c.h.b16 %v8961
    %v9008 = vunpack.c.l.b16 %v8962
    %v9009 = vunpack.c.h.b16 %v8962
    %v9010 = vunpack.c.l.b16 %v8963
    %v9011 = vunpack.c.h.b16 %v8963
    %v9012 = vpack.c.b16 %v8982, %v8980
    %v9013 = vpack.c.b16 %v8983, %v8981
    %v9014 = vpack.c.b16 %v8986, %v8984
    %v9015 = vpack.c.b16 %v8987, %v8985
    %v9016 = vpack.c.b16 %v8990, %v8988
    %v9017 = vpack.c.b16 %v8991, %v8989
    %v9018 = vpack.c.b16 %v8994, %v8992
    %v9019 = vpack.c.b16 %v8995, %v8993
    %v9020 = vpack.c.b16 %v8998, %v8996
    %v9021 = vpack.c.b16 %v8999, %v8997
    %v9022 = vpack.c.b16 %v9002, %v9000
    %v9023 = vpack.c.b16 %v9003, %v9001
    %v9024 = vpack.c.b16 %v9006, %v9004
    %v9025 = vpack.c.b16 %v9007, %v9005
    %v9026 = vpack.c.b16 %v9010, %v9008
    %v9027 = vpack.c.b16 %v9011, %v9009
    %9044 = vmatprep.subr.bf16.mxu0 %v9013
    %9045 = vmatpush1.bf16.msra.mxu0 %v9012
    %9046 = vmatprep.subr.bf16.mxu0 %v9015
    %9047 = vmatpush1.bf16.msra.mxu0 %v9014
    %9048 = vmatprep.subr.bf16.mxu0 %v9017
    %9049 = vmatpush1.bf16.msra.mxu0 %v9016
    %9050 = vmatprep.subr.bf16.mxu0 %v9019
    %9051 = vmatpush1.bf16.msra.mxu0 %v9018
    %9052 = vmatprep.subr.bf16.mxu0 %v9021
    %9053 = vmatpush1.bf16.msra.mxu0 %v9020
    %9054 = vmatprep.subr.bf16.mxu0 %v9023
    %9055 = vmatpush1.bf16.msra.mxu0 %v9022
    %9056 = vmatprep.subr.bf16.mxu0 %v9025
    %9057 = vmatpush1.bf16.msra.mxu0 %v9024
    %9058 = vmatprep.subr.bf16.mxu0 %v9027
    %9059 = vmatpush1.bf16.msra.mxu0 %v9026
    %9060 = vmatprep.subr.bf16.mxu0 0
    %9061 = vmatpush1.bf16.msra.mxu0 0
    %9062 = vmatprep.subr.bf16.mxu0 0
    %9063 = vmatpush1.bf16.msra.mxu0 0
    %9064 = vmatprep.subr.bf16.mxu0 0
    %9065 = vmatpush1.bf16.msra.mxu0 0
    %9066 = vmatprep.subr.bf16.mxu0 0
    %9067 = vmatpush1.bf16.msra.mxu0 0
    %9068 = vmatprep.subr.bf16.mxu0 0
    %9069 = vmatpush1.bf16.msra.mxu0 0
    %9070 = vmatprep.subr.bf16.mxu0 0
    %9071 = vmatpush1.bf16.msra.mxu0 0
    %9072 = vmatprep.subr.bf16.mxu0 0
    %9073 = vmatpush1.bf16.msra.mxu0 0
    %9074 = vmatprep.subr.bf16.mxu0 0
    %9075 = vmatpush1.bf16.msra.mxu0 0
    %9076 = vmatprep.mubr.bf16.mxu0 0
    %9077 = vmatmul.mubr.bf16.gmra.mrb[0].mxu0 %v6480
    %v9078 = vpop.f32.mrb[0].mxu0
    %v9079 = vadd.f32 0.0, %v9078
    %v9080 = vpop.f32.mrb[0].mxu0
    %v9081 = vadd.f32 0.0, %v9080
    %v9082 = vpop.f32.mrb[0].mxu0
    %v9083 = vadd.f32 0.0, %v9082
    %v9084 = vpop.f32.mrb[0].mxu0
    %v9085 = vadd.f32 0.0, %v9084
    %9086 = vmatprep.mubr.bf16.mxu0 0
    %9087 = vmatmul.mubr.bf16.gmra.mrb[0].mxu0 %v6481
    %v9088 = vpop.f32.mrb[0].mxu0
    %v9089 = vadd.f32 0.0, %v9088
    %v9090 = vpop.f32.mrb[0].mxu0
    %v9091 = vadd.f32 0.0, %v9090
    %v9092 = vpop.f32.mrb[0].mxu0
    %v9093 = vadd.f32 0.0, %v9092
    %v9094 = vpop.f32.mrb[0].mxu0
    %v9095 = vadd.f32 0.0, %v9094
    %9096 = vmatprep.mubr.bf16.mxu0 0
    %9097 = vmatmul.mubr.bf16.gmra.mrb[0].mxu0 %v6482
    %v9098 = vpop.f32.mrb[0].mxu0
    %v9099 = vadd.f32 0.0, %v9098
    %v9100 = vpop.f32.mrb[0].mxu0
    %v9101 = vadd.f32 0.0, %v9100
    %v9102 = vpop.f32.mrb[0].mxu0
    %v9103 = vadd.f32 0.0, %v9102
    %v9104 = vpop.f32.mrb[0].mxu0
    %v9105 = vadd.f32 0.0, %v9104
    %9106 = vmatprep.mubr.bf16.mxu0 0
    %9107 = vmatmul.mubr.bf16.gmra.mrb[0].mxu0 %v6483
    %v9108 = vpop.f32.mrb[0].mxu0
    %v9109 = vadd.f32 0.0, %v9108
    %v9110 = vpop.f32.mrb[0].mxu0
    %v9111 = vadd.f32 0.0, %v9110
    %v9112 = vpop.f32.mrb[0].mxu0
    %v9113 = vadd.f32 0.0, %v9112
    %v9114 = vpop.f32.mrb[0].mxu0
    %v9115 = vadd.f32 0.0, %v9114
    %9116 = vmatprep.mubr.bf16.mxu0 0
    %9117 = vmatmul.mubr.bf16.gmra.mrb[0].mxu0 %v6484
    %v9118 = vpop.f32.mrb[0].mxu0
    %v9119 = vadd.f32 0.0, %v9118
    %v9120 = vpop.f32.mrb[0].mxu0
    %v9121 = vadd.f32 0.0, %v9120
    %v9122 = vpop.f32.mrb[0].mxu0
    %v9123 = vadd.f32 0.0, %v9122
    %v9124 = vpop.f32.mrb[0].mxu0
    %v9125 = vadd.f32 0.0, %v9124
    %9126 = vmatprep.mubr.bf16.mxu0 0
    %9127 = vmatmul.mubr.bf16.gmra.mrb[0].mxu0 %v6485
    %v9128 = vpop.f32.mrb[0].mxu0
    %v9129 = vadd.f32 0.0, %v9128
    %v9130 = vpop.f32.mrb[0].mxu0
    %v9131 = vadd.f32 0.0, %v9130
    %v9132 = vpop.f32.mrb[0].mxu0
    %v9133 = vadd.f32 0.0, %v9132
    %v9134 = vpop.f32.mrb[0].mxu0
    %v9135 = vadd.f32 0.0, %v9134
    %9136 = vmatprep.mubr.bf16.mxu0 0
    %9137 = vmatmul.mubr.bf16.gmra.mrb[0].mxu0 %v6486
    %v9138 = vpop.f32.mrb[0].mxu0
    %v9139 = vadd.f32 0.0, %v9138
    %v9140 = vpop.f32.mrb[0].mxu0
    %v9141 = vadd.f32 0.0, %v9140
    %v9142 = vpop.f32.mrb[0].mxu0
    %v9143 = vadd.f32 0.0, %v9142
    %v9144 = vpop.f32.mrb[0].mxu0
    %v9145 = vadd.f32 0.0, %v9144
    %9146 = vmatprep.mubr.bf16.mxu0 0
    %9147 = vmatmul.mubr.bf16.gmra.mrb[0].mxu0 %v6487
    %v9148 = vpop.f32.mrb[0].mxu0
    %v9149 = vadd.f32 0.0, %v9148
    %v9150 = vpop.f32.mrb[0].mxu0
    %v9151 = vadd.f32 0.0, %v9150
    %v9152 = vpop.f32.mrb[0].mxu0
    %v9153 = vadd.f32 0.0, %v9152
    %v9154 = vpop.f32.mrb[0].mxu0
    %v9155 = vadd.f32 0.0, %v9154
    %9156 = vmatprep.mubr.bf16.mxu0 0
    %9157 = vmatmul.mubr.bf16.gmra.mrb[0].mxu0 %v6488
    %v9158 = vpop.f32.mrb[0].mxu0
    %v9159 = vadd.f32 0.0, %v9158
    %v9160 = vpop.f32.mrb[0].mxu0
    %v9161 = vadd.f32 0.0, %v9160
    %v9162 = vpop.f32.mrb[0].mxu0
    %v9163 = vadd.f32 0.0, %v9162
    %v9164 = vpop.f32.mrb[0].mxu0
    %v9165 = vadd.f32 0.0, %v9164
    %9166 = vmatprep.mubr.bf16.mxu0 0
    %9167 = vmatmul.mubr.bf16.gmra.mrb[0].mxu0 %v6489
    %v9168 = vpop.f32.mrb[0].mxu0
    %v9169 = vadd.f32 0.0, %v9168
    %v9170 = vpop.f32.mrb[0].mxu0
    %v9171 = vadd.f32 0.0, %v9170
    %v9172 = vpop.f32.mrb[0].mxu0
    %v9173 = vadd.f32 0.0, %v9172
    %v9174 = vpop.f32.mrb[0].mxu0
    %v9175 = vadd.f32 0.0, %v9174
    %9176 = vmatprep.mubr.bf16.mxu0 0
    %9177 = vmatmul.mubr.bf16.gmra.mrb[0].mxu0 %v6490
    %v9178 = vpop.f32.mrb[0].mxu0
    %v9179 = vadd.f32 0.0, %v9178
    %v9180 = vpop.f32.mrb[0].mxu0
    %v9181 = vadd.f32 0.0, %v9180
    %v9182 = vpop.f32.mrb[0].mxu0
    %v9183 = vadd.f32 0.0, %v9182
    %v9184 = vpop.f32.mrb[0].mxu0
    %v9185 = vadd.f32 0.0, %v9184
    %9186 = vmatprep.mubr.bf16.mxu0 0
    %9187 = vmatmul.mubr.bf16.gmra.mrb[0].mxu0 %v6491
    %v9188 = vpop.f32.mrb[0].mxu0
    %v9189 = vadd.f32 0.0, %v9188
    %v9190 = vpop.f32.mrb[0].mxu0
    %v9191 = vadd.f32 0.0, %v9190
    %v9192 = vpop.f32.mrb[0].mxu0
    %v9193 = vadd.f32 0.0, %v9192
    %v9194 = vpop.f32.mrb[0].mxu0
    %v9195 = vadd.f32 0.0, %v9194
    %9196 = vmatprep.mubr.bf16.mxu0 0
    %9197 = vmatmul.mubr.bf16.gmra.mrb[0].mxu0 %v6492
    %v9198 = vpop.f32.mrb[0].mxu0
    %v9199 = vadd.f32 0.0, %v9198
    %v9200 = vpop.f32.mrb[0].mxu0
    %v9201 = vadd.f32 0.0, %v9200
    %v9202 = vpop.f32.mrb[0].mxu0
    %v9203 = vadd.f32 0.0, %v9202
    %v9204 = vpop.f32.mrb[0].mxu0
    %v9205 = vadd.f32 0.0, %v9204
    %9206 = vmatprep.mubr.bf16.mxu0 0
    %9207 = vmatmul.mubr.bf16.gmra.mrb[0].mxu0 %v6493
    %v9208 = vpop.f32.mrb[0].mxu0
    %v9209 = vadd.f32 0.0, %v9208
    %v9210 = vpop.f32.mrb[0].mxu0
    %v9211 = vadd.f32 0.0, %v9210
    %v9212 = vpop.f32.mrb[0].mxu0
    %v9213 = vadd.f32 0.0, %v9212
    %v9214 = vpop.f32.mrb[0].mxu0
    %v9215 = vadd.f32 0.0, %v9214
    %9216 = vmatprep.mubr.bf16.mxu0 0
    %9217 = vmatmul.mubr.bf16.gmra.mrb[0].mxu0 %v6494
    %v9218 = vpop.f32.mrb[0].mxu0
    %v9219 = vadd.f32 0.0, %v9218
    %v9220 = vpop.f32.mrb[0].mxu0
    %v9221 = vadd.f32 0.0, %v9220
    %v9222 = vpop.f32.mrb[0].mxu0
    %v9223 = vadd.f32 0.0, %v9222
    %v9224 = vpop.f32.mrb[0].mxu0
    %v9225 = vadd.f32 0.0, %v9224
    %9226 = vmatprep.mubr.bf16.mxu0 0
    %9227 = vmatmul.mubr.bf16.gmra.mrb[0].mxu0 %v6495
    %v9228 = vpop.f32.mrb[0].mxu0
    %v9229 = vadd.f32 0.0, %v9228
    %v9230 = vpop.f32.mrb[0].mxu0
    %v9231 = vadd.f32 0.0, %v9230
    %v9232 = vpop.f32.mrb[0].mxu0
    %v9233 = vadd.f32 0.0, %v9232
    %v9234 = vpop.f32.mrb[0].mxu0
    %v9235 = vadd.f32 0.0, %v9234
    %9236 = vmatprep.mubr.bf16.mxu0 0
    %9237 = vmatmul.mubr.bf16.gmra.mrb[0].mxu0 %v6496
    %v9238 = vpop.f32.mrb[0].mxu0
    %v9239 = vadd.f32 0.0, %v9238
    %v9240 = vpop.f32.mrb[0].mxu0
    %v9241 = vadd.f32 0.0, %v9240
    %v9242 = vpop.f32.mrb[0].mxu0
    %v9243 = vadd.f32 0.0, %v9242
    %v9244 = vpop.f32.mrb[0].mxu0
    %v9245 = vadd.f32 0.0, %v9244
    %9246 = vmatprep.mubr.bf16.mxu0 0
    %9247 = vmatmul.mubr.bf16.gmra.mrb[0].mxu0 %v6497
    %v9248 = vpop.f32.mrb[0].mxu0
    %v9249 = vadd.f32 0.0, %v9248
    %v9250 = vpop.f32.mrb[0].mxu0
    %v9251 = vadd.f32 0.0, %v9250
    %v9252 = vpop.f32.mrb[0].mxu0
    %v9253 = vadd.f32 0.0, %v9252
    %v9254 = vpop.f32.mrb[0].mxu0
    %v9255 = vadd.f32 0.0, %v9254
    %9256 = vmatprep.mubr.bf16.mxu0 0
    %9257 = vmatmul.mubr.bf16.gmra.mrb[0].mxu0 %v6498
    %v9258 = vpop.f32.mrb[0].mxu0
    %v9259 = vadd.f32 0.0, %v9258
    %v9260 = vpop.f32.mrb[0].mxu0
    %v9261 = vadd.f32 0.0, %v9260
    %v9262 = vpop.f32.mrb[0].mxu0
    %v9263 = vadd.f32 0.0, %v9262
    %v9264 = vpop.f32.mrb[0].mxu0
    %v9265 = vadd.f32 0.0, %v9264
    %9266 = vmatprep.mubr.bf16.mxu0 0
    %9267 = vmatmul.mubr.bf16.gmra.mrb[0].mxu0 %v6499
    %v9268 = vpop.f32.mrb[0].mxu0
    %v9269 = vadd.f32 0.0, %v9268
    %v9270 = vpop.f32.mrb[0].mxu0
    %v9271 = vadd.f32 0.0, %v9270
    %v9272 = vpop.f32.mrb[0].mxu0
    %v9273 = vadd.f32 0.0, %v9272
    %v9274 = vpop.f32.mrb[0].mxu0
    %v9275 = vadd.f32 0.0, %v9274
    %9276 = vmatprep.mubr.bf16.mxu0 0
    %9277 = vmatmul.mubr.bf16.gmra.mrb[0].mxu0 %v6500
    %v9278 = vpop.f32.mrb[0].mxu0
    %v9279 = vadd.f32 0.0, %v9278
    %v9280 = vpop.f32.mrb[0].mxu0
    %v9281 = vadd.f32 0.0, %v9280
    %v9282 = vpop.f32.mrb[0].mxu0
    %v9283 = vadd.f32 0.0, %v9282
    %v9284 = vpop.f32.mrb[0].mxu0
    %v9285 = vadd.f32 0.0, %v9284
    %9286 = vmatprep.mubr.bf16.mxu0 0
    %9287 = vmatmul.mubr.bf16.gmra.mrb[0].mxu0 %v6501
    %v9288 = vpop.f32.mrb[0].mxu0
    %v9289 = vadd.f32 0.0, %v9288
    %v9290 = vpop.f32.mrb[0].mxu0
    %v9291 = vadd.f32 0.0, %v9290
    %v9292 = vpop.f32.mrb[0].mxu0
    %v9293 = vadd.f32 0.0, %v9292
    %v9294 = vpop.f32.mrb[0].mxu0
    %v9295 = vadd.f32 0.0, %v9294
    %9296 = vmatprep.mubr.bf16.mxu0 0
    %9297 = vmatmul.mubr.bf16.gmra.mrb[0].mxu0 %v6502
    %v9298 = vpop.f32.mrb[0].mxu0
    %v9299 = vadd.f32 0.0, %v9298
    %v9300 = vpop.f32.mrb[0].mxu0
    %v9301 = vadd.f32 0.0, %v9300
    %v9302 = vpop.f32.mrb[0].mxu0
    %v9303 = vadd.f32 0.0, %v9302
    %v9304 = vpop.f32.mrb[0].mxu0
    %v9305 = vadd.f32 0.0, %v9304
    %9306 = vmatprep.mubr.bf16.mxu0 0
    %9307 = vmatmul.mubr.bf16.gmra.mrb[0].mxu0 %v6503
    %v9308 = vpop.f32.mrb[0].mxu0
    %v9309 = vadd.f32 0.0, %v9308
    %v9310 = vpop.f32.mrb[0].mxu0
    %v9311 = vadd.f32 0.0, %v9310
    %v9312 = vpop.f32.mrb[0].mxu0
    %v9313 = vadd.f32 0.0, %v9312
    %v9314 = vpop.f32.mrb[0].mxu0
    %v9315 = vadd.f32 0.0, %v9314
    %9316 = vmatprep.mubr.bf16.mxu0 0
    %9317 = vmatmul.mubr.bf16.gmra.mrb[0].mxu0 %v6504
    %v9318 = vpop.f32.mrb[0].mxu0
    %v9319 = vadd.f32 0.0, %v9318
    %v9320 = vpop.f32.mrb[0].mxu0
    %v9321 = vadd.f32 0.0, %v9320
    %v9322 = vpop.f32.mrb[0].mxu0
    %v9323 = vadd.f32 0.0, %v9322
    %v9324 = vpop.f32.mrb[0].mxu0
    %v9325 = vadd.f32 0.0, %v9324
    %9326 = vmatprep.mubr.bf16.mxu0 0
    %9327 = vmatmul.mubr.bf16.gmra.mrb[0].mxu0 %v6505
    %v9328 = vpop.f32.mrb[0].mxu0
    %v9329 = vadd.f32 0.0, %v9328
    %v9330 = vpop.f32.mrb[0].mxu0
    %v9331 = vadd.f32 0.0, %v9330
    %v9332 = vpop.f32.mrb[0].mxu0
    %v9333 = vadd.f32 0.0, %v9332
    %v9334 = vpop.f32.mrb[0].mxu0
    %v9335 = vadd.f32 0.0, %v9334
    %9336 = vmatprep.mubr.bf16.mxu0 0
    %9337 = vmatmul.mubr.bf16.gmra.mrb[0].mxu0 %v6506
    %v9338 = vpop.f32.mrb[0].mxu0
    %v9339 = vadd.f32 0.0, %v9338
    %v9340 = vpop.f32.mrb[0].mxu0
    %v9341 = vadd.f32 0.0, %v9340
    %v9342 = vpop.f32.mrb[0].mxu0
    %v9343 = vadd.f32 0.0, %v9342
    %v9344 = vpop.f32.mrb[0].mxu0
    %v9345 = vadd.f32 0.0, %v9344
    %9346 = vmatprep.mubr.bf16.mxu0 0
    %9347 = vmatmul.mubr.bf16.gmra.mrb[0].mxu0 %v6507
    %v9348 = vpop.f32.mrb[0].mxu0
    %v9349 = vadd.f32 0.0, %v9348
    %v9350 = vpop.f32.mrb[0].mxu0
    %v9351 = vadd.f32 0.0, %v9350
    %v9352 = vpop.f32.mrb[0].mxu0
    %v9353 = vadd.f32 0.0, %v9352
    %v9354 = vpop.f32.mrb[0].mxu0
    %v9355 = vadd.f32 0.0, %v9354
    %9356 = vmatprep.mubr.bf16.mxu0 0
    %9357 = vmatmul.mubr.bf16.gmra.mrb[0].mxu0 %v6508
    %v9358 = vpop.f32.mrb[0].mxu0
    %v9359 = vadd.f32 0.0, %v9358
    %v9360 = vpop.f32.mrb[0].mxu0
    %v9361 = vadd.f32 0.0, %v9360
    %v9362 = vpop.f32.mrb[0].mxu0
    %v9363 = vadd.f32 0.0, %v9362
    %v9364 = vpop.f32.mrb[0].mxu0
    %v9365 = vadd.f32 0.0, %v9364
    %9366 = vmatprep.mubr.bf16.mxu0 0
    %9367 = vmatmul.mubr.bf16.gmra.mrb[0].mxu0 %v6509
    %v9368 = vpop.f32.mrb[0].mxu0
    %v9369 = vadd.f32 0.0, %v9368
    %v9370 = vpop.f32.mrb[0].mxu0
    %v9371 = vadd.f32 0.0, %v9370
    %v9372 = vpop.f32.mrb[0].mxu0
    %v9373 = vadd.f32 0.0, %v9372
    %v9374 = vpop.f32.mrb[0].mxu0
    %v9375 = vadd.f32 0.0, %v9374
    %9376 = vmatprep.mubr.bf16.mxu0 0
    %9377 = vmatmul.mubr.bf16.gmra.mrb[0].mxu0 %v6510
    %v9378 = vpop.f32.mrb[0].mxu0
    %v9379 = vadd.f32 0.0, %v9378
    %v9380 = vpop.f32.mrb[0].mxu0
    %v9381 = vadd.f32 0.0, %v9380
    %v9382 = vpop.f32.mrb[0].mxu0
    %v9383 = vadd.f32 0.0, %v9382
    %v9384 = vpop.f32.mrb[0].mxu0
    %v9385 = vadd.f32 0.0, %v9384
    %9386 = vmatprep.mubr.bf16.mxu0 0
    %9387 = vmatmul.mubr.bf16.gmra.mrb[0].mxu0 %v6511
    %v9388 = vpop.f32.mrb[0].mxu0
    %v9389 = vadd.f32 0.0, %v9388
    %v9390 = vpop.f32.mrb[0].mxu0
    %v9391 = vadd.f32 0.0, %v9390
    %v9392 = vpop.f32.mrb[0].mxu0
    %v9393 = vadd.f32 0.0, %v9392
    %v9394 = vpop.f32.mrb[0].mxu0
    %v9395 = vadd.f32 0.0, %v9394
    %9396 = vdwg.mxu0
    %s9397 = scalar_lea.vmem %s11, 2048
    %v9398 = vld [vmem:[%s9397] sm:$0xff]
    %v9399 = vld [vmem:[%s9397 + $0x8] sm:$0xff]
    %v9400 = vld [vmem:[%s9397 + $0x10] sm:$0xff]
    %v9401 = vld [vmem:[%s9397 + $0x18] sm:$0xff]
    %v9402 = vld [vmem:[%s9397 + $0x20] sm:$0xff]
    %v9403 = vld [vmem:[%s9397 + $0x28] sm:$0xff]
    %v9404 = vld [vmem:[%s9397 + $0x30] sm:$0xff]
    %v9405 = vld [vmem:[%s9397 + $0x38] sm:$0xff]
    %v9406 = vld [vmem:[%s9397 + $0x40] sm:$0xff]
    %v9407 = vld [vmem:[%s9397 + $0x48] sm:$0xff]
    %v9408 = vld [vmem:[%s9397 + $0x50] sm:$0xff]
    %v9409 = vld [vmem:[%s9397 + $0x58] sm:$0xff]
    %v9410 = vld [vmem:[%s9397 + $0x60] sm:$0xff]
    %v9411 = vld [vmem:[%s9397 + $0x68] sm:$0xff]
    %v9412 = vld [vmem:[%s9397 + $0x70] sm:$0xff]
    %v9413 = vld [vmem:[%s9397 + $0x78] sm:$0xff]
    %v9414 = vld [vmem:[%s9397 + $0x80] sm:$0xff]
    %v9415 = vld [vmem:[%s9397 + $0x88] sm:$0xff]
    %v9416 = vld [vmem:[%s9397 + $0x90] sm:$0xff]
    %v9417 = vld [vmem:[%s9397 + $0x98] sm:$0xff]
    %v9418 = vld [vmem:[%s9397 + $0xa0] sm:$0xff]
    %v9419 = vld [vmem:[%s9397 + $0xa8] sm:$0xff]
    %v9420 = vld [vmem:[%s9397 + $0xb0] sm:$0xff]
    %v9421 = vld [vmem:[%s9397 + $0xb8] sm:$0xff]
    %v9422 = vld [vmem:[%s9397 + $0xc0] sm:$0xff]
    %v9423 = vld [vmem:[%s9397 + $0xc8] sm:$0xff]
    %v9424 = vld [vmem:[%s9397 + $0xd0] sm:$0xff]
    %v9425 = vld [vmem:[%s9397 + $0xd8] sm:$0xff]
    %v9426 = vld [vmem:[%s9397 + $0xe0] sm:$0xff]
    %v9427 = vld [vmem:[%s9397 + $0xe8] sm:$0xff]
    %v9428 = vld [vmem:[%s9397 + $0xf0] sm:$0xff]
    %v9429 = vld [vmem:[%s9397 + $0xf8] sm:$0xff]
    %v9430 = vld [vmem:[%s9397 + $0x100] sm:$0xff]
    %v9431 = vld [vmem:[%s9397 + $0x108] sm:$0xff]
    %v9432 = vld [vmem:[%s9397 + $0x110] sm:$0xff]
    %v9433 = vld [vmem:[%s9397 + $0x118] sm:$0xff]
    %v9434 = vld [vmem:[%s9397 + $0x120] sm:$0xff]
    %v9435 = vld [vmem:[%s9397 + $0x128] sm:$0xff]
    %v9436 = vld [vmem:[%s9397 + $0x130] sm:$0xff]
    %v9437 = vld [vmem:[%s9397 + $0x138] sm:$0xff]
    %v9438 = vld [vmem:[%s9397 + $0x140] sm:$0xff]
    %v9439 = vld [vmem:[%s9397 + $0x148] sm:$0xff]
    %v9440 = vld [vmem:[%s9397 + $0x150] sm:$0xff]
    %v9441 = vld [vmem:[%s9397 + $0x158] sm:$0xff]
    %v9442 = vld [vmem:[%s9397 + $0x160] sm:$0xff]
    %v9443 = vld [vmem:[%s9397 + $0x168] sm:$0xff]
    %v9444 = vld [vmem:[%s9397 + $0x170] sm:$0xff]
    %v9445 = vld [vmem:[%s9397 + $0x178] sm:$0xff]
    %v9446 = vld [vmem:[%s9397 + $0x180] sm:$0xff]
    %v9447 = vld [vmem:[%s9397 + $0x188] sm:$0xff]
    %v9448 = vld [vmem:[%s9397 + $0x190] sm:$0xff]
    %v9449 = vld [vmem:[%s9397 + $0x198] sm:$0xff]
    %v9450 = vld [vmem:[%s9397 + $0x1a0] sm:$0xff]
    %v9451 = vld [vmem:[%s9397 + $0x1a8] sm:$0xff]
    %v9452 = vld [vmem:[%s9397 + $0x1b0] sm:$0xff]
    %v9453 = vld [vmem:[%s9397 + $0x1b8] sm:$0xff]
    %v9454 = vld [vmem:[%s9397 + $0x1c0] sm:$0xff]
    %v9455 = vld [vmem:[%s9397 + $0x1c8] sm:$0xff]
    %v9456 = vld [vmem:[%s9397 + $0x1d0] sm:$0xff]
    %v9457 = vld [vmem:[%s9397 + $0x1d8] sm:$0xff]
    %v9458 = vld [vmem:[%s9397 + $0x1e0] sm:$0xff]
    %v9459 = vld [vmem:[%s9397 + $0x1e8] sm:$0xff]
    %v9460 = vld [vmem:[%s9397 + $0x1f0] sm:$0xff]
    %v9461 = vld [vmem:[%s9397 + $0x1f8] sm:$0xff]
    %9463 = vset.pattern.permute.xlu0 0
    %9464 = vperm.xlu0 %9463, %v9398
    %v9465 = vpop.permute.xlu0 %9464
    %9468 = vset.pattern.permute.xlu0 0
    %9469 = vperm.xlu0 %9468, %v9399
    %v9470 = vpop.permute.xlu0 %9469
    %9473 = vset.pattern.permute.xlu0 0
    %9474 = vperm.xlu0 %9473, %v9400
    %v9475 = vpop.permute.xlu0 %9474
    %9478 = vset.pattern.permute.xlu0 0
    %9479 = vperm.xlu0 %9478, %v9401
    %v9480 = vpop.permute.xlu0 %9479
    %9483 = vset.pattern.permute.xlu0 0
    %9484 = vperm.xlu0 %9483, %v9402
    %v9485 = vpop.permute.xlu0 %9484
    %9488 = vset.pattern.permute.xlu0 0
    %9489 = vperm.xlu0 %9488, %v9403
    %v9490 = vpop.permute.xlu0 %9489
    %9493 = vset.pattern.permute.xlu0 0
    %9494 = vperm.xlu0 %9493, %v9404
    %v9495 = vpop.permute.xlu0 %9494
    %9498 = vset.pattern.permute.xlu0 0
    %9499 = vperm.xlu0 %9498, %v9405
    %v9500 = vpop.permute.xlu0 %9499
    %9503 = vset.pattern.permute.xlu0 0
    %9504 = vperm.xlu0 %9503, %v9406
    %v9505 = vpop.permute.xlu0 %9504
    %9508 = vset.pattern.permute.xlu0 0
    %9509 = vperm.xlu0 %9508, %v9407
    %v9510 = vpop.permute.xlu0 %9509
    %9513 = vset.pattern.permute.xlu0 0
    %9514 = vperm.xlu0 %9513, %v9408
    %v9515 = vpop.permute.xlu0 %9514
    %9518 = vset.pattern.permute.xlu0 0
    %9519 = vperm.xlu0 %9518, %v9409
    %v9520 = vpop.permute.xlu0 %9519
    %9523 = vset.pattern.permute.xlu0 0
    %9524 = vperm.xlu0 %9523, %v9410
    %v9525 = vpop.permute.xlu0 %9524
    %9528 = vset.pattern.permute.xlu0 0
    %9529 = vperm.xlu0 %9528, %v9411
    %v9530 = vpop.permute.xlu0 %9529
    %9533 = vset.pattern.permute.xlu0 0
    %9534 = vperm.xlu0 %9533, %v9412
    %v9535 = vpop.permute.xlu0 %9534
    %9538 = vset.pattern.permute.xlu0 0
    %9539 = vperm.xlu0 %9538, %v9413
    %v9540 = vpop.permute.xlu0 %9539
    %9543 = vset.pattern.permute.xlu0 0
    %9544 = vperm.xlu0 %9543, %v9414
    %v9545 = vpop.permute.xlu0 %9544
    %9548 = vset.pattern.permute.xlu0 0
    %9549 = vperm.xlu0 %9548, %v9415
    %v9550 = vpop.permute.xlu0 %9549
    %9553 = vset.pattern.permute.xlu0 0
    %9554 = vperm.xlu0 %9553, %v9416
    %v9555 = vpop.permute.xlu0 %9554
    %9558 = vset.pattern.permute.xlu0 0
    %9559 = vperm.xlu0 %9558, %v9417
    %v9560 = vpop.permute.xlu0 %9559
    %9563 = vset.pattern.permute.xlu0 0
    %9564 = vperm.xlu0 %9563, %v9418
    %v9565 = vpop.permute.xlu0 %9564
    %9568 = vset.pattern.permute.xlu0 0
    %9569 = vperm.xlu0 %9568, %v9419
    %v9570 = vpop.permute.xlu0 %9569
    %9573 = vset.pattern.permute.xlu0 0
    %9574 = vperm.xlu0 %9573, %v9420
    %v9575 = vpop.permute.xlu0 %9574
    %9578 = vset.pattern.permute.xlu0 0
    %9579 = vperm.xlu0 %9578, %v9421
    %v9580 = vpop.permute.xlu0 %9579
    %9583 = vset.pattern.permute.xlu0 0
    %9584 = vperm.xlu0 %9583, %v9422
    %v9585 = vpop.permute.xlu0 %9584
    %9588 = vset.pattern.permute.xlu0 0
    %9589 = vperm.xlu0 %9588, %v9423
    %v9590 = vpop.permute.xlu0 %9589
    %9593 = vset.pattern.permute.xlu0 0
    %9594 = vperm.xlu0 %9593, %v9424
    %v9595 = vpop.permute.xlu0 %9594
    %9598 = vset.pattern.permute.xlu0 0
    %9599 = vperm.xlu0 %9598, %v9425
    %v9600 = vpop.permute.xlu0 %9599
    %9603 = vset.pattern.permute.xlu0 0
    %9604 = vperm.xlu0 %9603, %v9426
    %v9605 = vpop.permute.xlu0 %9604
    %9608 = vset.pattern.permute.xlu0 0
    %9609 = vperm.xlu0 %9608, %v9427
    %v9610 = vpop.permute.xlu0 %9609
    %9613 = vset.pattern.permute.xlu0 0
    %9614 = vperm.xlu0 %9613, %v9428
    %v9615 = vpop.permute.xlu0 %9614
    %9618 = vset.pattern.permute.xlu0 0
    %9619 = vperm.xlu0 %9618, %v9429
    %v9620 = vpop.permute.xlu0 %9619
    %9623 = vset.pattern.permute.xlu0 0
    %9624 = vperm.xlu0 %9623, %v9430
    %v9625 = vpop.permute.xlu0 %9624
    %9628 = vset.pattern.permute.xlu0 0
    %9629 = vperm.xlu0 %9628, %v9431
    %v9630 = vpop.permute.xlu0 %9629
    %9633 = vset.pattern.permute.xlu0 0
    %9634 = vperm.xlu0 %9633, %v9432
    %v9635 = vpop.permute.xlu0 %9634
    %9638 = vset.pattern.permute.xlu0 0
    %9639 = vperm.xlu0 %9638, %v9433
    %v9640 = vpop.permute.xlu0 %9639
    %9643 = vset.pattern.permute.xlu0 0
    %9644 = vperm.xlu0 %9643, %v9434
    %v9645 = vpop.permute.xlu0 %9644
    %9648 = vset.pattern.permute.xlu0 0
    %9649 = vperm.xlu0 %9648, %v9435
    %v9650 = vpop.permute.xlu0 %9649
    %9653 = vset.pattern.permute.xlu0 0
    %9654 = vperm.xlu0 %9653, %v9436
    %v9655 = vpop.permute.xlu0 %9654
    %9658 = vset.pattern.permute.xlu0 0
    %9659 = vperm.xlu0 %9658, %v9437
    %v9660 = vpop.permute.xlu0 %9659
    %9663 = vset.pattern.permute.xlu0 0
    %9664 = vperm.xlu0 %9663, %v9438
    %v9665 = vpop.permute.xlu0 %9664
    %9668 = vset.pattern.permute.xlu0 0
    %9669 = vperm.xlu0 %9668, %v9439
    %v9670 = vpop.permute.xlu0 %9669
    %9673 = vset.pattern.permute.xlu0 0
    %9674 = vperm.xlu0 %9673, %v9440
    %v9675 = vpop.permute.xlu0 %9674
    %9678 = vset.pattern.permute.xlu0 0
    %9679 = vperm.xlu0 %9678, %v9441
    %v9680 = vpop.permute.xlu0 %9679
    %9683 = vset.pattern.permute.xlu0 0
    %9684 = vperm.xlu0 %9683, %v9442
    %v9685 = vpop.permute.xlu0 %9684
    %9688 = vset.pattern.permute.xlu0 0
    %9689 = vperm.xlu0 %9688, %v9443
    %v9690 = vpop.permute.xlu0 %9689
    %9693 = vset.pattern.permute.xlu0 0
    %9694 = vperm.xlu0 %9693, %v9444
    %v9695 = vpop.permute.xlu0 %9694
    %9698 = vset.pattern.permute.xlu0 0
    %9699 = vperm.xlu0 %9698, %v9445
    %v9700 = vpop.permute.xlu0 %9699
    %9703 = vset.pattern.permute.xlu0 0
    %9704 = vperm.xlu0 %9703, %v9446
    %v9705 = vpop.permute.xlu0 %9704
    %9708 = vset.pattern.permute.xlu0 0
    %9709 = vperm.xlu0 %9708, %v9447
    %v9710 = vpop.permute.xlu0 %9709
    %9713 = vset.pattern.permute.xlu0 0
    %9714 = vperm.xlu0 %9713, %v9448
    %v9715 = vpop.permute.xlu0 %9714
    %9718 = vset.pattern.permute.xlu0 0
    %9719 = vperm.xlu0 %9718, %v9449
    %v9720 = vpop.permute.xlu0 %9719
    %9723 = vset.pattern.permute.xlu0 0
    %9724 = vperm.xlu0 %9723, %v9450
    %v9725 = vpop.permute.xlu0 %9724
    %9728 = vset.pattern.permute.xlu0 0
    %9729 = vperm.xlu0 %9728, %v9451
    %v9730 = vpop.permute.xlu0 %9729
    %9733 = vset.pattern.permute.xlu0 0
    %9734 = vperm.xlu0 %9733, %v9452
    %v9735 = vpop.permute.xlu0 %9734
    %9738 = vset.pattern.permute.xlu0 0
    %9739 = vperm.xlu0 %9738, %v9453
    %v9740 = vpop.permute.xlu0 %9739
    %9743 = vset.pattern.permute.xlu0 0
    %9744 = vperm.xlu0 %9743, %v9454
    %v9745 = vpop.permute.xlu0 %9744
    %9748 = vset.pattern.permute.xlu0 0
    %9749 = vperm.xlu0 %9748, %v9455
    %v9750 = vpop.permute.xlu0 %9749
    %9753 = vset.pattern.permute.xlu0 0
    %9754 = vperm.xlu0 %9753, %v9456
    %v9755 = vpop.permute.xlu0 %9754
    %9758 = vset.pattern.permute.xlu0 0
    %9759 = vperm.xlu0 %9758, %v9457
    %v9760 = vpop.permute.xlu0 %9759
    %9763 = vset.pattern.permute.xlu0 0
    %9764 = vperm.xlu0 %9763, %v9458
    %v9765 = vpop.permute.xlu0 %9764
    %9768 = vset.pattern.permute.xlu0 0
    %9769 = vperm.xlu0 %9768, %v9459
    %v9770 = vpop.permute.xlu0 %9769
    %9773 = vset.pattern.permute.xlu0 0
    %9774 = vperm.xlu0 %9773, %v9460
    %v9775 = vpop.permute.xlu0 %9774
    %9778 = vset.pattern.permute.xlu0 0
    %9779 = vperm.xlu0 %9778, %v9461
    %v9780 = vpop.permute.xlu0 %9779
    %v9782 = vmul.f32 %v9089, %v9465
    %v9783 = vmul.f32 %v9093, %v9470
    %v9784 = vmul.f32 %v9099, %v9475
    %v9785 = vmul.f32 %v9103, %v9480
    %v9786 = vmul.f32 %v9109, %v9485
    %v9787 = vmul.f32 %v9113, %v9490
    %v9788 = vmul.f32 %v9119, %v9495
    %v9789 = vmul.f32 %v9123, %v9500
    %v9790 = vmul.f32 %v9129, %v9505
    %v9791 = vmul.f32 %v9133, %v9510
    %v9792 = vmul.f32 %v9139, %v9515
    %v9793 = vmul.f32 %v9143, %v9520
    %v9794 = vmul.f32 %v9149, %v9525
    %v9795 = vmul.f32 %v9153, %v9530
    %v9796 = vmul.f32 %v9159, %v9535
    %v9797 = vmul.f32 %v9163, %v9540
    %v9798 = vmul.f32 %v9169, %v9545
    %v9799 = vmul.f32 %v9173, %v9550
    %v9800 = vmul.f32 %v9179, %v9555
    %v9801 = vmul.f32 %v9183, %v9560
    %v9802 = vmul.f32 %v9189, %v9565
    %v9803 = vmul.f32 %v9193, %v9570
    %v9804 = vmul.f32 %v9199, %v9575
    %v9805 = vmul.f32 %v9203, %v9580
    %v9806 = vmul.f32 %v9209, %v9585
    %v9807 = vmul.f32 %v9213, %v9590
    %v9808 = vmul.f32 %v9219, %v9595
    %v9809 = vmul.f32 %v9223, %v9600
    %v9810 = vmul.f32 %v9229, %v9605
    %v9811 = vmul.f32 %v9233, %v9610
    %v9812 = vmul.f32 %v9239, %v9615
    %v9813 = vmul.f32 %v9243, %v9620
    %v9814 = vmul.f32 %v9249, %v9625
    %v9815 = vmul.f32 %v9253, %v9630
    %v9816 = vmul.f32 %v9259, %v9635
    %v9817 = vmul.f32 %v9263, %v9640
    %v9818 = vmul.f32 %v9269, %v9645
    %v9819 = vmul.f32 %v9273, %v9650
    %v9820 = vmul.f32 %v9279, %v9655
    %v9821 = vmul.f32 %v9283, %v9660
    %v9822 = vmul.f32 %v9289, %v9665
    %v9823 = vmul.f32 %v9293, %v9670
    %v9824 = vmul.f32 %v9299, %v9675
    %v9825 = vmul.f32 %v9303, %v9680
    %v9826 = vmul.f32 %v9309, %v9685
    %v9827 = vmul.f32 %v9313, %v9690
    %v9828 = vmul.f32 %v9319, %v9695
    %v9829 = vmul.f32 %v9323, %v9700
    %v9830 = vmul.f32 %v9329, %v9705
    %v9831 = vmul.f32 %v9333, %v9710
    %v9832 = vmul.f32 %v9339, %v9715
    %v9833 = vmul.f32 %v9343, %v9720
    %v9834 = vmul.f32 %v9349, %v9725
    %v9835 = vmul.f32 %v9353, %v9730
    %v9836 = vmul.f32 %v9359, %v9735
    %v9837 = vmul.f32 %v9363, %v9740
    %v9838 = vmul.f32 %v9369, %v9745
    %v9839 = vmul.f32 %v9373, %v9750
    %v9840 = vmul.f32 %v9379, %v9755
    %v9841 = vmul.f32 %v9383, %v9760
    %v9842 = vmul.f32 %v9389, %v9765
    %v9843 = vmul.f32 %v9393, %v9770
    %v9844 = vmul.f32 %v9079, %v9775
    %v9845 = vmul.f32 %v9083, %v9780
    %v9846 = vadd.f32 %v8884, %v9782
    %v9847 = vadd.f32 %v8885, %v9783
    %v9848 = vadd.f32 %v8886, %v9784
    %v9849 = vadd.f32 %v8887, %v9785
    %v9850 = vadd.f32 %v8888, %v9786
    %v9851 = vadd.f32 %v8889, %v9787
    %v9852 = vadd.f32 %v8890, %v9788
    %v9853 = vadd.f32 %v8891, %v9789
    %v9854 = vadd.f32 %v8892, %v9790
    %v9855 = vadd.f32 %v8893, %v9791
    %v9856 = vadd.f32 %v8894, %v9792
    %v9857 = vadd.f32 %v8895, %v9793
    %v9858 = vadd.f32 %v8896, %v9794
    %v9859 = vadd.f32 %v8897, %v9795
    %v9860 = vadd.f32 %v8898, %v9796
    %v9861 = vadd.f32 %v8899, %v9797
    %v9862 = vadd.f32 %v8900, %v9798
    %v9863 = vadd.f32 %v8901, %v9799
    %v9864 = vadd.f32 %v8902, %v9800
    %v9865 = vadd.f32 %v8903, %v9801
    %v9866 = vadd.f32 %v8904, %v9802
    %v9867 = vadd.f32 %v8905, %v9803
    %v9868 = vadd.f32 %v8906, %v9804
    %v9869 = vadd.f32 %v8907, %v9805
    %v9870 = vadd.f32 %v8908, %v9806
    %v9871 = vadd.f32 %v8909, %v9807
    %v9872 = vadd.f32 %v8910, %v9808
    %v9873 = vadd.f32 %v8911, %v9809
    %v9874 = vadd.f32 %v8912, %v9810
    %v9875 = vadd.f32 %v8913, %v9811
    %v9876 = vadd.f32 %v8914, %v9812
    %v9877 = vadd.f32 %v8915, %v9813
    %v9878 = vadd.f32 %v8916, %v9814
    %v9879 = vadd.f32 %v8917, %v9815
    %v9880 = vadd.f32 %v8918, %v9816
    %v9881 = vadd.f32 %v8919, %v9817
    %v9882 = vadd.f32 %v8920, %v9818
    %v9883 = vadd.f32 %v8921, %v9819
    %v9884 = vadd.f32 %v8922, %v9820
    %v9885 = vadd.f32 %v8923, %v9821
    %v9886 = vadd.f32 %v8924, %v9822
    %v9887 = vadd.f32 %v8925, %v9823
    %v9888 = vadd.f32 %v8926, %v9824
    %v9889 = vadd.f32 %v8927, %v9825
    %v9890 = vadd.f32 %v8928, %v9826
    %v9891 = vadd.f32 %v8929, %v9827
    %v9892 = vadd.f32 %v8930, %v9828
    %v9893 = vadd.f32 %v8931, %v9829
    %v9894 = vadd.f32 %v8932, %v9830
    %v9895 = vadd.f32 %v8933, %v9831
    %v9896 = vadd.f32 %v8934, %v9832
    %v9897 = vadd.f32 %v8935, %v9833
    %v9898 = vadd.f32 %v8936, %v9834
    %v9899 = vadd.f32 %v8937, %v9835
    %v9900 = vadd.f32 %v8938, %v9836
    %v9901 = vadd.f32 %v8939, %v9837
    %v9902 = vadd.f32 %v8940, %v9838
    %v9903 = vadd.f32 %v8941, %v9839
    %v9904 = vadd.f32 %v8942, %v9840
    %v9905 = vadd.f32 %v8943, %v9841
    %v9906 = vadd.f32 %v8944, %v9842
    %v9907 = vadd.f32 %v8945, %v9843
    %v9908 = vadd.f32 %v8946, %v9844
    %v9909 = vadd.f32 %v8947, %v9845
    %s9910 = scalar_lea.vmem %s11, 2560
    %v9911 = vld [vmem:[%s9910] sm:$0xff]
    %v9912 = vld [vmem:[%s9910 + $0x8] sm:$0xff]
    %v9913 = vld [vmem:[%s9910 + $0x10] sm:$0xff]
    %v9914 = vld [vmem:[%s9910 + $0x18] sm:$0xff]
    %v9915 = vld [vmem:[%s9910 + $0x20] sm:$0xff]
    %v9916 = vld [vmem:[%s9910 + $0x28] sm:$0xff]
    %v9917 = vld [vmem:[%s9910 + $0x30] sm:$0xff]
    %v9918 = vld [vmem:[%s9910 + $0x38] sm:$0xff]
    %v9919 = vld [vmem:[%s9910 + $0x40] sm:$0xff]
    %v9920 = vld [vmem:[%s9910 + $0x48] sm:$0xff]
    %v9921 = vld [vmem:[%s9910 + $0x50] sm:$0xff]
    %v9922 = vld [vmem:[%s9910 + $0x58] sm:$0xff]
    %v9923 = vld [vmem:[%s9910 + $0x60] sm:$0xff]
    %v9924 = vld [vmem:[%s9910 + $0x68] sm:$0xff]
    %v9925 = vld [vmem:[%s9910 + $0x70] sm:$0xff]
    %v9926 = vld [vmem:[%s9910 + $0x78] sm:$0xff]
    %v9927 = vld [vmem:[%s9910 + $0x80] sm:$0xff]
    %v9928 = vld [vmem:[%s9910 + $0x88] sm:$0xff]
    %v9929 = vld [vmem:[%s9910 + $0x90] sm:$0xff]
    %v9930 = vld [vmem:[%s9910 + $0x98] sm:$0xff]
    %v9931 = vld [vmem:[%s9910 + $0xa0] sm:$0xff]
    %v9932 = vld [vmem:[%s9910 + $0xa8] sm:$0xff]
    %v9933 = vld [vmem:[%s9910 + $0xb0] sm:$0xff]
    %v9934 = vld [vmem:[%s9910 + $0xb8] sm:$0xff]
    %v9935 = vld [vmem:[%s9910 + $0xc0] sm:$0xff]
    %v9936 = vld [vmem:[%s9910 + $0xc8] sm:$0xff]
    %v9937 = vld [vmem:[%s9910 + $0xd0] sm:$0xff]
    %v9938 = vld [vmem:[%s9910 + $0xd8] sm:$0xff]
    %v9939 = vld [vmem:[%s9910 + $0xe0] sm:$0xff]
    %v9940 = vld [vmem:[%s9910 + $0xe8] sm:$0xff]
    %v9941 = vld [vmem:[%s9910 + $0xf0] sm:$0xff]
    %v9942 = vld [vmem:[%s9910 + $0xf8] sm:$0xff]
    %v9943 = vld [vmem:[%s9910 + $0x100] sm:$0xff]
    %v9944 = vld [vmem:[%s9910 + $0x108] sm:$0xff]
    %v9945 = vld [vmem:[%s9910 + $0x110] sm:$0xff]
    %v9946 = vld [vmem:[%s9910 + $0x118] sm:$0xff]
    %v9947 = vld [vmem:[%s9910 + $0x120] sm:$0xff]
    %v9948 = vld [vmem:[%s9910 + $0x128] sm:$0xff]
    %v9949 = vld [vmem:[%s9910 + $0x130] sm:$0xff]
    %v9950 = vld [vmem:[%s9910 + $0x138] sm:$0xff]
    %v9951 = vld [vmem:[%s9910 + $0x140] sm:$0xff]
    %v9952 = vld [vmem:[%s9910 + $0x148] sm:$0xff]
    %v9953 = vld [vmem:[%s9910 + $0x150] sm:$0xff]
    %v9954 = vld [vmem:[%s9910 + $0x158] sm:$0xff]
    %v9955 = vld [vmem:[%s9910 + $0x160] sm:$0xff]
    %v9956 = vld [vmem:[%s9910 + $0x168] sm:$0xff]
    %v9957 = vld [vmem:[%s9910 + $0x170] sm:$0xff]
    %v9958 = vld [vmem:[%s9910 + $0x178] sm:$0xff]
    %v9959 = vld [vmem:[%s9910 + $0x180] sm:$0xff]
    %v9960 = vld [vmem:[%s9910 + $0x188] sm:$0xff]
    %v9961 = vld [vmem:[%s9910 + $0x190] sm:$0xff]
    %v9962 = vld [vmem:[%s9910 + $0x198] sm:$0xff]
    %v9963 = vld [vmem:[%s9910 + $0x1a0] sm:$0xff]
    %v9964 = vld [vmem:[%s9910 + $0x1a8] sm:$0xff]
    %v9965 = vld [vmem:[%s9910 + $0x1b0] sm:$0xff]
    %v9966 = vld [vmem:[%s9910 + $0x1b8] sm:$0xff]
    %v9967 = vld [vmem:[%s9910 + $0x1c0] sm:$0xff]
    %v9968 = vld [vmem:[%s9910 + $0x1c8] sm:$0xff]
    %v9969 = vld [vmem:[%s9910 + $0x1d0] sm:$0xff]
    %v9970 = vld [vmem:[%s9910 + $0x1d8] sm:$0xff]
    %v9971 = vld [vmem:[%s9910 + $0x1e0] sm:$0xff]
    %v9972 = vld [vmem:[%s9910 + $0x1e8] sm:$0xff]
    %v9973 = vld [vmem:[%s9910 + $0x1f0] sm:$0xff]
    %v9974 = vld [vmem:[%s9910 + $0x1f8] sm:$0xff]
    %9976 = vset.pattern.permute.xlu0 0
    %9977 = vperm.xlu0 %9976, %v9911
    %v9978 = vpop.permute.xlu0 %9977
    %9981 = vset.pattern.permute.xlu0 0
    %9982 = vperm.xlu0 %9981, %v9912
    %v9983 = vpop.permute.xlu0 %9982
    %9986 = vset.pattern.permute.xlu0 0
    %9987 = vperm.xlu0 %9986, %v9913
    %v9988 = vpop.permute.xlu0 %9987
    %9991 = vset.pattern.permute.xlu0 0
    %9992 = vperm.xlu0 %9991, %v9914
    %v9993 = vpop.permute.xlu0 %9992
    %9996 = vset.pattern.permute.xlu0 0
    %9997 = vperm.xlu0 %9996, %v9915
    %v9998 = vpop.permute.xlu0 %9997
    %10001 = vset.pattern.permute.xlu0 0
    %10002 = vperm.xlu0 %10001, %v9916
    %v10003 = vpop.permute.xlu0 %10002
    %10006 = vset.pattern.permute.xlu0 0
    %10007 = vperm.xlu0 %10006, %v9917
    %v10008 = vpop.permute.xlu0 %10007
    %10011 = vset.pattern.permute.xlu0 0
    %10012 = vperm.xlu0 %10011, %v9918
    %v10013 = vpop.permute.xlu0 %10012
    %10016 = vset.pattern.permute.xlu0 0
    %10017 = vperm.xlu0 %10016, %v9919
    %v10018 = vpop.permute.xlu0 %10017
    %10021 = vset.pattern.permute.xlu0 0
    %10022 = vperm.xlu0 %10021, %v9920
    %v10023 = vpop.permute.xlu0 %10022
    %10026 = vset.pattern.permute.xlu0 0
    %10027 = vperm.xlu0 %10026, %v9921
    %v10028 = vpop.permute.xlu0 %10027
    %10031 = vset.pattern.permute.xlu0 0
    %10032 = vperm.xlu0 %10031, %v9922
    %v10033 = vpop.permute.xlu0 %10032
    %10036 = vset.pattern.permute.xlu0 0
    %10037 = vperm.xlu0 %10036, %v9923
    %v10038 = vpop.permute.xlu0 %10037
    %10041 = vset.pattern.permute.xlu0 0
    %10042 = vperm.xlu0 %10041, %v9924
    %v10043 = vpop.permute.xlu0 %10042
    %10046 = vset.pattern.permute.xlu0 0
    %10047 = vperm.xlu0 %10046, %v9925
    %v10048 = vpop.permute.xlu0 %10047
    %10051 = vset.pattern.permute.xlu0 0
    %10052 = vperm.xlu0 %10051, %v9926
    %v10053 = vpop.permute.xlu0 %10052
    %10056 = vset.pattern.permute.xlu0 0
    %10057 = vperm.xlu0 %10056, %v9927
    %v10058 = vpop.permute.xlu0 %10057
    %10061 = vset.pattern.permute.xlu0 0
    %10062 = vperm.xlu0 %10061, %v9928
    %v10063 = vpop.permute.xlu0 %10062
    %10066 = vset.pattern.permute.xlu0 0
    %10067 = vperm.xlu0 %10066, %v9929
    %v10068 = vpop.permute.xlu0 %10067
    %10071 = vset.pattern.permute.xlu0 0
    %10072 = vperm.xlu0 %10071, %v9930
    %v10073 = vpop.permute.xlu0 %10072
    %10076 = vset.pattern.permute.xlu0 0
    %10077 = vperm.xlu0 %10076, %v9931
    %v10078 = vpop.permute.xlu0 %10077
    %10081 = vset.pattern.permute.xlu0 0
    %10082 = vperm.xlu0 %10081, %v9932
    %v10083 = vpop.permute.xlu0 %10082
    %10086 = vset.pattern.permute.xlu0 0
    %10087 = vperm.xlu0 %10086, %v9933
    %v10088 = vpop.permute.xlu0 %10087
    %10091 = vset.pattern.permute.xlu0 0
    %10092 = vperm.xlu0 %10091, %v9934
    %v10093 = vpop.permute.xlu0 %10092
    %10096 = vset.pattern.permute.xlu0 0
    %10097 = vperm.xlu0 %10096, %v9935
    %v10098 = vpop.permute.xlu0 %10097
    %10101 = vset.pattern.permute.xlu0 0
    %10102 = vperm.xlu0 %10101, %v9936
    %v10103 = vpop.permute.xlu0 %10102
    %10106 = vset.pattern.permute.xlu0 0
    %10107 = vperm.xlu0 %10106, %v9937
    %v10108 = vpop.permute.xlu0 %10107
    %10111 = vset.pattern.permute.xlu0 0
    %10112 = vperm.xlu0 %10111, %v9938
    %v10113 = vpop.permute.xlu0 %10112
    %10116 = vset.pattern.permute.xlu0 0
    %10117 = vperm.xlu0 %10116, %v9939
    %v10118 = vpop.permute.xlu0 %10117
    %10121 = vset.pattern.permute.xlu0 0
    %10122 = vperm.xlu0 %10121, %v9940
    %v10123 = vpop.permute.xlu0 %10122
    %10126 = vset.pattern.permute.xlu0 0
    %10127 = vperm.xlu0 %10126, %v9941
    %v10128 = vpop.permute.xlu0 %10127
    %10131 = vset.pattern.permute.xlu0 0
    %10132 = vperm.xlu0 %10131, %v9942
    %v10133 = vpop.permute.xlu0 %10132
    %10136 = vset.pattern.permute.xlu0 0
    %10137 = vperm.xlu0 %10136, %v9943
    %v10138 = vpop.permute.xlu0 %10137
    %10141 = vset.pattern.permute.xlu0 0
    %10142 = vperm.xlu0 %10141, %v9944
    %v10143 = vpop.permute.xlu0 %10142
    %10146 = vset.pattern.permute.xlu0 0
    %10147 = vperm.xlu0 %10146, %v9945
    %v10148 = vpop.permute.xlu0 %10147
    %10151 = vset.pattern.permute.xlu0 0
    %10152 = vperm.xlu0 %10151, %v9946
    %v10153 = vpop.permute.xlu0 %10152
    %10156 = vset.pattern.permute.xlu0 0
    %10157 = vperm.xlu0 %10156, %v9947
    %v10158 = vpop.permute.xlu0 %10157
    %10161 = vset.pattern.permute.xlu0 0
    %10162 = vperm.xlu0 %10161, %v9948
    %v10163 = vpop.permute.xlu0 %10162
    %10166 = vset.pattern.permute.xlu0 0
    %10167 = vperm.xlu0 %10166, %v9949
    %v10168 = vpop.permute.xlu0 %10167
    %10171 = vset.pattern.permute.xlu0 0
    %10172 = vperm.xlu0 %10171, %v9950
    %v10173 = vpop.permute.xlu0 %10172
    %10176 = vset.pattern.permute.xlu0 0
    %10177 = vperm.xlu0 %10176, %v9951
    %v10178 = vpop.permute.xlu0 %10177
    %10181 = vset.pattern.permute.xlu0 0
    %10182 = vperm.xlu0 %10181, %v9952
    %v10183 = vpop.permute.xlu0 %10182
    %10186 = vset.pattern.permute.xlu0 0
    %10187 = vperm.xlu0 %10186, %v9953
    %v10188 = vpop.permute.xlu0 %10187
    %10191 = vset.pattern.permute.xlu0 0
    %10192 = vperm.xlu0 %10191, %v9954
    %v10193 = vpop.permute.xlu0 %10192
    %10196 = vset.pattern.permute.xlu0 0
    %10197 = vperm.xlu0 %10196, %v9955
    %v10198 = vpop.permute.xlu0 %10197
    %10201 = vset.pattern.permute.xlu0 0
    %10202 = vperm.xlu0 %10201, %v9956
    %v10203 = vpop.permute.xlu0 %10202
    %10206 = vset.pattern.permute.xlu0 0
    %10207 = vperm.xlu0 %10206, %v9957
    %v10208 = vpop.permute.xlu0 %10207
    %10211 = vset.pattern.permute.xlu0 0
    %10212 = vperm.xlu0 %10211, %v9958
    %v10213 = vpop.permute.xlu0 %10212
    %10216 = vset.pattern.permute.xlu0 0
    %10217 = vperm.xlu0 %10216, %v9959
    %v10218 = vpop.permute.xlu0 %10217
    %10221 = vset.pattern.permute.xlu0 0
    %10222 = vperm.xlu0 %10221, %v9960
    %v10223 = vpop.permute.xlu0 %10222
    %10226 = vset.pattern.permute.xlu0 0
    %10227 = vperm.xlu0 %10226, %v9961
    %v10228 = vpop.permute.xlu0 %10227
    %10231 = vset.pattern.permute.xlu0 0
    %10232 = vperm.xlu0 %10231, %v9962
    %v10233 = vpop.permute.xlu0 %10232
    %10236 = vset.pattern.permute.xlu0 0
    %10237 = vperm.xlu0 %10236, %v9963
    %v10238 = vpop.permute.xlu0 %10237
    %10241 = vset.pattern.permute.xlu0 0
    %10242 = vperm.xlu0 %10241, %v9964
    %v10243 = vpop.permute.xlu0 %10242
    %10246 = vset.pattern.permute.xlu0 0
    %10247 = vperm.xlu0 %10246, %v9965
    %v10248 = vpop.permute.xlu0 %10247
    %10251 = vset.pattern.permute.xlu0 0
    %10252 = vperm.xlu0 %10251, %v9966
    %v10253 = vpop.permute.xlu0 %10252
    %10256 = vset.pattern.permute.xlu0 0
    %10257 = vperm.xlu0 %10256, %v9967
    %v10258 = vpop.permute.xlu0 %10257
    %10261 = vset.pattern.permute.xlu0 0
    %10262 = vperm.xlu0 %10261, %v9968
    %v10263 = vpop.permute.xlu0 %10262
    %10266 = vset.pattern.permute.xlu0 0
    %10267 = vperm.xlu0 %10266, %v9969
    %v10268 = vpop.permute.xlu0 %10267
    %10271 = vset.pattern.permute.xlu0 0
    %10272 = vperm.xlu0 %10271, %v9970
    %v10273 = vpop.permute.xlu0 %10272
    %10276 = vset.pattern.permute.xlu0 0
    %10277 = vperm.xlu0 %10276, %v9971
    %v10278 = vpop.permute.xlu0 %10277
    %10281 = vset.pattern.permute.xlu0 0
    %10282 = vperm.xlu0 %10281, %v9972
    %v10283 = vpop.permute.xlu0 %10282
    %10286 = vset.pattern.permute.xlu0 0
    %10287 = vperm.xlu0 %10286, %v9973
    %v10288 = vpop.permute.xlu0 %10287
    %10291 = vset.pattern.permute.xlu0 0
    %10292 = vperm.xlu0 %10291, %v9974
    %v10293 = vpop.permute.xlu0 %10292
    %v10295 = vmul.f32 %v9101, %v9978
    %v10296 = vmul.f32 %v9105, %v9983
    %v10297 = vmul.f32 %v9111, %v9988
    %v10298 = vmul.f32 %v9115, %v9993
    %v10299 = vmul.f32 %v9121, %v9998
    %v10300 = vmul.f32 %v9125, %v10003
    %v10301 = vmul.f32 %v9131, %v10008
    %v10302 = vmul.f32 %v9135, %v10013
    %v10303 = vmul.f32 %v9141, %v10018
    %v10304 = vmul.f32 %v9145, %v10023
    %v10305 = vmul.f32 %v9151, %v10028
    %v10306 = vmul.f32 %v9155, %v10033
    %v10307 = vmul.f32 %v9161, %v10038
    %v10308 = vmul.f32 %v9165, %v10043
    %v10309 = vmul.f32 %v9171, %v10048
    %v10310 = vmul.f32 %v9175, %v10053
    %v10311 = vmul.f32 %v9181, %v10058
    %v10312 = vmul.f32 %v9185, %v10063
    %v10313 = vmul.f32 %v9191, %v10068
    %v10314 = vmul.f32 %v9195, %v10073
    %v10315 = vmul.f32 %v9201, %v10078
    %v10316 = vmul.f32 %v9205, %v10083
    %v10317 = vmul.f32 %v9211, %v10088
    %v10318 = vmul.f32 %v9215, %v10093
    %v10319 = vmul.f32 %v9221, %v10098
    %v10320 = vmul.f32 %v9225, %v10103
    %v10321 = vmul.f32 %v9231, %v10108
    %v10322 = vmul.f32 %v9235, %v10113
    %v10323 = vmul.f32 %v9241, %v10118
    %v10324 = vmul.f32 %v9245, %v10123
    %v10325 = vmul.f32 %v9251, %v10128
    %v10326 = vmul.f32 %v9255, %v10133
    %v10327 = vmul.f32 %v9261, %v10138
    %v10328 = vmul.f32 %v9265, %v10143
    %v10329 = vmul.f32 %v9271, %v10148
    %v10330 = vmul.f32 %v9275, %v10153
    %v10331 = vmul.f32 %v9281, %v10158
    %v10332 = vmul.f32 %v9285, %v10163
    %v10333 = vmul.f32 %v9291, %v10168
    %v10334 = vmul.f32 %v9295, %v10173
    %v10335 = vmul.f32 %v9301, %v10178
    %v10336 = vmul.f32 %v9305, %v10183
    %v10337 = vmul.f32 %v9311, %v10188
    %v10338 = vmul.f32 %v9315, %v10193
    %v10339 = vmul.f32 %v9321, %v10198
    %v10340 = vmul.f32 %v9325, %v10203
    %v10341 = vmul.f32 %v9331, %v10208
    %v10342 = vmul.f32 %v9335, %v10213
    %v10343 = vmul.f32 %v9341, %v10218
    %v10344 = vmul.f32 %v9345, %v10223
    %v10345 = vmul.f32 %v9351, %v10228
    %v10346 = vmul.f32 %v9355, %v10233
    %v10347 = vmul.f32 %v9361, %v10238
    %v10348 = vmul.f32 %v9365, %v10243
    %v10349 = vmul.f32 %v9371, %v10248
    %v10350 = vmul.f32 %v9375, %v10253
    %v10351 = vmul.f32 %v9381, %v10258
    %v10352 = vmul.f32 %v9385, %v10263
    %v10353 = vmul.f32 %v9391, %v10268
    %v10354 = vmul.f32 %v9395, %v10273
    %v10355 = vmul.f32 %v9081, %v10278
    %v10356 = vmul.f32 %v9085, %v10283
    %v10357 = vmul.f32 %v9091, %v10288
    %v10358 = vmul.f32 %v9095, %v10293
    %v10359 = vadd.f32 %v9846, %v10295
    %v10360 = vadd.f32 %v9847, %v10296
    %v10361 = vadd.f32 %v9848, %v10297
    %v10362 = vadd.f32 %v9849, %v10298
    %v10363 = vadd.f32 %v9850, %v10299
    %v10364 = vadd.f32 %v9851, %v10300
    %v10365 = vadd.f32 %v9852, %v10301
    %v10366 = vadd.f32 %v9853, %v10302
    %v10367 = vadd.f32 %v9854, %v10303
    %v10368 = vadd.f32 %v9855, %v10304
    %v10369 = vadd.f32 %v9856, %v10305
    %v10370 = vadd.f32 %v9857, %v10306
    %v10371 = vadd.f32 %v9858, %v10307
    %v10372 = vadd.f32 %v9859, %v10308
    %v10373 = vadd.f32 %v9860, %v10309
    %v10374 = vadd.f32 %v9861, %v10310
    %v10375 = vadd.f32 %v9862, %v10311
    %v10376 = vadd.f32 %v9863, %v10312
    %v10377 = vadd.f32 %v9864, %v10313
    %v10378 = vadd.f32 %v9865, %v10314
    %v10379 = vadd.f32 %v9866, %v10315
    %v10380 = vadd.f32 %v9867, %v10316
    %v10381 = vadd.f32 %v9868, %v10317
    %v10382 = vadd.f32 %v9869, %v10318
    %v10383 = vadd.f32 %v9870, %v10319
    %v10384 = vadd.f32 %v9871, %v10320
    %v10385 = vadd.f32 %v9872, %v10321
    %v10386 = vadd.f32 %v9873, %v10322
    %v10387 = vadd.f32 %v9874, %v10323
    %v10388 = vadd.f32 %v9875, %v10324
    %v10389 = vadd.f32 %v9876, %v10325
    %v10390 = vadd.f32 %v9877, %v10326
    %v10391 = vadd.f32 %v9878, %v10327
    %v10392 = vadd.f32 %v9879, %v10328
    %v10393 = vadd.f32 %v9880, %v10329
    %v10394 = vadd.f32 %v9881, %v10330
    %v10395 = vadd.f32 %v9882, %v10331
    %v10396 = vadd.f32 %v9883, %v10332
    %v10397 = vadd.f32 %v9884, %v10333
    %v10398 = vadd.f32 %v9885, %v10334
    %v10399 = vadd.f32 %v9886, %v10335
    %v10400 = vadd.f32 %v9887, %v10336
    %v10401 = vadd.f32 %v9888, %v10337
    %v10402 = vadd.f32 %v9889, %v10338
    %v10403 = vadd.f32 %v9890, %v10339
    %v10404 = vadd.f32 %v9891, %v10340
    %v10405 = vadd.f32 %v9892, %v10341
    %v10406 = vadd.f32 %v9893, %v10342
    %v10407 = vadd.f32 %v9894, %v10343
    %v10408 = vadd.f32 %v9895, %v10344
    %v10409 = vadd.f32 %v9896, %v10345
    %v10410 = vadd.f32 %v9897, %v10346
    %v10411 = vadd.f32 %v9898, %v10347
    %v10412 = vadd.f32 %v9899, %v10348
    %v10413 = vadd.f32 %v9900, %v10349
    %v10414 = vadd.f32 %v9901, %v10350
    %v10415 = vadd.f32 %v9902, %v10351
    %v10416 = vadd.f32 %v9903, %v10352
    %v10417 = vadd.f32 %v9904, %v10353
    %v10418 = vadd.f32 %v9905, %v10354
    %v10419 = vadd.f32 %v9906, %v10355
    %v10420 = vadd.f32 %v9907, %v10356
    %v10421 = vadd.f32 %v9908, %v10357
    %v10422 = vadd.f32 %v9909, %v10358
    %v10423 = vld [vmem:[%s5 + $0x18] sm:$0xf]
    %v10424 = vld [vmem:[%s5 + $0x34] sm:$0xf]
    %v10425 = vld [vmem:[%s5 + $0x50] sm:$0xf]
    %v10426 = vld [vmem:[%s5 + $0x6c] sm:$0xf]
    %v10427 = vld [vmem:[%s5 + $0x88] sm:$0xf]
    %v10428 = vld [vmem:[%s5 + $0xa4] sm:$0xf]
    %v10429 = vld [vmem:[%s5 + $0xc0] sm:$0xf]
    %v10430 = vld [vmem:[%s5 + $0xdc] sm:$0xf]
    %v10431 = vld [vmem:[%s5 + $0xf8] sm:$0xf]
    %v10432 = vld [vmem:[%s5 + $0x114] sm:$0xf]
    %v10433 = vld [vmem:[%s5 + $0x130] sm:$0xf]
    %v10434 = vld [vmem:[%s5 + $0x14c] sm:$0xf]
    %v10435 = vld [vmem:[%s5 + $0x168] sm:$0xf]
    %v10436 = vld [vmem:[%s5 + $0x184] sm:$0xf]
    %v10437 = vld [vmem:[%s5 + $0x1a0] sm:$0xf]
    %v10438 = vld [vmem:[%s5 + $0x1bc] sm:$0xf]
    %v10455 = vunpack.c.l.b16 %v10423
    %v10456 = vunpack.c.l.b16 %v10424
    %v10457 = vunpack.c.l.b16 %v10425
    %v10458 = vunpack.c.l.b16 %v10426
    %v10459 = vunpack.c.l.b16 %v10427
    %v10460 = vunpack.c.l.b16 %v10428
    %v10461 = vunpack.c.l.b16 %v10429
    %v10462 = vunpack.c.l.b16 %v10430
    %v10463 = vunpack.c.l.b16 %v10431
    %v10464 = vunpack.c.l.b16 %v10432
    %v10465 = vunpack.c.l.b16 %v10433
    %v10466 = vunpack.c.l.b16 %v10434
    %v10467 = vunpack.c.l.b16 %v10435
    %v10468 = vunpack.c.l.b16 %v10436
    %v10469 = vunpack.c.l.b16 %v10437
    %v10470 = vunpack.c.l.b16 %v10438
    %v10471 = vpack.c.b16 %v10456, %v10455
    %v10472 = vpack.c.b16 %v10458, %v10457
    %v10473 = vpack.c.b16 %v10460, %v10459
    %v10474 = vpack.c.b16 %v10462, %v10461
    %v10475 = vpack.c.b16 %v10464, %v10463
    %v10476 = vpack.c.b16 %v10466, %v10465
    %v10477 = vpack.c.b16 %v10468, %v10467
    %v10478 = vpack.c.b16 %v10470, %v10469
    %10487 = vmatprep.subr.bf16.mxu0 0
    %10488 = vmatpush1.bf16.msra.mxu0 %v10471
    %10489 = vmatprep.subr.bf16.mxu0 0
    %10490 = vmatpush1.bf16.msra.mxu0 %v10472
    %10491 = vmatprep.subr.bf16.mxu0 0
    %10492 = vmatpush1.bf16.msra.mxu0 %v10473
    %10493 = vmatprep.subr.bf16.mxu0 0
    %10494 = vmatpush1.bf16.msra.mxu0 %v10474
    %10495 = vmatprep.subr.bf16.mxu0 0
    %10496 = vmatpush1.bf16.msra.mxu0 %v10475
    %10497 = vmatprep.subr.bf16.mxu0 0
    %10498 = vmatpush1.bf16.msra.mxu0 %v10476
    %10499 = vmatprep.subr.bf16.mxu0 0
    %10500 = vmatpush1.bf16.msra.mxu0 %v10477
    %10501 = vmatprep.subr.bf16.mxu0 0
    %10502 = vmatpush1.bf16.msra.mxu0 %v10478
    %10503 = vmatprep.subr.bf16.mxu0 0
    %10504 = vmatpush1.bf16.msra.mxu0 0
    %10505 = vmatprep.subr.bf16.mxu0 0
    %10506 = vmatpush1.bf16.msra.mxu0 0
    %10507 = vmatprep.subr.bf16.mxu0 0
    %10508 = vmatpush1.bf16.msra.mxu0 0
    %10509 = vmatprep.subr.bf16.mxu0 0
    %10510 = vmatpush1.bf16.msra.mxu0 0
    %10511 = vmatprep.subr.bf16.mxu0 0
    %10512 = vmatpush1.bf16.msra.mxu0 0
    %10513 = vmatprep.subr.bf16.mxu0 0
    %10514 = vmatpush1.bf16.msra.mxu0 0
    %10515 = vmatprep.subr.bf16.mxu0 0
    %10516 = vmatpush1.bf16.msra.mxu0 0
    %10517 = vmatprep.subr.bf16.mxu0 0
    %10518 = vmatpush1.bf16.msra.mxu0 0
    %10519 = vmatprep.mubr.bf16.mxu0 0
    %10520 = vmatmul.mubr.bf16.gmra.mrb[0].mxu0 %v6480
    %v10521 = vpop.f32.mrb[0].mxu0
    %v10522 = vadd.f32 0.0, %v10521
    %v10523 = vpop.f32.mrb[0].mxu0
    %v10524 = vpop.f32.mrb[0].mxu0
    %v10525 = vadd.f32 0.0, %v10524
    %v10526 = vpop.f32.mrb[0].mxu0
    %10527 = vmatprep.mubr.bf16.mxu0 0
    %10528 = vmatmul.mubr.bf16.gmra.mrb[0].mxu0 %v6481
    %v10529 = vpop.f32.mrb[0].mxu0
    %v10530 = vadd.f32 0.0, %v10529
    %v10531 = vpop.f32.mrb[0].mxu0
    %v10532 = vpop.f32.mrb[0].mxu0
    %v10533 = vadd.f32 0.0, %v10532
    %v10534 = vpop.f32.mrb[0].mxu0
    %10535 = vmatprep.mubr.bf16.mxu0 0
    %10536 = vmatmul.mubr.bf16.gmra.mrb[0].mxu0 %v6482
    %v10537 = vpop.f32.mrb[0].mxu0
    %v10538 = vadd.f32 0.0, %v10537
    %v10539 = vpop.f32.mrb[0].mxu0
    %v10540 = vpop.f32.mrb[0].mxu0
    %v10541 = vadd.f32 0.0, %v10540
    %v10542 = vpop.f32.mrb[0].mxu0
    %10543 = vmatprep.mubr.bf16.mxu0 0
    %10544 = vmatmul.mubr.bf16.gmra.mrb[0].mxu0 %v6483
    %v10545 = vpop.f32.mrb[0].mxu0
    %v10546 = vadd.f32 0.0, %v10545
    %v10547 = vpop.f32.mrb[0].mxu0
    %v10548 = vpop.f32.mrb[0].mxu0
    %v10549 = vadd.f32 0.0, %v10548
    %v10550 = vpop.f32.mrb[0].mxu0
    %10551 = vmatprep.mubr.bf16.mxu0 0
    %10552 = vmatmul.mubr.bf16.gmra.mrb[0].mxu0 %v6484
    %v10553 = vpop.f32.mrb[0].mxu0
    %v10554 = vadd.f32 0.0, %v10553
    %v10555 = vpop.f32.mrb[0].mxu0
    %v10556 = vpop.f32.mrb[0].mxu0
    %v10557 = vadd.f32 0.0, %v10556
    %v10558 = vpop.f32.mrb[0].mxu0
    %10559 = vmatprep.mubr.bf16.mxu0 0
    %10560 = vmatmul.mubr.bf16.gmra.mrb[0].mxu0 %v6485
    %v10561 = vpop.f32.mrb[0].mxu0
    %v10562 = vadd.f32 0.0, %v10561
    %v10563 = vpop.f32.mrb[0].mxu0
    %v10564 = vpop.f32.mrb[0].mxu0
    %v10565 = vadd.f32 0.0, %v10564
    %v10566 = vpop.f32.mrb[0].mxu0
    %10567 = vmatprep.mubr.bf16.mxu0 0
    %10568 = vmatmul.mubr.bf16.gmra.mrb[0].mxu0 %v6486
    %v10569 = vpop.f32.mrb[0].mxu0
    %v10570 = vadd.f32 0.0, %v10569
    %v10571 = vpop.f32.mrb[0].mxu0
    %v10572 = vpop.f32.mrb[0].mxu0
    %v10573 = vadd.f32 0.0, %v10572
    %v10574 = vpop.f32.mrb[0].mxu0
    %10575 = vmatprep.mubr.bf16.mxu0 0
    %10576 = vmatmul.mubr.bf16.gmra.mrb[0].mxu0 %v6487
    %v10577 = vpop.f32.mrb[0].mxu0
    %v10578 = vadd.f32 0.0, %v10577
    %v10579 = vpop.f32.mrb[0].mxu0
    %v10580 = vpop.f32.mrb[0].mxu0
    %v10581 = vadd.f32 0.0, %v10580
    %v10582 = vpop.f32.mrb[0].mxu0
    %10583 = vmatprep.mubr.bf16.mxu0 0
    %10584 = vmatmul.mubr.bf16.gmra.mrb[0].mxu0 %v6488
    %v10585 = vpop.f32.mrb[0].mxu0
    %v10586 = vadd.f32 0.0, %v10585
    %v10587 = vpop.f32.mrb[0].mxu0
    %v10588 = vpop.f32.mrb[0].mxu0
    %v10589 = vadd.f32 0.0, %v10588
    %v10590 = vpop.f32.mrb[0].mxu0
    %10591 = vmatprep.mubr.bf16.mxu0 0
    %10592 = vmatmul.mubr.bf16.gmra.mrb[0].mxu0 %v6489
    %v10593 = vpop.f32.mrb[0].mxu0
    %v10594 = vadd.f32 0.0, %v10593
    %v10595 = vpop.f32.mrb[0].mxu0
    %v10596 = vpop.f32.mrb[0].mxu0
    %v10597 = vadd.f32 0.0, %v10596
    %v10598 = vpop.f32.mrb[0].mxu0
    %10599 = vmatprep.mubr.bf16.mxu0 0
    %10600 = vmatmul.mubr.bf16.gmra.mrb[0].mxu0 %v6490
    %v10601 = vpop.f32.mrb[0].mxu0
    %v10602 = vadd.f32 0.0, %v10601
    %v10603 = vpop.f32.mrb[0].mxu0
    %v10604 = vpop.f32.mrb[0].mxu0
    %v10605 = vadd.f32 0.0, %v10604
    %v10606 = vpop.f32.mrb[0].mxu0
    %10607 = vmatprep.mubr.bf16.mxu0 0
    %10608 = vmatmul.mubr.bf16.gmra.mrb[0].mxu0 %v6491
    %v10609 = vpop.f32.mrb[0].mxu0
    %v10610 = vadd.f32 0.0, %v10609
    %v10611 = vpop.f32.mrb[0].mxu0
    %v10612 = vpop.f32.mrb[0].mxu0
    %v10613 = vadd.f32 0.0, %v10612
    %v10614 = vpop.f32.mrb[0].mxu0
    %10615 = vmatprep.mubr.bf16.mxu0 0
    %10616 = vmatmul.mubr.bf16.gmra.mrb[0].mxu0 %v6492
    %v10617 = vpop.f32.mrb[0].mxu0
    %v10618 = vadd.f32 0.0, %v10617
    %v10619 = vpop.f32.mrb[0].mxu0
    %v10620 = vpop.f32.mrb[0].mxu0
    %v10621 = vadd.f32 0.0, %v10620
    %v10622 = vpop.f32.mrb[0].mxu0
    %10623 = vmatprep.mubr.bf16.mxu0 0
    %10624 = vmatmul.mubr.bf16.gmra.mrb[0].mxu0 %v6493
    %v10625 = vpop.f32.mrb[0].mxu0
    %v10626 = vadd.f32 0.0, %v10625
    %v10627 = vpop.f32.mrb[0].mxu0
    %v10628 = vpop.f32.mrb[0].mxu0
    %v10629 = vadd.f32 0.0, %v10628
    %v10630 = vpop.f32.mrb[0].mxu0
    %10631 = vmatprep.mubr.bf16.mxu0 0
    %10632 = vmatmul.mubr.bf16.gmra.mrb[0].mxu0 %v6494
    %v10633 = vpop.f32.mrb[0].mxu0
    %v10634 = vadd.f32 0.0, %v10633
    %v10635 = vpop.f32.mrb[0].mxu0
    %v10636 = vpop.f32.mrb[0].mxu0
    %v10637 = vadd.f32 0.0, %v10636
    %v10638 = vpop.f32.mrb[0].mxu0
    %10639 = vmatprep.mubr.bf16.mxu0 0
    %10640 = vmatmul.mubr.bf16.gmra.mrb[0].mxu0 %v6495
    %v10641 = vpop.f32.mrb[0].mxu0
    %v10642 = vadd.f32 0.0, %v10641
    %v10643 = vpop.f32.mrb[0].mxu0
    %v10644 = vpop.f32.mrb[0].mxu0
    %v10645 = vadd.f32 0.0, %v10644
    %v10646 = vpop.f32.mrb[0].mxu0
    %10647 = vmatprep.mubr.bf16.mxu0 0
    %10648 = vmatmul.mubr.bf16.gmra.mrb[0].mxu0 %v6496
    %v10649 = vpop.f32.mrb[0].mxu0
    %v10650 = vadd.f32 0.0, %v10649
    %v10651 = vpop.f32.mrb[0].mxu0
    %v10652 = vpop.f32.mrb[0].mxu0
    %v10653 = vadd.f32 0.0, %v10652
    %v10654 = vpop.f32.mrb[0].mxu0
    %10655 = vmatprep.mubr.bf16.mxu0 0
    %10656 = vmatmul.mubr.bf16.gmra.mrb[0].mxu0 %v6497
    %v10657 = vpop.f32.mrb[0].mxu0
    %v10658 = vadd.f32 0.0, %v10657
    %v10659 = vpop.f32.mrb[0].mxu0
    %v10660 = vpop.f32.mrb[0].mxu0
    %v10661 = vadd.f32 0.0, %v10660
    %v10662 = vpop.f32.mrb[0].mxu0
    %10663 = vmatprep.mubr.bf16.mxu0 0
    %10664 = vmatmul.mubr.bf16.gmra.mrb[0].mxu0 %v6498
    %v10665 = vpop.f32.mrb[0].mxu0
    %v10666 = vadd.f32 0.0, %v10665
    %v10667 = vpop.f32.mrb[0].mxu0
    %v10668 = vpop.f32.mrb[0].mxu0
    %v10669 = vadd.f32 0.0, %v10668
    %v10670 = vpop.f32.mrb[0].mxu0
    %10671 = vmatprep.mubr.bf16.mxu0 0
    %10672 = vmatmul.mubr.bf16.gmra.mrb[0].mxu0 %v6499
    %v10673 = vpop.f32.mrb[0].mxu0
    %v10674 = vadd.f32 0.0, %v10673
    %v10675 = vpop.f32.mrb[0].mxu0
    %v10676 = vpop.f32.mrb[0].mxu0
    %v10677 = vadd.f32 0.0, %v10676
    %v10678 = vpop.f32.mrb[0].mxu0
    %10679 = vmatprep.mubr.bf16.mxu0 0
    %10680 = vmatmul.mubr.bf16.gmra.mrb[0].mxu0 %v6500
    %v10681 = vpop.f32.mrb[0].mxu0
    %v10682 = vadd.f32 0.0, %v10681
    %v10683 = vpop.f32.mrb[0].mxu0
    %v10684 = vpop.f32.mrb[0].mxu0
    %v10685 = vadd.f32 0.0, %v10684
    %v10686 = vpop.f32.mrb[0].mxu0
    %10687 = vmatprep.mubr.bf16.mxu0 0
    %10688 = vmatmul.mubr.bf16.gmra.mrb[0].mxu0 %v6501
    %v10689 = vpop.f32.mrb[0].mxu0
    %v10690 = vadd.f32 0.0, %v10689
    %v10691 = vpop.f32.mrb[0].mxu0
    %v10692 = vpop.f32.mrb[0].mxu0
    %v10693 = vadd.f32 0.0, %v10692
    %v10694 = vpop.f32.mrb[0].mxu0
    %10695 = vmatprep.mubr.bf16.mxu0 0
    %10696 = vmatmul.mubr.bf16.gmra.mrb[0].mxu0 %v6502
    %v10697 = vpop.f32.mrb[0].mxu0
    %v10698 = vadd.f32 0.0, %v10697
    %v10699 = vpop.f32.mrb[0].mxu0
    %v10700 = vpop.f32.mrb[0].mxu0
    %v10701 = vadd.f32 0.0, %v10700
    %v10702 = vpop.f32.mrb[0].mxu0
    %10703 = vmatprep.mubr.bf16.mxu0 0
    %10704 = vmatmul.mubr.bf16.gmra.mrb[0].mxu0 %v6503
    %v10705 = vpop.f32.mrb[0].mxu0
    %v10706 = vadd.f32 0.0, %v10705
    %v10707 = vpop.f32.mrb[0].mxu0
    %v10708 = vpop.f32.mrb[0].mxu0
    %v10709 = vadd.f32 0.0, %v10708
    %v10710 = vpop.f32.mrb[0].mxu0
    %10711 = vmatprep.mubr.bf16.mxu0 0
    %10712 = vmatmul.mubr.bf16.gmra.mrb[0].mxu0 %v6504
    %v10713 = vpop.f32.mrb[0].mxu0
    %v10714 = vadd.f32 0.0, %v10713
    %v10715 = vpop.f32.mrb[0].mxu0
    %v10716 = vpop.f32.mrb[0].mxu0
    %v10717 = vadd.f32 0.0, %v10716
    %v10718 = vpop.f32.mrb[0].mxu0
    %10719 = vmatprep.mubr.bf16.mxu0 0
    %10720 = vmatmul.mubr.bf16.gmra.mrb[0].mxu0 %v6505
    %v10721 = vpop.f32.mrb[0].mxu0
    %v10722 = vadd.f32 0.0, %v10721
    %v10723 = vpop.f32.mrb[0].mxu0
    %v10724 = vpop.f32.mrb[0].mxu0
    %v10725 = vadd.f32 0.0, %v10724
    %v10726 = vpop.f32.mrb[0].mxu0
    %10727 = vmatprep.mubr.bf16.mxu0 0
    %10728 = vmatmul.mubr.bf16.gmra.mrb[0].mxu0 %v6506
    %v10729 = vpop.f32.mrb[0].mxu0
    %v10730 = vadd.f32 0.0, %v10729
    %v10731 = vpop.f32.mrb[0].mxu0
    %v10732 = vpop.f32.mrb[0].mxu0
    %v10733 = vadd.f32 0.0, %v10732
    %v10734 = vpop.f32.mrb[0].mxu0
    %10735 = vmatprep.mubr.bf16.mxu0 0
    %10736 = vmatmul.mubr.bf16.gmra.mrb[0].mxu0 %v6507
    %v10737 = vpop.f32.mrb[0].mxu0
    %v10738 = vadd.f32 0.0, %v10737
    %v10739 = vpop.f32.mrb[0].mxu0
    %v10740 = vpop.f32.mrb[0].mxu0
    %v10741 = vadd.f32 0.0, %v10740
    %v10742 = vpop.f32.mrb[0].mxu0
    %10743 = vmatprep.mubr.bf16.mxu0 0
    %10744 = vmatmul.mubr.bf16.gmra.mrb[0].mxu0 %v6508
    %v10745 = vpop.f32.mrb[0].mxu0
    %v10746 = vadd.f32 0.0, %v10745
    %v10747 = vpop.f32.mrb[0].mxu0
    %v10748 = vpop.f32.mrb[0].mxu0
    %v10749 = vadd.f32 0.0, %v10748
    %v10750 = vpop.f32.mrb[0].mxu0
    %10751 = vmatprep.mubr.bf16.mxu0 0
    %10752 = vmatmul.mubr.bf16.gmra.mrb[0].mxu0 %v6509
    %v10753 = vpop.f32.mrb[0].mxu0
    %v10754 = vadd.f32 0.0, %v10753
    %v10755 = vpop.f32.mrb[0].mxu0
    %v10756 = vpop.f32.mrb[0].mxu0
    %v10757 = vadd.f32 0.0, %v10756
    %v10758 = vpop.f32.mrb[0].mxu0
    %10759 = vmatprep.mubr.bf16.mxu0 0
    %10760 = vmatmul.mubr.bf16.gmra.mrb[0].mxu0 %v6510
    %v10761 = vpop.f32.mrb[0].mxu0
    %v10762 = vadd.f32 0.0, %v10761
    %v10763 = vpop.f32.mrb[0].mxu0
    %v10764 = vpop.f32.mrb[0].mxu0
    %v10765 = vadd.f32 0.0, %v10764
    %v10766 = vpop.f32.mrb[0].mxu0
    %10767 = vmatprep.mubr.bf16.mxu0 0
    %10768 = vmatmul.mubr.bf16.gmra.mrb[0].mxu0 %v6511
    %v10769 = vpop.f32.mrb[0].mxu0
    %v10770 = vadd.f32 0.0, %v10769
    %v10771 = vpop.f32.mrb[0].mxu0
    %v10772 = vpop.f32.mrb[0].mxu0
    %v10773 = vadd.f32 0.0, %v10772
    %v10774 = vpop.f32.mrb[0].mxu0
    %10775 = vdwg.mxu0
    %s10776 = scalar_lea.vmem %s11, 3072
    %v10777 = vld [vmem:[%s10776] sm:$0xff]
    %v10778 = vld [vmem:[%s10776 + $0x8] sm:$0xff]
    %v10779 = vld [vmem:[%s10776 + $0x10] sm:$0xff]
    %v10780 = vld [vmem:[%s10776 + $0x18] sm:$0xff]
    %v10781 = vld [vmem:[%s10776 + $0x20] sm:$0xff]
    %v10782 = vld [vmem:[%s10776 + $0x28] sm:$0xff]
    %v10783 = vld [vmem:[%s10776 + $0x30] sm:$0xff]
    %v10784 = vld [vmem:[%s10776 + $0x38] sm:$0xff]
    %v10785 = vld [vmem:[%s10776 + $0x40] sm:$0xff]
    %v10786 = vld [vmem:[%s10776 + $0x48] sm:$0xff]
    %v10787 = vld [vmem:[%s10776 + $0x50] sm:$0xff]
    %v10788 = vld [vmem:[%s10776 + $0x58] sm:$0xff]
    %v10789 = vld [vmem:[%s10776 + $0x60] sm:$0xff]
    %v10790 = vld [vmem:[%s10776 + $0x68] sm:$0xff]
    %v10791 = vld [vmem:[%s10776 + $0x70] sm:$0xff]
    %v10792 = vld [vmem:[%s10776 + $0x78] sm:$0xff]
    %v10793 = vld [vmem:[%s10776 + $0x80] sm:$0xff]
    %v10794 = vld [vmem:[%s10776 + $0x88] sm:$0xff]
    %v10795 = vld [vmem:[%s10776 + $0x90] sm:$0xff]
    %v10796 = vld [vmem:[%s10776 + $0x98] sm:$0xff]
    %v10797 = vld [vmem:[%s10776 + $0xa0] sm:$0xff]
    %v10798 = vld [vmem:[%s10776 + $0xa8] sm:$0xff]
    %v10799 = vld [vmem:[%s10776 + $0xb0] sm:$0xff]
    %v10800 = vld [vmem:[%s10776 + $0xb8] sm:$0xff]
    %v10801 = vld [vmem:[%s10776 + $0xc0] sm:$0xff]
    %v10802 = vld [vmem:[%s10776 + $0xc8] sm:$0xff]
    %v10803 = vld [vmem:[%s10776 + $0xd0] sm:$0xff]
    %v10804 = vld [vmem:[%s10776 + $0xd8] sm:$0xff]
    %v10805 = vld [vmem:[%s10776 + $0xe0] sm:$0xff]
    %v10806 = vld [vmem:[%s10776 + $0xe8] sm:$0xff]
    %v10807 = vld [vmem:[%s10776 + $0xf0] sm:$0xff]
    %v10808 = vld [vmem:[%s10776 + $0xf8] sm:$0xff]
    %v10809 = vld [vmem:[%s10776 + $0x100] sm:$0xff]
    %v10810 = vld [vmem:[%s10776 + $0x108] sm:$0xff]
    %v10811 = vld [vmem:[%s10776 + $0x110] sm:$0xff]
    %v10812 = vld [vmem:[%s10776 + $0x118] sm:$0xff]
    %v10813 = vld [vmem:[%s10776 + $0x120] sm:$0xff]
    %v10814 = vld [vmem:[%s10776 + $0x128] sm:$0xff]
    %v10815 = vld [vmem:[%s10776 + $0x130] sm:$0xff]
    %v10816 = vld [vmem:[%s10776 + $0x138] sm:$0xff]
    %v10817 = vld [vmem:[%s10776 + $0x140] sm:$0xff]
    %v10818 = vld [vmem:[%s10776 + $0x148] sm:$0xff]
    %v10819 = vld [vmem:[%s10776 + $0x150] sm:$0xff]
    %v10820 = vld [vmem:[%s10776 + $0x158] sm:$0xff]
    %v10821 = vld [vmem:[%s10776 + $0x160] sm:$0xff]
    %v10822 = vld [vmem:[%s10776 + $0x168] sm:$0xff]
    %v10823 = vld [vmem:[%s10776 + $0x170] sm:$0xff]
    %v10824 = vld [vmem:[%s10776 + $0x178] sm:$0xff]
    %v10825 = vld [vmem:[%s10776 + $0x180] sm:$0xff]
    %v10826 = vld [vmem:[%s10776 + $0x188] sm:$0xff]
    %v10827 = vld [vmem:[%s10776 + $0x190] sm:$0xff]
    %v10828 = vld [vmem:[%s10776 + $0x198] sm:$0xff]
    %v10829 = vld [vmem:[%s10776 + $0x1a0] sm:$0xff]
    %v10830 = vld [vmem:[%s10776 + $0x1a8] sm:$0xff]
    %v10831 = vld [vmem:[%s10776 + $0x1b0] sm:$0xff]
    %v10832 = vld [vmem:[%s10776 + $0x1b8] sm:$0xff]
    %v10833 = vld [vmem:[%s10776 + $0x1c0] sm:$0xff]
    %v10834 = vld [vmem:[%s10776 + $0x1c8] sm:$0xff]
    %v10835 = vld [vmem:[%s10776 + $0x1d0] sm:$0xff]
    %v10836 = vld [vmem:[%s10776 + $0x1d8] sm:$0xff]
    %v10837 = vld [vmem:[%s10776 + $0x1e0] sm:$0xff]
    %v10838 = vld [vmem:[%s10776 + $0x1e8] sm:$0xff]
    %v10839 = vld [vmem:[%s10776 + $0x1f0] sm:$0xff]
    %v10840 = vld [vmem:[%s10776 + $0x1f8] sm:$0xff]
    %10842 = vset.pattern.permute.xlu0 0
    %10843 = vperm.xlu0 %10842, %v10777
    %v10844 = vpop.permute.xlu0 %10843
    %10847 = vset.pattern.permute.xlu0 0
    %10848 = vperm.xlu0 %10847, %v10778
    %v10849 = vpop.permute.xlu0 %10848
    %10852 = vset.pattern.permute.xlu0 0
    %10853 = vperm.xlu0 %10852, %v10779
    %v10854 = vpop.permute.xlu0 %10853
    %10857 = vset.pattern.permute.xlu0 0
    %10858 = vperm.xlu0 %10857, %v10780
    %v10859 = vpop.permute.xlu0 %10858
    %10862 = vset.pattern.permute.xlu0 0
    %10863 = vperm.xlu0 %10862, %v10781
    %v10864 = vpop.permute.xlu0 %10863
    %10867 = vset.pattern.permute.xlu0 0
    %10868 = vperm.xlu0 %10867, %v10782
    %v10869 = vpop.permute.xlu0 %10868
    %10872 = vset.pattern.permute.xlu0 0
    %10873 = vperm.xlu0 %10872, %v10783
    %v10874 = vpop.permute.xlu0 %10873
    %10877 = vset.pattern.permute.xlu0 0
    %10878 = vperm.xlu0 %10877, %v10784
    %v10879 = vpop.permute.xlu0 %10878
    %10882 = vset.pattern.permute.xlu0 0
    %10883 = vperm.xlu0 %10882, %v10785
    %v10884 = vpop.permute.xlu0 %10883
    %10887 = vset.pattern.permute.xlu0 0
    %10888 = vperm.xlu0 %10887, %v10786
    %v10889 = vpop.permute.xlu0 %10888
    %10892 = vset.pattern.permute.xlu0 0
    %10893 = vperm.xlu0 %10892, %v10787
    %v10894 = vpop.permute.xlu0 %10893
    %10897 = vset.pattern.permute.xlu0 0
    %10898 = vperm.xlu0 %10897, %v10788
    %v10899 = vpop.permute.xlu0 %10898
    %10902 = vset.pattern.permute.xlu0 0
    %10903 = vperm.xlu0 %10902, %v10789
    %v10904 = vpop.permute.xlu0 %10903
    %10907 = vset.pattern.permute.xlu0 0
    %10908 = vperm.xlu0 %10907, %v10790
    %v10909 = vpop.permute.xlu0 %10908
    %10912 = vset.pattern.permute.xlu0 0
    %10913 = vperm.xlu0 %10912, %v10791
    %v10914 = vpop.permute.xlu0 %10913
    %10917 = vset.pattern.permute.xlu0 0
    %10918 = vperm.xlu0 %10917, %v10792
    %v10919 = vpop.permute.xlu0 %10918
    %10922 = vset.pattern.permute.xlu0 0
    %10923 = vperm.xlu0 %10922, %v10793
    %v10924 = vpop.permute.xlu0 %10923
    %10927 = vset.pattern.permute.xlu0 0
    %10928 = vperm.xlu0 %10927, %v10794
    %v10929 = vpop.permute.xlu0 %10928
    %10932 = vset.pattern.permute.xlu0 0
    %10933 = vperm.xlu0 %10932, %v10795
    %v10934 = vpop.permute.xlu0 %10933
    %10937 = vset.pattern.permute.xlu0 0
    %10938 = vperm.xlu0 %10937, %v10796
    %v10939 = vpop.permute.xlu0 %10938
    %10942 = vset.pattern.permute.xlu0 0
    %10943 = vperm.xlu0 %10942, %v10797
    %v10944 = vpop.permute.xlu0 %10943
    %10947 = vset.pattern.permute.xlu0 0
    %10948 = vperm.xlu0 %10947, %v10798
    %v10949 = vpop.permute.xlu0 %10948
    %10952 = vset.pattern.permute.xlu0 0
    %10953 = vperm.xlu0 %10952, %v10799
    %v10954 = vpop.permute.xlu0 %10953
    %10957 = vset.pattern.permute.xlu0 0
    %10958 = vperm.xlu0 %10957, %v10800
    %v10959 = vpop.permute.xlu0 %10958
    %10962 = vset.pattern.permute.xlu0 0
    %10963 = vperm.xlu0 %10962, %v10801
    %v10964 = vpop.permute.xlu0 %10963
    %10967 = vset.pattern.permute.xlu0 0
    %10968 = vperm.xlu0 %10967, %v10802
    %v10969 = vpop.permute.xlu0 %10968
    %10972 = vset.pattern.permute.xlu0 0
    %10973 = vperm.xlu0 %10972, %v10803
    %v10974 = vpop.permute.xlu0 %10973
    %10977 = vset.pattern.permute.xlu0 0
    %10978 = vperm.xlu0 %10977, %v10804
    %v10979 = vpop.permute.xlu0 %10978
    %10982 = vset.pattern.permute.xlu0 0
    %10983 = vperm.xlu0 %10982, %v10805
    %v10984 = vpop.permute.xlu0 %10983
    %10987 = vset.pattern.permute.xlu0 0
    %10988 = vperm.xlu0 %10987, %v10806
    %v10989 = vpop.permute.xlu0 %10988
    %10992 = vset.pattern.permute.xlu0 0
    %10993 = vperm.xlu0 %10992, %v10807
    %v10994 = vpop.permute.xlu0 %10993
    %10997 = vset.pattern.permute.xlu0 0
    %10998 = vperm.xlu0 %10997, %v10808
    %v10999 = vpop.permute.xlu0 %10998
    %11002 = vset.pattern.permute.xlu0 0
    %11003 = vperm.xlu0 %11002, %v10809
    %v11004 = vpop.permute.xlu0 %11003
    %11007 = vset.pattern.permute.xlu0 0
    %11008 = vperm.xlu0 %11007, %v10810
    %v11009 = vpop.permute.xlu0 %11008
    %11012 = vset.pattern.permute.xlu0 0
    %11013 = vperm.xlu0 %11012, %v10811
    %v11014 = vpop.permute.xlu0 %11013
    %11017 = vset.pattern.permute.xlu0 0
    %11018 = vperm.xlu0 %11017, %v10812
    %v11019 = vpop.permute.xlu0 %11018
    %11022 = vset.pattern.permute.xlu0 0
    %11023 = vperm.xlu0 %11022, %v10813
    %v11024 = vpop.permute.xlu0 %11023
    %11027 = vset.pattern.permute.xlu0 0
    %11028 = vperm.xlu0 %11027, %v10814
    %v11029 = vpop.permute.xlu0 %11028
    %11032 = vset.pattern.permute.xlu0 0
    %11033 = vperm.xlu0 %11032, %v10815
    %v11034 = vpop.permute.xlu0 %11033
    %11037 = vset.pattern.permute.xlu0 0
    %11038 = vperm.xlu0 %11037, %v10816
    %v11039 = vpop.permute.xlu0 %11038
    %11042 = vset.pattern.permute.xlu0 0
    %11043 = vperm.xlu0 %11042, %v10817
    %v11044 = vpop.permute.xlu0 %11043
    %11047 = vset.pattern.permute.xlu0 0
    %11048 = vperm.xlu0 %11047, %v10818
    %v11049 = vpop.permute.xlu0 %11048
    %11052 = vset.pattern.permute.xlu0 0
    %11053 = vperm.xlu0 %11052, %v10819
    %v11054 = vpop.permute.xlu0 %11053
    %11057 = vset.pattern.permute.xlu0 0
    %11058 = vperm.xlu0 %11057, %v10820
    %v11059 = vpop.permute.xlu0 %11058
    %11062 = vset.pattern.permute.xlu0 0
    %11063 = vperm.xlu0 %11062, %v10821
    %v11064 = vpop.permute.xlu0 %11063
    %11067 = vset.pattern.permute.xlu0 0
    %11068 = vperm.xlu0 %11067, %v10822
    %v11069 = vpop.permute.xlu0 %11068
    %11072 = vset.pattern.permute.xlu0 0
    %11073 = vperm.xlu0 %11072, %v10823
    %v11074 = vpop.permute.xlu0 %11073
    %11077 = vset.pattern.permute.xlu0 0
    %11078 = vperm.xlu0 %11077, %v10824
    %v11079 = vpop.permute.xlu0 %11078
    %11082 = vset.pattern.permute.xlu0 0
    %11083 = vperm.xlu0 %11082, %v10825
    %v11084 = vpop.permute.xlu0 %11083
    %11087 = vset.pattern.permute.xlu0 0
    %11088 = vperm.xlu0 %11087, %v10826
    %v11089 = vpop.permute.xlu0 %11088
    %11092 = vset.pattern.permute.xlu0 0
    %11093 = vperm.xlu0 %11092, %v10827
    %v11094 = vpop.permute.xlu0 %11093
    %11097 = vset.pattern.permute.xlu0 0
    %11098 = vperm.xlu0 %11097, %v10828
    %v11099 = vpop.permute.xlu0 %11098
    %11102 = vset.pattern.permute.xlu0 0
    %11103 = vperm.xlu0 %11102, %v10829
    %v11104 = vpop.permute.xlu0 %11103
    %11107 = vset.pattern.permute.xlu0 0
    %11108 = vperm.xlu0 %11107, %v10830
    %v11109 = vpop.permute.xlu0 %11108
    %11112 = vset.pattern.permute.xlu0 0
    %11113 = vperm.xlu0 %11112, %v10831
    %v11114 = vpop.permute.xlu0 %11113
    %11117 = vset.pattern.permute.xlu0 0
    %11118 = vperm.xlu0 %11117, %v10832
    %v11119 = vpop.permute.xlu0 %11118
    %11122 = vset.pattern.permute.xlu0 0
    %11123 = vperm.xlu0 %11122, %v10833
    %v11124 = vpop.permute.xlu0 %11123
    %11127 = vset.pattern.permute.xlu0 0
    %11128 = vperm.xlu0 %11127, %v10834
    %v11129 = vpop.permute.xlu0 %11128
    %11132 = vset.pattern.permute.xlu0 0
    %11133 = vperm.xlu0 %11132, %v10835
    %v11134 = vpop.permute.xlu0 %11133
    %11137 = vset.pattern.permute.xlu0 0
    %11138 = vperm.xlu0 %11137, %v10836
    %v11139 = vpop.permute.xlu0 %11138
    %11142 = vset.pattern.permute.xlu0 0
    %11143 = vperm.xlu0 %11142, %v10837
    %v11144 = vpop.permute.xlu0 %11143
    %11147 = vset.pattern.permute.xlu0 0
    %11148 = vperm.xlu0 %11147, %v10838
    %v11149 = vpop.permute.xlu0 %11148
    %11152 = vset.pattern.permute.xlu0 0
    %11153 = vperm.xlu0 %11152, %v10839
    %v11154 = vpop.permute.xlu0 %11153
    %11157 = vset.pattern.permute.xlu0 0
    %11158 = vperm.xlu0 %11157, %v10840
    %v11159 = vpop.permute.xlu0 %11158
    %v11161 = vmul.f32 %v10546, %v10844
    %v11162 = vmul.f32 %v10549, %v10849
    %v11163 = vmul.f32 %v10554, %v10854
    %v11164 = vmul.f32 %v10557, %v10859
    %v11165 = vmul.f32 %v10562, %v10864
    %v11166 = vmul.f32 %v10565, %v10869
    %v11167 = vmul.f32 %v10570, %v10874
    %v11168 = vmul.f32 %v10573, %v10879
    %v11169 = vmul.f32 %v10578, %v10884
    %v11170 = vmul.f32 %v10581, %v10889
    %v11171 = vmul.f32 %v10586, %v10894
    %v11172 = vmul.f32 %v10589, %v10899
    %v11173 = vmul.f32 %v10594, %v10904
    %v11174 = vmul.f32 %v10597, %v10909
    %v11175 = vmul.f32 %v10602, %v10914
    %v11176 = vmul.f32 %v10605, %v10919
    %v11177 = vmul.f32 %v10610, %v10924
    %v11178 = vmul.f32 %v10613, %v10929
    %v11179 = vmul.f32 %v10618, %v10934
    %v11180 = vmul.f32 %v10621, %v10939
    %v11181 = vmul.f32 %v10626, %v10944
    %v11182 = vmul.f32 %v10629, %v10949
    %v11183 = vmul.f32 %v10634, %v10954
    %v11184 = vmul.f32 %v10637, %v10959
    %v11185 = vmul.f32 %v10642, %v10964
    %v11186 = vmul.f32 %v10645, %v10969
    %v11187 = vmul.f32 %v10650, %v10974
    %v11188 = vmul.f32 %v10653, %v10979
    %v11189 = vmul.f32 %v10658, %v10984
    %v11190 = vmul.f32 %v10661, %v10989
    %v11191 = vmul.f32 %v10666, %v10994
    %v11192 = vmul.f32 %v10669, %v10999
    %v11193 = vmul.f32 %v10674, %v11004
    %v11194 = vmul.f32 %v10677, %v11009
    %v11195 = vmul.f32 %v10682, %v11014
    %v11196 = vmul.f32 %v10685, %v11019
    %v11197 = vmul.f32 %v10690, %v11024
    %v11198 = vmul.f32 %v10693, %v11029
    %v11199 = vmul.f32 %v10698, %v11034
    %v11200 = vmul.f32 %v10701, %v11039
    %v11201 = vmul.f32 %v10706, %v11044
    %v11202 = vmul.f32 %v10709, %v11049
    %v11203 = vmul.f32 %v10714, %v11054
    %v11204 = vmul.f32 %v10717, %v11059
    %v11205 = vmul.f32 %v10722, %v11064
    %v11206 = vmul.f32 %v10725, %v11069
    %v11207 = vmul.f32 %v10730, %v11074
    %v11208 = vmul.f32 %v10733, %v11079
    %v11209 = vmul.f32 %v10738, %v11084
    %v11210 = vmul.f32 %v10741, %v11089
    %v11211 = vmul.f32 %v10746, %v11094
    %v11212 = vmul.f32 %v10749, %v11099
    %v11213 = vmul.f32 %v10754, %v11104
    %v11214 = vmul.f32 %v10757, %v11109
    %v11215 = vmul.f32 %v10762, %v11114
    %v11216 = vmul.f32 %v10765, %v11119
    %v11217 = vmul.f32 %v10770, %v11124
    %v11218 = vmul.f32 %v10773, %v11129
    %v11219 = vmul.f32 %v10522, %v11134
    %v11220 = vmul.f32 %v10525, %v11139
    %v11221 = vmul.f32 %v10530, %v11144
    %v11222 = vmul.f32 %v10533, %v11149
    %v11223 = vmul.f32 %v10538, %v11154
    %v11224 = vmul.f32 %v10541, %v11159
    %v11225 = vadd.f32 %v10359, %v11161
    %v11226 = vadd.f32 %v10360, %v11162
    %v11227 = vadd.f32 %v10361, %v11163
    %v11228 = vadd.f32 %v10362, %v11164
    %v11229 = vadd.f32 %v10363, %v11165
    %v11230 = vadd.f32 %v10364, %v11166
    %v11231 = vadd.f32 %v10365, %v11167
    %v11232 = vadd.f32 %v10366, %v11168
    %v11233 = vadd.f32 %v10367, %v11169
    %v11234 = vadd.f32 %v10368, %v11170
    %v11235 = vadd.f32 %v10369, %v11171
    %v11236 = vadd.f32 %v10370, %v11172
    %v11237 = vadd.f32 %v10371, %v11173
    %v11238 = vadd.f32 %v10372, %v11174
    %v11239 = vadd.f32 %v10373, %v11175
    %v11240 = vadd.f32 %v10374, %v11176
    %v11241 = vadd.f32 %v10375, %v11177
    %v11242 = vadd.f32 %v10376, %v11178
    %v11243 = vadd.f32 %v10377, %v11179
    %v11244 = vadd.f32 %v10378, %v11180
    %v11245 = vadd.f32 %v10379, %v11181
    %v11246 = vadd.f32 %v10380, %v11182
    %v11247 = vadd.f32 %v10381, %v11183
    %v11248 = vadd.f32 %v10382, %v11184
    %v11249 = vadd.f32 %v10383, %v11185
    %v11250 = vadd.f32 %v10384, %v11186
    %v11251 = vadd.f32 %v10385, %v11187
    %v11252 = vadd.f32 %v10386, %v11188
    %v11253 = vadd.f32 %v10387, %v11189
    %v11254 = vadd.f32 %v10388, %v11190
    %v11255 = vadd.f32 %v10389, %v11191
    %v11256 = vadd.f32 %v10390, %v11192
    %v11257 = vadd.f32 %v10391, %v11193
    %v11258 = vadd.f32 %v10392, %v11194
    %v11259 = vadd.f32 %v10393, %v11195
    %v11260 = vadd.f32 %v10394, %v11196
    %v11261 = vadd.f32 %v10395, %v11197
    %v11262 = vadd.f32 %v10396, %v11198
    %v11263 = vadd.f32 %v10397, %v11199
    %v11264 = vadd.f32 %v10398, %v11200
    %v11265 = vadd.f32 %v10399, %v11201
    %v11266 = vadd.f32 %v10400, %v11202
    %v11267 = vadd.f32 %v10401, %v11203
    %v11268 = vadd.f32 %v10402, %v11204
    %v11269 = vadd.f32 %v10403, %v11205
    %v11270 = vadd.f32 %v10404, %v11206
    %v11271 = vadd.f32 %v10405, %v11207
    %v11272 = vadd.f32 %v10406, %v11208
    %v11273 = vadd.f32 %v10407, %v11209
    %v11274 = vadd.f32 %v10408, %v11210
    %v11275 = vadd.f32 %v10409, %v11211
    %v11276 = vadd.f32 %v10410, %v11212
    %v11277 = vadd.f32 %v10411, %v11213
    %v11278 = vadd.f32 %v10412, %v11214
    %v11279 = vadd.f32 %v10413, %v11215
    %v11280 = vadd.f32 %v10414, %v11216
    %v11281 = vadd.f32 %v10415, %v11217
    %v11282 = vadd.f32 %v10416, %v11218
    %v11283 = vadd.f32 %v10417, %v11219
    %v11284 = vadd.f32 %v10418, %v11220
    %v11285 = vadd.f32 %v10419, %v11221
    %v11286 = vadd.f32 %v10420, %v11222
    %v11287 = vadd.f32 %v10421, %v11223
    %v11288 = vadd.f32 %v10422, %v11224
    %v11289 = vld [vmem:[%s6] sm:$0x1]
    %v11291 = vlaneseq
    %v11292 = vshrl.u32 %v11291, 7
    %v11293 = vsub.s32 0, %v11292
    %v11294 = vrot.slane %v11289, %v11293
    %v11296 = vadd.f32 %v11225, %v11294
    %v11297 = vadd.f32 %v11226, %v11294
    %v11298 = vadd.f32 %v11227, %v11294
    %v11299 = vadd.f32 %v11228, %v11294
    %v11300 = vadd.f32 %v11229, %v11294
    %v11301 = vadd.f32 %v11230, %v11294
    %v11302 = vadd.f32 %v11231, %v11294
    %v11303 = vadd.f32 %v11232, %v11294
    %v11304 = vadd.f32 %v11233, %v11294
    %v11305 = vadd.f32 %v11234, %v11294
    %v11306 = vadd.f32 %v11235, %v11294
    %v11307 = vadd.f32 %v11236, %v11294
    %v11308 = vadd.f32 %v11237, %v11294
    %v11309 = vadd.f32 %v11238, %v11294
    %v11310 = vadd.f32 %v11239, %v11294
    %v11311 = vadd.f32 %v11240, %v11294
    %v11312 = vadd.f32 %v11241, %v11294
    %v11313 = vadd.f32 %v11242, %v11294
    %v11314 = vadd.f32 %v11243, %v11294
    %v11315 = vadd.f32 %v11244, %v11294
    %v11316 = vadd.f32 %v11245, %v11294
    %v11317 = vadd.f32 %v11246, %v11294
    %v11318 = vadd.f32 %v11247, %v11294
    %v11319 = vadd.f32 %v11248, %v11294
    %v11320 = vadd.f32 %v11249, %v11294
    %v11321 = vadd.f32 %v11250, %v11294
    %v11322 = vadd.f32 %v11251, %v11294
    %v11323 = vadd.f32 %v11252, %v11294
    %v11324 = vadd.f32 %v11253, %v11294
    %v11325 = vadd.f32 %v11254, %v11294
    %v11326 = vadd.f32 %v11255, %v11294
    %v11327 = vadd.f32 %v11256, %v11294
    %v11328 = vadd.f32 %v11257, %v11294
    %v11329 = vadd.f32 %v11258, %v11294
    %v11330 = vadd.f32 %v11259, %v11294
    %v11331 = vadd.f32 %v11260, %v11294
    %v11332 = vadd.f32 %v11261, %v11294
    %v11333 = vadd.f32 %v11262, %v11294
    %v11334 = vadd.f32 %v11263, %v11294
    %v11335 = vadd.f32 %v11264, %v11294
    %v11336 = vadd.f32 %v11265, %v11294
    %v11337 = vadd.f32 %v11266, %v11294
    %v11338 = vadd.f32 %v11267, %v11294
    %v11339 = vadd.f32 %v11268, %v11294
    %v11340 = vadd.f32 %v11269, %v11294
    %v11341 = vadd.f32 %v11270, %v11294
    %v11342 = vadd.f32 %v11271, %v11294
    %v11343 = vadd.f32 %v11272, %v11294
    %v11344 = vadd.f32 %v11273, %v11294
    %v11345 = vadd.f32 %v11274, %v11294
    %v11346 = vadd.f32 %v11275, %v11294
    %v11347 = vadd.f32 %v11276, %v11294
    %v11348 = vadd.f32 %v11277, %v11294
    %v11349 = vadd.f32 %v11278, %v11294
    %v11350 = vadd.f32 %v11279, %v11294
    %v11351 = vadd.f32 %v11280, %v11294
    %v11352 = vadd.f32 %v11281, %v11294
    %v11353 = vadd.f32 %v11282, %v11294
    %v11354 = vadd.f32 %v11283, %v11294
    %v11355 = vadd.f32 %v11284, %v11294
    %v11356 = vadd.f32 %v11285, %v11294
    %v11357 = vadd.f32 %v11286, %v11294
    %v11358 = vadd.f32 %v11287, %v11294
    %v11359 = vadd.f32 %v11288, %v11294
    %v11360 = vmax.f32 %v11296, 0.0
    %v11361 = vmax.f32 %v11297, 0.0
    %v11362 = vmax.f32 %v11298, 0.0
    %v11363 = vmax.f32 %v11299, 0.0
    %v11364 = vmax.f32 %v11300, 0.0
    %v11365 = vmax.f32 %v11301, 0.0
    %v11366 = vmax.f32 %v11302, 0.0
    %v11367 = vmax.f32 %v11303, 0.0
    %v11368 = vmax.f32 %v11304, 0.0
    %v11369 = vmax.f32 %v11305, 0.0
    %v11370 = vmax.f32 %v11306, 0.0
    %v11371 = vmax.f32 %v11307, 0.0
    %v11372 = vmax.f32 %v11308, 0.0
    %v11373 = vmax.f32 %v11309, 0.0
    %v11374 = vmax.f32 %v11310, 0.0
    %v11375 = vmax.f32 %v11311, 0.0
    %v11376 = vmax.f32 %v11312, 0.0
    %v11377 = vmax.f32 %v11313, 0.0
    %v11378 = vmax.f32 %v11314, 0.0
    %v11379 = vmax.f32 %v11315, 0.0
    %v11380 = vmax.f32 %v11316, 0.0
    %v11381 = vmax.f32 %v11317, 0.0
    %v11382 = vmax.f32 %v11318, 0.0
    %v11383 = vmax.f32 %v11319, 0.0
    %v11384 = vmax.f32 %v11320, 0.0
    %v11385 = vmax.f32 %v11321, 0.0
    %v11386 = vmax.f32 %v11322, 0.0
    %v11387 = vmax.f32 %v11323, 0.0
    %v11388 = vmax.f32 %v11324, 0.0
    %v11389 = vmax.f32 %v11325, 0.0
    %v11390 = vmax.f32 %v11326, 0.0
    %v11391 = vmax.f32 %v11327, 0.0
    %v11392 = vmax.f32 %v11328, 0.0
    %v11393 = vmax.f32 %v11329, 0.0
    %v11394 = vmax.f32 %v11330, 0.0
    %v11395 = vmax.f32 %v11331, 0.0
    %v11396 = vmax.f32 %v11332, 0.0
    %v11397 = vmax.f32 %v11333, 0.0
    %v11398 = vmax.f32 %v11334, 0.0
    %v11399 = vmax.f32 %v11335, 0.0
    %v11400 = vmax.f32 %v11336, 0.0
    %v11401 = vmax.f32 %v11337, 0.0
    %v11402 = vmax.f32 %v11338, 0.0
    %v11403 = vmax.f32 %v11339, 0.0
    %v11404 = vmax.f32 %v11340, 0.0
    %v11405 = vmax.f32 %v11341, 0.0
    %v11406 = vmax.f32 %v11342, 0.0
    %v11407 = vmax.f32 %v11343, 0.0
    %v11408 = vmax.f32 %v11344, 0.0
    %v11409 = vmax.f32 %v11345, 0.0
    %v11410 = vmax.f32 %v11346, 0.0
    %v11411 = vmax.f32 %v11347, 0.0
    %v11412 = vmax.f32 %v11348, 0.0
    %v11413 = vmax.f32 %v11349, 0.0
    %v11414 = vmax.f32 %v11350, 0.0
    %v11415 = vmax.f32 %v11351, 0.0
    %v11416 = vmax.f32 %v11352, 0.0
    %v11417 = vmax.f32 %v11353, 0.0
    %v11418 = vmax.f32 %v11354, 0.0
    %v11419 = vmax.f32 %v11355, 0.0
    %v11420 = vmax.f32 %v11356, 0.0
    %v11421 = vmax.f32 %v11357, 0.0
    %v11422 = vmax.f32 %v11358, 0.0
    %v11423 = vmax.f32 %v11359, 0.0
    %v11424 = vpack.c.bf16 %v11361, %v11360
    %v11425 = vpack.c.bf16 %v11363, %v11362
    %v11426 = vpack.c.bf16 %v11365, %v11364
    %v11427 = vpack.c.bf16 %v11367, %v11366
    %v11428 = vpack.c.bf16 %v11369, %v11368
    %v11429 = vpack.c.bf16 %v11371, %v11370
    %v11430 = vpack.c.bf16 %v11373, %v11372
    %v11431 = vpack.c.bf16 %v11375, %v11374
    %v11432 = vpack.c.bf16 %v11377, %v11376
    %v11433 = vpack.c.bf16 %v11379, %v11378
    %v11434 = vpack.c.bf16 %v11381, %v11380
    %v11435 = vpack.c.bf16 %v11383, %v11382
    %v11436 = vpack.c.bf16 %v11385, %v11384
    %v11437 = vpack.c.bf16 %v11387, %v11386
    %v11438 = vpack.c.bf16 %v11389, %v11388
    %v11439 = vpack.c.bf16 %v11391, %v11390
    %v11440 = vpack.c.bf16 %v11393, %v11392
    %v11441 = vpack.c.bf16 %v11395, %v11394
    %v11442 = vpack.c.bf16 %v11397, %v11396
    %v11443 = vpack.c.bf16 %v11399, %v11398
    %v11444 = vpack.c.bf16 %v11401, %v11400
    %v11445 = vpack.c.bf16 %v11403, %v11402
    %v11446 = vpack.c.bf16 %v11405, %v11404
    %v11447 = vpack.c.bf16 %v11407, %v11406
    %v11448 = vpack.c.bf16 %v11409, %v11408
    %v11449 = vpack.c.bf16 %v11411, %v11410
    %v11450 = vpack.c.bf16 %v11413, %v11412
    %v11451 = vpack.c.bf16 %v11415, %v11414
    %v11452 = vpack.c.bf16 %v11417, %v11416
    %v11453 = vpack.c.bf16 %v11419, %v11418
    %v11454 = vpack.c.bf16 %v11421, %v11420
    %v11455 = vpack.c.bf16 %v11423, %v11422
    %v11456 = vld [vmem:[%s8] sm:$0xf]
    %v11457 = vld [vmem:[%s8 + $0x4] sm:$0xf]
    %v11458 = vld [vmem:[%s8 + $0x8] sm:$0xf]
    %v11459 = vld [vmem:[%s8 + $0xc] sm:$0xf]
    %v11460 = vld [vmem:[%s8 + $0x10] sm:$0xf]
    %v11461 = vld [vmem:[%s8 + $0x14] sm:$0xf]
    %v11462 = vld [vmem:[%s8 + $0x18] sm:$0xf]
    %v11463 = vld [vmem:[%s8 + $0x1c] sm:$0xf]
    %v11464 = vld [vmem:[%s8 + $0x20] sm:$0xf]
    %v11465 = vld [vmem:[%s8 + $0x24] sm:$0xf]
    %v11466 = vld [vmem:[%s8 + $0x28] sm:$0xf]
    %v11467 = vld [vmem:[%s8 + $0x2c] sm:$0xf]
    %v11468 = vld [vmem:[%s8 + $0x30] sm:$0xf]
    %v11469 = vld [vmem:[%s8 + $0x34] sm:$0xf]
    %v11470 = vld [vmem:[%s8 + $0x38] sm:$0xf]
    %v11471 = vld [vmem:[%s8 + $0x3c] sm:$0xf]
    %v11472 = vld [vmem:[%s7] sm:$0xf]
    %v11473 = vld [vmem:[%s7 + $0x4] sm:$0xf]
    %v11474 = vld [vmem:[%s7 + $0x8] sm:$0xf]
    %v11475 = vld [vmem:[%s7 + $0xc] sm:$0xf]
    %v11476 = vld [vmem:[%s7 + $0x10] sm:$0xf]
    %v11477 = vld [vmem:[%s7 + $0x14] sm:$0xf]
    %v11478 = vld [vmem:[%s7 + $0x18] sm:$0xf]
    %v11479 = vld [vmem:[%s7 + $0x1c] sm:$0xf]
    %v11480 = vld [vmem:[%s7 + $0x20] sm:$0xf]
    %v11481 = vld [vmem:[%s7 + $0x24] sm:$0xf]
    %v11482 = vld [vmem:[%s7 + $0x28] sm:$0xf]
    %v11483 = vld [vmem:[%s7 + $0x2c] sm:$0xf]
    %v11484 = vld [vmem:[%s7 + $0x30] sm:$0xf]
    %v11485 = vld [vmem:[%s7 + $0x34] sm:$0xf]
    %v11486 = vld [vmem:[%s7 + $0x38] sm:$0xf]
    %v11487 = vld [vmem:[%s7 + $0x3c] sm:$0xf]
    %v11504 = vunpack.c.l.b16 %v11472
    %v11505 = vunpack.c.l.b16 %v11473
    %v11506 = vunpack.c.l.b16 %v11474
    %v11507 = vunpack.c.l.b16 %v11475
    %v11508 = vunpack.c.l.b16 %v11476
    %v11509 = vunpack.c.l.b16 %v11477
    %v11510 = vunpack.c.l.b16 %v11478
    %v11511 = vunpack.c.l.b16 %v11479
    %v11512 = vunpack.c.l.b16 %v11480
    %v11513 = vunpack.c.l.b16 %v11481
    %v11514 = vunpack.c.l.b16 %v11482
    %v11515 = vunpack.c.l.b16 %v11483
    %v11516 = vunpack.c.l.b16 %v11484
    %v11517 = vunpack.c.l.b16 %v11485
    %v11518 = vunpack.c.l.b16 %v11486
    %v11519 = vunpack.c.l.b16 %v11487
    %v11520 = vpack.c.b16 %v11505, %v11504
    %v11521 = vpack.c.b16 %v11507, %v11506
    %v11522 = vpack.c.b16 %v11509, %v11508
    %v11523 = vpack.c.b16 %v11511, %v11510
    %v11524 = vpack.c.b16 %v11513, %v11512
    %v11525 = vpack.c.b16 %v11515, %v11514
    %v11526 = vpack.c.b16 %v11517, %v11516
    %v11527 = vpack.c.b16 %v11519, %v11518
    %11536 = vmatprep.subr.bf16.mxu0 0
    %11537 = vmatpush1.bf16.msra.mxu0 %v11520
    %11538 = vmatprep.subr.bf16.mxu0 0
    %11539 = vmatpush1.bf16.msra.mxu0 %v11521
    %11540 = vmatprep.subr.bf16.mxu0 0
    %11541 = vmatpush1.bf16.msra.mxu0 %v11522
    %11542 = vmatprep.subr.bf16.mxu0 0
    %11543 = vmatpush1.bf16.msra.mxu0 %v11523
    %11544 = vmatprep.subr.bf16.mxu0 0
    %11545 = vmatpush1.bf16.msra.mxu0 %v11524
    %11546 = vmatprep.subr.bf16.mxu0 0
    %11547 = vmatpush1.bf16.msra.mxu0 %v11525
    %11548 = vmatprep.subr.bf16.mxu0 0
    %11549 = vmatpush1.bf16.msra.mxu0 %v11526
    %11550 = vmatprep.subr.bf16.mxu0 0
    %11551 = vmatpush1.bf16.msra.mxu0 %v11527
    %11552 = vmatprep.subr.bf16.mxu0 0
    %11553 = vmatpush1.bf16.msra.mxu0 0
    %11554 = vmatprep.subr.bf16.mxu0 0
    %11555 = vmatpush1.bf16.msra.mxu0 0
    %11556 = vmatprep.subr.bf16.mxu0 0
    %11557 = vmatpush1.bf16.msra.mxu0 0
    %11558 = vmatprep.subr.bf16.mxu0 0
    %11559 = vmatpush1.bf16.msra.mxu0 0
    %11560 = vmatprep.subr.bf16.mxu0 0
    %11561 = vmatpush1.bf16.msra.mxu0 0
    %11562 = vmatprep.subr.bf16.mxu0 0
    %11563 = vmatpush1.bf16.msra.mxu0 0
    %11564 = vmatprep.subr.bf16.mxu0 0
    %11565 = vmatpush1.bf16.msra.mxu0 0
    %11566 = vmatprep.subr.bf16.mxu0 0
    %11567 = vmatpush1.bf16.msra.mxu0 0
    %11568 = vmatprep.mubr.bf16.mxu0 0
    %11569 = vmatmul.mubr.bf16.gmra.mrb[0].mxu0 %v728
    %v11570 = vpop.f32.mrb[0].mxu0
    %v11571 = vadd.f32 0.0, %v11570
    %v11572 = vpop.f32.mrb[0].mxu0
    %v11573 = vpop.f32.mrb[0].mxu0
    %v11574 = vadd.f32 0.0, %v11573
    %v11575 = vpop.f32.mrb[0].mxu0
    %11576 = vmatprep.mubr.bf16.mxu0 0
    %11577 = vmatmul.mubr.bf16.gmra.mrb[0].mxu0 %v729
    %v11578 = vpop.f32.mrb[0].mxu0
    %v11579 = vadd.f32 0.0, %v11578
    %v11580 = vpop.f32.mrb[0].mxu0
    %v11581 = vpop.f32.mrb[0].mxu0
    %v11582 = vadd.f32 0.0, %v11581
    %v11583 = vpop.f32.mrb[0].mxu0
    %11584 = vmatprep.mubr.bf16.mxu0 0
    %11585 = vmatmul.mubr.bf16.gmra.mrb[0].mxu0 %v730
    %v11586 = vpop.f32.mrb[0].mxu0
    %v11587 = vadd.f32 0.0, %v11586
    %v11588 = vpop.f32.mrb[0].mxu0
    %v11589 = vpop.f32.mrb[0].mxu0
    %v11590 = vadd.f32 0.0, %v11589
    %v11591 = vpop.f32.mrb[0].mxu0
    %11592 = vmatprep.mubr.bf16.mxu0 0
    %11593 = vmatmul.mubr.bf16.gmra.mrb[0].mxu0 %v731
    %v11594 = vpop.f32.mrb[0].mxu0
    %v11595 = vadd.f32 0.0, %v11594
    %v11596 = vpop.f32.mrb[0].mxu0
    %v11597 = vpop.f32.mrb[0].mxu0
    %v11598 = vadd.f32 0.0, %v11597
    %v11599 = vpop.f32.mrb[0].mxu0
    %11600 = vmatprep.mubr.bf16.mxu0 0
    %11601 = vmatmul.mubr.bf16.gmra.mrb[0].mxu0 %v732
    %v11602 = vpop.f32.mrb[0].mxu0
    %v11603 = vadd.f32 0.0, %v11602
    %v11604 = vpop.f32.mrb[0].mxu0
    %v11605 = vpop.f32.mrb[0].mxu0
    %v11606 = vadd.f32 0.0, %v11605
    %v11607 = vpop.f32.mrb[0].mxu0
    %11608 = vmatprep.mubr.bf16.mxu0 0
    %11609 = vmatmul.mubr.bf16.gmra.mrb[0].mxu0 %v733
    %v11610 = vpop.f32.mrb[0].mxu0
    %v11611 = vadd.f32 0.0, %v11610
    %v11612 = vpop.f32.mrb[0].mxu0
    %v11613 = vpop.f32.mrb[0].mxu0
    %v11614 = vadd.f32 0.0, %v11613
    %v11615 = vpop.f32.mrb[0].mxu0
    %11616 = vmatprep.mubr.bf16.mxu0 0
    %11617 = vmatmul.mubr.bf16.gmra.mrb[0].mxu0 %v734
    %v11618 = vpop.f32.mrb[0].mxu0
    %v11619 = vadd.f32 0.0, %v11618
    %v11620 = vpop.f32.mrb[0].mxu0
    %v11621 = vpop.f32.mrb[0].mxu0
    %v11622 = vadd.f32 0.0, %v11621
    %v11623 = vpop.f32.mrb[0].mxu0
    %11624 = vmatprep.mubr.bf16.mxu0 0
    %11625 = vmatmul.mubr.bf16.gmra.mrb[0].mxu0 %v735
    %v11626 = vpop.f32.mrb[0].mxu0
    %v11627 = vadd.f32 0.0, %v11626
    %v11628 = vpop.f32.mrb[0].mxu0
    %v11629 = vpop.f32.mrb[0].mxu0
    %v11630 = vadd.f32 0.0, %v11629
    %v11631 = vpop.f32.mrb[0].mxu0
    %11632 = vmatprep.mubr.bf16.mxu0 0
    %11633 = vmatmul.mubr.bf16.gmra.mrb[0].mxu0 %v736
    %v11634 = vpop.f32.mrb[0].mxu0
    %v11635 = vadd.f32 0.0, %v11634
    %v11636 = vpop.f32.mrb[0].mxu0
    %v11637 = vpop.f32.mrb[0].mxu0
    %v11638 = vadd.f32 0.0, %v11637
    %v11639 = vpop.f32.mrb[0].mxu0
    %11640 = vmatprep.mubr.bf16.mxu0 0
    %11641 = vmatmul.mubr.bf16.gmra.mrb[0].mxu0 %v737
    %v11642 = vpop.f32.mrb[0].mxu0
    %v11643 = vadd.f32 0.0, %v11642
    %v11644 = vpop.f32.mrb[0].mxu0
    %v11645 = vpop.f32.mrb[0].mxu0
    %v11646 = vadd.f32 0.0, %v11645
    %v11647 = vpop.f32.mrb[0].mxu0
    %11648 = vmatprep.mubr.bf16.mxu0 0
    %11649 = vmatmul.mubr.bf16.gmra.mrb[0].mxu0 %v738
    %v11650 = vpop.f32.mrb[0].mxu0
    %v11651 = vadd.f32 0.0, %v11650
    %v11652 = vpop.f32.mrb[0].mxu0
    %v11653 = vpop.f32.mrb[0].mxu0
    %v11654 = vadd.f32 0.0, %v11653
    %v11655 = vpop.f32.mrb[0].mxu0
    %11656 = vmatprep.mubr.bf16.mxu0 0
    %11657 = vmatmul.mubr.bf16.gmra.mrb[0].mxu0 %v739
    %v11658 = vpop.f32.mrb[0].mxu0
    %v11659 = vadd.f32 0.0, %v11658
    %v11660 = vpop.f32.mrb[0].mxu0
    %v11661 = vpop.f32.mrb[0].mxu0
    %v11662 = vadd.f32 0.0, %v11661
    %v11663 = vpop.f32.mrb[0].mxu0
    %11664 = vmatprep.mubr.bf16.mxu0 0
    %11665 = vmatmul.mubr.bf16.gmra.mrb[0].mxu0 %v740
    %v11666 = vpop.f32.mrb[0].mxu0
    %v11667 = vadd.f32 0.0, %v11666
    %v11668 = vpop.f32.mrb[0].mxu0
    %v11669 = vpop.f32.mrb[0].mxu0
    %v11670 = vadd.f32 0.0, %v11669
    %v11671 = vpop.f32.mrb[0].mxu0
    %11672 = vmatprep.mubr.bf16.mxu0 0
    %11673 = vmatmul.mubr.bf16.gmra.mrb[0].mxu0 %v741
    %v11674 = vpop.f32.mrb[0].mxu0
    %v11675 = vadd.f32 0.0, %v11674
    %v11676 = vpop.f32.mrb[0].mxu0
    %v11677 = vpop.f32.mrb[0].mxu0
    %v11678 = vadd.f32 0.0, %v11677
    %v11679 = vpop.f32.mrb[0].mxu0
    %11680 = vmatprep.mubr.bf16.mxu0 0
    %11681 = vmatmul.mubr.bf16.gmra.mrb[0].mxu0 %v742
    %v11682 = vpop.f32.mrb[0].mxu0
    %v11683 = vadd.f32 0.0, %v11682
    %v11684 = vpop.f32.mrb[0].mxu0
    %v11685 = vpop.f32.mrb[0].mxu0
    %v11686 = vadd.f32 0.0, %v11685
    %v11687 = vpop.f32.mrb[0].mxu0
    %11688 = vmatprep.mubr.bf16.mxu0 0
    %11689 = vmatmul.mubr.bf16.gmra.mrb[0].mxu0 %v743
    %v11690 = vpop.f32.mrb[0].mxu0
    %v11691 = vadd.f32 0.0, %v11690
    %v11692 = vpop.f32.mrb[0].mxu0
    %v11693 = vpop.f32.mrb[0].mxu0
    %v11694 = vadd.f32 0.0, %v11693
    %v11695 = vpop.f32.mrb[0].mxu0
    %11696 = vmatprep.mubr.bf16.mxu0 0
    %11697 = vmatmul.mubr.bf16.gmra.mrb[0].mxu0 %v744
    %v11698 = vpop.f32.mrb[0].mxu0
    %v11699 = vadd.f32 0.0, %v11698
    %v11700 = vpop.f32.mrb[0].mxu0
    %v11701 = vpop.f32.mrb[0].mxu0
    %v11702 = vadd.f32 0.0, %v11701
    %v11703 = vpop.f32.mrb[0].mxu0
    %11704 = vmatprep.mubr.bf16.mxu0 0
    %11705 = vmatmul.mubr.bf16.gmra.mrb[0].mxu0 %v745
    %v11706 = vpop.f32.mrb[0].mxu0
    %v11707 = vadd.f32 0.0, %v11706
    %v11708 = vpop.f32.mrb[0].mxu0
    %v11709 = vpop.f32.mrb[0].mxu0
    %v11710 = vadd.f32 0.0, %v11709
    %v11711 = vpop.f32.mrb[0].mxu0
    %11712 = vmatprep.mubr.bf16.mxu0 0
    %11713 = vmatmul.mubr.bf16.gmra.mrb[0].mxu0 %v746
    %v11714 = vpop.f32.mrb[0].mxu0
    %v11715 = vadd.f32 0.0, %v11714
    %v11716 = vpop.f32.mrb[0].mxu0
    %v11717 = vpop.f32.mrb[0].mxu0
    %v11718 = vadd.f32 0.0, %v11717
    %v11719 = vpop.f32.mrb[0].mxu0
    %11720 = vmatprep.mubr.bf16.mxu0 0
    %11721 = vmatmul.mubr.bf16.gmra.mrb[0].mxu0 %v747
    %v11722 = vpop.f32.mrb[0].mxu0
    %v11723 = vadd.f32 0.0, %v11722
    %v11724 = vpop.f32.mrb[0].mxu0
    %v11725 = vpop.f32.mrb[0].mxu0
    %v11726 = vadd.f32 0.0, %v11725
    %v11727 = vpop.f32.mrb[0].mxu0
    %11728 = vmatprep.mubr.bf16.mxu0 0
    %11729 = vmatmul.mubr.bf16.gmra.mrb[0].mxu0 %v748
    %v11730 = vpop.f32.mrb[0].mxu0
    %v11731 = vadd.f32 0.0, %v11730
    %v11732 = vpop.f32.mrb[0].mxu0
    %v11733 = vpop.f32.mrb[0].mxu0
    %v11734 = vadd.f32 0.0, %v11733
    %v11735 = vpop.f32.mrb[0].mxu0
    %11736 = vmatprep.mubr.bf16.mxu0 0
    %11737 = vmatmul.mubr.bf16.gmra.mrb[0].mxu0 %v749
    %v11738 = vpop.f32.mrb[0].mxu0
    %v11739 = vadd.f32 0.0, %v11738
    %v11740 = vpop.f32.mrb[0].mxu0
    %v11741 = vpop.f32.mrb[0].mxu0
    %v11742 = vadd.f32 0.0, %v11741
    %v11743 = vpop.f32.mrb[0].mxu0
    %11744 = vmatprep.mubr.bf16.mxu0 0
    %11745 = vmatmul.mubr.bf16.gmra.mrb[0].mxu0 %v750
    %v11746 = vpop.f32.mrb[0].mxu0
    %v11747 = vadd.f32 0.0, %v11746
    %v11748 = vpop.f32.mrb[0].mxu0
    %v11749 = vpop.f32.mrb[0].mxu0
    %v11750 = vadd.f32 0.0, %v11749
    %v11751 = vpop.f32.mrb[0].mxu0
    %11752 = vmatprep.mubr.bf16.mxu0 0
    %11753 = vmatmul.mubr.bf16.gmra.mrb[0].mxu0 %v751
    %v11754 = vpop.f32.mrb[0].mxu0
    %v11755 = vadd.f32 0.0, %v11754
    %v11756 = vpop.f32.mrb[0].mxu0
    %v11757 = vpop.f32.mrb[0].mxu0
    %v11758 = vadd.f32 0.0, %v11757
    %v11759 = vpop.f32.mrb[0].mxu0
    %11760 = vmatprep.mubr.bf16.mxu0 0
    %11761 = vmatmul.mubr.bf16.gmra.mrb[0].mxu0 %v752
    %v11762 = vpop.f32.mrb[0].mxu0
    %v11763 = vadd.f32 0.0, %v11762
    %v11764 = vpop.f32.mrb[0].mxu0
    %v11765 = vpop.f32.mrb[0].mxu0
    %v11766 = vadd.f32 0.0, %v11765
    %v11767 = vpop.f32.mrb[0].mxu0
    %11768 = vmatprep.mubr.bf16.mxu0 0
    %11769 = vmatmul.mubr.bf16.gmra.mrb[0].mxu0 %v753
    %v11770 = vpop.f32.mrb[0].mxu0
    %v11771 = vadd.f32 0.0, %v11770
    %v11772 = vpop.f32.mrb[0].mxu0
    %v11773 = vpop.f32.mrb[0].mxu0
    %v11774 = vadd.f32 0.0, %v11773
    %v11775 = vpop.f32.mrb[0].mxu0
    %11776 = vmatprep.mubr.bf16.mxu0 0
    %11777 = vmatmul.mubr.bf16.gmra.mrb[0].mxu0 %v754
    %v11778 = vpop.f32.mrb[0].mxu0
    %v11779 = vadd.f32 0.0, %v11778
    %v11780 = vpop.f32.mrb[0].mxu0
    %v11781 = vpop.f32.mrb[0].mxu0
    %v11782 = vadd.f32 0.0, %v11781
    %v11783 = vpop.f32.mrb[0].mxu0
    %11784 = vmatprep.mubr.bf16.mxu0 0
    %11785 = vmatmul.mubr.bf16.gmra.mrb[0].mxu0 %v755
    %v11786 = vpop.f32.mrb[0].mxu0
    %v11787 = vadd.f32 0.0, %v11786
    %v11788 = vpop.f32.mrb[0].mxu0
    %v11789 = vpop.f32.mrb[0].mxu0
    %v11790 = vadd.f32 0.0, %v11789
    %v11791 = vpop.f32.mrb[0].mxu0
    %11792 = vmatprep.mubr.bf16.mxu0 0
    %11793 = vmatmul.mubr.bf16.gmra.mrb[0].mxu0 %v756
    %v11794 = vpop.f32.mrb[0].mxu0
    %v11795 = vadd.f32 0.0, %v11794
    %v11796 = vpop.f32.mrb[0].mxu0
    %v11797 = vpop.f32.mrb[0].mxu0
    %v11798 = vadd.f32 0.0, %v11797
    %v11799 = vpop.f32.mrb[0].mxu0
    %11800 = vmatprep.mubr.bf16.mxu0 0
    %11801 = vmatmul.mubr.bf16.gmra.mrb[0].mxu0 %v757
    %v11802 = vpop.f32.mrb[0].mxu0
    %v11803 = vadd.f32 0.0, %v11802
    %v11804 = vpop.f32.mrb[0].mxu0
    %v11805 = vpop.f32.mrb[0].mxu0
    %v11806 = vadd.f32 0.0, %v11805
    %v11807 = vpop.f32.mrb[0].mxu0
    %11808 = vmatprep.mubr.bf16.mxu0 0
    %11809 = vmatmul.mubr.bf16.gmra.mrb[0].mxu0 %v758
    %v11810 = vpop.f32.mrb[0].mxu0
    %v11811 = vadd.f32 0.0, %v11810
    %v11812 = vpop.f32.mrb[0].mxu0
    %v11813 = vpop.f32.mrb[0].mxu0
    %v11814 = vadd.f32 0.0, %v11813
    %v11815 = vpop.f32.mrb[0].mxu0
    %11816 = vmatprep.mubr.bf16.mxu0 0
    %11817 = vmatmul.mubr.bf16.gmra.mrb[0].mxu0 %v759
    %v11818 = vpop.f32.mrb[0].mxu0
    %v11819 = vadd.f32 0.0, %v11818
    %v11820 = vpop.f32.mrb[0].mxu0
    %v11821 = vpop.f32.mrb[0].mxu0
    %v11822 = vadd.f32 0.0, %v11821
    %v11823 = vpop.f32.mrb[0].mxu0
    %11824 = vdwg.mxu0
    %v11841 = vunpack.c.l.b16 %v11456
    %v11842 = vunpack.c.l.b16 %v11457
    %v11843 = vunpack.c.l.b16 %v11458
    %v11844 = vunpack.c.l.b16 %v11459
    %v11845 = vunpack.c.l.b16 %v11460
    %v11846 = vunpack.c.l.b16 %v11461
    %v11847 = vunpack.c.l.b16 %v11462
    %v11848 = vunpack.c.l.b16 %v11463
    %v11849 = vunpack.c.l.b16 %v11464
    %v11850 = vunpack.c.l.b16 %v11465
    %v11851 = vunpack.c.l.b16 %v11466
    %v11852 = vunpack.c.l.b16 %v11467
    %v11853 = vunpack.c.l.b16 %v11468
    %v11854 = vunpack.c.l.b16 %v11469
    %v11855 = vunpack.c.l.b16 %v11470
    %v11856 = vunpack.c.l.b16 %v11471
    %v11857 = vpack.c.b16 %v11842, %v11841
    %v11858 = vpack.c.b16 %v11844, %v11843
    %v11859 = vpack.c.b16 %v11846, %v11845
    %v11860 = vpack.c.b16 %v11848, %v11847
    %v11861 = vpack.c.b16 %v11850, %v11849
    %v11862 = vpack.c.b16 %v11852, %v11851
    %v11863 = vpack.c.b16 %v11854, %v11853
    %v11864 = vpack.c.b16 %v11856, %v11855
    %11873 = vmatprep.subr.bf16.mxu0 0
    %11874 = vmatpush1.bf16.msra.mxu0 %v11857
    %11875 = vmatprep.subr.bf16.mxu0 0
    %11876 = vmatpush1.bf16.msra.mxu0 %v11858
    %11877 = vmatprep.subr.bf16.mxu0 0
    %11878 = vmatpush1.bf16.msra.mxu0 %v11859
    %11879 = vmatprep.subr.bf16.mxu0 0
    %11880 = vmatpush1.bf16.msra.mxu0 %v11860
    %11881 = vmatprep.subr.bf16.mxu0 0
    %11882 = vmatpush1.bf16.msra.mxu0 %v11861
    %11883 = vmatprep.subr.bf16.mxu0 0
    %11884 = vmatpush1.bf16.msra.mxu0 %v11862
    %11885 = vmatprep.subr.bf16.mxu0 0
    %11886 = vmatpush1.bf16.msra.mxu0 %v11863
    %11887 = vmatprep.subr.bf16.mxu0 0
    %11888 = vmatpush1.bf16.msra.mxu0 %v11864
    %11889 = vmatprep.subr.bf16.mxu0 0
    %11890 = vmatpush1.bf16.msra.mxu0 0
    %11891 = vmatprep.subr.bf16.mxu0 0
    %11892 = vmatpush1.bf16.msra.mxu0 0
    %11893 = vmatprep.subr.bf16.mxu0 0
    %11894 = vmatpush1.bf16.msra.mxu0 0
    %11895 = vmatprep.subr.bf16.mxu0 0
    %11896 = vmatpush1.bf16.msra.mxu0 0
    %11897 = vmatprep.subr.bf16.mxu0 0
    %11898 = vmatpush1.bf16.msra.mxu0 0
    %11899 = vmatprep.subr.bf16.mxu0 0
    %11900 = vmatpush1.bf16.msra.mxu0 0
    %11901 = vmatprep.subr.bf16.mxu0 0
    %11902 = vmatpush1.bf16.msra.mxu0 0
    %11903 = vmatprep.subr.bf16.mxu0 0
    %11904 = vmatpush1.bf16.msra.mxu0 0
    %11905 = vmatprep.mubr.bf16.mxu0 0
    %11906 = vmatmul.mubr.bf16.gmra.mrb[0].mxu0 %v11424
    %v11907 = vpop.f32.mrb[0].mxu0
    %v11908 = vadd.f32 %v11571, %v11907
    %v11909 = vpop.f32.mrb[0].mxu0
    %v11910 = vpop.f32.mrb[0].mxu0
    %v11911 = vadd.f32 %v11574, %v11910
    %v11912 = vpop.f32.mrb[0].mxu0
    %11913 = vmatprep.mubr.bf16.mxu0 0
    %11914 = vmatmul.mubr.bf16.gmra.mrb[0].mxu0 %v11425
    %v11915 = vpop.f32.mrb[0].mxu0
    %v11916 = vadd.f32 %v11579, %v11915
    %v11917 = vpop.f32.mrb[0].mxu0
    %v11918 = vpop.f32.mrb[0].mxu0
    %v11919 = vadd.f32 %v11582, %v11918
    %v11920 = vpop.f32.mrb[0].mxu0
    %11921 = vmatprep.mubr.bf16.mxu0 0
    %11922 = vmatmul.mubr.bf16.gmra.mrb[0].mxu0 %v11426
    %v11923 = vpop.f32.mrb[0].mxu0
    %v11924 = vadd.f32 %v11587, %v11923
    %v11925 = vpop.f32.mrb[0].mxu0
    %v11926 = vpop.f32.mrb[0].mxu0
    %v11927 = vadd.f32 %v11590, %v11926
    %v11928 = vpop.f32.mrb[0].mxu0
    %11929 = vmatprep.mubr.bf16.mxu0 0
    %11930 = vmatmul.mubr.bf16.gmra.mrb[0].mxu0 %v11427
    %v11931 = vpop.f32.mrb[0].mxu0
    %v11932 = vadd.f32 %v11595, %v11931
    %v11933 = vpop.f32.mrb[0].mxu0
    %v11934 = vpop.f32.mrb[0].mxu0
    %v11935 = vadd.f32 %v11598, %v11934
    %v11936 = vpop.f32.mrb[0].mxu0
    %11937 = vmatprep.mubr.bf16.mxu0 0
    %11938 = vmatmul.mubr.bf16.gmra.mrb[0].mxu0 %v11428
    %v11939 = vpop.f32.mrb[0].mxu0
    %v11940 = vadd.f32 %v11603, %v11939
    %v11941 = vpop.f32.mrb[0].mxu0
    %v11942 = vpop.f32.mrb[0].mxu0
    %v11943 = vadd.f32 %v11606, %v11942
    %v11944 = vpop.f32.mrb[0].mxu0
    %11945 = vmatprep.mubr.bf16.mxu0 0
    %11946 = vmatmul.mubr.bf16.gmra.mrb[0].mxu0 %v11429
    %v11947 = vpop.f32.mrb[0].mxu0
    %v11948 = vadd.f32 %v11611, %v11947
    %v11949 = vpop.f32.mrb[0].mxu0
    %v11950 = vpop.f32.mrb[0].mxu0
    %v11951 = vadd.f32 %v11614, %v11950
    %v11952 = vpop.f32.mrb[0].mxu0
    %11953 = vmatprep.mubr.bf16.mxu0 0
    %11954 = vmatmul.mubr.bf16.gmra.mrb[0].mxu0 %v11430
    %v11955 = vpop.f32.mrb[0].mxu0
    %v11956 = vadd.f32 %v11619, %v11955
    %v11957 = vpop.f32.mrb[0].mxu0
    %v11958 = vpop.f32.mrb[0].mxu0
    %v11959 = vadd.f32 %v11622, %v11958
    %v11960 = vpop.f32.mrb[0].mxu0
    %11961 = vmatprep.mubr.bf16.mxu0 0
    %11962 = vmatmul.mubr.bf16.gmra.mrb[0].mxu0 %v11431
    %v11963 = vpop.f32.mrb[0].mxu0
    %v11964 = vadd.f32 %v11627, %v11963
    %v11965 = vpop.f32.mrb[0].mxu0
    %v11966 = vpop.f32.mrb[0].mxu0
    %v11967 = vadd.f32 %v11630, %v11966
    %v11968 = vpop.f32.mrb[0].mxu0
    %11969 = vmatprep.mubr.bf16.mxu0 0
    %11970 = vmatmul.mubr.bf16.gmra.mrb[0].mxu0 %v11432
    %v11971 = vpop.f32.mrb[0].mxu0
    %v11972 = vadd.f32 %v11635, %v11971
    %v11973 = vpop.f32.mrb[0].mxu0
    %v11974 = vpop.f32.mrb[0].mxu0
    %v11975 = vadd.f32 %v11638, %v11974
    %v11976 = vpop.f32.mrb[0].mxu0
    %11977 = vmatprep.mubr.bf16.mxu0 0
    %11978 = vmatmul.mubr.bf16.gmra.mrb[0].mxu0 %v11433
    %v11979 = vpop.f32.mrb[0].mxu0
    %v11980 = vadd.f32 %v11643, %v11979
    %v11981 = vpop.f32.mrb[0].mxu0
    %v11982 = vpop.f32.mrb[0].mxu0
    %v11983 = vadd.f32 %v11646, %v11982
    %v11984 = vpop.f32.mrb[0].mxu0
    %11985 = vmatprep.mubr.bf16.mxu0 0
    %11986 = vmatmul.mubr.bf16.gmra.mrb[0].mxu0 %v11434
    %v11987 = vpop.f32.mrb[0].mxu0
    %v11988 = vadd.f32 %v11651, %v11987
    %v11989 = vpop.f32.mrb[0].mxu0
    %v11990 = vpop.f32.mrb[0].mxu0
    %v11991 = vadd.f32 %v11654, %v11990
    %v11992 = vpop.f32.mrb[0].mxu0
    %11993 = vmatprep.mubr.bf16.mxu0 0
    %11994 = vmatmul.mubr.bf16.gmra.mrb[0].mxu0 %v11435
    %v11995 = vpop.f32.mrb[0].mxu0
    %v11996 = vadd.f32 %v11659, %v11995
    %v11997 = vpop.f32.mrb[0].mxu0
    %v11998 = vpop.f32.mrb[0].mxu0
    %v11999 = vadd.f32 %v11662, %v11998
    %v12000 = vpop.f32.mrb[0].mxu0
    %12001 = vmatprep.mubr.bf16.mxu0 0
    %12002 = vmatmul.mubr.bf16.gmra.mrb[0].mxu0 %v11436
    %v12003 = vpop.f32.mrb[0].mxu0
    %v12004 = vadd.f32 %v11667, %v12003
    %v12005 = vpop.f32.mrb[0].mxu0
    %v12006 = vpop.f32.mrb[0].mxu0
    %v12007 = vadd.f32 %v11670, %v12006
    %v12008 = vpop.f32.mrb[0].mxu0
    %12009 = vmatprep.mubr.bf16.mxu0 0
    %12010 = vmatmul.mubr.bf16.gmra.mrb[0].mxu0 %v11437
    %v12011 = vpop.f32.mrb[0].mxu0
    %v12012 = vadd.f32 %v11675, %v12011
    %v12013 = vpop.f32.mrb[0].mxu0
    %v12014 = vpop.f32.mrb[0].mxu0
    %v12015 = vadd.f32 %v11678, %v12014
    %v12016 = vpop.f32.mrb[0].mxu0
    %12017 = vmatprep.mubr.bf16.mxu0 0
    %12018 = vmatmul.mubr.bf16.gmra.mrb[0].mxu0 %v11438
    %v12019 = vpop.f32.mrb[0].mxu0
    %v12020 = vadd.f32 %v11683, %v12019
    %v12021 = vpop.f32.mrb[0].mxu0
    %v12022 = vpop.f32.mrb[0].mxu0
    %v12023 = vadd.f32 %v11686, %v12022
    %v12024 = vpop.f32.mrb[0].mxu0
    %12025 = vmatprep.mubr.bf16.mxu0 0
    %12026 = vmatmul.mubr.bf16.gmra.mrb[0].mxu0 %v11439
    %v12027 = vpop.f32.mrb[0].mxu0
    %v12028 = vadd.f32 %v11691, %v12027
    %v12029 = vpop.f32.mrb[0].mxu0
    %v12030 = vpop.f32.mrb[0].mxu0
    %v12031 = vadd.f32 %v11694, %v12030
    %v12032 = vpop.f32.mrb[0].mxu0
    %12033 = vmatprep.mubr.bf16.mxu0 0
    %12034 = vmatmul.mubr.bf16.gmra.mrb[0].mxu0 %v11440
    %v12035 = vpop.f32.mrb[0].mxu0
    %v12036 = vadd.f32 %v11699, %v12035
    %v12037 = vpop.f32.mrb[0].mxu0
    %v12038 = vpop.f32.mrb[0].mxu0
    %v12039 = vadd.f32 %v11702, %v12038
    %v12040 = vpop.f32.mrb[0].mxu0
    %12041 = vmatprep.mubr.bf16.mxu0 0
    %12042 = vmatmul.mubr.bf16.gmra.mrb[0].mxu0 %v11441
    %v12043 = vpop.f32.mrb[0].mxu0
    %v12044 = vadd.f32 %v11707, %v12043
    %v12045 = vpop.f32.mrb[0].mxu0
    %v12046 = vpop.f32.mrb[0].mxu0
    %v12047 = vadd.f32 %v11710, %v12046
    %v12048 = vpop.f32.mrb[0].mxu0
    %12049 = vmatprep.mubr.bf16.mxu0 0
    %12050 = vmatmul.mubr.bf16.gmra.mrb[0].mxu0 %v11442
    %v12051 = vpop.f32.mrb[0].mxu0
    %v12052 = vadd.f32 %v11715, %v12051
    %v12053 = vpop.f32.mrb[0].mxu0
    %v12054 = vpop.f32.mrb[0].mxu0
    %v12055 = vadd.f32 %v11718, %v12054
    %v12056 = vpop.f32.mrb[0].mxu0
    %12057 = vmatprep.mubr.bf16.mxu0 0
    %12058 = vmatmul.mubr.bf16.gmra.mrb[0].mxu0 %v11443
    %v12059 = vpop.f32.mrb[0].mxu0
    %v12060 = vadd.f32 %v11723, %v12059
    %v12061 = vpop.f32.mrb[0].mxu0
    %v12062 = vpop.f32.mrb[0].mxu0
    %v12063 = vadd.f32 %v11726, %v12062
    %v12064 = vpop.f32.mrb[0].mxu0
    %12065 = vmatprep.mubr.bf16.mxu0 0
    %12066 = vmatmul.mubr.bf16.gmra.mrb[0].mxu0 %v11444
    %v12067 = vpop.f32.mrb[0].mxu0
    %v12068 = vadd.f32 %v11731, %v12067
    %v12069 = vpop.f32.mrb[0].mxu0
    %v12070 = vpop.f32.mrb[0].mxu0
    %v12071 = vadd.f32 %v11734, %v12070
    %v12072 = vpop.f32.mrb[0].mxu0
    %12073 = vmatprep.mubr.bf16.mxu0 0
    %12074 = vmatmul.mubr.bf16.gmra.mrb[0].mxu0 %v11445
    %v12075 = vpop.f32.mrb[0].mxu0
    %v12076 = vadd.f32 %v11739, %v12075
    %v12077 = vpop.f32.mrb[0].mxu0
    %v12078 = vpop.f32.mrb[0].mxu0
    %v12079 = vadd.f32 %v11742, %v12078
    %v12080 = vpop.f32.mrb[0].mxu0
    %12081 = vmatprep.mubr.bf16.mxu0 0
    %12082 = vmatmul.mubr.bf16.gmra.mrb[0].mxu0 %v11446
    %v12083 = vpop.f32.mrb[0].mxu0
    %v12084 = vadd.f32 %v11747, %v12083
    %v12085 = vpop.f32.mrb[0].mxu0
    %v12086 = vpop.f32.mrb[0].mxu0
    %v12087 = vadd.f32 %v11750, %v12086
    %v12088 = vpop.f32.mrb[0].mxu0
    %12089 = vmatprep.mubr.bf16.mxu0 0
    %12090 = vmatmul.mubr.bf16.gmra.mrb[0].mxu0 %v11447
    %v12091 = vpop.f32.mrb[0].mxu0
    %v12092 = vadd.f32 %v11755, %v12091
    %v12093 = vpop.f32.mrb[0].mxu0
    %v12094 = vpop.f32.mrb[0].mxu0
    %v12095 = vadd.f32 %v11758, %v12094
    %v12096 = vpop.f32.mrb[0].mxu0
    %12097 = vmatprep.mubr.bf16.mxu0 0
    %12098 = vmatmul.mubr.bf16.gmra.mrb[0].mxu0 %v11448
    %v12099 = vpop.f32.mrb[0].mxu0
    %v12100 = vadd.f32 %v11763, %v12099
    %v12101 = vpop.f32.mrb[0].mxu0
    %v12102 = vpop.f32.mrb[0].mxu0
    %v12103 = vadd.f32 %v11766, %v12102
    %v12104 = vpop.f32.mrb[0].mxu0
    %12105 = vmatprep.mubr.bf16.mxu0 0
    %12106 = vmatmul.mubr.bf16.gmra.mrb[0].mxu0 %v11449
    %v12107 = vpop.f32.mrb[0].mxu0
    %v12108 = vadd.f32 %v11771, %v12107
    %v12109 = vpop.f32.mrb[0].mxu0
    %v12110 = vpop.f32.mrb[0].mxu0
    %v12111 = vadd.f32 %v11774, %v12110
    %v12112 = vpop.f32.mrb[0].mxu0
    %12113 = vmatprep.mubr.bf16.mxu0 0
    %12114 = vmatmul.mubr.bf16.gmra.mrb[0].mxu0 %v11450
    %v12115 = vpop.f32.mrb[0].mxu0
    %v12116 = vadd.f32 %v11779, %v12115
    %v12117 = vpop.f32.mrb[0].mxu0
    %v12118 = vpop.f32.mrb[0].mxu0
    %v12119 = vadd.f32 %v11782, %v12118
    %v12120 = vpop.f32.mrb[0].mxu0
    %12121 = vmatprep.mubr.bf16.mxu0 0
    %12122 = vmatmul.mubr.bf16.gmra.mrb[0].mxu0 %v11451
    %v12123 = vpop.f32.mrb[0].mxu0
    %v12124 = vadd.f32 %v11787, %v12123
    %v12125 = vpop.f32.mrb[0].mxu0
    %v12126 = vpop.f32.mrb[0].mxu0
    %v12127 = vadd.f32 %v11790, %v12126
    %v12128 = vpop.f32.mrb[0].mxu0
    %12129 = vmatprep.mubr.bf16.mxu0 0
    %12130 = vmatmul.mubr.bf16.gmra.mrb[0].mxu0 %v11452
    %v12131 = vpop.f32.mrb[0].mxu0
    %v12132 = vadd.f32 %v11795, %v12131
    %v12133 = vpop.f32.mrb[0].mxu0
    %v12134 = vpop.f32.mrb[0].mxu0
    %v12135 = vadd.f32 %v11798, %v12134
    %v12136 = vpop.f32.mrb[0].mxu0
    %12137 = vmatprep.mubr.bf16.mxu0 0
    %12138 = vmatmul.mubr.bf16.gmra.mrb[0].mxu0 %v11453
    %v12139 = vpop.f32.mrb[0].mxu0
    %v12140 = vadd.f32 %v11803, %v12139
    %v12141 = vpop.f32.mrb[0].mxu0
    %v12142 = vpop.f32.mrb[0].mxu0
    %v12143 = vadd.f32 %v11806, %v12142
    %v12144 = vpop.f32.mrb[0].mxu0
    %12145 = vmatprep.mubr.bf16.mxu0 0
    %12146 = vmatmul.mubr.bf16.gmra.mrb[0].mxu0 %v11454
    %v12147 = vpop.f32.mrb[0].mxu0
    %v12148 = vadd.f32 %v11811, %v12147
    %v12149 = vpop.f32.mrb[0].mxu0
    %v12150 = vpop.f32.mrb[0].mxu0
    %v12151 = vadd.f32 %v11814, %v12150
    %v12152 = vpop.f32.mrb[0].mxu0
    %12153 = vmatprep.mubr.bf16.mxu0 0
    %12154 = vmatmul.mubr.bf16.gmra.mrb[0].mxu0 %v11455
    %v12155 = vpop.f32.mrb[0].mxu0
    %v12156 = vadd.f32 %v11819, %v12155
    %v12157 = vpop.f32.mrb[0].mxu0
    %v12158 = vpop.f32.mrb[0].mxu0
    %v12159 = vadd.f32 %v11822, %v12158
    %v12160 = vpop.f32.mrb[0].mxu0
    %12161 = vdwg.mxu0
    %v12162 = vld [vmem:[%s9] sm:$0x1]
    %v12164 = vlaneseq
    %v12165 = vshrl.u32 %v12164, 7
    %v12166 = vsub.s32 0, %v12165
    %v12167 = vrot.slane %v12162, %v12166
    %v12169 = vadd.f32 %v11908, %v12167
    %v12170 = vadd.f32 %v11911, %v12167
    %v12171 = vadd.f32 %v11916, %v12167
    %v12172 = vadd.f32 %v11919, %v12167
    %v12173 = vadd.f32 %v11924, %v12167
    %v12174 = vadd.f32 %v11927, %v12167
    %v12175 = vadd.f32 %v11932, %v12167
    %v12176 = vadd.f32 %v11935, %v12167
    %v12177 = vadd.f32 %v11940, %v12167
    %v12178 = vadd.f32 %v11943, %v12167
    %v12179 = vadd.f32 %v11948, %v12167
    %v12180 = vadd.f32 %v11951, %v12167
    %v12181 = vadd.f32 %v11956, %v12167
    %v12182 = vadd.f32 %v11959, %v12167
    %v12183 = vadd.f32 %v11964, %v12167
    %v12184 = vadd.f32 %v11967, %v12167
    %v12185 = vadd.f32 %v11972, %v12167
    %v12186 = vadd.f32 %v11975, %v12167
    %v12187 = vadd.f32 %v11980, %v12167
    %v12188 = vadd.f32 %v11983, %v12167
    %v12189 = vadd.f32 %v11988, %v12167
    %v12190 = vadd.f32 %v11991, %v12167
    %v12191 = vadd.f32 %v11996, %v12167
    %v12192 = vadd.f32 %v11999, %v12167
    %v12193 = vadd.f32 %v12004, %v12167
    %v12194 = vadd.f32 %v12007, %v12167
    %v12195 = vadd.f32 %v12012, %v12167
    %v12196 = vadd.f32 %v12015, %v12167
    %v12197 = vadd.f32 %v12020, %v12167
    %v12198 = vadd.f32 %v12023, %v12167
    %v12199 = vadd.f32 %v12028, %v12167
    %v12200 = vadd.f32 %v12031, %v12167
    %v12201 = vadd.f32 %v12036, %v12167
    %v12202 = vadd.f32 %v12039, %v12167
    %v12203 = vadd.f32 %v12044, %v12167
    %v12204 = vadd.f32 %v12047, %v12167
    %v12205 = vadd.f32 %v12052, %v12167
    %v12206 = vadd.f32 %v12055, %v12167
    %v12207 = vadd.f32 %v12060, %v12167
    %v12208 = vadd.f32 %v12063, %v12167
    %v12209 = vadd.f32 %v12068, %v12167
    %v12210 = vadd.f32 %v12071, %v12167
    %v12211 = vadd.f32 %v12076, %v12167
    %v12212 = vadd.f32 %v12079, %v12167
    %v12213 = vadd.f32 %v12084, %v12167
    %v12214 = vadd.f32 %v12087, %v12167
    %v12215 = vadd.f32 %v12092, %v12167
    %v12216 = vadd.f32 %v12095, %v12167
    %v12217 = vadd.f32 %v12100, %v12167
    %v12218 = vadd.f32 %v12103, %v12167
    %v12219 = vadd.f32 %v12108, %v12167
    %v12220 = vadd.f32 %v12111, %v12167
    %v12221 = vadd.f32 %v12116, %v12167
    %v12222 = vadd.f32 %v12119, %v12167
    %v12223 = vadd.f32 %v12124, %v12167
    %v12224 = vadd.f32 %v12127, %v12167
    %v12225 = vadd.f32 %v12132, %v12167
    %v12226 = vadd.f32 %v12135, %v12167
    %v12227 = vadd.f32 %v12140, %v12167
    %v12228 = vadd.f32 %v12143, %v12167
    %v12229 = vadd.f32 %v12148, %v12167
    %v12230 = vadd.f32 %v12151, %v12167
    %v12231 = vadd.f32 %v12156, %v12167
    %v12232 = vadd.f32 %v12159, %v12167
    %v12233 = vadd.f32 %v43, %v12169
    %v12234 = vadd.f32 %v44, %v12170
    %v12235 = vadd.f32 %v45, %v12171
    %v12236 = vadd.f32 %v46, %v12172
    %v12237 = vadd.f32 %v47, %v12173
    %v12238 = vadd.f32 %v48, %v12174
    %v12239 = vadd.f32 %v49, %v12175
    %v12240 = vadd.f32 %v50, %v12176
    %v12241 = vadd.f32 %v51, %v12177
    %v12242 = vadd.f32 %v52, %v12178
    %v12243 = vadd.f32 %v53, %v12179
    %v12244 = vadd.f32 %v54, %v12180
    %v12245 = vadd.f32 %v55, %v12181
    %v12246 = vadd.f32 %v56, %v12182
    %v12247 = vadd.f32 %v57, %v12183
    %v12248 = vadd.f32 %v58, %v12184
    %v12249 = vadd.f32 %v59, %v12185
    %v12250 = vadd.f32 %v60, %v12186
    %v12251 = vadd.f32 %v61, %v12187
    %v12252 = vadd.f32 %v62, %v12188
    %v12253 = vadd.f32 %v63, %v12189
    %v12254 = vadd.f32 %v64, %v12190
    %v12255 = vadd.f32 %v65, %v12191
    %v12256 = vadd.f32 %v66, %v12192
    %v12257 = vadd.f32 %v67, %v12193
    %v12258 = vadd.f32 %v68, %v12194
    %v12259 = vadd.f32 %v69, %v12195
    %v12260 = vadd.f32 %v70, %v12196
    %v12261 = vadd.f32 %v71, %v12197
    %v12262 = vadd.f32 %v72, %v12198
    %v12263 = vadd.f32 %v73, %v12199
    %v12264 = vadd.f32 %v74, %v12200
    %v12265 = vadd.f32 %v75, %v12201
    %v12266 = vadd.f32 %v76, %v12202
    %v12267 = vadd.f32 %v77, %v12203
    %v12268 = vadd.f32 %v78, %v12204
    %v12269 = vadd.f32 %v79, %v12205
    %v12270 = vadd.f32 %v80, %v12206
    %v12271 = vadd.f32 %v81, %v12207
    %v12272 = vadd.f32 %v82, %v12208
    %v12273 = vadd.f32 %v83, %v12209
    %v12274 = vadd.f32 %v84, %v12210
    %v12275 = vadd.f32 %v85, %v12211
    %v12276 = vadd.f32 %v86, %v12212
    %v12277 = vadd.f32 %v87, %v12213
    %v12278 = vadd.f32 %v88, %v12214
    %v12279 = vadd.f32 %v89, %v12215
    %v12280 = vadd.f32 %v90, %v12216
    %v12281 = vadd.f32 %v91, %v12217
    %v12282 = vadd.f32 %v92, %v12218
    %v12283 = vadd.f32 %v93, %v12219
    %v12284 = vadd.f32 %v94, %v12220
    %v12285 = vadd.f32 %v95, %v12221
    %v12286 = vadd.f32 %v96, %v12222
    %v12287 = vadd.f32 %v97, %v12223
    %v12288 = vadd.f32 %v98, %v12224
    %v12289 = vadd.f32 %v99, %v12225
    %v12290 = vadd.f32 %v100, %v12226
    %v12291 = vadd.f32 %v101, %v12227
    %v12292 = vadd.f32 %v102, %v12228
    %v12293 = vadd.f32 %v103, %v12229
    %v12294 = vadd.f32 %v104, %v12230
    %v12295 = vadd.f32 %v105, %v12231
    %v12296 = vadd.f32 %v106, %v12232
    %v12297 = vmax.f32 %v12233, 0.0
    %v12298 = vmax.f32 %v12234, 0.0
    %v12299 = vmax.f32 %v12235, 0.0
    %v12300 = vmax.f32 %v12236, 0.0
    %v12301 = vmax.f32 %v12237, 0.0
    %v12302 = vmax.f32 %v12238, 0.0
    %v12303 = vmax.f32 %v12239, 0.0
    %v12304 = vmax.f32 %v12240, 0.0
    %v12305 = vmax.f32 %v12241, 0.0
    %v12306 = vmax.f32 %v12242, 0.0
    %v12307 = vmax.f32 %v12243, 0.0
    %v12308 = vmax.f32 %v12244, 0.0
    %v12309 = vmax.f32 %v12245, 0.0
    %v12310 = vmax.f32 %v12246, 0.0
    %v12311 = vmax.f32 %v12247, 0.0
    %v12312 = vmax.f32 %v12248, 0.0
    %v12313 = vmax.f32 %v12249, 0.0
    %v12314 = vmax.f32 %v12250, 0.0
    %v12315 = vmax.f32 %v12251, 0.0
    %v12316 = vmax.f32 %v12252, 0.0
    %v12317 = vmax.f32 %v12253, 0.0
    %v12318 = vmax.f32 %v12254, 0.0
    %v12319 = vmax.f32 %v12255, 0.0
    %v12320 = vmax.f32 %v12256, 0.0
    %v12321 = vmax.f32 %v12257, 0.0
    %v12322 = vmax.f32 %v12258, 0.0
    %v12323 = vmax.f32 %v12259, 0.0
    %v12324 = vmax.f32 %v12260, 0.0
    %v12325 = vmax.f32 %v12261, 0.0
    %v12326 = vmax.f32 %v12262, 0.0
    %v12327 = vmax.f32 %v12263, 0.0
    %v12328 = vmax.f32 %v12264, 0.0
    %v12329 = vmax.f32 %v12265, 0.0
    %v12330 = vmax.f32 %v12266, 0.0
    %v12331 = vmax.f32 %v12267, 0.0
    %v12332 = vmax.f32 %v12268, 0.0
    %v12333 = vmax.f32 %v12269, 0.0
    %v12334 = vmax.f32 %v12270, 0.0
    %v12335 = vmax.f32 %v12271, 0.0
    %v12336 = vmax.f32 %v12272, 0.0
    %v12337 = vmax.f32 %v12273, 0.0
    %v12338 = vmax.f32 %v12274, 0.0
    %v12339 = vmax.f32 %v12275, 0.0
    %v12340 = vmax.f32 %v12276, 0.0
    %v12341 = vmax.f32 %v12277, 0.0
    %v12342 = vmax.f32 %v12278, 0.0
    %v12343 = vmax.f32 %v12279, 0.0
    %v12344 = vmax.f32 %v12280, 0.0
    %v12345 = vmax.f32 %v12281, 0.0
    %v12346 = vmax.f32 %v12282, 0.0
    %v12347 = vmax.f32 %v12283, 0.0
    %v12348 = vmax.f32 %v12284, 0.0
    %v12349 = vmax.f32 %v12285, 0.0
    %v12350 = vmax.f32 %v12286, 0.0
    %v12351 = vmax.f32 %v12287, 0.0
    %v12352 = vmax.f32 %v12288, 0.0
    %v12353 = vmax.f32 %v12289, 0.0
    %v12354 = vmax.f32 %v12290, 0.0
    %v12355 = vmax.f32 %v12291, 0.0
    %v12356 = vmax.f32 %v12292, 0.0
    %v12357 = vmax.f32 %v12293, 0.0
    %v12358 = vmax.f32 %v12294, 0.0
    %v12359 = vmax.f32 %v12295, 0.0
    %v12360 = vmax.f32 %v12296, 0.0
    %12361 = vst [vmem:[#allocation2] sm:$0xff] %v12297
    %12362 = vst [vmem:[#allocation2 + $0x8] sm:$0xff] %v12298
    %12363 = vst [vmem:[#allocation2 + $0x10] sm:$0xff] %v12299
    %12364 = vst [vmem:[#allocation2 + $0x18] sm:$0xff] %v12300
    %12365 = vst [vmem:[#allocation2 + $0x20] sm:$0xff] %v12301
    %12366 = vst [vmem:[#allocation2 + $0x28] sm:$0xff] %v12302
    %12367 = vst [vmem:[#allocation2 + $0x30] sm:$0xff] %v12303
    %12368 = vst [vmem:[#allocation2 + $0x38] sm:$0xff] %v12304
    %12369 = vst [vmem:[#allocation2 + $0x40] sm:$0xff] %v12305
    %12370 = vst [vmem:[#allocation2 + $0x48] sm:$0xff] %v12306
    %12371 = vst [vmem:[#allocation2 + $0x50] sm:$0xff] %v12307
    %12372 = vst [vmem:[#allocation2 + $0x58] sm:$0xff] %v12308
    %12373 = vst [vmem:[#allocation2 + $0x60] sm:$0xff] %v12309
    %12374 = vst [vmem:[#allocation2 + $0x68] sm:$0xff] %v12310
    %12375 = vst [vmem:[#allocation2 + $0x70] sm:$0xff] %v12311
    %12376 = vst [vmem:[#allocation2 + $0x78] sm:$0xff] %v12312
    %12377 = vst [vmem:[#allocation2 + $0x80] sm:$0xff] %v12313
    %12378 = vst [vmem:[#allocation2 + $0x88] sm:$0xff] %v12314
    %12379 = vst [vmem:[#allocation2 + $0x90] sm:$0xff] %v12315
    %12380 = vst [vmem:[#allocation2 + $0x98] sm:$0xff] %v12316
    %12381 = vst [vmem:[#allocation2 + $0xa0] sm:$0xff] %v12317
    %12382 = vst [vmem:[#allocation2 + $0xa8] sm:$0xff] %v12318
    %12383 = vst [vmem:[#allocation2 + $0xb0] sm:$0xff] %v12319
    %12384 = vst [vmem:[#allocation2 + $0xb8] sm:$0xff] %v12320
    %12385 = vst [vmem:[#allocation2 + $0xc0] sm:$0xff] %v12321
    %12386 = vst [vmem:[#allocation2 + $0xc8] sm:$0xff] %v12322
    %12387 = vst [vmem:[#allocation2 + $0xd0] sm:$0xff] %v12323
    %12388 = vst [vmem:[#allocation2 + $0xd8] sm:$0xff] %v12324
    %12389 = vst [vmem:[#allocation2 + $0xe0] sm:$0xff] %v12325
    %12390 = vst [vmem:[#allocation2 + $0xe8] sm:$0xff] %v12326
    %12391 = vst [vmem:[#allocation2 + $0xf0] sm:$0xff] %v12327
    %12392 = vst [vmem:[#allocation2 + $0xf8] sm:$0xff] %v12328
    %12393 = vst [vmem:[#allocation2 + $0x100] sm:$0xff] %v12329
    %12394 = vst [vmem:[#allocation2 + $0x108] sm:$0xff] %v12330
    %12395 = vst [vmem:[#allocation2 + $0x110] sm:$0xff] %v12331
    %12396 = vst [vmem:[#allocation2 + $0x118] sm:$0xff] %v12332
    %12397 = vst [vmem:[#allocation2 + $0x120] sm:$0xff] %v12333
    %12398 = vst [vmem:[#allocation2 + $0x128] sm:$0xff] %v12334
    %12399 = vst [vmem:[#allocation2 + $0x130] sm:$0xff] %v12335
    %12400 = vst [vmem:[#allocation2 + $0x138] sm:$0xff] %v12336
    %12401 = vst [vmem:[#allocation2 + $0x140] sm:$0xff] %v12337
    %12402 = vst [vmem:[#allocation2 + $0x148] sm:$0xff] %v12338
    %12403 = vst [vmem:[#allocation2 + $0x150] sm:$0xff] %v12339
    %12404 = vst [vmem:[#allocation2 + $0x158] sm:$0xff] %v12340
    %12405 = vst [vmem:[#allocation2 + $0x160] sm:$0xff] %v12341
    %12406 = vst [vmem:[#allocation2 + $0x168] sm:$0xff] %v12342
    %12407 = vst [vmem:[#allocation2 + $0x170] sm:$0xff] %v12343
    %12408 = vst [vmem:[#allocation2 + $0x178] sm:$0xff] %v12344
    %12409 = vst [vmem:[#allocation2 + $0x180] sm:$0xff] %v12345
    %12410 = vst [vmem:[#allocation2 + $0x188] sm:$0xff] %v12346
    %12411 = vst [vmem:[#allocation2 + $0x190] sm:$0xff] %v12347
    %12412 = vst [vmem:[#allocation2 + $0x198] sm:$0xff] %v12348
    %12413 = vst [vmem:[#allocation2 + $0x1a0] sm:$0xff] %v12349
    %12414 = vst [vmem:[#allocation2 + $0x1a8] sm:$0xff] %v12350
    %12415 = vst [vmem:[#allocation2 + $0x1b0] sm:$0xff] %v12351
    %12416 = vst [vmem:[#allocation2 + $0x1b8] sm:$0xff] %v12352
    %12417 = vst [vmem:[#allocation2 + $0x1c0] sm:$0xff] %v12353
    %12418 = vst [vmem:[#allocation2 + $0x1c8] sm:$0xff] %v12354
    %12419 = vst [vmem:[#allocation2 + $0x1d0] sm:$0xff] %v12355
    %12420 = vst [vmem:[#allocation2 + $0x1d8] sm:$0xff] %v12356
    %12421 = vst [vmem:[#allocation2 + $0x1e0] sm:$0xff] %v12357
    %12422 = vst [vmem:[#allocation2 + $0x1e8] sm:$0xff] %v12358
    %12423 = vst [vmem:[#allocation2 + $0x1f0] sm:$0xff] %v12359
    %12424 = vst [vmem:[#allocation2 + $0x1f8] sm:$0xff] %v12360
    // Predicated region
    $region50: #{tpu_custom_call.1} parent=1 // pred_check
      _
    $region51: #{tpu_custom_call.1} parent=1 // pred_check_branch
      %12426 = sbr.rel (0) target = $region53
    $region52: #{tpu_custom_call.1} parent=1 // pred_region
      %s12428 = ssub.s32 8192, 8192
      %12429 = vsyncadd [#allocation3], %s12428
      %s12430 = sshll.u32 [#allocation2], 4
      %s12431 = int_to_ptr.vmem [resolvable:$true] %s12430
      %12436 = dma.vmem_to_hbm [thread:$0]  %s12431, 8192, %s12, [#allocation3], 128, 128, 8
    $region53: #{tpu_custom_call.1} parent=1 // pred_fallthru
      _
    // Predicated region
    $region54: #{tpu_custom_call.1} parent=1 // pred_check
      _
    $region55: #{tpu_custom_call.1} parent=1 // pred_check_branch
      %12438 = sbr.rel (0) target = $region57
    $region56: #{tpu_custom_call.1} parent=1 // pred_region
      %12439 = dma.done [#allocation3], 8192
    $region57: #{tpu_custom_call.1} parent=1 // pred_fallthru
      _
    %12440 = vsyncpa [#allocation3], 1

</llo_original>
